<compile_context>
chip_gen: v6e
topology: v6e:2x2x1
jax: 0.10.0
libtpu: 0.0.40
codegen_flags: <defaults>
</compile_context>

<pallas_src>
import functools

import jax
import jax.numpy as jnp
from jax.experimental import pallas as pl
from jax.experimental.pallas import tpu as pltpu


def _mhsa_kernel(x_ref, wqkv_ref, bqkv_ref, wo_ref, bo_ref, *out_refs,
                 num_heads, key_dim, value_dim, block_q, with_attn):
    # Block shapes:
    #   x_ref    : (1, L, D_in)        f32  (full sequence; cast to bf16 in-kernel)
    #   wqkv_ref : (D_in, 2A + V)      bf16 (Q|K|V fused; Q cols pre-scaled by 1/temp)
    #   bqkv_ref : (1, 2A + V)         f32
    #   wo_ref   : (H*dv, D_out)       bf16
    #   bo_ref   : (1, D_out)          f32
    #   ctx_ref  : (1, TQ, D_out)      f32
    #   attn_ref : (1, TQ, H*L)        f32/bf16 (lane-dense; free reshape in wrapper)
    if with_attn:
        ctx_ref, attn_ref = out_refs
    else:
        (ctx_ref,) = out_refs

    L = x_ref.shape[1]
    A = num_heads * key_dim

    # Cast activations on the VPU (x is DMA'd as f32: no wrapper convert pass).
    x_kv = x_ref[0].astype(jnp.bfloat16)                        # (L, D_in)

    w_qkv = wqkv_ref[...]                                       # (D_in, 2A+V) bf16
    b_qkv = bqkv_ref[0]                                         # (2A+V,)      f32

    if block_q == L:
        # Single q block: one fused Q|K|V projection (f32 MXU accumulation).
        qkv = jnp.dot(x_kv, w_qkv, preferred_element_type=jnp.float32) + b_qkv
        q, kv = qkv[:, :A], qkv[:, A:]
    else:
        # Query-tiled: K/V over the whole sequence, Q over this block's rows.
        q0 = pl.multiple_of(pl.program_id(1) * block_q, block_q)
        x_q = x_ref[0, pl.ds(q0, block_q), :].astype(jnp.bfloat16)
        kv = jnp.dot(x_kv, w_qkv[:, A:], preferred_element_type=jnp.float32) + b_qkv[A:]
        q = jnp.dot(x_q, w_qkv[:, :A], preferred_element_type=jnp.float32) + b_qkv[:A]

    def split_heads(m, d, transpose_kd=False):                  # (N, H*d) -> (H, N, d)
        n = m.shape[0]
        t = jnp.transpose(m.reshape(n, num_heads, d), (1, 0, 2))
        if transpose_kd:
            t = jnp.swapaxes(t, 1, 2)                           # (H, d, N)
        return t.astype(jnp.bfloat16)                           # cast exactly once

    q_h = split_heads(q, key_dim)                               # (H, TQ, dk)  1/temp folded
    k_ht = split_heads(kv[:, :A], key_dim, transpose_kd=True)   # (H, dk, L)   pre-transposed
    v_h = split_heads(kv[:, A:], value_dim)                     # (H, L, dv)

    # Head-batched scores in MXU-native orientation; f32 softmax math (v5e-safe).
    s = jnp.einsum('hqd,hdk->hqk', q_h, k_ht,
                   preferred_element_type=jnp.float32)          # (H, TQ, L)
    s = s - jnp.max(s, axis=-1, keepdims=True)                  # keep: protects exp()
    p = jnp.exp(s)
    # Approx EUP reciprocal: rows sum to 1 only to ~bf16 accuracy (accepted).
    p = p * pl.reciprocal(jnp.sum(p, axis=-1, keepdims=True), approx=True)

    if with_attn:
        # Lane-dense (TQ, H*L) store: per-head, 128-aligned, unmasked vst;
        # no transpose of the probabilities anywhere (kernel or wrapper).
        for h in range(num_heads):
            attn_ref[0, :, h * L:(h + 1) * L] = p[h].astype(attn_ref.dtype)

    # Head-batched attention * values.
    ctx_h = jnp.einsum('hqk,hkd->hqd', p.astype(jnp.bfloat16), v_h,
                       preferred_element_type=jnp.float32)      # (H, TQ, dv)

    # (H, TQ, dv) -> (TQ, H*dv): single K = H*dv output projection on the MXU
    # (replaces H small-K matmuls + VPU head-sum and the f32 (H,TQ,D_out) temp).
    ctx_flat = jnp.transpose(ctx_h, (1, 0, 2)).reshape(block_q, num_heads * value_dim)
    out = jnp.dot(ctx_flat.astype(jnp.bfloat16), wo_ref[...],
                  preferred_element_type=jnp.float32) + bo_ref[0]
    ctx_ref[0] = out.astype(ctx_ref.dtype)


def prepare_mhsa_params(params, *, num_heads, temperature=None):
    """One-time (load-time) parameter transform: fuse Q|KV projections, fold
    1/temperature into the Q columns/bias, cast MXU weight operands to bf16."""
    wq, bq, wkv, bkv, wo, bo = (params[k] for k in ("wq", "bq", "wkv", "bkv", "wo", "bo"))
    A = wq.shape[1]
    key_dim = A // num_heads
    value_dim = (wkv.shape[1] - A) // num_heads
    temp = float(temperature) if temperature is not None else float(key_dim) ** 0.5
    inv_t = 1.0 / temp
    return {
        "w_qkv": jnp.concatenate([wq * inv_t, wkv], axis=1).astype(jnp.bfloat16),
        "b_qkv": jnp.concatenate([bq * inv_t, bkv], axis=1).astype(jnp.float32),
        "wo": wo.astype(jnp.bfloat16),          # (H*dv, D_out), kept 2D for one K=H*dv matmul
        "bo": bo.astype(jnp.float32),
        "num_heads": num_heads,
        "key_dim": key_dim,
        "value_dim": value_dim,
    }


def multi_head_self_attention(x, prepared, *, block_q=None, return_attention=True,
                              attn_dtype=jnp.float32, vmem_limit_bytes=None):
    """x: (B, L, D_in) float32.
    Returns (context (B, L, D_out), attention (B, L, H, L)) if return_attention,
    else just context (B, L, D_out)."""
    num_heads = prepared["num_heads"]
    key_dim = prepared["key_dim"]
    value_dim = prepared["value_dim"]
    w_qkv, b_qkv, wo, bo = (prepared[k] for k in ("w_qkv", "b_qkv", "wo", "bo"))

    B, L, D_in = x.shape
    A = num_heads * key_dim
    Vt = num_heads * value_dim
    QKV = w_qkv.shape[1]
    D_out = wo.shape[1]
    assert QKV == 2 * A + Vt

    # Query-block tiling bounds VMEM to O(block_q * L) for long sequences
    # (v7x: 64 MiB VMEM) and adds parallel grid steps when B is small.
    if block_q is None:
        block_q = L if L <= 512 else 512
    if L % block_q != 0:
        block_q = L
    assert block_q == L or block_q % 8 == 0
    num_q = L // block_q

    kernel = functools.partial(
        _mhsa_kernel, num_heads=num_heads, key_dim=key_dim, value_dim=value_dim,
        block_q=block_q, with_attn=return_attention)

    out_shape = [jax.ShapeDtypeStruct((B, L, D_out), jnp.float32)]
    out_specs = [pl.BlockSpec((1, block_q, D_out), lambda b, qi: (b, qi, 0))]
    if return_attention:
        out_shape.append(jax.ShapeDtypeStruct((B, L, num_heads * L), attn_dtype))
        out_specs.append(pl.BlockSpec((1, block_q, num_heads * L), lambda b, qi: (b, qi, 0)))

    flops = (2 * B * L * D_in * QKV                                   # fused projection
             + 2 * B * num_heads * L * L * (key_dim + value_dim)      # scores + P.V
             + 2 * B * L * Vt * D_out)                                # output projection
    bytes_accessed = (x.nbytes + w_qkv.nbytes + b_qkv.nbytes + wo.nbytes + bo.nbytes
                      + B * L * D_out * 4
                      + (B * L * num_heads * L * jnp.dtype(attn_dtype).itemsize
                         if return_attention else 0))

    outs = pl.pallas_call(
        kernel,
        out_shape=tuple(out_shape),
        grid=(B, num_q),
        in_specs=[
            # Full sequence per batch element (same block across qi -> no re-DMA).
            pl.BlockSpec((1, L, D_in), lambda b, qi: (b, 0, 0)),
            pl.BlockSpec((D_in, QKV), lambda b, qi: (0, 0)),
            pl.BlockSpec((1, QKV), lambda b, qi: (0, 0)),
            pl.BlockSpec((Vt, D_out), lambda b, qi: (0, 0)),
            pl.BlockSpec((1, D_out), lambda b, qi: (0, 0)),
        ],
        out_specs=tuple(out_specs),
        compiler_params=pltpu.CompilerParams(
            dimension_semantics=("parallel", "parallel"),
            vmem_limit_bytes=vmem_limit_bytes),
        cost_estimate=pl.CostEstimate(
            flops=flops,
            transcendentals=B * num_heads * L * L,
            bytes_accessed=bytes_accessed),
    )(x, w_qkv, b_qkv, wo, bo)

    if not return_attention:
        (ctx,) = outs
        return ctx
    ctx, attn_flat = outs
    # (B, L, H*L) -> (B, L, H, L): pure metadata reshape, no HBM transpose pass.
    return ctx, attn_flat.reshape(B, L, num_heads, L)


def _reference(x, params, *, num_heads, temperature=None):
    """Pure-JAX f32 reference mirroring the PyTorch forward (mask=None, eval mode)."""
    wq, bq, wkv, bkv, wo, bo = (params[k] for k in ("wq", "bq", "wkv", "bkv", "wo", "bo"))
    B, L, _ = x.shape
    A = wq.shape[1]
    key_dim = A // num_heads
    value_dim = (wkv.shape[1] - A) // num_heads
    temp = float(temperature) if temperature is not None else float(key_dim) ** 0.5

    kv = x @ wkv + bkv
    keys, values = kv[..., :A], kv[..., A:]
    queries = x @ wq + bq
    keys = keys.reshape(B, L, num_heads, key_dim).transpose(0, 2, 3, 1)        # (B,H,dk,L)
    values = values.reshape(B, L, num_heads, value_dim).transpose(0, 2, 1, 3)  # (B,H,L,dv)
    queries = queries.reshape(B, L, num_heads, key_dim).transpose(0, 2, 1, 3)  # (B,H,L,dk)
    sim = jnp.matmul(queries, keys) / temp
    attn = jax.nn.softmax(sim, axis=-1)                                        # (B,H,L,L)
    ctx = jnp.matmul(attn, values).transpose(0, 2, 1, 3).reshape(B, L, -1)
    context = ctx @ wo + bo
    return context, attn.transpose(0, 2, 1, 3)


if __name__ == "__main__":
    # Small config, lane-dense on TPU (all feature dims are multiples of 128).
    num_heads = 4
    input_dim = 128
    total_attention_dim = 128
    total_value_dim = 128
    output_dim = input_dim
    B, L = 2, 128

    key = jax.random.PRNGKey(0)
    kx, kwq, kbq, kwkv, kbkv, kwo, kbo = jax.random.split(key, 7)

    x = jax.random.normal(kx, (B, L, input_dim), dtype=jnp.float32)

    params = {
        "wq": 0.1 * jax.random.normal(kwq, (input_dim, total_attention_dim), jnp.float32),
        "bq": 0.1 * jax.random.normal(kbq, (1, total_attention_dim), jnp.float32),
        "wkv": 0.1 * jax.random.normal(
            kwkv, (input_dim, total_attention_dim + total_value_dim), jnp.float32),
        "bkv": 0.1 * jax.random.normal(
            kbkv, (1, total_attention_dim + total_value_dim), jnp.float32),
        "wo": 0.1 * jax.random.normal(kwo, (total_value_dim, output_dim), jnp.float32),
        "bo": 0.1 * jax.random.normal(kbo, (1, output_dim), jnp.float32),
    }

    # Load-time parameter preparation (fusion / scaling / casts), done once.
    prepared = prepare_mhsa_params(params, num_heads=num_heads)

    context, attn = multi_head_self_attention(x, prepared)
    jax.block_until_ready((context, attn))

    # Sanity check against the pure-JAX f32 reference. Tolerances are loosened
    # because the kernel feeds bf16 operands to the MXU and uses the approximate
    # EUP reciprocal in the softmax (standard for TPU attention kernels).
    ref_ctx, ref_attn = _reference(x, params, num_heads=num_heads)
    assert context.shape == (B, L, output_dim)
    assert attn.shape == (B, L, num_heads, L)
    assert jnp.allclose(context, ref_ctx, atol=5e-2, rtol=5e-2), (
        float(jnp.max(jnp.abs(context - ref_ctx))))
    assert jnp.allclose(attn, ref_attn, atol=5e-2, rtol=5e-2), (
        float(jnp.max(jnp.abs(attn - ref_attn))))

    # Context-only path: drops the dominant B*H*L^2 attention HBM write entirely.
    ctx_only = multi_head_self_attention(x, prepared, return_attention=False)
    jax.block_until_ready(ctx_only)
    assert ctx_only.shape == (B, L, output_dim)
    assert jnp.allclose(ctx_only, ref_ctx, atol=5e-2, rtol=5e-2), (
        float(jnp.max(jnp.abs(ctx_only - ref_ctx))))

    print("KERNEL_OK")
</pallas_src>

<mosaic_0001>
module attributes {stable_mosaic.version = 11 : i64} {
  func.func @_mhsa_kernel(%arg0: i32, %arg1: i32, %arg2: memref<1x128x128xf32, #tpu.memory_space<vmem>>, %arg3: memref<128x384xbf16, #tpu.memory_space<vmem>>, %arg4: memref<1x384xf32, #tpu.memory_space<vmem>>, %arg5: memref<128x128xbf16, #tpu.memory_space<vmem>>, %arg6: memref<1x128xf32, #tpu.memory_space<vmem>>, %arg7: memref<1x128x128xf32, #tpu.memory_space<vmem>>, %arg8: memref<1x128x512xf32, #tpu.memory_space<vmem>>) attributes {dimension_semantics = [#tpu.dimension_semantics<parallel>, #tpu.dimension_semantics<parallel>], iteration_bounds = array<i64: 2, 1>, scalar_prefetch = 0 : i64, scratch_operands = 0 : i64, tpu.core_type = #tpu.core_type<tc>, window_params = [{transform_indices = @transform_0, window_bounds = array<i64: 1, 128, 128>}, {pipeline_mode = #tpu.pipeline_mode<synchronous>, transform_indices = @transform_1, window_bounds = array<i64: 128, 384>}, {pipeline_mode = #tpu.pipeline_mode<synchronous>, transform_indices = @transform_2, window_bounds = array<i64: 1, 384>}, {pipeline_mode = #tpu.pipeline_mode<synchronous>, transform_indices = @transform_3, window_bounds = array<i64: 128, 128>}, {pipeline_mode = #tpu.pipeline_mode<synchronous>, transform_indices = @transform_4, window_bounds = array<i64: 1, 128>}, {transform_indices = @transform_5, window_bounds = array<i64: 1, 128, 128>}, {transform_indices = @transform_6, window_bounds = array<i64: 1, 128, 512>}]} {
    %c0 = arith.constant 0 : index
    %c0_0 = arith.constant 0 : index
    %c0_1 = arith.constant 0 : index
    %0 = vector.load %arg2[%c0, %c0_0, %c0_1] : memref<1x128x128xf32, #tpu.memory_space<vmem>>, vector<1x128x128xf32>
    %1 = vector.shape_cast %0 : vector<1x128x128xf32> to vector<128x128xf32>
    %2 = arith.truncf %1 : vector<128x128xf32> to vector<128x128xbf16>
    %c0_2 = arith.constant 0 : index
    %c0_3 = arith.constant 0 : index
    %3 = vector.load %arg3[%c0_2, %c0_3] : memref<128x384xbf16, #tpu.memory_space<vmem>>, vector<128x384xbf16>
    %c0_4 = arith.constant 0 : index
    %c0_5 = arith.constant 0 : index
    %4 = vector.load %arg4[%c0_4, %c0_5] : memref<1x384xf32, #tpu.memory_space<vmem>>, vector<1x384xf32>
    %5 = vector.shape_cast %4 : vector<1x384xf32> to vector<384xf32>
    %cst = arith.constant dense<0.000000e+00> : vector<128x384xf32>
    %6 = tpu.matmul %2, %3, %cst {dimension_numbers = #tpu.dot_dimension_numbers<[1], [0], [0], [1], [0, 0, 1, 1], [], []>} : vector<128x128xbf16>, vector<128x384xbf16>, vector<128x384xf32> -> vector<128x384xf32>
    %7 = vector.shape_cast %5 : vector<384xf32> to vector<1x384xf32>
    %8 = vector.broadcast %7 : vector<1x384xf32> to vector<128x384xf32>
    %9 = arith.addf %6, %8 : vector<128x384xf32>
    %10 = vector.extract_strided_slice %9 {offsets = [0, 0], sizes = [128, 128], strides = [1, 1]} : vector<128x384xf32> to vector<128x128xf32>
    %11 = vector.extract_strided_slice %9 {offsets = [0, 128], sizes = [128, 256], strides = [1, 1]} : vector<128x384xf32> to vector<128x256xf32>
    %12 = vector.shape_cast %10 : vector<128x128xf32> to vector<128x4x32xf32>
    %13 = tpu.transpose %12, [1, 0, 2] : vector<128x4x32xf32> -> vector<4x128x32xf32>
    %14 = arith.truncf %13 : vector<4x128x32xf32> to vector<4x128x32xbf16>
    %15 = vector.extract_strided_slice %11 {offsets = [0, 0], sizes = [128, 128], strides = [1, 1]} : vector<128x256xf32> to vector<128x128xf32>
    %16 = vector.shape_cast %15 : vector<128x128xf32> to vector<128x4x32xf32>
    %17 = tpu.transpose %16, [1, 0, 2] : vector<128x4x32xf32> -> vector<4x128x32xf32>
    %18 = tpu.transpose %17, [0, 2, 1] : vector<4x128x32xf32> -> vector<4x32x128xf32>
    %19 = arith.truncf %18 : vector<4x32x128xf32> to vector<4x32x128xbf16>
    %20 = vector.extract_strided_slice %11 {offsets = [0, 128], sizes = [128, 128], strides = [1, 1]} : vector<128x256xf32> to vector<128x128xf32>
    %21 = vector.shape_cast %20 : vector<128x128xf32> to vector<128x4x32xf32>
    %22 = tpu.transpose %21, [1, 0, 2] : vector<128x4x32xf32> -> vector<4x128x32xf32>
    %23 = arith.truncf %22 : vector<4x128x32xf32> to vector<4x128x32xbf16>
    "tpu.trace_start"() <{level = 10 : i32, message = "hqd,hdk->hqk"}> : () -> ()
    %cst_6 = arith.constant dense<0.000000e+00> : vector<4x128x128xf32>
    %24 = tpu.matmul %14, %19, %cst_6 {dimension_numbers = #tpu.dot_dimension_numbers<[2], [1], [1], [2], [0, 0, 0, 1, 1, 2], [0], [0]>} : vector<4x128x32xbf16>, vector<4x32x128xbf16>, vector<4x128x128xf32> -> vector<4x128x128xf32>
    "tpu.trace_stop"() : () -> ()
    %cst_7 = arith.constant dense<0xFF800000> : vector<4x128xf32>
    %25 = vector.multi_reduction <maximumf>, %24, %cst_7 [2] : vector<4x128x128xf32> to vector<4x128xf32>
    %26 = vector.shape_cast %25 : vector<4x128xf32> to vector<4x128x1xf32>
    %27 = vector.broadcast %26 : vector<4x128x1xf32> to vector<4x128x128xf32>
    %28 = arith.subf %24, %27 : vector<4x128x128xf32>
    %29 = math.exp %28 : vector<4x128x128xf32>
    %cst_8 = arith.constant dense<0.000000e+00> : vector<4x128xf32>
    %30 = vector.multi_reduction <add>, %29, %cst_8 [2] : vector<4x128x128xf32> to vector<4x128xf32>
    %31 = vector.shape_cast %30 : vector<4x128xf32> to vector<4x128x1xf32>
    %32 = tpu.reciprocal %31 {approx = true} : vector<4x128x1xf32> -> vector<4x128x1xf32>
    %33 = vector.broadcast %32 : vector<4x128x1xf32> to vector<4x128x128xf32>
    %34 = arith.mulf %29, %33 : vector<4x128x128xf32>
    %35 = vector.extract_strided_slice %34 {offsets = [0, 0, 0], sizes = [1, 128, 128], strides = [1, 1, 1]} : vector<4x128x128xf32> to vector<1x128x128xf32>
    %36 = vector.shape_cast %35 : vector<1x128x128xf32> to vector<128x128xf32>
    %c0_9 = arith.constant 0 : index
    %c0_10 = arith.constant 0 : index
    %c0_11 = arith.constant 0 : index
    %37 = vector.load %arg8[%c0_9, %c0_10, %c0_11] : memref<1x128x512xf32, #tpu.memory_space<vmem>>, vector<1x128x128xf32>
    %38 = vector.shape_cast %37 : vector<1x128x128xf32> to vector<128x128xf32>
    %39 = vector.shape_cast %36 : vector<128x128xf32> to vector<1x128x128xf32>
    tpu.vector_store %arg8[%c0_9, %c0_10, %c0_11], %39 {strides = array<i32>} : memref<1x128x512xf32, #tpu.memory_space<vmem>>, vector<1x128x128xf32>,
    %40 = vector.extract_strided_slice %34 {offsets = [1, 0, 0], sizes = [1, 128, 128], strides = [1, 1, 1]} : vector<4x128x128xf32> to vector<1x128x128xf32>
    %41 = vector.shape_cast %40 : vector<1x128x128xf32> to vector<128x128xf32>
    %c0_12 = arith.constant 0 : index
    %c0_13 = arith.constant 0 : index
    %c128 = arith.constant 128 : index
    %42 = vector.load %arg8[%c0_12, %c0_13, %c128] : memref<1x128x512xf32, #tpu.memory_space<vmem>>, vector<1x128x128xf32>
    %43 = vector.shape_cast %42 : vector<1x128x128xf32> to vector<128x128xf32>
    %44 = vector.shape_cast %41 : vector<128x128xf32> to vector<1x128x128xf32>
    tpu.vector_store %arg8[%c0_12, %c0_13, %c128], %44 {strides = array<i32>} : memref<1x128x512xf32, #tpu.memory_space<vmem>>, vector<1x128x128xf32>,
    %45 = vector.extract_strided_slice %34 {offsets = [2, 0, 0], sizes = [1, 128, 128], strides = [1, 1, 1]} : vector<4x128x128xf32> to vector<1x128x128xf32>
    %46 = vector.shape_cast %45 : vector<1x128x128xf32> to vector<128x128xf32>
    %c0_14 = arith.constant 0 : index
    %c0_15 = arith.constant 0 : index
    %c256 = arith.constant 256 : index
    %47 = vector.load %arg8[%c0_14, %c0_15, %c256] : memref<1x128x512xf32, #tpu.memory_space<vmem>>, vector<1x128x128xf32>
    %48 = vector.shape_cast %47 : vector<1x128x128xf32> to vector<128x128xf32>
    %49 = vector.shape_cast %46 : vector<128x128xf32> to vector<1x128x128xf32>
    tpu.vector_store %arg8[%c0_14, %c0_15, %c256], %49 {strides = array<i32>} : memref<1x128x512xf32, #tpu.memory_space<vmem>>, vector<1x128x128xf32>,
    %50 = vector.extract_strided_slice %34 {offsets = [3, 0, 0], sizes = [1, 128, 128], strides = [1, 1, 1]} : vector<4x128x128xf32> to vector<1x128x128xf32>
    %51 = vector.shape_cast %50 : vector<1x128x128xf32> to vector<128x128xf32>
    %c0_16 = arith.constant 0 : index
    %c0_17 = arith.constant 0 : index
    %c384 = arith.constant 384 : index
    %52 = vector.load %arg8[%c0_16, %c0_17, %c384] : memref<1x128x512xf32, #tpu.memory_space<vmem>>, vector<1x128x128xf32>
    %53 = vector.shape_cast %52 : vector<1x128x128xf32> to vector<128x128xf32>
    %54 = vector.shape_cast %51 : vector<128x128xf32> to vector<1x128x128xf32>
    tpu.vector_store %arg8[%c0_16, %c0_17, %c384], %54 {strides = array<i32>} : memref<1x128x512xf32, #tpu.memory_space<vmem>>, vector<1x128x128xf32>,
    %55 = arith.truncf %34 : vector<4x128x128xf32> to vector<4x128x128xbf16>
    "tpu.trace_start"() <{level = 10 : i32, message = "hqk,hkd->hqd"}> : () -> ()
    %cst_18 = arith.constant dense<0.000000e+00> : vector<4x128x32xf32>
    %56 = tpu.matmul %55, %23, %cst_18 {dimension_numbers = #tpu.dot_dimension_numbers<[2], [1], [1], [2], [0, 0, 0, 1, 1, 2], [0], [0]>} : vector<4x128x128xbf16>, vector<4x128x32xbf16>, vector<4x128x32xf32> -> vector<4x128x32xf32>
    "tpu.trace_stop"() : () -> ()
    %57 = tpu.transpose %56, [1, 0, 2] : vector<4x128x32xf32> -> vector<128x4x32xf32>
    %58 = vector.shape_cast %57 : vector<128x4x32xf32> to vector<128x128xf32>
    %59 = arith.truncf %58 : vector<128x128xf32> to vector<128x128xbf16>
    %c0_19 = arith.constant 0 : index
    %c0_20 = arith.constant 0 : index
    %60 = vector.load %arg5[%c0_19, %c0_20] : memref<128x128xbf16, #tpu.memory_space<vmem>>, vector<128x128xbf16>
    %cst_21 = arith.constant dense<0.000000e+00> : vector<128x128xf32>
    %61 = tpu.matmul %59, %60, %cst_21 {dimension_numbers = #tpu.dot_dimension_numbers<[1], [0], [0], [1], [0, 0, 1, 1], [], []>} : vector<128x128xbf16>, vector<128x128xbf16>, vector<128x128xf32> -> vector<128x128xf32>
    %c0_22 = arith.constant 0 : index
    %c0_23 = arith.constant 0 : index
    %62 = vector.load %arg6[%c0_22, %c0_23] : memref<1x128xf32, #tpu.memory_space<vmem>>, vector<1x128xf32>
    %63 = vector.shape_cast %62 : vector<1x128xf32> to vector<128xf32>
    %64 = vector.shape_cast %63 : vector<128xf32> to vector<1x128xf32>
    %65 = vector.broadcast %64 : vector<1x128xf32> to vector<128x128xf32>
    %66 = arith.addf %61, %65 : vector<128x128xf32>
    %c0_24 = arith.constant 0 : index
    %c0_25 = arith.constant 0 : index
    %c0_26 = arith.constant 0 : index
    %67 = vector.load %arg7[%c0_24, %c0_25, %c0_26] : memref<1x128x128xf32, #tpu.memory_space<vmem>>, vector<1x128x128xf32>
    %68 = vector.shape_cast %67 : vector<1x128x128xf32> to vector<128x128xf32>
    %69 = vector.shape_cast %66 : vector<128x128xf32> to vector<1x128x128xf32>
    tpu.vector_store %arg7[%c0_24, %c0_25, %c0_26], %69 {strides = array<i32>} : memref<1x128x128xf32, #tpu.memory_space<vmem>>, vector<1x128x128xf32>,
    return
  }
  func.func @transform_0(%arg0: i32, %arg1: i32) -> (i32, i32, i32) {
    %c0_i32 = arith.constant 0 : i32
    %c0_i32_0 = arith.constant 0 : i32
    %c0_i32_1 = arith.constant 0 : i32
    return %arg0, %c0_i32, %c0_i32_0 : i32, i32, i32
  }
  func.func @transform_1(%arg0: i32, %arg1: i32) -> (i32, i32) {
    %c0_i32 = arith.constant 0 : i32
    %c0_i32_0 = arith.constant 0 : i32
    %c0_i32_1 = arith.constant 0 : i32
    return %c0_i32, %c0_i32_0 : i32, i32
  }
  func.func @transform_2(%arg0: i32, %arg1: i32) -> (i32, i32) {
    %c0_i32 = arith.constant 0 : i32
    %c0_i32_0 = arith.constant 0 : i32
    %c0_i32_1 = arith.constant 0 : i32
    return %c0_i32, %c0_i32_0 : i32, i32
  }
  func.func @transform_3(%arg0: i32, %arg1: i32) -> (i32, i32) {
    %c0_i32 = arith.constant 0 : i32
    %c0_i32_0 = arith.constant 0 : i32
    %c0_i32_1 = arith.constant 0 : i32
    return %c0_i32, %c0_i32_0 : i32, i32
  }
  func.func @transform_4(%arg0: i32, %arg1: i32) -> (i32, i32) {
    %c0_i32 = arith.constant 0 : i32
    %c0_i32_0 = arith.constant 0 : i32
    %c0_i32_1 = arith.constant 0 : i32
    return %c0_i32, %c0_i32_0 : i32, i32
  }
  func.func @transform_5(%arg0: i32, %arg1: i32) -> (i32, i32, i32) {
    %c0_i32 = arith.constant 0 : i32
    %c0_i32_0 = arith.constant 0 : i32
    return %arg0, %arg1, %c0_i32 : i32, i32, i32
  }
  func.func @transform_6(%arg0: i32, %arg1: i32) -> (i32, i32, i32) {
    %c0_i32 = arith.constant 0 : i32
    %c0_i32_0 = arith.constant 0 : i32
    return %arg0, %arg1, %c0_i32 : i32, i32, i32
  }
}

</mosaic_0001>

<llo_original>
// kernel: tpu_custom_call.1
$region0: #{tpu_custom_call.1}
  #allocation0 [shape = 'u32[]', space=smem, size = 0x4, offset = 0x4, fixed_abs, tag = 'smem constant byte address 0x4 - core index']
  #allocation1 [shape = 'u32[144,128]{1,0:T(1,128)}', space=vmem, size = 0x12000, scoped, tag = 'internal scratch']
  %s0 = inlined_call_operand.hbm [shape: f32[2,128,128], index: 0, kind: input, shape index: {}]
  %s1 = inlined_call_operand.hbm [shape: bf16[128,384], index: 1, kind: input, shape index: {}]
  %s2 = inlined_call_operand.vmem [shape: f32[1,384], index: 2, kind: input, shape index: {}]
  %s3 = inlined_call_operand.hbm [shape: bf16[128,128], index: 3, kind: input, shape index: {}]
  %s4 = inlined_call_operand.vmem [shape: f32[1,128], index: 4, kind: input, shape index: {}]
  %s5 = inlined_call_operand.hbm [shape: f32[2,128,128], index: 5, kind: output, shape index: {0}]
  %s6 = inlined_call_operand.hbm [shape: f32[2,128,512], index: 6, kind: output, shape index: {1}]
  %7 = xla_tuple %s5, %s6
  %s8 = sld [smem:[#allocation0]]
  $region73: #{tpu_custom_call.1} parent=0
    _
  %s10 = ssub.s32 1, %s8
  %s11 = scalar_select 0, %s10, %s8
  $region1: #{tpu_custom_call.1} parent=0
    #allocation2 [shape = 'u8[131072]{0}', space=vmem, size = 0x20000, scoped, tag = 'input window, operand 0']
    #allocation3 [shape = 's32[2]{0}', space=sflag, size = 0x8, scoped, tag = 'scoped memory for tpu_custom_call.1']
    #allocation4 [shape = 's32[2]{0}', space=sflag, size = 0x8, scoped, tag = 'scoped memory for tpu_custom_call.1']
    #allocation5 [shape = 'u8[98304]{0}', space=vmem, size = 0x18000, scoped, tag = 'input window, operand 1, single buffered']
    #allocation6 [shape = 's32[1]{0}', space=sflag, size = 0x4, scoped, tag = 'scoped memory for tpu_custom_call.1']
    #allocation7 [shape = 'u8[32768]{0}', space=vmem, size = 0x8000, scoped, tag = 'input window, operand 3, single buffered']
    #allocation8 [shape = 'u8[131072]{0}', space=vmem, size = 0x20000, scoped, tag = 'output window, operand 0']
    #allocation9 [shape = 'u8[524288]{0}', space=vmem, size = 0x80000, scoped, tag = 'output window, operand 1']
    #allocation10 [shape = 's32[2]{0}', space=sflag, size = 0x8, scoped, tag = 'scoped memory for tpu_custom_call.1']
    %12 = vsyncpa [#allocation3], 0
    %s13 = scalar_lea.sflag [#allocation3], 1
    %14 = vsyncpa %s13, 0
    %15 = vsyncpa [#allocation6], 0
    %16 = vsyncpa [#allocation4], 0
    %s17 = scalar_lea.sflag [#allocation4], 1
    %18 = vsyncpa %s17, 0
    %19 = vsyncpa [#allocation10], 0
    %s20 = scalar_lea.sflag [#allocation10], 1
    %21 = vsyncpa %s20, 0
    loop: start=0, step=1, limit=4
    $region2: #{tpu_custom_call.1} parent=1 // loop_pre_header
      _
    $region3: #{tpu_custom_call.1} parent=1 // loop_header
      %s23 = sphi 0, %s27
      %p24 = scmp.ge.s32.totalorder %s23, 4
      %s30 = sphi 0, %s42
      %s31 = sphi 0, %s38
      %s32 = sphi 0, %s30
      %s33 = sphi 0, %s31
      %s34 = sphi 0, %s32
      %s35 = sphi 0, %s33
      %s45 = sphi 0, %s47
      %s48 = sphi 0, %s45
      %s49 = sphi 0, %s48
      %s65 = sphi 0, %s49
      %s69 = sphi 0, %s69
      %s71 = sphi 0, %s69
      %s72 = sphi 0, %s71
      %s86 = sphi 0, %s72
      %s90 = sphi 0, %s90
      %s92 = sphi 0, %s90
      %s93 = sphi 0, %s92
      %s107 = sphi 0, %s93
      %s111 = sphi 0, %s111
      %s113 = sphi 0, %s111
      %s114 = sphi 0, %s113
      %s128 = sphi 0, %s114
      %s132 = sphi 0, %s132
      %s134 = sphi 0, %s132
      %s135 = sphi 0, %s134
      %s149 = sphi 0, %s135
      %s157 = sphi 0, %s159
      %s160 = sphi 0, %s157
      %s161 = sphi 0, %s160
      %s177 = sphi 0, %s161
      %s185 = sphi 0, %s187
      %s188 = sphi 0, %s185
      %s189 = sphi 0, %s188
      %s205 = sphi 0, %s189
    $region4: #{tpu_custom_call.1} parent=1 // loop_header_branch
      %26 = sbr.rel (%p24) target = $region8
    $region5: #{tpu_custom_call.1} parent=1 // loop_body
      %s28 = ssub.s32 %s23, 1
      %s29 = ssub.s32 %s23, 2
      %s36 = sadd.s32 1, %s31
      %p37 = scmp.ge.s32.totalorder %s36, 1
      %s38 = scalar_select %p37, 0, %s36
      %s39 = sadd.s32 1, %s30
      %s40 = scalar_select %p37, %s39, %s30
      %p41 = scmp.ge.s32.totalorder %s40, 2
      %s42 = scalar_select %p41, 0, %s40
      %s43 = ssub.s32 %s30, %s42
      %p44 = scmp.eq.s32.totalorder %s43, 0
      %s46 = sadd.s32 %s45, 1
      %s47 = scalar_select %p44, %s45, %s46
      %p50 = pneg %p44
      %p51 = scmp.eq.s32.totalorder %s23, 1
      %p52 = por %p50, %p51
      %p53 = scmp.ne.s32.totalorder %s45, %s48
      %p54 = scmp.eq.s32.totalorder %s23, 0
      %p55 = por %p53, %p54
      %p56 = scmp.ne.s32.totalorder %s45, %s48
      %p57 = scmp.eq.s32.totalorder %s28, 1
      %p58 = por %p56, %p57
      %p59 = scmp.ne.s32.totalorder %s48, %s49
      %p60 = scmp.eq.s32.totalorder %s28, 0
      %p61 = por %p59, %p60
      %p62 = scmp.ne.s32.totalorder %s48, %s49
      %p63 = scmp.eq.s32.totalorder %s29, 1
      %p64 = por %p62, %p63
      %p66 = scmp.ne.s32.totalorder %s49, %s65
      %p67 = scmp.eq.s32.totalorder %s29, 0
      %p68 = por %p66, %p67
      %s70 = sadd.s32 %s69, 1
      %p73 = scmp.eq.s32.totalorder %s23, 1
      %p74 = scmp.ne.s32.totalorder %s69, %s71
      %p75 = scmp.eq.s32.totalorder %s23, 0
      %p76 = por %p74, %p75
      %p77 = scmp.ne.s32.totalorder %s69, %s71
      %p78 = scmp.eq.s32.totalorder %s28, 1
      %p79 = por %p77, %p78
      %p80 = scmp.ne.s32.totalorder %s71, %s72
      %p81 = scmp.eq.s32.totalorder %s28, 0
      %p82 = por %p80, %p81
      %p83 = scmp.ne.s32.totalorder %s71, %s72
      %p84 = scmp.eq.s32.totalorder %s29, 1
      %p85 = por %p83, %p84
      %p87 = scmp.ne.s32.totalorder %s72, %s86
      %p88 = scmp.eq.s32.totalorder %s29, 0
      %p89 = por %p87, %p88
      %s91 = sadd.s32 %s90, 1
      %p94 = scmp.eq.s32.totalorder %s23, 1
      %p95 = scmp.ne.s32.totalorder %s90, %s92
      %p96 = scmp.eq.s32.totalorder %s23, 0
      %p97 = por %p95, %p96
      %p98 = scmp.ne.s32.totalorder %s90, %s92
      %p99 = scmp.eq.s32.totalorder %s28, 1
      %p100 = por %p98, %p99
      %p101 = scmp.ne.s32.totalorder %s92, %s93
      %p102 = scmp.eq.s32.totalorder %s28, 0
      %p103 = por %p101, %p102
      %p104 = scmp.ne.s32.totalorder %s92, %s93
      %p105 = scmp.eq.s32.totalorder %s29, 1
      %p106 = por %p104, %p105
      %p108 = scmp.ne.s32.totalorder %s93, %s107
      %p109 = scmp.eq.s32.totalorder %s29, 0
      %p110 = por %p108, %p109
      %s112 = sadd.s32 %s111, 1
      %p115 = scmp.eq.s32.totalorder %s23, 1
      %p116 = scmp.ne.s32.totalorder %s111, %s113
      %p117 = scmp.eq.s32.totalorder %s23, 0
      %p118 = por %p116, %p117
      %p119 = scmp.ne.s32.totalorder %s111, %s113
      %p120 = scmp.eq.s32.totalorder %s28, 1
      %p121 = por %p119, %p120
      %p122 = scmp.ne.s32.totalorder %s113, %s114
      %p123 = scmp.eq.s32.totalorder %s28, 0
      %p124 = por %p122, %p123
      %p125 = scmp.ne.s32.totalorder %s113, %s114
      %p126 = scmp.eq.s32.totalorder %s29, 1
      %p127 = por %p125, %p126
      %p129 = scmp.ne.s32.totalorder %s114, %s128
      %p130 = scmp.eq.s32.totalorder %s29, 0
      %p131 = por %p129, %p130
      %s133 = sadd.s32 %s132, 1
      %p136 = scmp.eq.s32.totalorder %s23, 1
      %p137 = scmp.ne.s32.totalorder %s132, %s134
      %p138 = scmp.eq.s32.totalorder %s23, 0
      %p139 = por %p137, %p138
      %p140 = scmp.ne.s32.totalorder %s132, %s134
      %p141 = scmp.eq.s32.totalorder %s28, 1
      %p142 = por %p140, %p141
      %p143 = scmp.ne.s32.totalorder %s134, %s135
      %p144 = scmp.eq.s32.totalorder %s28, 0
      %p145 = por %p143, %p144
      %p146 = scmp.ne.s32.totalorder %s134, %s135
      %p147 = scmp.eq.s32.totalorder %s29, 1
      %p148 = por %p146, %p147
      %p150 = scmp.ne.s32.totalorder %s135, %s149
      %p151 = scmp.eq.s32.totalorder %s29, 0
      %p152 = por %p150, %p151
      %s153 = ssub.s32 %s30, %s42
      %s154 = ssub.s32 %s31, %s38
      %s155 = sor.u32 %s153, %s154
      %p156 = scmp.eq.s32.totalorder %s155, 0
      %s158 = sadd.s32 %s157, 1
      %s159 = scalar_select %p156, %s157, %s158
      %p162 = pneg %p156
      %p163 = scmp.eq.s32.totalorder %s23, 1
      %p164 = por %p162, %p163
      %p165 = scmp.ne.s32.totalorder %s157, %s160
      %p166 = scmp.eq.s32.totalorder %s23, 0
      %p167 = por %p165, %p166
      %p168 = scmp.ne.s32.totalorder %s157, %s160
      %p169 = scmp.eq.s32.totalorder %s28, 1
      %p170 = por %p168, %p169
      %p171 = scmp.ne.s32.totalorder %s160, %s161
      %p172 = scmp.eq.s32.totalorder %s28, 0
      %p173 = por %p171, %p172
      %p174 = scmp.ne.s32.totalorder %s160, %s161
      %p175 = scmp.eq.s32.totalorder %s29, 1
      %p176 = por %p174, %p175
      %p178 = scmp.ne.s32.totalorder %s161, %s177
      %p179 = scmp.eq.s32.totalorder %s29, 0
      %p180 = por %p178, %p179
      %s181 = ssub.s32 %s30, %s42
      %s182 = ssub.s32 %s31, %s38
      %s183 = sor.u32 %s181, %s182
      %p184 = scmp.eq.s32.totalorder %s183, 0
      %s186 = sadd.s32 %s185, 1
      %s187 = scalar_select %p184, %s185, %s186
      %p190 = pneg %p184
      %p191 = scmp.eq.s32.totalorder %s23, 1
      %p192 = por %p190, %p191
      %p193 = scmp.ne.s32.totalorder %s185, %s188
      %p194 = scmp.eq.s32.totalorder %s23, 0
      %p195 = por %p193, %p194
      %p196 = scmp.ne.s32.totalorder %s185, %s188
      %p197 = scmp.eq.s32.totalorder %s28, 1
      %p198 = por %p196, %p197
      %p199 = scmp.ne.s32.totalorder %s188, %s189
      %p200 = scmp.eq.s32.totalorder %s28, 0
      %p201 = por %p199, %p200
      %p202 = scmp.ne.s32.totalorder %s188, %s189
      %p203 = scmp.eq.s32.totalorder %s29, 1
      %p204 = por %p202, %p203
      %p206 = scmp.ne.s32.totalorder %s189, %s205
      %p207 = scmp.eq.s32.totalorder %s29, 0
      %p208 = por %p206, %p207
      %p209 = scmp.le.s32.totalorder 1, %s23
      %p210 = scmp.lt.s32.totalorder %s23, 3
      %p211 = pnand %p209, %p210
      %p212 = pneg %p211
      // Predicated region
      $region9: #{tpu_custom_call.1} parent=5 // pred_check
        _
      $region10: #{tpu_custom_call.1} parent=5 // pred_check_branch
        %214 = sbr.rel (%p211) target = $region12
      $region11: #{tpu_custom_call.1} parent=5 // pred_region
        %s215 = ssub.s32 %s23, 1
        // Predicated region
        $region13: #{tpu_custom_call.1} parent=11 // pred_check
          %p216 = pneg %p82
        $region14: #{tpu_custom_call.1} parent=11 // pred_check_branch
          %218 = sbr.rel (%p216) target = $region16
        $region15: #{tpu_custom_call.1} parent=11 // pred_region
          %s220 = ssub.s32 3072, 3072
          %221 = vsyncadd [#allocation6], %s220
          %s222 = sshll.u32 [#allocation5], 4
          %s223 = int_to_ptr.vmem [resolvable:$true] %s222
          %228 = dma.hbm_to_vmem [thread:$0]  %s1, 3072, %s223, [#allocation6], 192, 192, 12
        $region16: #{tpu_custom_call.1} parent=11 // pred_fallthru
          _
        // Predicated region
        $region17: #{tpu_custom_call.1} parent=11 // pred_check
          %p229 = pneg %p103
        $region18: #{tpu_custom_call.1} parent=11 // pred_check_branch
          %231 = sbr.rel (%p229) target = $region20
        $region19: #{tpu_custom_call.1} parent=11 // pred_region
          _
        $region20: #{tpu_custom_call.1} parent=11 // pred_fallthru
          _
        // Predicated region
        $region21: #{tpu_custom_call.1} parent=11 // pred_check
          %p232 = pneg %p124
        $region22: #{tpu_custom_call.1} parent=11 // pred_check_branch
          %234 = sbr.rel (%p232) target = $region24
        $region23: #{tpu_custom_call.1} parent=11 // pred_region
          %s236 = ssub.s32 1024, 1024
          %237 = vsyncadd [#allocation6], %s236
          %s238 = sshll.u32 [#allocation7], 4
          %s239 = int_to_ptr.vmem [resolvable:$true] %s238
          %244 = dma.hbm_to_vmem [thread:$0]  %s3, 1024, %s239, [#allocation6], 64, 64, 4
        $region24: #{tpu_custom_call.1} parent=11 // pred_fallthru
          _
        // Predicated region
        $region25: #{tpu_custom_call.1} parent=11 // pred_check
          %p245 = pneg %p145
        $region26: #{tpu_custom_call.1} parent=11 // pred_check_branch
          %247 = sbr.rel (%p245) target = $region28
        $region27: #{tpu_custom_call.1} parent=11 // pred_region
          _
        $region28: #{tpu_custom_call.1} parent=11 // pred_fallthru
          _
      $region12: #{tpu_custom_call.1} parent=5 // pred_fallthru
        _
      %p248 = scmp.lt.s32.totalorder %s23, 2
      // Predicated region
      $region29: #{tpu_custom_call.1} parent=5 // pred_check
        %p249 = pneg %p248
      $region30: #{tpu_custom_call.1} parent=5 // pred_check_branch
        %251 = sbr.rel (%p249) target = $region32
      $region31: #{tpu_custom_call.1} parent=5 // pred_region
        // Predicated region
        $region33: #{tpu_custom_call.1} parent=31 // pred_check
          %p252 = pneg %p55
        $region34: #{tpu_custom_call.1} parent=31 // pred_check_branch
          %254 = sbr.rel (%p252) target = $region36
        $region35: #{tpu_custom_call.1} parent=31 // pred_region
          %s255 = sand.u32 %s45, 1
          %s256 = scalar_lea.sflag [#allocation3], %s255
          %s257 = sand.u32 %s45, 1
          %s258 = smul.addr %s257, 128
          %s259 = scalar_lea.vmem [#allocation2], %s258
          %s261 = ssub.s32 2048, 2048
          %262 = vsyncadd %s256, %s261
          %s263 = smul.addr %s30, 16
          %s264 = smul.addr %s263, 128
          %s265 = scalar_lea.hbm %s0, %s264
          %s266 = sshll.u32 %s259, 4
          %s267 = int_to_ptr.vmem [resolvable:$true] %s266
          %272 = dma.hbm_to_vmem [thread:$0]  %s265, 2048, %s267, %s256, 128, 128, 8
        $region36: #{tpu_custom_call.1} parent=31 // pred_fallthru
          _
      $region32: #{tpu_custom_call.1} parent=5 // pred_fallthru
        _
      %p273 = scmp.le.s32.totalorder 1, %s23
      %p274 = scmp.lt.s32.totalorder %s23, 3
      %p275 = pnand %p273, %p274
      %p276 = pneg %p275
      // Predicated region
      $region37: #{tpu_custom_call.1} parent=5 // pred_check
        _
      $region38: #{tpu_custom_call.1} parent=5 // pred_check_branch
        %278 = sbr.rel (%p275) target = $region40
      $region39: #{tpu_custom_call.1} parent=5 // pred_region
        %s279 = ssub.s32 %s23, 1
        %s280 = sand.u32 %s48, 1
        %s281 = scalar_lea.sflag [#allocation3], %s280
        %s282 = sand.u32 %s48, 1
        %s283 = smul.addr %s282, 128
        %s284 = scalar_lea.vmem [#allocation2], %s283
        // Predicated region
        $region41: #{tpu_custom_call.1} parent=39 // pred_check
          %p285 = pneg %p61
        $region42: #{tpu_custom_call.1} parent=39 // pred_check_branch
          %287 = sbr.rel (%p285) target = $region44
        $region43: #{tpu_custom_call.1} parent=39 // pred_region
          %288 = dma.done %s281, 2048
        $region44: #{tpu_custom_call.1} parent=39 // pred_fallthru
          _
        // Predicated region
        $region45: #{tpu_custom_call.1} parent=39 // pred_check
          %p289 = pneg %p82
        $region46: #{tpu_custom_call.1} parent=39 // pred_check_branch
          %291 = sbr.rel (%p289) target = $region48
        $region47: #{tpu_custom_call.1} parent=39 // pred_region
          %292 = dma.done [#allocation6], 3072
        $region48: #{tpu_custom_call.1} parent=39 // pred_fallthru
          _
        // Predicated region
        $region49: #{tpu_custom_call.1} parent=39 // pred_check
          %p293 = pneg %p124
        $region50: #{tpu_custom_call.1} parent=39 // pred_check_branch
          %295 = sbr.rel (%p293) target = $region52
        $region51: #{tpu_custom_call.1} parent=39 // pred_region
          %296 = dma.done [#allocation6], 1024
        $region52: #{tpu_custom_call.1} parent=39 // pred_fallthru
          _
        %s297 = sand.u32 %s48, 1
        %s298 = scalar_lea.sflag [#allocation3], %s297
        %s299 = sand.u32 %s48, 1
        %s300 = smul.addr %s299, 128
        %s301 = scalar_lea.vmem [#allocation2], %s300
        %p302 = pneg %p61
        %p303 = pneg %p58
        %p304 = pneg %p82
        %p305 = pneg %p79
        %p306 = pneg %p103
        %p307 = pneg %p100
        %p308 = pneg %p124
        %p309 = pneg %p121
        %p310 = pneg %p145
        %p311 = pneg %p142
        %p312 = pneg %p173
        %p313 = pneg %p170
        %s314 = sand.u32 %s160, 1
        %s315 = scalar_lea.sflag [#allocation4], %s314
        %s316 = sand.u32 %s160, 1
        %s317 = smul.addr %s316, 128
        %s318 = scalar_lea.vmem [#allocation8], %s317
        %p319 = pneg %p201
        %p320 = pneg %p198
        %s321 = sand.u32 %s188, 1
        %s322 = scalar_lea.sflag [#allocation10], %s321
        %s323 = sand.u32 %s188, 1
        %s324 = smul.addr %s323, 512
        %s325 = scalar_lea.vmem [#allocation9], %s324
        %s326 = smul.u32 16, %s33
        %s327 = smul.u32 16, %s33
        %v329 = vld [vmem:[%s284] sm:$0xff]
        %v330 = vld [vmem:[%s284 + $0x8] sm:$0xff]
        %v331 = vld [vmem:[%s284 + $0x10] sm:$0xff]
        %v332 = vld [vmem:[%s284 + $0x18] sm:$0xff]
        %v333 = vld [vmem:[%s284 + $0x20] sm:$0xff]
        %v334 = vld [vmem:[%s284 + $0x28] sm:$0xff]
        %v335 = vld [vmem:[%s284 + $0x30] sm:$0xff]
        %v336 = vld [vmem:[%s284 + $0x38] sm:$0xff]
        %v337 = vld [vmem:[%s284 + $0x40] sm:$0xff]
        %v338 = vld [vmem:[%s284 + $0x48] sm:$0xff]
        %v339 = vld [vmem:[%s284 + $0x50] sm:$0xff]
        %v340 = vld [vmem:[%s284 + $0x58] sm:$0xff]
        %v341 = vld [vmem:[%s284 + $0x60] sm:$0xff]
        %v342 = vld [vmem:[%s284 + $0x68] sm:$0xff]
        %v343 = vld [vmem:[%s284 + $0x70] sm:$0xff]
        %v344 = vld [vmem:[%s284 + $0x78] sm:$0xff]
        %v345 = vpack.c.bf16 %v330, %v329
        %v346 = vpack.c.bf16 %v332, %v331
        %v347 = vpack.c.bf16 %v334, %v333
        %v348 = vpack.c.bf16 %v336, %v335
        %v349 = vpack.c.bf16 %v338, %v337
        %v350 = vpack.c.bf16 %v340, %v339
        %v351 = vpack.c.bf16 %v342, %v341
        %v352 = vpack.c.bf16 %v344, %v343
        %v353 = vld [vmem:[#allocation5] sm:$0xff]
        %v354 = vld [vmem:[#allocation5 + $0x8] sm:$0xf]
        %v355 = vld [vmem:[#allocation5 + $0xc] sm:$0xff]
        %v356 = vld [vmem:[#allocation5 + $0x14] sm:$0xf]
        %v357 = vld [vmem:[#allocation5 + $0x18] sm:$0xff]
        %v358 = vld [vmem:[#allocation5 + $0x20] sm:$0xf]
        %v359 = vld [vmem:[#allocation5 + $0x24] sm:$0xff]
        %v360 = vld [vmem:[#allocation5 + $0x2c] sm:$0xf]
        %v361 = vld [vmem:[#allocation5 + $0x30] sm:$0xff]
        %v362 = vld [vmem:[#allocation5 + $0x38] sm:$0xf]
        %v363 = vld [vmem:[#allocation5 + $0x3c] sm:$0xff]
        %v364 = vld [vmem:[#allocation5 + $0x44] sm:$0xf]
        %v365 = vld [vmem:[#allocation5 + $0x48] sm:$0xff]
        %v366 = vld [vmem:[#allocation5 + $0x50] sm:$0xf]
        %v367 = vld [vmem:[#allocation5 + $0x54] sm:$0xff]
        %v368 = vld [vmem:[#allocation5 + $0x5c] sm:$0xf]
        %v369 = vld [vmem:[#allocation5 + $0x60] sm:$0xff]
        %v370 = vld [vmem:[#allocation5 + $0x68] sm:$0xf]
        %v371 = vld [vmem:[#allocation5 + $0x6c] sm:$0xff]
        %v372 = vld [vmem:[#allocation5 + $0x74] sm:$0xf]
        %v373 = vld [vmem:[#allocation5 + $0x78] sm:$0xff]
        %v374 = vld [vmem:[#allocation5 + $0x80] sm:$0xf]
        %v375 = vld [vmem:[#allocation5 + $0x84] sm:$0xff]
        %v376 = vld [vmem:[#allocation5 + $0x8c] sm:$0xf]
        %v377 = vld [vmem:[#allocation5 + $0x90] sm:$0xff]
        %v378 = vld [vmem:[#allocation5 + $0x98] sm:$0xf]
        %v379 = vld [vmem:[#allocation5 + $0x9c] sm:$0xff]
        %v380 = vld [vmem:[#allocation5 + $0xa4] sm:$0xf]
        %v381 = vld [vmem:[#allocation5 + $0xa8] sm:$0xff]
        %v382 = vld [vmem:[#allocation5 + $0xb0] sm:$0xf]
        %v383 = vld [vmem:[#allocation5 + $0xb4] sm:$0xff]
        %v384 = vld [vmem:[#allocation5 + $0xbc] sm:$0xf]
        %v385 = vld [vmem:[%s2] sm:$0x7]
        %v387 = vlaneseq
        %v388 = vshrl.u32 %v387, 7
        %v389 = vsub.s32 0, %v388
        %v390 = vrot.slane %v385, %v389
        %v391 = vlaneseq
        %v392 = vshrl.u32 %v391, 7
        %v393 = vsub.s32 1, %v392
        %v394 = vrot.slane %v385, %v393
        %v395 = vlaneseq
        %v396 = vshrl.u32 %v395, 7
        %v397 = vsub.s32 2, %v396
        %v398 = vrot.slane %v385, %v397
        %v434 = vunpack.c.l.b16 %v353
        %v435 = vunpack.c.h.b16 %v353
        %v436 = vunpack.c.l.b16 %v354
        %v437 = vunpack.c.l.b16 %v355
        %v438 = vunpack.c.h.b16 %v355
        %v439 = vunpack.c.l.b16 %v356
        %v440 = vunpack.c.l.b16 %v357
        %v441 = vunpack.c.h.b16 %v357
        %v442 = vunpack.c.l.b16 %v358
        %v443 = vunpack.c.l.b16 %v359
        %v444 = vunpack.c.h.b16 %v359
        %v445 = vunpack.c.l.b16 %v360
        %v446 = vunpack.c.l.b16 %v361
        %v447 = vunpack.c.h.b16 %v361
        %v448 = vunpack.c.l.b16 %v362
        %v449 = vunpack.c.l.b16 %v363
        %v450 = vunpack.c.h.b16 %v363
        %v451 = vunpack.c.l.b16 %v364
        %v452 = vunpack.c.l.b16 %v365
        %v453 = vunpack.c.h.b16 %v365
        %v454 = vunpack.c.l.b16 %v366
        %v455 = vunpack.c.l.b16 %v367
        %v456 = vunpack.c.h.b16 %v367
        %v457 = vunpack.c.l.b16 %v368
        %v458 = vunpack.c.l.b16 %v369
        %v459 = vunpack.c.h.b16 %v369
        %v460 = vunpack.c.l.b16 %v370
        %v461 = vunpack.c.l.b16 %v371
        %v462 = vunpack.c.h.b16 %v371
        %v463 = vunpack.c.l.b16 %v372
        %v464 = vunpack.c.l.b16 %v373
        %v465 = vunpack.c.h.b16 %v373
        %v466 = vunpack.c.l.b16 %v374
        %v467 = vunpack.c.l.b16 %v375
        %v468 = vunpack.c.h.b16 %v375
        %v469 = vunpack.c.l.b16 %v376
        %v470 = vunpack.c.l.b16 %v377
        %v471 = vunpack.c.h.b16 %v377
        %v472 = vunpack.c.l.b16 %v378
        %v473 = vunpack.c.l.b16 %v379
        %v474 = vunpack.c.h.b16 %v379
        %v475 = vunpack.c.l.b16 %v380
        %v476 = vunpack.c.l.b16 %v381
        %v477 = vunpack.c.h.b16 %v381
        %v478 = vunpack.c.l.b16 %v382
        %v479 = vunpack.c.l.b16 %v383
        %v480 = vunpack.c.h.b16 %v383
        %v481 = vunpack.c.l.b16 %v384
        %v482 = vpack.c.b16 %v437, %v434
        %v483 = vpack.c.b16 %v438, %v435
        %v484 = vpack.c.b16 %v439, %v436
        %v485 = vpack.c.b16 %v443, %v440
        %v486 = vpack.c.b16 %v444, %v441
        %v487 = vpack.c.b16 %v445, %v442
        %v488 = vpack.c.b16 %v449, %v446
        %v489 = vpack.c.b16 %v450, %v447
        %v490 = vpack.c.b16 %v451, %v448
        %v491 = vpack.c.b16 %v455, %v452
        %v492 = vpack.c.b16 %v456, %v453
        %v493 = vpack.c.b16 %v457, %v454
        %v494 = vpack.c.b16 %v461, %v458
        %v495 = vpack.c.b16 %v462, %v459
        %v496 = vpack.c.b16 %v463, %v460
        %v497 = vpack.c.b16 %v467, %v464
        %v498 = vpack.c.b16 %v468, %v465
        %v499 = vpack.c.b16 %v469, %v466
        %v500 = vpack.c.b16 %v473, %v470
        %v501 = vpack.c.b16 %v474, %v471
        %v502 = vpack.c.b16 %v475, %v472
        %v503 = vpack.c.b16 %v479, %v476
        %v504 = vpack.c.b16 %v480, %v477
        %v505 = vpack.c.b16 %v481, %v478
        %530 = vmatprep.subr.bf16.mxu0 %v504
        %531 = vmatpush1.bf16.msra.mxu0 %v503
        %532 = vmatprep.subr.bf16.mxu0 %v501
        %533 = vmatpush1.bf16.msra.mxu0 %v500
        %534 = vmatprep.subr.bf16.mxu0 %v498
        %535 = vmatpush1.bf16.msra.mxu0 %v497
        %536 = vmatprep.subr.bf16.mxu0 %v495
        %537 = vmatpush1.bf16.msra.mxu0 %v494
        %538 = vmatprep.subr.bf16.mxu0 %v492
        %539 = vmatpush1.bf16.msra.mxu0 %v491
        %540 = vmatprep.subr.bf16.mxu0 %v489
        %541 = vmatpush1.bf16.msra.mxu0 %v488
        %542 = vmatprep.subr.bf16.mxu0 %v486
        %543 = vmatpush1.bf16.msra.mxu0 %v485
        %544 = vmatprep.subr.bf16.mxu0 %v483
        %545 = vmatpush1.bf16.msra.mxu0 %v482
        %546 = vmatprep.subr.bf16.mxu0 0
        %547 = vmatpush2.bf16.msra.mxu0 0
        %548 = vmatprep.subr.bf16.mxu0 0
        %549 = vmatpush2.bf16.msra.mxu0 0
        %550 = vmatprep.subr.bf16.mxu0 0
        %551 = vmatpush2.bf16.msra.mxu0 0
        %552 = vmatprep.subr.bf16.mxu0 0
        %553 = vmatpush2.bf16.msra.mxu0 0
        %554 = vmatprep.subr.bf16.mxu0 0
        %555 = vmatpush2.bf16.msra.mxu0 0
        %556 = vmatprep.subr.bf16.mxu0 0
        %557 = vmatpush2.bf16.msra.mxu0 0
        %558 = vmatprep.subr.bf16.mxu0 0
        %559 = vmatpush2.bf16.msra.mxu0 0
        %560 = vmatprep.subr.bf16.mxu0 0
        %561 = vmatpush2.bf16.msra.mxu0 0
        %562 = vmatprep.mubr.bf16.mxu0 0
        %563 = vmatmul.mubr.bf16.gmra.mxu0 %v345
        %v564 = vpop.f32.mrf.mxu0
        %v565 = vadd.f32 %v390, %v564
        %v566 = vpop.f32.mrf.mxu0
        %v567 = vadd.f32 %v394, %v566
        %v568 = vpop.f32.mrf.mxu0
        %v569 = vadd.f32 %v390, %v568
        %v570 = vpop.f32.mrf.mxu0
        %v571 = vadd.f32 %v394, %v570
        %572 = vmatprep.mubr.bf16.mxu0 0
        %573 = vmatmul.mubr.bf16.gmra.mxu0 %v346
        %v574 = vpop.f32.mrf.mxu0
        %v575 = vadd.f32 %v390, %v574
        %v576 = vpop.f32.mrf.mxu0
        %v577 = vadd.f32 %v394, %v576
        %v578 = vpop.f32.mrf.mxu0
        %v579 = vadd.f32 %v390, %v578
        %v580 = vpop.f32.mrf.mxu0
        %v581 = vadd.f32 %v394, %v580
        %582 = vmatprep.mubr.bf16.mxu0 0
        %583 = vmatmul.mubr.bf16.gmra.mxu0 %v347
        %v584 = vpop.f32.mrf.mxu0
        %v585 = vadd.f32 %v390, %v584
        %v586 = vpop.f32.mrf.mxu0
        %v587 = vadd.f32 %v394, %v586
        %v588 = vpop.f32.mrf.mxu0
        %v589 = vadd.f32 %v390, %v588
        %v590 = vpop.f32.mrf.mxu0
        %v591 = vadd.f32 %v394, %v590
        %592 = vmatprep.mubr.bf16.mxu0 0
        %593 = vmatmul.mubr.bf16.gmra.mxu0 %v348
        %v594 = vpop.f32.mrf.mxu0
        %v595 = vadd.f32 %v390, %v594
        %v596 = vpop.f32.mrf.mxu0
        %v597 = vadd.f32 %v394, %v596
        %v598 = vpop.f32.mrf.mxu0
        %v599 = vadd.f32 %v390, %v598
        %v600 = vpop.f32.mrf.mxu0
        %v601 = vadd.f32 %v394, %v600
        %602 = vmatprep.mubr.bf16.mxu0 0
        %603 = vmatmul.mubr.bf16.gmra.mxu0 %v349
        %v604 = vpop.f32.mrf.mxu0
        %v605 = vadd.f32 %v390, %v604
        %v606 = vpop.f32.mrf.mxu0
        %v607 = vadd.f32 %v394, %v606
        %v608 = vpop.f32.mrf.mxu0
        %v609 = vadd.f32 %v390, %v608
        %v610 = vpop.f32.mrf.mxu0
        %v611 = vadd.f32 %v394, %v610
        %612 = vmatprep.mubr.bf16.mxu0 0
        %613 = vmatmul.mubr.bf16.gmra.mxu0 %v350
        %v614 = vpop.f32.mrf.mxu0
        %v615 = vadd.f32 %v390, %v614
        %v616 = vpop.f32.mrf.mxu0
        %v617 = vadd.f32 %v394, %v616
        %v618 = vpop.f32.mrf.mxu0
        %v619 = vadd.f32 %v390, %v618
        %v620 = vpop.f32.mrf.mxu0
        %v621 = vadd.f32 %v394, %v620
        %622 = vmatprep.mubr.bf16.mxu0 0
        %623 = vmatmul.mubr.bf16.gmra.mxu0 %v351
        %v624 = vpop.f32.mrf.mxu0
        %v625 = vadd.f32 %v390, %v624
        %v626 = vpop.f32.mrf.mxu0
        %v627 = vadd.f32 %v394, %v626
        %v628 = vpop.f32.mrf.mxu0
        %v629 = vadd.f32 %v390, %v628
        %v630 = vpop.f32.mrf.mxu0
        %v631 = vadd.f32 %v394, %v630
        %632 = vmatprep.mubr.bf16.mxu0 0
        %633 = vmatmul.mubr.bf16.gmra.mxu0 %v352
        %v634 = vpop.f32.mrf.mxu0
        %v635 = vadd.f32 %v390, %v634
        %v636 = vpop.f32.mrf.mxu0
        %v637 = vadd.f32 %v394, %v636
        %v638 = vpop.f32.mrf.mxu0
        %v639 = vadd.f32 %v390, %v638
        %v640 = vpop.f32.mrf.mxu0
        %v641 = vadd.f32 %v394, %v640
        %642 = vdwg.mxu0
        %643 = vmatprep.subr.bf16.mxu0 0
        %644 = vmatpush1.bf16.msra.mxu0 %v505
        %645 = vmatprep.subr.bf16.mxu0 0
        %646 = vmatpush1.bf16.msra.mxu0 %v502
        %647 = vmatprep.subr.bf16.mxu0 0
        %648 = vmatpush1.bf16.msra.mxu0 %v499
        %649 = vmatprep.subr.bf16.mxu0 0
        %650 = vmatpush1.bf16.msra.mxu0 %v496
        %651 = vmatprep.subr.bf16.mxu0 0
        %652 = vmatpush1.bf16.msra.mxu0 %v493
        %653 = vmatprep.subr.bf16.mxu0 0
        %654 = vmatpush1.bf16.msra.mxu0 %v490
        %655 = vmatprep.subr.bf16.mxu0 0
        %656 = vmatpush1.bf16.msra.mxu0 %v487
        %657 = vmatprep.subr.bf16.mxu0 0
        %658 = vmatpush1.bf16.msra.mxu0 %v484
        %659 = vmatprep.subr.bf16.mxu0 0
        %660 = vmatpush2.bf16.msra.mxu0 0
        %661 = vmatprep.subr.bf16.mxu0 0
        %662 = vmatpush2.bf16.msra.mxu0 0
        %663 = vmatprep.subr.bf16.mxu0 0
        %664 = vmatpush2.bf16.msra.mxu0 0
        %665 = vmatprep.subr.bf16.mxu0 0
        %666 = vmatpush2.bf16.msra.mxu0 0
        %667 = vmatprep.subr.bf16.mxu0 0
        %668 = vmatpush2.bf16.msra.mxu0 0
        %669 = vmatprep.subr.bf16.mxu0 0
        %670 = vmatpush2.bf16.msra.mxu0 0
        %671 = vmatprep.subr.bf16.mxu0 0
        %672 = vmatpush2.bf16.msra.mxu0 0
        %673 = vmatprep.subr.bf16.mxu0 0
        %674 = vmatpush2.bf16.msra.mxu0 0
        %675 = vmatprep.mubr.bf16.mxu0 0
        %676 = vmatmul.mubr.bf16.gmra.mxu0 %v345
        %v677 = vpop.f32.mrf.mxu0
        %v678 = vadd.f32 %v398, %v677
        %v679 = vpop.f32.mrf.mxu0
        %v680 = vpop.f32.mrf.mxu0
        %v681 = vadd.f32 %v398, %v680
        %v682 = vpop.f32.mrf.mxu0
        %683 = vmatprep.mubr.bf16.mxu0 0
        %684 = vmatmul.mubr.bf16.gmra.mxu0 %v346
        %v685 = vpop.f32.mrf.mxu0
        %v686 = vadd.f32 %v398, %v685
        %v687 = vpop.f32.mrf.mxu0
        %v688 = vpop.f32.mrf.mxu0
        %v689 = vadd.f32 %v398, %v688
        %v690 = vpop.f32.mrf.mxu0
        %691 = vmatprep.mubr.bf16.mxu0 0
        %692 = vmatmul.mubr.bf16.gmra.mxu0 %v347
        %v693 = vpop.f32.mrf.mxu0
        %v694 = vadd.f32 %v398, %v693
        %v695 = vpop.f32.mrf.mxu0
        %v696 = vpop.f32.mrf.mxu0
        %v697 = vadd.f32 %v398, %v696
        %v698 = vpop.f32.mrf.mxu0
        %699 = vmatprep.mubr.bf16.mxu0 0
        %700 = vmatmul.mubr.bf16.gmra.mxu0 %v348
        %v701 = vpop.f32.mrf.mxu0
        %v702 = vadd.f32 %v398, %v701
        %v703 = vpop.f32.mrf.mxu0
        %v704 = vpop.f32.mrf.mxu0
        %v705 = vadd.f32 %v398, %v704
        %v706 = vpop.f32.mrf.mxu0
        %707 = vmatprep.mubr.bf16.mxu0 0
        %708 = vmatmul.mubr.bf16.gmra.mxu0 %v349
        %v709 = vpop.f32.mrf.mxu0
        %v710 = vadd.f32 %v398, %v709
        %v711 = vpop.f32.mrf.mxu0
        %v712 = vpop.f32.mrf.mxu0
        %v713 = vadd.f32 %v398, %v712
        %v714 = vpop.f32.mrf.mxu0
        %715 = vmatprep.mubr.bf16.mxu0 0
        %716 = vmatmul.mubr.bf16.gmra.mxu0 %v350
        %v717 = vpop.f32.mrf.mxu0
        %v718 = vadd.f32 %v398, %v717
        %v719 = vpop.f32.mrf.mxu0
        %v720 = vpop.f32.mrf.mxu0
        %v721 = vadd.f32 %v398, %v720
        %v722 = vpop.f32.mrf.mxu0
        %723 = vmatprep.mubr.bf16.mxu0 0
        %724 = vmatmul.mubr.bf16.gmra.mxu0 %v351
        %v725 = vpop.f32.mrf.mxu0
        %v726 = vadd.f32 %v398, %v725
        %v727 = vpop.f32.mrf.mxu0
        %v728 = vpop.f32.mrf.mxu0
        %v729 = vadd.f32 %v398, %v728
        %v730 = vpop.f32.mrf.mxu0
        %731 = vmatprep.mubr.bf16.mxu0 0
        %732 = vmatmul.mubr.bf16.gmra.mxu0 %v352
        %v733 = vpop.f32.mrf.mxu0
        %v734 = vadd.f32 %v398, %v733
        %v735 = vpop.f32.mrf.mxu0
        %v736 = vpop.f32.mrf.mxu0
        %v737 = vadd.f32 %v398, %v736
        %v738 = vpop.f32.mrf.mxu0
        %739 = vdwg.mxu0
        %756 = vrot.lane.b32.xlu0 %v565, 96
        %v757 = vpop.permute.xlu0 %756
        %758 = vrot.lane.b32.xlu0 %v569, 96
        %v759 = vpop.permute.xlu0 %758
        %760 = vrot.lane.b32.xlu0 %v575, 96
        %v761 = vpop.permute.xlu0 %760
        %762 = vrot.lane.b32.xlu0 %v579, 96
        %v763 = vpop.permute.xlu0 %762
        %764 = vrot.lane.b32.xlu0 %v585, 96
        %v765 = vpop.permute.xlu0 %764
        %766 = vrot.lane.b32.xlu0 %v589, 96
        %v767 = vpop.permute.xlu0 %766
        %768 = vrot.lane.b32.xlu0 %v595, 96
        %v769 = vpop.permute.xlu0 %768
        %770 = vrot.lane.b32.xlu0 %v599, 96
        %v771 = vpop.permute.xlu0 %770
        %772 = vrot.lane.b32.xlu0 %v605, 96
        %v773 = vpop.permute.xlu0 %772
        %774 = vrot.lane.b32.xlu0 %v609, 96
        %v775 = vpop.permute.xlu0 %774
        %776 = vrot.lane.b32.xlu0 %v615, 96
        %v777 = vpop.permute.xlu0 %776
        %778 = vrot.lane.b32.xlu0 %v619, 96
        %v779 = vpop.permute.xlu0 %778
        %780 = vrot.lane.b32.xlu0 %v625, 96
        %v781 = vpop.permute.xlu0 %780
        %782 = vrot.lane.b32.xlu0 %v629, 96
        %v783 = vpop.permute.xlu0 %782
        %784 = vrot.lane.b32.xlu0 %v635, 96
        %v785 = vpop.permute.xlu0 %784
        %786 = vrot.lane.b32.xlu0 %v639, 96
        %v787 = vpop.permute.xlu0 %786
        %804 = vrot.lane.b32.xlu0 %v565, 64
        %v805 = vpop.permute.xlu0 %804
        %806 = vrot.lane.b32.xlu0 %v569, 64
        %v807 = vpop.permute.xlu0 %806
        %808 = vrot.lane.b32.xlu0 %v575, 64
        %v809 = vpop.permute.xlu0 %808
        %810 = vrot.lane.b32.xlu0 %v579, 64
        %v811 = vpop.permute.xlu0 %810
        %812 = vrot.lane.b32.xlu0 %v585, 64
        %v813 = vpop.permute.xlu0 %812
        %814 = vrot.lane.b32.xlu0 %v589, 64
        %v815 = vpop.permute.xlu0 %814
        %816 = vrot.lane.b32.xlu0 %v595, 64
        %v817 = vpop.permute.xlu0 %816
        %818 = vrot.lane.b32.xlu0 %v599, 64
        %v819 = vpop.permute.xlu0 %818
        %820 = vrot.lane.b32.xlu0 %v605, 64
        %v821 = vpop.permute.xlu0 %820
        %822 = vrot.lane.b32.xlu0 %v609, 64
        %v823 = vpop.permute.xlu0 %822
        %824 = vrot.lane.b32.xlu0 %v615, 64
        %v825 = vpop.permute.xlu0 %824
        %826 = vrot.lane.b32.xlu0 %v619, 64
        %v827 = vpop.permute.xlu0 %826
        %828 = vrot.lane.b32.xlu0 %v625, 64
        %v829 = vpop.permute.xlu0 %828
        %830 = vrot.lane.b32.xlu0 %v629, 64
        %v831 = vpop.permute.xlu0 %830
        %832 = vrot.lane.b32.xlu0 %v635, 64
        %v833 = vpop.permute.xlu0 %832
        %834 = vrot.lane.b32.xlu0 %v639, 64
        %v835 = vpop.permute.xlu0 %834
        %852 = vrot.lane.b32.xlu0 %v565, 32
        %v853 = vpop.permute.xlu0 %852
        %854 = vrot.lane.b32.xlu0 %v569, 32
        %v855 = vpop.permute.xlu0 %854
        %856 = vrot.lane.b32.xlu0 %v575, 32
        %v857 = vpop.permute.xlu0 %856
        %858 = vrot.lane.b32.xlu0 %v579, 32
        %v859 = vpop.permute.xlu0 %858
        %860 = vrot.lane.b32.xlu0 %v585, 32
        %v861 = vpop.permute.xlu0 %860
        %862 = vrot.lane.b32.xlu0 %v589, 32
        %v863 = vpop.permute.xlu0 %862
        %864 = vrot.lane.b32.xlu0 %v595, 32
        %v865 = vpop.permute.xlu0 %864
        %866 = vrot.lane.b32.xlu0 %v599, 32
        %v867 = vpop.permute.xlu0 %866
        %868 = vrot.lane.b32.xlu0 %v605, 32
        %v869 = vpop.permute.xlu0 %868
        %870 = vrot.lane.b32.xlu0 %v609, 32
        %v871 = vpop.permute.xlu0 %870
        %872 = vrot.lane.b32.xlu0 %v615, 32
        %v873 = vpop.permute.xlu0 %872
        %874 = vrot.lane.b32.xlu0 %v619, 32
        %v875 = vpop.permute.xlu0 %874
        %876 = vrot.lane.b32.xlu0 %v625, 32
        %v877 = vpop.permute.xlu0 %876
        %878 = vrot.lane.b32.xlu0 %v629, 32
        %v879 = vpop.permute.xlu0 %878
        %880 = vrot.lane.b32.xlu0 %v635, 32
        %v881 = vpop.permute.xlu0 %880
        %882 = vrot.lane.b32.xlu0 %v639, 32
        %v883 = vpop.permute.xlu0 %882
        %v900 = vcombine.low %v565, %v805
        %v901 = vcombine.high %v565, %v805
        %v903 = vunpack.c.l.s4 1983009808
        %v904 = vunpack.c.0.s8 %v903
        %v905 = vlaneseq
        %v906 = vshrl.u32 %v905, 7
        %v907 = vsub.s32 %v904, %v906
        %v908 = vrot.slane %v900, %v907
        %v910 = vunpack.c.l.s4 1983009808
        %v911 = vunpack.c.0.s8 %v910
        %v912 = vlaneseq
        %v913 = vshrl.u32 %v912, 7
        %v914 = vsub.s32 %v911, %v913
        %v915 = vrot.slane %v901, %v914
        %v916 = vcombine.low %v757, %v853
        %v917 = vcombine.high %v757, %v853
        %v919 = vunpack.c.l.s4 1983009808
        %v920 = vunpack.c.0.s8 %v919
        %v921 = vlaneseq
        %v922 = vshrl.u32 %v921, 7
        %v923 = vsub.s32 %v920, %v922
        %v924 = vrot.slane %v916, %v923
        %v926 = vunpack.c.l.s4 1983009808
        %v927 = vunpack.c.0.s8 %v926
        %v928 = vlaneseq
        %v929 = vshrl.u32 %v928, 7
        %v930 = vsub.s32 %v927, %v929
        %v931 = vrot.slane %v917, %v930
        %v932 = vcombine.low %v908, %v924
        %v933 = vcombine.high %v908, %v924
        %v935 = vunpack.c.l.s4 1934713408
        %v936 = vunpack.c.0.s8 %v935
        %v937 = vlaneseq
        %v938 = vshrl.u32 %v937, 7
        %v939 = vsub.s32 %v936, %v938
        %v940 = vrot.slane %v932, %v939
        %v942 = vunpack.c.l.s4 1934713408
        %v943 = vunpack.c.0.s8 %v942
        %v944 = vlaneseq
        %v945 = vshrl.u32 %v944, 7
        %v946 = vsub.s32 %v943, %v945
        %v947 = vrot.slane %v933, %v946
        %v948 = vcombine.low %v915, %v931
        %v949 = vcombine.high %v915, %v931
        %v951 = vunpack.c.l.s4 1934713408
        %v952 = vunpack.c.0.s8 %v951
        %v953 = vlaneseq
        %v954 = vshrl.u32 %v953, 7
        %v955 = vsub.s32 %v952, %v954
        %v956 = vrot.slane %v948, %v955
        %v958 = vunpack.c.l.s4 1934713408
        %v959 = vunpack.c.0.s8 %v958
        %v960 = vlaneseq
        %v961 = vshrl.u32 %v960, 7
        %v962 = vsub.s32 %v959, %v961
        %v963 = vrot.slane %v949, %v962
        %v964 = vcombine.high %v940, 0.0
        %v965 = vcombine.high %v947, 0.0
        %v966 = vcombine.high %v956, 0.0
        %v967 = vcombine.high %v963, 0.0
        %v968 = vcombine.low %v569, %v807
        %v969 = vcombine.high %v569, %v807
        %v971 = vunpack.c.l.s4 1983009808
        %v972 = vunpack.c.0.s8 %v971
        %v973 = vlaneseq
        %v974 = vshrl.u32 %v973, 7
        %v975 = vsub.s32 %v972, %v974
        %v976 = vrot.slane %v968, %v975
        %v978 = vunpack.c.l.s4 1983009808
        %v979 = vunpack.c.0.s8 %v978
        %v980 = vlaneseq
        %v981 = vshrl.u32 %v980, 7
        %v982 = vsub.s32 %v979, %v981
        %v983 = vrot.slane %v969, %v982
        %v984 = vcombine.low %v759, %v855
        %v985 = vcombine.high %v759, %v855
        %v987 = vunpack.c.l.s4 1983009808
        %v988 = vunpack.c.0.s8 %v987
        %v989 = vlaneseq
        %v990 = vshrl.u32 %v989, 7
        %v991 = vsub.s32 %v988, %v990
        %v992 = vrot.slane %v984, %v991
        %v994 = vunpack.c.l.s4 1983009808
        %v995 = vunpack.c.0.s8 %v994
        %v996 = vlaneseq
        %v997 = vshrl.u32 %v996, 7
        %v998 = vsub.s32 %v995, %v997
        %v999 = vrot.slane %v985, %v998
        %v1000 = vcombine.low %v976, %v992
        %v1001 = vcombine.high %v976, %v992
        %v1003 = vunpack.c.l.s4 1934713408
        %v1004 = vunpack.c.0.s8 %v1003
        %v1005 = vlaneseq
        %v1006 = vshrl.u32 %v1005, 7
        %v1007 = vsub.s32 %v1004, %v1006
        %v1008 = vrot.slane %v1000, %v1007
        %v1010 = vunpack.c.l.s4 1934713408
        %v1011 = vunpack.c.0.s8 %v1010
        %v1012 = vlaneseq
        %v1013 = vshrl.u32 %v1012, 7
        %v1014 = vsub.s32 %v1011, %v1013
        %v1015 = vrot.slane %v1001, %v1014
        %v1016 = vcombine.low %v983, %v999
        %v1017 = vcombine.high %v983, %v999
        %v1019 = vunpack.c.l.s4 1934713408
        %v1020 = vunpack.c.0.s8 %v1019
        %v1021 = vlaneseq
        %v1022 = vshrl.u32 %v1021, 7
        %v1023 = vsub.s32 %v1020, %v1022
        %v1024 = vrot.slane %v1016, %v1023
        %v1026 = vunpack.c.l.s4 1934713408
        %v1027 = vunpack.c.0.s8 %v1026
        %v1028 = vlaneseq
        %v1029 = vshrl.u32 %v1028, 7
        %v1030 = vsub.s32 %v1027, %v1029
        %v1031 = vrot.slane %v1017, %v1030
        %v1032 = vcombine.high %v1008, 0.0
        %v1033 = vcombine.high %v1015, 0.0
        %v1034 = vcombine.high %v1024, 0.0
        %v1035 = vcombine.high %v1031, 0.0
        %v1036 = vcombine.low %v575, %v809
        %v1037 = vcombine.high %v575, %v809
        %v1039 = vunpack.c.l.s4 1983009808
        %v1040 = vunpack.c.0.s8 %v1039
        %v1041 = vlaneseq
        %v1042 = vshrl.u32 %v1041, 7
        %v1043 = vsub.s32 %v1040, %v1042
        %v1044 = vrot.slane %v1036, %v1043
        %v1046 = vunpack.c.l.s4 1983009808
        %v1047 = vunpack.c.0.s8 %v1046
        %v1048 = vlaneseq
        %v1049 = vshrl.u32 %v1048, 7
        %v1050 = vsub.s32 %v1047, %v1049
        %v1051 = vrot.slane %v1037, %v1050
        %v1052 = vcombine.low %v761, %v857
        %v1053 = vcombine.high %v761, %v857
        %v1055 = vunpack.c.l.s4 1983009808
        %v1056 = vunpack.c.0.s8 %v1055
        %v1057 = vlaneseq
        %v1058 = vshrl.u32 %v1057, 7
        %v1059 = vsub.s32 %v1056, %v1058
        %v1060 = vrot.slane %v1052, %v1059
        %v1062 = vunpack.c.l.s4 1983009808
        %v1063 = vunpack.c.0.s8 %v1062
        %v1064 = vlaneseq
        %v1065 = vshrl.u32 %v1064, 7
        %v1066 = vsub.s32 %v1063, %v1065
        %v1067 = vrot.slane %v1053, %v1066
        %v1068 = vcombine.low %v1044, %v1060
        %v1069 = vcombine.high %v1044, %v1060
        %v1071 = vunpack.c.l.s4 1934713408
        %v1072 = vunpack.c.0.s8 %v1071
        %v1073 = vlaneseq
        %v1074 = vshrl.u32 %v1073, 7
        %v1075 = vsub.s32 %v1072, %v1074
        %v1076 = vrot.slane %v1068, %v1075
        %v1078 = vunpack.c.l.s4 1934713408
        %v1079 = vunpack.c.0.s8 %v1078
        %v1080 = vlaneseq
        %v1081 = vshrl.u32 %v1080, 7
        %v1082 = vsub.s32 %v1079, %v1081
        %v1083 = vrot.slane %v1069, %v1082
        %v1084 = vcombine.low %v1051, %v1067
        %v1085 = vcombine.high %v1051, %v1067
        %v1087 = vunpack.c.l.s4 1934713408
        %v1088 = vunpack.c.0.s8 %v1087
        %v1089 = vlaneseq
        %v1090 = vshrl.u32 %v1089, 7
        %v1091 = vsub.s32 %v1088, %v1090
        %v1092 = vrot.slane %v1084, %v1091
        %v1094 = vunpack.c.l.s4 1934713408
        %v1095 = vunpack.c.0.s8 %v1094
        %v1096 = vlaneseq
        %v1097 = vshrl.u32 %v1096, 7
        %v1098 = vsub.s32 %v1095, %v1097
        %v1099 = vrot.slane %v1085, %v1098
        %v1100 = vcombine.high %v1076, 0.0
        %v1101 = vcombine.high %v1083, 0.0
        %v1102 = vcombine.high %v1092, 0.0
        %v1103 = vcombine.high %v1099, 0.0
        %v1104 = vcombine.low %v579, %v811
        %v1105 = vcombine.high %v579, %v811
        %v1107 = vunpack.c.l.s4 1983009808
        %v1108 = vunpack.c.0.s8 %v1107
        %v1109 = vlaneseq
        %v1110 = vshrl.u32 %v1109, 7
        %v1111 = vsub.s32 %v1108, %v1110
        %v1112 = vrot.slane %v1104, %v1111
        %v1114 = vunpack.c.l.s4 1983009808
        %v1115 = vunpack.c.0.s8 %v1114
        %v1116 = vlaneseq
        %v1117 = vshrl.u32 %v1116, 7
        %v1118 = vsub.s32 %v1115, %v1117
        %v1119 = vrot.slane %v1105, %v1118
        %v1120 = vcombine.low %v763, %v859
        %v1121 = vcombine.high %v763, %v859
        %v1123 = vunpack.c.l.s4 1983009808
        %v1124 = vunpack.c.0.s8 %v1123
        %v1125 = vlaneseq
        %v1126 = vshrl.u32 %v1125, 7
        %v1127 = vsub.s32 %v1124, %v1126
        %v1128 = vrot.slane %v1120, %v1127
        %v1130 = vunpack.c.l.s4 1983009808
        %v1131 = vunpack.c.0.s8 %v1130
        %v1132 = vlaneseq
        %v1133 = vshrl.u32 %v1132, 7
        %v1134 = vsub.s32 %v1131, %v1133
        %v1135 = vrot.slane %v1121, %v1134
        %v1136 = vcombine.low %v1112, %v1128
        %v1137 = vcombine.high %v1112, %v1128
        %v1139 = vunpack.c.l.s4 1934713408
        %v1140 = vunpack.c.0.s8 %v1139
        %v1141 = vlaneseq
        %v1142 = vshrl.u32 %v1141, 7
        %v1143 = vsub.s32 %v1140, %v1142
        %v1144 = vrot.slane %v1136, %v1143
        %v1146 = vunpack.c.l.s4 1934713408
        %v1147 = vunpack.c.0.s8 %v1146
        %v1148 = vlaneseq
        %v1149 = vshrl.u32 %v1148, 7
        %v1150 = vsub.s32 %v1147, %v1149
        %v1151 = vrot.slane %v1137, %v1150
        %v1152 = vcombine.low %v1119, %v1135
        %v1153 = vcombine.high %v1119, %v1135
        %v1155 = vunpack.c.l.s4 1934713408
        %v1156 = vunpack.c.0.s8 %v1155
        %v1157 = vlaneseq
        %v1158 = vshrl.u32 %v1157, 7
        %v1159 = vsub.s32 %v1156, %v1158
        %v1160 = vrot.slane %v1152, %v1159
        %v1162 = vunpack.c.l.s4 1934713408
        %v1163 = vunpack.c.0.s8 %v1162
        %v1164 = vlaneseq
        %v1165 = vshrl.u32 %v1164, 7
        %v1166 = vsub.s32 %v1163, %v1165
        %v1167 = vrot.slane %v1153, %v1166
        %v1168 = vcombine.high %v1144, 0.0
        %v1169 = vcombine.high %v1151, 0.0
        %v1170 = vcombine.high %v1160, 0.0
        %v1171 = vcombine.high %v1167, 0.0
        %v1172 = vcombine.low %v585, %v813
        %v1173 = vcombine.high %v585, %v813
        %v1175 = vunpack.c.l.s4 1983009808
        %v1176 = vunpack.c.0.s8 %v1175
        %v1177 = vlaneseq
        %v1178 = vshrl.u32 %v1177, 7
        %v1179 = vsub.s32 %v1176, %v1178
        %v1180 = vrot.slane %v1172, %v1179
        %v1182 = vunpack.c.l.s4 1983009808
        %v1183 = vunpack.c.0.s8 %v1182
        %v1184 = vlaneseq
        %v1185 = vshrl.u32 %v1184, 7
        %v1186 = vsub.s32 %v1183, %v1185
        %v1187 = vrot.slane %v1173, %v1186
        %v1188 = vcombine.low %v765, %v861
        %v1189 = vcombine.high %v765, %v861
        %v1191 = vunpack.c.l.s4 1983009808
        %v1192 = vunpack.c.0.s8 %v1191
        %v1193 = vlaneseq
        %v1194 = vshrl.u32 %v1193, 7
        %v1195 = vsub.s32 %v1192, %v1194
        %v1196 = vrot.slane %v1188, %v1195
        %v1198 = vunpack.c.l.s4 1983009808
        %v1199 = vunpack.c.0.s8 %v1198
        %v1200 = vlaneseq
        %v1201 = vshrl.u32 %v1200, 7
        %v1202 = vsub.s32 %v1199, %v1201
        %v1203 = vrot.slane %v1189, %v1202
        %v1204 = vcombine.low %v1180, %v1196
        %v1205 = vcombine.high %v1180, %v1196
        %v1207 = vunpack.c.l.s4 1934713408
        %v1208 = vunpack.c.0.s8 %v1207
        %v1209 = vlaneseq
        %v1210 = vshrl.u32 %v1209, 7
        %v1211 = vsub.s32 %v1208, %v1210
        %v1212 = vrot.slane %v1204, %v1211
        %v1214 = vunpack.c.l.s4 1934713408
        %v1215 = vunpack.c.0.s8 %v1214
        %v1216 = vlaneseq
        %v1217 = vshrl.u32 %v1216, 7
        %v1218 = vsub.s32 %v1215, %v1217
        %v1219 = vrot.slane %v1205, %v1218
        %v1220 = vcombine.low %v1187, %v1203
        %v1221 = vcombine.high %v1187, %v1203
        %v1223 = vunpack.c.l.s4 1934713408
        %v1224 = vunpack.c.0.s8 %v1223
        %v1225 = vlaneseq
        %v1226 = vshrl.u32 %v1225, 7
        %v1227 = vsub.s32 %v1224, %v1226
        %v1228 = vrot.slane %v1220, %v1227
        %v1230 = vunpack.c.l.s4 1934713408
        %v1231 = vunpack.c.0.s8 %v1230
        %v1232 = vlaneseq
        %v1233 = vshrl.u32 %v1232, 7
        %v1234 = vsub.s32 %v1231, %v1233
        %v1235 = vrot.slane %v1221, %v1234
        %v1236 = vcombine.high %v1212, 0.0
        %v1237 = vcombine.high %v1219, 0.0
        %v1238 = vcombine.high %v1228, 0.0
        %v1239 = vcombine.high %v1235, 0.0
        %v1240 = vcombine.low %v589, %v815
        %v1241 = vcombine.high %v589, %v815
        %v1243 = vunpack.c.l.s4 1983009808
        %v1244 = vunpack.c.0.s8 %v1243
        %v1245 = vlaneseq
        %v1246 = vshrl.u32 %v1245, 7
        %v1247 = vsub.s32 %v1244, %v1246
        %v1248 = vrot.slane %v1240, %v1247
        %v1250 = vunpack.c.l.s4 1983009808
        %v1251 = vunpack.c.0.s8 %v1250
        %v1252 = vlaneseq
        %v1253 = vshrl.u32 %v1252, 7
        %v1254 = vsub.s32 %v1251, %v1253
        %v1255 = vrot.slane %v1241, %v1254
        %v1256 = vcombine.low %v767, %v863
        %v1257 = vcombine.high %v767, %v863
        %v1259 = vunpack.c.l.s4 1983009808
        %v1260 = vunpack.c.0.s8 %v1259
        %v1261 = vlaneseq
        %v1262 = vshrl.u32 %v1261, 7
        %v1263 = vsub.s32 %v1260, %v1262
        %v1264 = vrot.slane %v1256, %v1263
        %v1266 = vunpack.c.l.s4 1983009808
        %v1267 = vunpack.c.0.s8 %v1266
        %v1268 = vlaneseq
        %v1269 = vshrl.u32 %v1268, 7
        %v1270 = vsub.s32 %v1267, %v1269
        %v1271 = vrot.slane %v1257, %v1270
        %v1272 = vcombine.low %v1248, %v1264
        %v1273 = vcombine.high %v1248, %v1264
        %v1275 = vunpack.c.l.s4 1934713408
        %v1276 = vunpack.c.0.s8 %v1275
        %v1277 = vlaneseq
        %v1278 = vshrl.u32 %v1277, 7
        %v1279 = vsub.s32 %v1276, %v1278
        %v1280 = vrot.slane %v1272, %v1279
        %v1282 = vunpack.c.l.s4 1934713408
        %v1283 = vunpack.c.0.s8 %v1282
        %v1284 = vlaneseq
        %v1285 = vshrl.u32 %v1284, 7
        %v1286 = vsub.s32 %v1283, %v1285
        %v1287 = vrot.slane %v1273, %v1286
        %v1288 = vcombine.low %v1255, %v1271
        %v1289 = vcombine.high %v1255, %v1271
        %v1291 = vunpack.c.l.s4 1934713408
        %v1292 = vunpack.c.0.s8 %v1291
        %v1293 = vlaneseq
        %v1294 = vshrl.u32 %v1293, 7
        %v1295 = vsub.s32 %v1292, %v1294
        %v1296 = vrot.slane %v1288, %v1295
        %v1298 = vunpack.c.l.s4 1934713408
        %v1299 = vunpack.c.0.s8 %v1298
        %v1300 = vlaneseq
        %v1301 = vshrl.u32 %v1300, 7
        %v1302 = vsub.s32 %v1299, %v1301
        %v1303 = vrot.slane %v1289, %v1302
        %v1304 = vcombine.high %v1280, 0.0
        %v1305 = vcombine.high %v1287, 0.0
        %v1306 = vcombine.high %v1296, 0.0
        %v1307 = vcombine.high %v1303, 0.0
        %v1308 = vcombine.low %v595, %v817
        %v1309 = vcombine.high %v595, %v817
        %v1311 = vunpack.c.l.s4 1983009808
        %v1312 = vunpack.c.0.s8 %v1311
        %v1313 = vlaneseq
        %v1314 = vshrl.u32 %v1313, 7
        %v1315 = vsub.s32 %v1312, %v1314
        %v1316 = vrot.slane %v1308, %v1315
        %v1318 = vunpack.c.l.s4 1983009808
        %v1319 = vunpack.c.0.s8 %v1318
        %v1320 = vlaneseq
        %v1321 = vshrl.u32 %v1320, 7
        %v1322 = vsub.s32 %v1319, %v1321
        %v1323 = vrot.slane %v1309, %v1322
        %v1324 = vcombine.low %v769, %v865
        %v1325 = vcombine.high %v769, %v865
        %v1327 = vunpack.c.l.s4 1983009808
        %v1328 = vunpack.c.0.s8 %v1327
        %v1329 = vlaneseq
        %v1330 = vshrl.u32 %v1329, 7
        %v1331 = vsub.s32 %v1328, %v1330
        %v1332 = vrot.slane %v1324, %v1331
        %v1334 = vunpack.c.l.s4 1983009808
        %v1335 = vunpack.c.0.s8 %v1334
        %v1336 = vlaneseq
        %v1337 = vshrl.u32 %v1336, 7
        %v1338 = vsub.s32 %v1335, %v1337
        %v1339 = vrot.slane %v1325, %v1338
        %v1340 = vcombine.low %v1316, %v1332
        %v1341 = vcombine.high %v1316, %v1332
        %v1343 = vunpack.c.l.s4 1934713408
        %v1344 = vunpack.c.0.s8 %v1343
        %v1345 = vlaneseq
        %v1346 = vshrl.u32 %v1345, 7
        %v1347 = vsub.s32 %v1344, %v1346
        %v1348 = vrot.slane %v1340, %v1347
        %v1350 = vunpack.c.l.s4 1934713408
        %v1351 = vunpack.c.0.s8 %v1350
        %v1352 = vlaneseq
        %v1353 = vshrl.u32 %v1352, 7
        %v1354 = vsub.s32 %v1351, %v1353
        %v1355 = vrot.slane %v1341, %v1354
        %v1356 = vcombine.low %v1323, %v1339
        %v1357 = vcombine.high %v1323, %v1339
        %v1359 = vunpack.c.l.s4 1934713408
        %v1360 = vunpack.c.0.s8 %v1359
        %v1361 = vlaneseq
        %v1362 = vshrl.u32 %v1361, 7
        %v1363 = vsub.s32 %v1360, %v1362
        %v1364 = vrot.slane %v1356, %v1363
        %v1366 = vunpack.c.l.s4 1934713408
        %v1367 = vunpack.c.0.s8 %v1366
        %v1368 = vlaneseq
        %v1369 = vshrl.u32 %v1368, 7
        %v1370 = vsub.s32 %v1367, %v1369
        %v1371 = vrot.slane %v1357, %v1370
        %v1372 = vcombine.high %v1348, 0.0
        %v1373 = vcombine.high %v1355, 0.0
        %v1374 = vcombine.high %v1364, 0.0
        %v1375 = vcombine.high %v1371, 0.0
        %v1376 = vcombine.low %v599, %v819
        %v1377 = vcombine.high %v599, %v819
        %v1379 = vunpack.c.l.s4 1983009808
        %v1380 = vunpack.c.0.s8 %v1379
        %v1381 = vlaneseq
        %v1382 = vshrl.u32 %v1381, 7
        %v1383 = vsub.s32 %v1380, %v1382
        %v1384 = vrot.slane %v1376, %v1383
        %v1386 = vunpack.c.l.s4 1983009808
        %v1387 = vunpack.c.0.s8 %v1386
        %v1388 = vlaneseq
        %v1389 = vshrl.u32 %v1388, 7
        %v1390 = vsub.s32 %v1387, %v1389
        %v1391 = vrot.slane %v1377, %v1390
        %v1392 = vcombine.low %v771, %v867
        %v1393 = vcombine.high %v771, %v867
        %v1395 = vunpack.c.l.s4 1983009808
        %v1396 = vunpack.c.0.s8 %v1395
        %v1397 = vlaneseq
        %v1398 = vshrl.u32 %v1397, 7
        %v1399 = vsub.s32 %v1396, %v1398
        %v1400 = vrot.slane %v1392, %v1399
        %v1402 = vunpack.c.l.s4 1983009808
        %v1403 = vunpack.c.0.s8 %v1402
        %v1404 = vlaneseq
        %v1405 = vshrl.u32 %v1404, 7
        %v1406 = vsub.s32 %v1403, %v1405
        %v1407 = vrot.slane %v1393, %v1406
        %v1408 = vcombine.low %v1384, %v1400
        %v1409 = vcombine.high %v1384, %v1400
        %v1411 = vunpack.c.l.s4 1934713408
        %v1412 = vunpack.c.0.s8 %v1411
        %v1413 = vlaneseq
        %v1414 = vshrl.u32 %v1413, 7
        %v1415 = vsub.s32 %v1412, %v1414
        %v1416 = vrot.slane %v1408, %v1415
        %v1418 = vunpack.c.l.s4 1934713408
        %v1419 = vunpack.c.0.s8 %v1418
        %v1420 = vlaneseq
        %v1421 = vshrl.u32 %v1420, 7
        %v1422 = vsub.s32 %v1419, %v1421
        %v1423 = vrot.slane %v1409, %v1422
        %v1424 = vcombine.low %v1391, %v1407
        %v1425 = vcombine.high %v1391, %v1407
        %v1427 = vunpack.c.l.s4 1934713408
        %v1428 = vunpack.c.0.s8 %v1427
        %v1429 = vlaneseq
        %v1430 = vshrl.u32 %v1429, 7
        %v1431 = vsub.s32 %v1428, %v1430
        %v1432 = vrot.slane %v1424, %v1431
        %v1434 = vunpack.c.l.s4 1934713408
        %v1435 = vunpack.c.0.s8 %v1434
        %v1436 = vlaneseq
        %v1437 = vshrl.u32 %v1436, 7
        %v1438 = vsub.s32 %v1435, %v1437
        %v1439 = vrot.slane %v1425, %v1438
        %v1440 = vcombine.high %v1416, 0.0
        %v1441 = vcombine.high %v1423, 0.0
        %v1442 = vcombine.high %v1432, 0.0
        %v1443 = vcombine.high %v1439, 0.0
        %v1444 = vcombine.low %v605, %v821
        %v1445 = vcombine.high %v605, %v821
        %v1447 = vunpack.c.l.s4 1983009808
        %v1448 = vunpack.c.0.s8 %v1447
        %v1449 = vlaneseq
        %v1450 = vshrl.u32 %v1449, 7
        %v1451 = vsub.s32 %v1448, %v1450
        %v1452 = vrot.slane %v1444, %v1451
        %v1454 = vunpack.c.l.s4 1983009808
        %v1455 = vunpack.c.0.s8 %v1454
        %v1456 = vlaneseq
        %v1457 = vshrl.u32 %v1456, 7
        %v1458 = vsub.s32 %v1455, %v1457
        %v1459 = vrot.slane %v1445, %v1458
        %v1460 = vcombine.low %v773, %v869
        %v1461 = vcombine.high %v773, %v869
        %v1463 = vunpack.c.l.s4 1983009808
        %v1464 = vunpack.c.0.s8 %v1463
        %v1465 = vlaneseq
        %v1466 = vshrl.u32 %v1465, 7
        %v1467 = vsub.s32 %v1464, %v1466
        %v1468 = vrot.slane %v1460, %v1467
        %v1470 = vunpack.c.l.s4 1983009808
        %v1471 = vunpack.c.0.s8 %v1470
        %v1472 = vlaneseq
        %v1473 = vshrl.u32 %v1472, 7
        %v1474 = vsub.s32 %v1471, %v1473
        %v1475 = vrot.slane %v1461, %v1474
        %v1476 = vcombine.low %v1452, %v1468
        %v1477 = vcombine.high %v1452, %v1468
        %v1479 = vunpack.c.l.s4 1934713408
        %v1480 = vunpack.c.0.s8 %v1479
        %v1481 = vlaneseq
        %v1482 = vshrl.u32 %v1481, 7
        %v1483 = vsub.s32 %v1480, %v1482
        %v1484 = vrot.slane %v1476, %v1483
        %v1486 = vunpack.c.l.s4 1934713408
        %v1487 = vunpack.c.0.s8 %v1486
        %v1488 = vlaneseq
        %v1489 = vshrl.u32 %v1488, 7
        %v1490 = vsub.s32 %v1487, %v1489
        %v1491 = vrot.slane %v1477, %v1490
        %v1492 = vcombine.low %v1459, %v1475
        %v1493 = vcombine.high %v1459, %v1475
        %v1495 = vunpack.c.l.s4 1934713408
        %v1496 = vunpack.c.0.s8 %v1495
        %v1497 = vlaneseq
        %v1498 = vshrl.u32 %v1497, 7
        %v1499 = vsub.s32 %v1496, %v1498
        %v1500 = vrot.slane %v1492, %v1499
        %v1502 = vunpack.c.l.s4 1934713408
        %v1503 = vunpack.c.0.s8 %v1502
        %v1504 = vlaneseq
        %v1505 = vshrl.u32 %v1504, 7
        %v1506 = vsub.s32 %v1503, %v1505
        %v1507 = vrot.slane %v1493, %v1506
        %v1508 = vcombine.high %v1484, 0.0
        %v1509 = vcombine.high %v1491, 0.0
        %v1510 = vcombine.high %v1500, 0.0
        %v1511 = vcombine.high %v1507, 0.0
        %v1512 = vcombine.low %v609, %v823
        %v1513 = vcombine.high %v609, %v823
        %v1515 = vunpack.c.l.s4 1983009808
        %v1516 = vunpack.c.0.s8 %v1515
        %v1517 = vlaneseq
        %v1518 = vshrl.u32 %v1517, 7
        %v1519 = vsub.s32 %v1516, %v1518
        %v1520 = vrot.slane %v1512, %v1519
        %v1522 = vunpack.c.l.s4 1983009808
        %v1523 = vunpack.c.0.s8 %v1522
        %v1524 = vlaneseq
        %v1525 = vshrl.u32 %v1524, 7
        %v1526 = vsub.s32 %v1523, %v1525
        %v1527 = vrot.slane %v1513, %v1526
        %v1528 = vcombine.low %v775, %v871
        %v1529 = vcombine.high %v775, %v871
        %v1531 = vunpack.c.l.s4 1983009808
        %v1532 = vunpack.c.0.s8 %v1531
        %v1533 = vlaneseq
        %v1534 = vshrl.u32 %v1533, 7
        %v1535 = vsub.s32 %v1532, %v1534
        %v1536 = vrot.slane %v1528, %v1535
        %v1538 = vunpack.c.l.s4 1983009808
        %v1539 = vunpack.c.0.s8 %v1538
        %v1540 = vlaneseq
        %v1541 = vshrl.u32 %v1540, 7
        %v1542 = vsub.s32 %v1539, %v1541
        %v1543 = vrot.slane %v1529, %v1542
        %v1544 = vcombine.low %v1520, %v1536
        %v1545 = vcombine.high %v1520, %v1536
        %v1547 = vunpack.c.l.s4 1934713408
        %v1548 = vunpack.c.0.s8 %v1547
        %v1549 = vlaneseq
        %v1550 = vshrl.u32 %v1549, 7
        %v1551 = vsub.s32 %v1548, %v1550
        %v1552 = vrot.slane %v1544, %v1551
        %v1554 = vunpack.c.l.s4 1934713408
        %v1555 = vunpack.c.0.s8 %v1554
        %v1556 = vlaneseq
        %v1557 = vshrl.u32 %v1556, 7
        %v1558 = vsub.s32 %v1555, %v1557
        %v1559 = vrot.slane %v1545, %v1558
        %v1560 = vcombine.low %v1527, %v1543
        %v1561 = vcombine.high %v1527, %v1543
        %v1563 = vunpack.c.l.s4 1934713408
        %v1564 = vunpack.c.0.s8 %v1563
        %v1565 = vlaneseq
        %v1566 = vshrl.u32 %v1565, 7
        %v1567 = vsub.s32 %v1564, %v1566
        %v1568 = vrot.slane %v1560, %v1567
        %v1570 = vunpack.c.l.s4 1934713408
        %v1571 = vunpack.c.0.s8 %v1570
        %v1572 = vlaneseq
        %v1573 = vshrl.u32 %v1572, 7
        %v1574 = vsub.s32 %v1571, %v1573
        %v1575 = vrot.slane %v1561, %v1574
        %v1576 = vcombine.high %v1552, 0.0
        %v1577 = vcombine.high %v1559, 0.0
        %v1578 = vcombine.high %v1568, 0.0
        %v1579 = vcombine.high %v1575, 0.0
        %v1580 = vcombine.low %v615, %v825
        %v1581 = vcombine.high %v615, %v825
        %v1583 = vunpack.c.l.s4 1983009808
        %v1584 = vunpack.c.0.s8 %v1583
        %v1585 = vlaneseq
        %v1586 = vshrl.u32 %v1585, 7
        %v1587 = vsub.s32 %v1584, %v1586
        %v1588 = vrot.slane %v1580, %v1587
        %v1590 = vunpack.c.l.s4 1983009808
        %v1591 = vunpack.c.0.s8 %v1590
        %v1592 = vlaneseq
        %v1593 = vshrl.u32 %v1592, 7
        %v1594 = vsub.s32 %v1591, %v1593
        %v1595 = vrot.slane %v1581, %v1594
        %v1596 = vcombine.low %v777, %v873
        %v1597 = vcombine.high %v777, %v873
        %v1599 = vunpack.c.l.s4 1983009808
        %v1600 = vunpack.c.0.s8 %v1599
        %v1601 = vlaneseq
        %v1602 = vshrl.u32 %v1601, 7
        %v1603 = vsub.s32 %v1600, %v1602
        %v1604 = vrot.slane %v1596, %v1603
        %v1606 = vunpack.c.l.s4 1983009808
        %v1607 = vunpack.c.0.s8 %v1606
        %v1608 = vlaneseq
        %v1609 = vshrl.u32 %v1608, 7
        %v1610 = vsub.s32 %v1607, %v1609
        %v1611 = vrot.slane %v1597, %v1610
        %v1612 = vcombine.low %v1588, %v1604
        %v1613 = vcombine.high %v1588, %v1604
        %v1615 = vunpack.c.l.s4 1934713408
        %v1616 = vunpack.c.0.s8 %v1615
        %v1617 = vlaneseq
        %v1618 = vshrl.u32 %v1617, 7
        %v1619 = vsub.s32 %v1616, %v1618
        %v1620 = vrot.slane %v1612, %v1619
        %v1622 = vunpack.c.l.s4 1934713408
        %v1623 = vunpack.c.0.s8 %v1622
        %v1624 = vlaneseq
        %v1625 = vshrl.u32 %v1624, 7
        %v1626 = vsub.s32 %v1623, %v1625
        %v1627 = vrot.slane %v1613, %v1626
        %v1628 = vcombine.low %v1595, %v1611
        %v1629 = vcombine.high %v1595, %v1611
        %v1631 = vunpack.c.l.s4 1934713408
        %v1632 = vunpack.c.0.s8 %v1631
        %v1633 = vlaneseq
        %v1634 = vshrl.u32 %v1633, 7
        %v1635 = vsub.s32 %v1632, %v1634
        %v1636 = vrot.slane %v1628, %v1635
        %v1638 = vunpack.c.l.s4 1934713408
        %v1639 = vunpack.c.0.s8 %v1638
        %v1640 = vlaneseq
        %v1641 = vshrl.u32 %v1640, 7
        %v1642 = vsub.s32 %v1639, %v1641
        %v1643 = vrot.slane %v1629, %v1642
        %v1644 = vcombine.high %v1620, 0.0
        %v1645 = vcombine.high %v1627, 0.0
        %v1646 = vcombine.high %v1636, 0.0
        %v1647 = vcombine.high %v1643, 0.0
        %v1648 = vcombine.low %v619, %v827
        %v1649 = vcombine.high %v619, %v827
        %v1651 = vunpack.c.l.s4 1983009808
        %v1652 = vunpack.c.0.s8 %v1651
        %v1653 = vlaneseq
        %v1654 = vshrl.u32 %v1653, 7
        %v1655 = vsub.s32 %v1652, %v1654
        %v1656 = vrot.slane %v1648, %v1655
        %v1658 = vunpack.c.l.s4 1983009808
        %v1659 = vunpack.c.0.s8 %v1658
        %v1660 = vlaneseq
        %v1661 = vshrl.u32 %v1660, 7
        %v1662 = vsub.s32 %v1659, %v1661
        %v1663 = vrot.slane %v1649, %v1662
        %v1664 = vcombine.low %v779, %v875
        %v1665 = vcombine.high %v779, %v875
        %v1667 = vunpack.c.l.s4 1983009808
        %v1668 = vunpack.c.0.s8 %v1667
        %v1669 = vlaneseq
        %v1670 = vshrl.u32 %v1669, 7
        %v1671 = vsub.s32 %v1668, %v1670
        %v1672 = vrot.slane %v1664, %v1671
        %v1674 = vunpack.c.l.s4 1983009808
        %v1675 = vunpack.c.0.s8 %v1674
        %v1676 = vlaneseq
        %v1677 = vshrl.u32 %v1676, 7
        %v1678 = vsub.s32 %v1675, %v1677
        %v1679 = vrot.slane %v1665, %v1678
        %v1680 = vcombine.low %v1656, %v1672
        %v1681 = vcombine.high %v1656, %v1672
        %v1683 = vunpack.c.l.s4 1934713408
        %v1684 = vunpack.c.0.s8 %v1683
        %v1685 = vlaneseq
        %v1686 = vshrl.u32 %v1685, 7
        %v1687 = vsub.s32 %v1684, %v1686
        %v1688 = vrot.slane %v1680, %v1687
        %v1690 = vunpack.c.l.s4 1934713408
        %v1691 = vunpack.c.0.s8 %v1690
        %v1692 = vlaneseq
        %v1693 = vshrl.u32 %v1692, 7
        %v1694 = vsub.s32 %v1691, %v1693
        %v1695 = vrot.slane %v1681, %v1694
        %v1696 = vcombine.low %v1663, %v1679
        %v1697 = vcombine.high %v1663, %v1679
        %v1699 = vunpack.c.l.s4 1934713408
        %v1700 = vunpack.c.0.s8 %v1699
        %v1701 = vlaneseq
        %v1702 = vshrl.u32 %v1701, 7
        %v1703 = vsub.s32 %v1700, %v1702
        %v1704 = vrot.slane %v1696, %v1703
        %v1706 = vunpack.c.l.s4 1934713408
        %v1707 = vunpack.c.0.s8 %v1706
        %v1708 = vlaneseq
        %v1709 = vshrl.u32 %v1708, 7
        %v1710 = vsub.s32 %v1707, %v1709
        %v1711 = vrot.slane %v1697, %v1710
        %v1712 = vcombine.high %v1688, 0.0
        %v1713 = vcombine.high %v1695, 0.0
        %v1714 = vcombine.high %v1704, 0.0
        %v1715 = vcombine.high %v1711, 0.0
        %v1716 = vcombine.low %v625, %v829
        %v1717 = vcombine.high %v625, %v829
        %v1719 = vunpack.c.l.s4 1983009808
        %v1720 = vunpack.c.0.s8 %v1719
        %v1721 = vlaneseq
        %v1722 = vshrl.u32 %v1721, 7
        %v1723 = vsub.s32 %v1720, %v1722
        %v1724 = vrot.slane %v1716, %v1723
        %v1726 = vunpack.c.l.s4 1983009808
        %v1727 = vunpack.c.0.s8 %v1726
        %v1728 = vlaneseq
        %v1729 = vshrl.u32 %v1728, 7
        %v1730 = vsub.s32 %v1727, %v1729
        %v1731 = vrot.slane %v1717, %v1730
        %v1732 = vcombine.low %v781, %v877
        %v1733 = vcombine.high %v781, %v877
        %v1735 = vunpack.c.l.s4 1983009808
        %v1736 = vunpack.c.0.s8 %v1735
        %v1737 = vlaneseq
        %v1738 = vshrl.u32 %v1737, 7
        %v1739 = vsub.s32 %v1736, %v1738
        %v1740 = vrot.slane %v1732, %v1739
        %v1742 = vunpack.c.l.s4 1983009808
        %v1743 = vunpack.c.0.s8 %v1742
        %v1744 = vlaneseq
        %v1745 = vshrl.u32 %v1744, 7
        %v1746 = vsub.s32 %v1743, %v1745
        %v1747 = vrot.slane %v1733, %v1746
        %v1748 = vcombine.low %v1724, %v1740
        %v1749 = vcombine.high %v1724, %v1740
        %v1751 = vunpack.c.l.s4 1934713408
        %v1752 = vunpack.c.0.s8 %v1751
        %v1753 = vlaneseq
        %v1754 = vshrl.u32 %v1753, 7
        %v1755 = vsub.s32 %v1752, %v1754
        %v1756 = vrot.slane %v1748, %v1755
        %v1758 = vunpack.c.l.s4 1934713408
        %v1759 = vunpack.c.0.s8 %v1758
        %v1760 = vlaneseq
        %v1761 = vshrl.u32 %v1760, 7
        %v1762 = vsub.s32 %v1759, %v1761
        %v1763 = vrot.slane %v1749, %v1762
        %v1764 = vcombine.low %v1731, %v1747
        %v1765 = vcombine.high %v1731, %v1747
        %v1767 = vunpack.c.l.s4 1934713408
        %v1768 = vunpack.c.0.s8 %v1767
        %v1769 = vlaneseq
        %v1770 = vshrl.u32 %v1769, 7
        %v1771 = vsub.s32 %v1768, %v1770
        %v1772 = vrot.slane %v1764, %v1771
        %v1774 = vunpack.c.l.s4 1934713408
        %v1775 = vunpack.c.0.s8 %v1774
        %v1776 = vlaneseq
        %v1777 = vshrl.u32 %v1776, 7
        %v1778 = vsub.s32 %v1775, %v1777
        %v1779 = vrot.slane %v1765, %v1778
        %v1780 = vcombine.high %v1756, 0.0
        %v1781 = vcombine.high %v1763, 0.0
        %v1782 = vcombine.high %v1772, 0.0
        %v1783 = vcombine.high %v1779, 0.0
        %v1784 = vcombine.low %v629, %v831
        %v1785 = vcombine.high %v629, %v831
        %v1787 = vunpack.c.l.s4 1983009808
        %v1788 = vunpack.c.0.s8 %v1787
        %v1789 = vlaneseq
        %v1790 = vshrl.u32 %v1789, 7
        %v1791 = vsub.s32 %v1788, %v1790
        %v1792 = vrot.slane %v1784, %v1791
        %v1794 = vunpack.c.l.s4 1983009808
        %v1795 = vunpack.c.0.s8 %v1794
        %v1796 = vlaneseq
        %v1797 = vshrl.u32 %v1796, 7
        %v1798 = vsub.s32 %v1795, %v1797
        %v1799 = vrot.slane %v1785, %v1798
        %v1800 = vcombine.low %v783, %v879
        %v1801 = vcombine.high %v783, %v879
        %v1803 = vunpack.c.l.s4 1983009808
        %v1804 = vunpack.c.0.s8 %v1803
        %v1805 = vlaneseq
        %v1806 = vshrl.u32 %v1805, 7
        %v1807 = vsub.s32 %v1804, %v1806
        %v1808 = vrot.slane %v1800, %v1807
        %v1810 = vunpack.c.l.s4 1983009808
        %v1811 = vunpack.c.0.s8 %v1810
        %v1812 = vlaneseq
        %v1813 = vshrl.u32 %v1812, 7
        %v1814 = vsub.s32 %v1811, %v1813
        %v1815 = vrot.slane %v1801, %v1814
        %v1816 = vcombine.low %v1792, %v1808
        %v1817 = vcombine.high %v1792, %v1808
        %v1819 = vunpack.c.l.s4 1934713408
        %v1820 = vunpack.c.0.s8 %v1819
        %v1821 = vlaneseq
        %v1822 = vshrl.u32 %v1821, 7
        %v1823 = vsub.s32 %v1820, %v1822
        %v1824 = vrot.slane %v1816, %v1823
        %v1826 = vunpack.c.l.s4 1934713408
        %v1827 = vunpack.c.0.s8 %v1826
        %v1828 = vlaneseq
        %v1829 = vshrl.u32 %v1828, 7
        %v1830 = vsub.s32 %v1827, %v1829
        %v1831 = vrot.slane %v1817, %v1830
        %v1832 = vcombine.low %v1799, %v1815
        %v1833 = vcombine.high %v1799, %v1815
        %v1835 = vunpack.c.l.s4 1934713408
        %v1836 = vunpack.c.0.s8 %v1835
        %v1837 = vlaneseq
        %v1838 = vshrl.u32 %v1837, 7
        %v1839 = vsub.s32 %v1836, %v1838
        %v1840 = vrot.slane %v1832, %v1839
        %v1842 = vunpack.c.l.s4 1934713408
        %v1843 = vunpack.c.0.s8 %v1842
        %v1844 = vlaneseq
        %v1845 = vshrl.u32 %v1844, 7
        %v1846 = vsub.s32 %v1843, %v1845
        %v1847 = vrot.slane %v1833, %v1846
        %v1848 = vcombine.high %v1824, 0.0
        %v1849 = vcombine.high %v1831, 0.0
        %v1850 = vcombine.high %v1840, 0.0
        %v1851 = vcombine.high %v1847, 0.0
        %v1852 = vcombine.low %v635, %v833
        %v1853 = vcombine.high %v635, %v833
        %v1855 = vunpack.c.l.s4 1983009808
        %v1856 = vunpack.c.0.s8 %v1855
        %v1857 = vlaneseq
        %v1858 = vshrl.u32 %v1857, 7
        %v1859 = vsub.s32 %v1856, %v1858
        %v1860 = vrot.slane %v1852, %v1859
        %v1862 = vunpack.c.l.s4 1983009808
        %v1863 = vunpack.c.0.s8 %v1862
        %v1864 = vlaneseq
        %v1865 = vshrl.u32 %v1864, 7
        %v1866 = vsub.s32 %v1863, %v1865
        %v1867 = vrot.slane %v1853, %v1866
        %v1868 = vcombine.low %v785, %v881
        %v1869 = vcombine.high %v785, %v881
        %v1871 = vunpack.c.l.s4 1983009808
        %v1872 = vunpack.c.0.s8 %v1871
        %v1873 = vlaneseq
        %v1874 = vshrl.u32 %v1873, 7
        %v1875 = vsub.s32 %v1872, %v1874
        %v1876 = vrot.slane %v1868, %v1875
        %v1878 = vunpack.c.l.s4 1983009808
        %v1879 = vunpack.c.0.s8 %v1878
        %v1880 = vlaneseq
        %v1881 = vshrl.u32 %v1880, 7
        %v1882 = vsub.s32 %v1879, %v1881
        %v1883 = vrot.slane %v1869, %v1882
        %v1884 = vcombine.low %v1860, %v1876
        %v1885 = vcombine.high %v1860, %v1876
        %v1887 = vunpack.c.l.s4 1934713408
        %v1888 = vunpack.c.0.s8 %v1887
        %v1889 = vlaneseq
        %v1890 = vshrl.u32 %v1889, 7
        %v1891 = vsub.s32 %v1888, %v1890
        %v1892 = vrot.slane %v1884, %v1891
        %v1894 = vunpack.c.l.s4 1934713408
        %v1895 = vunpack.c.0.s8 %v1894
        %v1896 = vlaneseq
        %v1897 = vshrl.u32 %v1896, 7
        %v1898 = vsub.s32 %v1895, %v1897
        %v1899 = vrot.slane %v1885, %v1898
        %v1900 = vcombine.low %v1867, %v1883
        %v1901 = vcombine.high %v1867, %v1883
        %v1903 = vunpack.c.l.s4 1934713408
        %v1904 = vunpack.c.0.s8 %v1903
        %v1905 = vlaneseq
        %v1906 = vshrl.u32 %v1905, 7
        %v1907 = vsub.s32 %v1904, %v1906
        %v1908 = vrot.slane %v1900, %v1907
        %v1910 = vunpack.c.l.s4 1934713408
        %v1911 = vunpack.c.0.s8 %v1910
        %v1912 = vlaneseq
        %v1913 = vshrl.u32 %v1912, 7
        %v1914 = vsub.s32 %v1911, %v1913
        %v1915 = vrot.slane %v1901, %v1914
        %v1916 = vcombine.high %v1892, 0.0
        %v1917 = vcombine.high %v1899, 0.0
        %v1918 = vcombine.high %v1908, 0.0
        %v1919 = vcombine.high %v1915, 0.0
        %v1920 = vcombine.low %v639, %v835
        %v1921 = vcombine.high %v639, %v835
        %v1923 = vunpack.c.l.s4 1983009808
        %v1924 = vunpack.c.0.s8 %v1923
        %v1925 = vlaneseq
        %v1926 = vshrl.u32 %v1925, 7
        %v1927 = vsub.s32 %v1924, %v1926
        %v1928 = vrot.slane %v1920, %v1927
        %v1930 = vunpack.c.l.s4 1983009808
        %v1931 = vunpack.c.0.s8 %v1930
        %v1932 = vlaneseq
        %v1933 = vshrl.u32 %v1932, 7
        %v1934 = vsub.s32 %v1931, %v1933
        %v1935 = vrot.slane %v1921, %v1934
        %v1936 = vcombine.low %v787, %v883
        %v1937 = vcombine.high %v787, %v883
        %v1939 = vunpack.c.l.s4 1983009808
        %v1940 = vunpack.c.0.s8 %v1939
        %v1941 = vlaneseq
        %v1942 = vshrl.u32 %v1941, 7
        %v1943 = vsub.s32 %v1940, %v1942
        %v1944 = vrot.slane %v1936, %v1943
        %v1946 = vunpack.c.l.s4 1983009808
        %v1947 = vunpack.c.0.s8 %v1946
        %v1948 = vlaneseq
        %v1949 = vshrl.u32 %v1948, 7
        %v1950 = vsub.s32 %v1947, %v1949
        %v1951 = vrot.slane %v1937, %v1950
        %v1952 = vcombine.low %v1928, %v1944
        %v1953 = vcombine.high %v1928, %v1944
        %v1955 = vunpack.c.l.s4 1934713408
        %v1956 = vunpack.c.0.s8 %v1955
        %v1957 = vlaneseq
        %v1958 = vshrl.u32 %v1957, 7
        %v1959 = vsub.s32 %v1956, %v1958
        %v1960 = vrot.slane %v1952, %v1959
        %v1962 = vunpack.c.l.s4 1934713408
        %v1963 = vunpack.c.0.s8 %v1962
        %v1964 = vlaneseq
        %v1965 = vshrl.u32 %v1964, 7
        %v1966 = vsub.s32 %v1963, %v1965
        %v1967 = vrot.slane %v1953, %v1966
        %v1968 = vcombine.low %v1935, %v1951
        %v1969 = vcombine.high %v1935, %v1951
        %v1971 = vunpack.c.l.s4 1934713408
        %v1972 = vunpack.c.0.s8 %v1971
        %v1973 = vlaneseq
        %v1974 = vshrl.u32 %v1973, 7
        %v1975 = vsub.s32 %v1972, %v1974
        %v1976 = vrot.slane %v1968, %v1975
        %v1978 = vunpack.c.l.s4 1934713408
        %v1979 = vunpack.c.0.s8 %v1978
        %v1980 = vlaneseq
        %v1981 = vshrl.u32 %v1980, 7
        %v1982 = vsub.s32 %v1979, %v1981
        %v1983 = vrot.slane %v1969, %v1982
        %v1984 = vcombine.high %v1960, 0.0
        %v1985 = vcombine.high %v1967, 0.0
        %v1986 = vcombine.high %v1976, 0.0
        %v1987 = vcombine.high %v1983, 0.0
        %v1988 = vcombine.low %v940, %v947
        %v1990 = vunpack.c.l.s4 1983009808
        %v1991 = vunpack.c.0.s8 %v1990
        %v1992 = vlaneseq
        %v1993 = vshrl.u32 %v1992, 7
        %v1994 = vsub.s32 %v1991, %v1993
        %v1995 = vrot.slane %v1988, %v1994
        %v1996 = vcombine.low %v964, %v965
        %v1998 = vunpack.c.l.s4 1983009808
        %v1999 = vunpack.c.0.s8 %v1998
        %v2000 = vlaneseq
        %v2001 = vshrl.u32 %v2000, 7
        %v2002 = vsub.s32 %v1999, %v2001
        %v2003 = vrot.slane %v1996, %v2002
        %v2004 = vcombine.low %v956, %v963
        %v2006 = vunpack.c.l.s4 1983009808
        %v2007 = vunpack.c.0.s8 %v2006
        %v2008 = vlaneseq
        %v2009 = vshrl.u32 %v2008, 7
        %v2010 = vsub.s32 %v2007, %v2009
        %v2011 = vrot.slane %v2004, %v2010
        %v2012 = vcombine.low %v966, %v967
        %v2014 = vunpack.c.l.s4 1983009808
        %v2015 = vunpack.c.0.s8 %v2014
        %v2016 = vlaneseq
        %v2017 = vshrl.u32 %v2016, 7
        %v2018 = vsub.s32 %v2015, %v2017
        %v2019 = vrot.slane %v2012, %v2018
        %v2020 = vcombine.low %v1995, %v2003
        %v2021 = vcombine.high %v1995, %v2003
        %v2023 = vunpack.c.l.s4 1934713408
        %v2024 = vunpack.c.0.s8 %v2023
        %v2025 = vlaneseq
        %v2026 = vshrl.u32 %v2025, 7
        %v2027 = vsub.s32 %v2024, %v2026
        %v2028 = vrot.slane %v2020, %v2027
        %v2030 = vunpack.c.l.s4 1934713408
        %v2031 = vunpack.c.0.s8 %v2030
        %v2032 = vlaneseq
        %v2033 = vshrl.u32 %v2032, 7
        %v2034 = vsub.s32 %v2031, %v2033
        %v2035 = vrot.slane %v2021, %v2034
        %v2036 = vcombine.low %v2011, %v2019
        %v2037 = vcombine.high %v2011, %v2019
        %v2039 = vunpack.c.l.s4 1934713408
        %v2040 = vunpack.c.0.s8 %v2039
        %v2041 = vlaneseq
        %v2042 = vshrl.u32 %v2041, 7
        %v2043 = vsub.s32 %v2040, %v2042
        %v2044 = vrot.slane %v2036, %v2043
        %v2046 = vunpack.c.l.s4 1934713408
        %v2047 = vunpack.c.0.s8 %v2046
        %v2048 = vlaneseq
        %v2049 = vshrl.u32 %v2048, 7
        %v2050 = vsub.s32 %v2047, %v2049
        %v2051 = vrot.slane %v2037, %v2050
        %v2052 = vcombine.low %v2028, %v2044
        %v2053 = vcombine.high %v2028, %v2044
        %v2054 = vcombine.low %v2035, %v2051
        %v2055 = vcombine.high %v2035, %v2051
        %v2056 = vcombine.low %v1008, %v1015
        %v2058 = vunpack.c.l.s4 1983009808
        %v2059 = vunpack.c.0.s8 %v2058
        %v2060 = vlaneseq
        %v2061 = vshrl.u32 %v2060, 7
        %v2062 = vsub.s32 %v2059, %v2061
        %v2063 = vrot.slane %v2056, %v2062
        %v2064 = vcombine.low %v1032, %v1033
        %v2066 = vunpack.c.l.s4 1983009808
        %v2067 = vunpack.c.0.s8 %v2066
        %v2068 = vlaneseq
        %v2069 = vshrl.u32 %v2068, 7
        %v2070 = vsub.s32 %v2067, %v2069
        %v2071 = vrot.slane %v2064, %v2070
        %v2072 = vcombine.low %v1024, %v1031
        %v2074 = vunpack.c.l.s4 1983009808
        %v2075 = vunpack.c.0.s8 %v2074
        %v2076 = vlaneseq
        %v2077 = vshrl.u32 %v2076, 7
        %v2078 = vsub.s32 %v2075, %v2077
        %v2079 = vrot.slane %v2072, %v2078
        %v2080 = vcombine.low %v1034, %v1035
        %v2082 = vunpack.c.l.s4 1983009808
        %v2083 = vunpack.c.0.s8 %v2082
        %v2084 = vlaneseq
        %v2085 = vshrl.u32 %v2084, 7
        %v2086 = vsub.s32 %v2083, %v2085
        %v2087 = vrot.slane %v2080, %v2086
        %v2088 = vcombine.low %v2063, %v2071
        %v2089 = vcombine.high %v2063, %v2071
        %v2091 = vunpack.c.l.s4 1934713408
        %v2092 = vunpack.c.0.s8 %v2091
        %v2093 = vlaneseq
        %v2094 = vshrl.u32 %v2093, 7
        %v2095 = vsub.s32 %v2092, %v2094
        %v2096 = vrot.slane %v2088, %v2095
        %v2098 = vunpack.c.l.s4 1934713408
        %v2099 = vunpack.c.0.s8 %v2098
        %v2100 = vlaneseq
        %v2101 = vshrl.u32 %v2100, 7
        %v2102 = vsub.s32 %v2099, %v2101
        %v2103 = vrot.slane %v2089, %v2102
        %v2104 = vcombine.low %v2079, %v2087
        %v2105 = vcombine.high %v2079, %v2087
        %v2107 = vunpack.c.l.s4 1934713408
        %v2108 = vunpack.c.0.s8 %v2107
        %v2109 = vlaneseq
        %v2110 = vshrl.u32 %v2109, 7
        %v2111 = vsub.s32 %v2108, %v2110
        %v2112 = vrot.slane %v2104, %v2111
        %v2114 = vunpack.c.l.s4 1934713408
        %v2115 = vunpack.c.0.s8 %v2114
        %v2116 = vlaneseq
        %v2117 = vshrl.u32 %v2116, 7
        %v2118 = vsub.s32 %v2115, %v2117
        %v2119 = vrot.slane %v2105, %v2118
        %v2120 = vcombine.low %v2096, %v2112
        %v2121 = vcombine.high %v2096, %v2112
        %v2122 = vcombine.low %v2103, %v2119
        %v2123 = vcombine.high %v2103, %v2119
        %v2124 = vcombine.low %v1076, %v1083
        %v2126 = vunpack.c.l.s4 1983009808
        %v2127 = vunpack.c.0.s8 %v2126
        %v2128 = vlaneseq
        %v2129 = vshrl.u32 %v2128, 7
        %v2130 = vsub.s32 %v2127, %v2129
        %v2131 = vrot.slane %v2124, %v2130
        %v2132 = vcombine.low %v1100, %v1101
        %v2134 = vunpack.c.l.s4 1983009808
        %v2135 = vunpack.c.0.s8 %v2134
        %v2136 = vlaneseq
        %v2137 = vshrl.u32 %v2136, 7
        %v2138 = vsub.s32 %v2135, %v2137
        %v2139 = vrot.slane %v2132, %v2138
        %v2140 = vcombine.low %v1092, %v1099
        %v2142 = vunpack.c.l.s4 1983009808
        %v2143 = vunpack.c.0.s8 %v2142
        %v2144 = vlaneseq
        %v2145 = vshrl.u32 %v2144, 7
        %v2146 = vsub.s32 %v2143, %v2145
        %v2147 = vrot.slane %v2140, %v2146
        %v2148 = vcombine.low %v1102, %v1103
        %v2150 = vunpack.c.l.s4 1983009808
        %v2151 = vunpack.c.0.s8 %v2150
        %v2152 = vlaneseq
        %v2153 = vshrl.u32 %v2152, 7
        %v2154 = vsub.s32 %v2151, %v2153
        %v2155 = vrot.slane %v2148, %v2154
        %v2156 = vcombine.low %v2131, %v2139
        %v2157 = vcombine.high %v2131, %v2139
        %v2159 = vunpack.c.l.s4 1934713408
        %v2160 = vunpack.c.0.s8 %v2159
        %v2161 = vlaneseq
        %v2162 = vshrl.u32 %v2161, 7
        %v2163 = vsub.s32 %v2160, %v2162
        %v2164 = vrot.slane %v2156, %v2163
        %v2166 = vunpack.c.l.s4 1934713408
        %v2167 = vunpack.c.0.s8 %v2166
        %v2168 = vlaneseq
        %v2169 = vshrl.u32 %v2168, 7
        %v2170 = vsub.s32 %v2167, %v2169
        %v2171 = vrot.slane %v2157, %v2170
        %v2172 = vcombine.low %v2147, %v2155
        %v2173 = vcombine.high %v2147, %v2155
        %v2175 = vunpack.c.l.s4 1934713408
        %v2176 = vunpack.c.0.s8 %v2175
        %v2177 = vlaneseq
        %v2178 = vshrl.u32 %v2177, 7
        %v2179 = vsub.s32 %v2176, %v2178
        %v2180 = vrot.slane %v2172, %v2179
        %v2182 = vunpack.c.l.s4 1934713408
        %v2183 = vunpack.c.0.s8 %v2182
        %v2184 = vlaneseq
        %v2185 = vshrl.u32 %v2184, 7
        %v2186 = vsub.s32 %v2183, %v2185
        %v2187 = vrot.slane %v2173, %v2186
        %v2188 = vcombine.low %v2164, %v2180
        %v2189 = vcombine.high %v2164, %v2180
        %v2190 = vcombine.low %v2171, %v2187
        %v2191 = vcombine.high %v2171, %v2187
        %v2192 = vcombine.low %v1144, %v1151
        %v2194 = vunpack.c.l.s4 1983009808
        %v2195 = vunpack.c.0.s8 %v2194
        %v2196 = vlaneseq
        %v2197 = vshrl.u32 %v2196, 7
        %v2198 = vsub.s32 %v2195, %v2197
        %v2199 = vrot.slane %v2192, %v2198
        %v2200 = vcombine.low %v1168, %v1169
        %v2202 = vunpack.c.l.s4 1983009808
        %v2203 = vunpack.c.0.s8 %v2202
        %v2204 = vlaneseq
        %v2205 = vshrl.u32 %v2204, 7
        %v2206 = vsub.s32 %v2203, %v2205
        %v2207 = vrot.slane %v2200, %v2206
        %v2208 = vcombine.low %v1160, %v1167
        %v2210 = vunpack.c.l.s4 1983009808
        %v2211 = vunpack.c.0.s8 %v2210
        %v2212 = vlaneseq
        %v2213 = vshrl.u32 %v2212, 7
        %v2214 = vsub.s32 %v2211, %v2213
        %v2215 = vrot.slane %v2208, %v2214
        %v2216 = vcombine.low %v1170, %v1171
        %v2218 = vunpack.c.l.s4 1983009808
        %v2219 = vunpack.c.0.s8 %v2218
        %v2220 = vlaneseq
        %v2221 = vshrl.u32 %v2220, 7
        %v2222 = vsub.s32 %v2219, %v2221
        %v2223 = vrot.slane %v2216, %v2222
        %v2224 = vcombine.low %v2199, %v2207
        %v2225 = vcombine.high %v2199, %v2207
        %v2227 = vunpack.c.l.s4 1934713408
        %v2228 = vunpack.c.0.s8 %v2227
        %v2229 = vlaneseq
        %v2230 = vshrl.u32 %v2229, 7
        %v2231 = vsub.s32 %v2228, %v2230
        %v2232 = vrot.slane %v2224, %v2231
        %v2234 = vunpack.c.l.s4 1934713408
        %v2235 = vunpack.c.0.s8 %v2234
        %v2236 = vlaneseq
        %v2237 = vshrl.u32 %v2236, 7
        %v2238 = vsub.s32 %v2235, %v2237
        %v2239 = vrot.slane %v2225, %v2238
        %v2240 = vcombine.low %v2215, %v2223
        %v2241 = vcombine.high %v2215, %v2223
        %v2243 = vunpack.c.l.s4 1934713408
        %v2244 = vunpack.c.0.s8 %v2243
        %v2245 = vlaneseq
        %v2246 = vshrl.u32 %v2245, 7
        %v2247 = vsub.s32 %v2244, %v2246
        %v2248 = vrot.slane %v2240, %v2247
        %v2250 = vunpack.c.l.s4 1934713408
        %v2251 = vunpack.c.0.s8 %v2250
        %v2252 = vlaneseq
        %v2253 = vshrl.u32 %v2252, 7
        %v2254 = vsub.s32 %v2251, %v2253
        %v2255 = vrot.slane %v2241, %v2254
        %v2256 = vcombine.low %v2232, %v2248
        %v2257 = vcombine.high %v2232, %v2248
        %v2258 = vcombine.low %v2239, %v2255
        %v2259 = vcombine.high %v2239, %v2255
        %v2260 = vcombine.low %v1212, %v1219
        %v2262 = vunpack.c.l.s4 1983009808
        %v2263 = vunpack.c.0.s8 %v2262
        %v2264 = vlaneseq
        %v2265 = vshrl.u32 %v2264, 7
        %v2266 = vsub.s32 %v2263, %v2265
        %v2267 = vrot.slane %v2260, %v2266
        %v2268 = vcombine.low %v1236, %v1237
        %v2270 = vunpack.c.l.s4 1983009808
        %v2271 = vunpack.c.0.s8 %v2270
        %v2272 = vlaneseq
        %v2273 = vshrl.u32 %v2272, 7
        %v2274 = vsub.s32 %v2271, %v2273
        %v2275 = vrot.slane %v2268, %v2274
        %v2276 = vcombine.low %v1228, %v1235
        %v2278 = vunpack.c.l.s4 1983009808
        %v2279 = vunpack.c.0.s8 %v2278
        %v2280 = vlaneseq
        %v2281 = vshrl.u32 %v2280, 7
        %v2282 = vsub.s32 %v2279, %v2281
        %v2283 = vrot.slane %v2276, %v2282
        %v2284 = vcombine.low %v1238, %v1239
        %v2286 = vunpack.c.l.s4 1983009808
        %v2287 = vunpack.c.0.s8 %v2286
        %v2288 = vlaneseq
        %v2289 = vshrl.u32 %v2288, 7
        %v2290 = vsub.s32 %v2287, %v2289
        %v2291 = vrot.slane %v2284, %v2290
        %v2292 = vcombine.low %v2267, %v2275
        %v2293 = vcombine.high %v2267, %v2275
        %v2295 = vunpack.c.l.s4 1934713408
        %v2296 = vunpack.c.0.s8 %v2295
        %v2297 = vlaneseq
        %v2298 = vshrl.u32 %v2297, 7
        %v2299 = vsub.s32 %v2296, %v2298
        %v2300 = vrot.slane %v2292, %v2299
        %v2302 = vunpack.c.l.s4 1934713408
        %v2303 = vunpack.c.0.s8 %v2302
        %v2304 = vlaneseq
        %v2305 = vshrl.u32 %v2304, 7
        %v2306 = vsub.s32 %v2303, %v2305
        %v2307 = vrot.slane %v2293, %v2306
        %v2308 = vcombine.low %v2283, %v2291
        %v2309 = vcombine.high %v2283, %v2291
        %v2311 = vunpack.c.l.s4 1934713408
        %v2312 = vunpack.c.0.s8 %v2311
        %v2313 = vlaneseq
        %v2314 = vshrl.u32 %v2313, 7
        %v2315 = vsub.s32 %v2312, %v2314
        %v2316 = vrot.slane %v2308, %v2315
        %v2318 = vunpack.c.l.s4 1934713408
        %v2319 = vunpack.c.0.s8 %v2318
        %v2320 = vlaneseq
        %v2321 = vshrl.u32 %v2320, 7
        %v2322 = vsub.s32 %v2319, %v2321
        %v2323 = vrot.slane %v2309, %v2322
        %v2324 = vcombine.low %v2300, %v2316
        %v2325 = vcombine.high %v2300, %v2316
        %v2326 = vcombine.low %v2307, %v2323
        %v2327 = vcombine.high %v2307, %v2323
        %v2328 = vcombine.low %v1280, %v1287
        %v2330 = vunpack.c.l.s4 1983009808
        %v2331 = vunpack.c.0.s8 %v2330
        %v2332 = vlaneseq
        %v2333 = vshrl.u32 %v2332, 7
        %v2334 = vsub.s32 %v2331, %v2333
        %v2335 = vrot.slane %v2328, %v2334
        %v2336 = vcombine.low %v1304, %v1305
        %v2338 = vunpack.c.l.s4 1983009808
        %v2339 = vunpack.c.0.s8 %v2338
        %v2340 = vlaneseq
        %v2341 = vshrl.u32 %v2340, 7
        %v2342 = vsub.s32 %v2339, %v2341
        %v2343 = vrot.slane %v2336, %v2342
        %v2344 = vcombine.low %v1296, %v1303
        %v2346 = vunpack.c.l.s4 1983009808
        %v2347 = vunpack.c.0.s8 %v2346
        %v2348 = vlaneseq
        %v2349 = vshrl.u32 %v2348, 7
        %v2350 = vsub.s32 %v2347, %v2349
        %v2351 = vrot.slane %v2344, %v2350
        %v2352 = vcombine.low %v1306, %v1307
        %v2354 = vunpack.c.l.s4 1983009808
        %v2355 = vunpack.c.0.s8 %v2354
        %v2356 = vlaneseq
        %v2357 = vshrl.u32 %v2356, 7
        %v2358 = vsub.s32 %v2355, %v2357
        %v2359 = vrot.slane %v2352, %v2358
        %v2360 = vcombine.low %v2335, %v2343
        %v2361 = vcombine.high %v2335, %v2343
        %v2363 = vunpack.c.l.s4 1934713408
        %v2364 = vunpack.c.0.s8 %v2363
        %v2365 = vlaneseq
        %v2366 = vshrl.u32 %v2365, 7
        %v2367 = vsub.s32 %v2364, %v2366
        %v2368 = vrot.slane %v2360, %v2367
        %v2370 = vunpack.c.l.s4 1934713408
        %v2371 = vunpack.c.0.s8 %v2370
        %v2372 = vlaneseq
        %v2373 = vshrl.u32 %v2372, 7
        %v2374 = vsub.s32 %v2371, %v2373
        %v2375 = vrot.slane %v2361, %v2374
        %v2376 = vcombine.low %v2351, %v2359
        %v2377 = vcombine.high %v2351, %v2359
        %v2379 = vunpack.c.l.s4 1934713408
        %v2380 = vunpack.c.0.s8 %v2379
        %v2381 = vlaneseq
        %v2382 = vshrl.u32 %v2381, 7
        %v2383 = vsub.s32 %v2380, %v2382
        %v2384 = vrot.slane %v2376, %v2383
        %v2386 = vunpack.c.l.s4 1934713408
        %v2387 = vunpack.c.0.s8 %v2386
        %v2388 = vlaneseq
        %v2389 = vshrl.u32 %v2388, 7
        %v2390 = vsub.s32 %v2387, %v2389
        %v2391 = vrot.slane %v2377, %v2390
        %v2392 = vcombine.low %v2368, %v2384
        %v2393 = vcombine.high %v2368, %v2384
        %v2394 = vcombine.low %v2375, %v2391
        %v2395 = vcombine.high %v2375, %v2391
        %v2396 = vcombine.low %v1348, %v1355
        %v2398 = vunpack.c.l.s4 1983009808
        %v2399 = vunpack.c.0.s8 %v2398
        %v2400 = vlaneseq
        %v2401 = vshrl.u32 %v2400, 7
        %v2402 = vsub.s32 %v2399, %v2401
        %v2403 = vrot.slane %v2396, %v2402
        %v2404 = vcombine.low %v1372, %v1373
        %v2406 = vunpack.c.l.s4 1983009808
        %v2407 = vunpack.c.0.s8 %v2406
        %v2408 = vlaneseq
        %v2409 = vshrl.u32 %v2408, 7
        %v2410 = vsub.s32 %v2407, %v2409
        %v2411 = vrot.slane %v2404, %v2410
        %v2412 = vcombine.low %v1364, %v1371
        %v2414 = vunpack.c.l.s4 1983009808
        %v2415 = vunpack.c.0.s8 %v2414
        %v2416 = vlaneseq
        %v2417 = vshrl.u32 %v2416, 7
        %v2418 = vsub.s32 %v2415, %v2417
        %v2419 = vrot.slane %v2412, %v2418
        %v2420 = vcombine.low %v1374, %v1375
        %v2422 = vunpack.c.l.s4 1983009808
        %v2423 = vunpack.c.0.s8 %v2422
        %v2424 = vlaneseq
        %v2425 = vshrl.u32 %v2424, 7
        %v2426 = vsub.s32 %v2423, %v2425
        %v2427 = vrot.slane %v2420, %v2426
        %v2428 = vcombine.low %v2403, %v2411
        %v2429 = vcombine.high %v2403, %v2411
        %v2431 = vunpack.c.l.s4 1934713408
        %v2432 = vunpack.c.0.s8 %v2431
        %v2433 = vlaneseq
        %v2434 = vshrl.u32 %v2433, 7
        %v2435 = vsub.s32 %v2432, %v2434
        %v2436 = vrot.slane %v2428, %v2435
        %v2438 = vunpack.c.l.s4 1934713408
        %v2439 = vunpack.c.0.s8 %v2438
        %v2440 = vlaneseq
        %v2441 = vshrl.u32 %v2440, 7
        %v2442 = vsub.s32 %v2439, %v2441
        %v2443 = vrot.slane %v2429, %v2442
        %v2444 = vcombine.low %v2419, %v2427
        %v2445 = vcombine.high %v2419, %v2427
        %v2447 = vunpack.c.l.s4 1934713408
        %v2448 = vunpack.c.0.s8 %v2447
        %v2449 = vlaneseq
        %v2450 = vshrl.u32 %v2449, 7
        %v2451 = vsub.s32 %v2448, %v2450
        %v2452 = vrot.slane %v2444, %v2451
        %v2454 = vunpack.c.l.s4 1934713408
        %v2455 = vunpack.c.0.s8 %v2454
        %v2456 = vlaneseq
        %v2457 = vshrl.u32 %v2456, 7
        %v2458 = vsub.s32 %v2455, %v2457
        %v2459 = vrot.slane %v2445, %v2458
        %v2460 = vcombine.low %v2436, %v2452
        %v2461 = vcombine.high %v2436, %v2452
        %v2462 = vcombine.low %v2443, %v2459
        %v2463 = vcombine.high %v2443, %v2459
        %v2464 = vcombine.low %v1416, %v1423
        %v2466 = vunpack.c.l.s4 1983009808
        %v2467 = vunpack.c.0.s8 %v2466
        %v2468 = vlaneseq
        %v2469 = vshrl.u32 %v2468, 7
        %v2470 = vsub.s32 %v2467, %v2469
        %v2471 = vrot.slane %v2464, %v2470
        %v2472 = vcombine.low %v1440, %v1441
        %v2474 = vunpack.c.l.s4 1983009808
        %v2475 = vunpack.c.0.s8 %v2474
        %v2476 = vlaneseq
        %v2477 = vshrl.u32 %v2476, 7
        %v2478 = vsub.s32 %v2475, %v2477
        %v2479 = vrot.slane %v2472, %v2478
        %v2480 = vcombine.low %v1432, %v1439
        %v2482 = vunpack.c.l.s4 1983009808
        %v2483 = vunpack.c.0.s8 %v2482
        %v2484 = vlaneseq
        %v2485 = vshrl.u32 %v2484, 7
        %v2486 = vsub.s32 %v2483, %v2485
        %v2487 = vrot.slane %v2480, %v2486
        %v2488 = vcombine.low %v1442, %v1443
        %v2490 = vunpack.c.l.s4 1983009808
        %v2491 = vunpack.c.0.s8 %v2490
        %v2492 = vlaneseq
        %v2493 = vshrl.u32 %v2492, 7
        %v2494 = vsub.s32 %v2491, %v2493
        %v2495 = vrot.slane %v2488, %v2494
        %v2496 = vcombine.low %v2471, %v2479
        %v2497 = vcombine.high %v2471, %v2479
        %v2499 = vunpack.c.l.s4 1934713408
        %v2500 = vunpack.c.0.s8 %v2499
        %v2501 = vlaneseq
        %v2502 = vshrl.u32 %v2501, 7
        %v2503 = vsub.s32 %v2500, %v2502
        %v2504 = vrot.slane %v2496, %v2503
        %v2506 = vunpack.c.l.s4 1934713408
        %v2507 = vunpack.c.0.s8 %v2506
        %v2508 = vlaneseq
        %v2509 = vshrl.u32 %v2508, 7
        %v2510 = vsub.s32 %v2507, %v2509
        %v2511 = vrot.slane %v2497, %v2510
        %v2512 = vcombine.low %v2487, %v2495
        %v2513 = vcombine.high %v2487, %v2495
        %v2515 = vunpack.c.l.s4 1934713408
        %v2516 = vunpack.c.0.s8 %v2515
        %v2517 = vlaneseq
        %v2518 = vshrl.u32 %v2517, 7
        %v2519 = vsub.s32 %v2516, %v2518
        %v2520 = vrot.slane %v2512, %v2519
        %v2522 = vunpack.c.l.s4 1934713408
        %v2523 = vunpack.c.0.s8 %v2522
        %v2524 = vlaneseq
        %v2525 = vshrl.u32 %v2524, 7
        %v2526 = vsub.s32 %v2523, %v2525
        %v2527 = vrot.slane %v2513, %v2526
        %v2528 = vcombine.low %v2504, %v2520
        %v2529 = vcombine.high %v2504, %v2520
        %v2530 = vcombine.low %v2511, %v2527
        %v2531 = vcombine.high %v2511, %v2527
        %v2532 = vcombine.low %v1484, %v1491
        %v2534 = vunpack.c.l.s4 1983009808
        %v2535 = vunpack.c.0.s8 %v2534
        %v2536 = vlaneseq
        %v2537 = vshrl.u32 %v2536, 7
        %v2538 = vsub.s32 %v2535, %v2537
        %v2539 = vrot.slane %v2532, %v2538
        %v2540 = vcombine.low %v1508, %v1509
        %v2542 = vunpack.c.l.s4 1983009808
        %v2543 = vunpack.c.0.s8 %v2542
        %v2544 = vlaneseq
        %v2545 = vshrl.u32 %v2544, 7
        %v2546 = vsub.s32 %v2543, %v2545
        %v2547 = vrot.slane %v2540, %v2546
        %v2548 = vcombine.low %v1500, %v1507
        %v2550 = vunpack.c.l.s4 1983009808
        %v2551 = vunpack.c.0.s8 %v2550
        %v2552 = vlaneseq
        %v2553 = vshrl.u32 %v2552, 7
        %v2554 = vsub.s32 %v2551, %v2553
        %v2555 = vrot.slane %v2548, %v2554
        %v2556 = vcombine.low %v1510, %v1511
        %v2558 = vunpack.c.l.s4 1983009808
        %v2559 = vunpack.c.0.s8 %v2558
        %v2560 = vlaneseq
        %v2561 = vshrl.u32 %v2560, 7
        %v2562 = vsub.s32 %v2559, %v2561
        %v2563 = vrot.slane %v2556, %v2562
        %v2564 = vcombine.low %v2539, %v2547
        %v2565 = vcombine.high %v2539, %v2547
        %v2567 = vunpack.c.l.s4 1934713408
        %v2568 = vunpack.c.0.s8 %v2567
        %v2569 = vlaneseq
        %v2570 = vshrl.u32 %v2569, 7
        %v2571 = vsub.s32 %v2568, %v2570
        %v2572 = vrot.slane %v2564, %v2571
        %v2574 = vunpack.c.l.s4 1934713408
        %v2575 = vunpack.c.0.s8 %v2574
        %v2576 = vlaneseq
        %v2577 = vshrl.u32 %v2576, 7
        %v2578 = vsub.s32 %v2575, %v2577
        %v2579 = vrot.slane %v2565, %v2578
        %v2580 = vcombine.low %v2555, %v2563
        %v2581 = vcombine.high %v2555, %v2563
        %v2583 = vunpack.c.l.s4 1934713408
        %v2584 = vunpack.c.0.s8 %v2583
        %v2585 = vlaneseq
        %v2586 = vshrl.u32 %v2585, 7
        %v2587 = vsub.s32 %v2584, %v2586
        %v2588 = vrot.slane %v2580, %v2587
        %v2590 = vunpack.c.l.s4 1934713408
        %v2591 = vunpack.c.0.s8 %v2590
        %v2592 = vlaneseq
        %v2593 = vshrl.u32 %v2592, 7
        %v2594 = vsub.s32 %v2591, %v2593
        %v2595 = vrot.slane %v2581, %v2594
        %v2596 = vcombine.low %v2572, %v2588
        %v2597 = vcombine.high %v2572, %v2588
        %v2598 = vcombine.low %v2579, %v2595
        %v2599 = vcombine.high %v2579, %v2595
        %v2600 = vcombine.low %v1552, %v1559
        %v2602 = vunpack.c.l.s4 1983009808
        %v2603 = vunpack.c.0.s8 %v2602
        %v2604 = vlaneseq
        %v2605 = vshrl.u32 %v2604, 7
        %v2606 = vsub.s32 %v2603, %v2605
        %v2607 = vrot.slane %v2600, %v2606
        %v2608 = vcombine.low %v1576, %v1577
        %v2610 = vunpack.c.l.s4 1983009808
        %v2611 = vunpack.c.0.s8 %v2610
        %v2612 = vlaneseq
        %v2613 = vshrl.u32 %v2612, 7
        %v2614 = vsub.s32 %v2611, %v2613
        %v2615 = vrot.slane %v2608, %v2614
        %v2616 = vcombine.low %v1568, %v1575
        %v2618 = vunpack.c.l.s4 1983009808
        %v2619 = vunpack.c.0.s8 %v2618
        %v2620 = vlaneseq
        %v2621 = vshrl.u32 %v2620, 7
        %v2622 = vsub.s32 %v2619, %v2621
        %v2623 = vrot.slane %v2616, %v2622
        %v2624 = vcombine.low %v1578, %v1579
        %v2626 = vunpack.c.l.s4 1983009808
        %v2627 = vunpack.c.0.s8 %v2626
        %v2628 = vlaneseq
        %v2629 = vshrl.u32 %v2628, 7
        %v2630 = vsub.s32 %v2627, %v2629
        %v2631 = vrot.slane %v2624, %v2630
        %v2632 = vcombine.low %v2607, %v2615
        %v2633 = vcombine.high %v2607, %v2615
        %v2635 = vunpack.c.l.s4 1934713408
        %v2636 = vunpack.c.0.s8 %v2635
        %v2637 = vlaneseq
        %v2638 = vshrl.u32 %v2637, 7
        %v2639 = vsub.s32 %v2636, %v2638
        %v2640 = vrot.slane %v2632, %v2639
        %v2642 = vunpack.c.l.s4 1934713408
        %v2643 = vunpack.c.0.s8 %v2642
        %v2644 = vlaneseq
        %v2645 = vshrl.u32 %v2644, 7
        %v2646 = vsub.s32 %v2643, %v2645
        %v2647 = vrot.slane %v2633, %v2646
        %v2648 = vcombine.low %v2623, %v2631
        %v2649 = vcombine.high %v2623, %v2631
        %v2651 = vunpack.c.l.s4 1934713408
        %v2652 = vunpack.c.0.s8 %v2651
        %v2653 = vlaneseq
        %v2654 = vshrl.u32 %v2653, 7
        %v2655 = vsub.s32 %v2652, %v2654
        %v2656 = vrot.slane %v2648, %v2655
        %v2658 = vunpack.c.l.s4 1934713408
        %v2659 = vunpack.c.0.s8 %v2658
        %v2660 = vlaneseq
        %v2661 = vshrl.u32 %v2660, 7
        %v2662 = vsub.s32 %v2659, %v2661
        %v2663 = vrot.slane %v2649, %v2662
        %v2664 = vcombine.low %v2640, %v2656
        %v2665 = vcombine.high %v2640, %v2656
        %v2666 = vcombine.low %v2647, %v2663
        %v2667 = vcombine.high %v2647, %v2663
        %v2668 = vcombine.low %v1620, %v1627
        %v2670 = vunpack.c.l.s4 1983009808
        %v2671 = vunpack.c.0.s8 %v2670
        %v2672 = vlaneseq
        %v2673 = vshrl.u32 %v2672, 7
        %v2674 = vsub.s32 %v2671, %v2673
        %v2675 = vrot.slane %v2668, %v2674
        %v2676 = vcombine.low %v1644, %v1645
        %v2678 = vunpack.c.l.s4 1983009808
        %v2679 = vunpack.c.0.s8 %v2678
        %v2680 = vlaneseq
        %v2681 = vshrl.u32 %v2680, 7
        %v2682 = vsub.s32 %v2679, %v2681
        %v2683 = vrot.slane %v2676, %v2682
        %v2684 = vcombine.low %v1636, %v1643
        %v2686 = vunpack.c.l.s4 1983009808
        %v2687 = vunpack.c.0.s8 %v2686
        %v2688 = vlaneseq
        %v2689 = vshrl.u32 %v2688, 7
        %v2690 = vsub.s32 %v2687, %v2689
        %v2691 = vrot.slane %v2684, %v2690
        %v2692 = vcombine.low %v1646, %v1647
        %v2694 = vunpack.c.l.s4 1983009808
        %v2695 = vunpack.c.0.s8 %v2694
        %v2696 = vlaneseq
        %v2697 = vshrl.u32 %v2696, 7
        %v2698 = vsub.s32 %v2695, %v2697
        %v2699 = vrot.slane %v2692, %v2698
        %v2700 = vcombine.low %v2675, %v2683
        %v2701 = vcombine.high %v2675, %v2683
        %v2703 = vunpack.c.l.s4 1934713408
        %v2704 = vunpack.c.0.s8 %v2703
        %v2705 = vlaneseq
        %v2706 = vshrl.u32 %v2705, 7
        %v2707 = vsub.s32 %v2704, %v2706
        %v2708 = vrot.slane %v2700, %v2707
        %v2710 = vunpack.c.l.s4 1934713408
        %v2711 = vunpack.c.0.s8 %v2710
        %v2712 = vlaneseq
        %v2713 = vshrl.u32 %v2712, 7
        %v2714 = vsub.s32 %v2711, %v2713
        %v2715 = vrot.slane %v2701, %v2714
        %v2716 = vcombine.low %v2691, %v2699
        %v2717 = vcombine.high %v2691, %v2699
        %v2719 = vunpack.c.l.s4 1934713408
        %v2720 = vunpack.c.0.s8 %v2719
        %v2721 = vlaneseq
        %v2722 = vshrl.u32 %v2721, 7
        %v2723 = vsub.s32 %v2720, %v2722
        %v2724 = vrot.slane %v2716, %v2723
        %v2726 = vunpack.c.l.s4 1934713408
        %v2727 = vunpack.c.0.s8 %v2726
        %v2728 = vlaneseq
        %v2729 = vshrl.u32 %v2728, 7
        %v2730 = vsub.s32 %v2727, %v2729
        %v2731 = vrot.slane %v2717, %v2730
        %v2732 = vcombine.low %v2708, %v2724
        %v2733 = vcombine.high %v2708, %v2724
        %v2734 = vcombine.low %v2715, %v2731
        %v2735 = vcombine.high %v2715, %v2731
        %v2736 = vcombine.low %v1688, %v1695
        %v2738 = vunpack.c.l.s4 1983009808
        %v2739 = vunpack.c.0.s8 %v2738
        %v2740 = vlaneseq
        %v2741 = vshrl.u32 %v2740, 7
        %v2742 = vsub.s32 %v2739, %v2741
        %v2743 = vrot.slane %v2736, %v2742
        %v2744 = vcombine.low %v1712, %v1713
        %v2746 = vunpack.c.l.s4 1983009808
        %v2747 = vunpack.c.0.s8 %v2746
        %v2748 = vlaneseq
        %v2749 = vshrl.u32 %v2748, 7
        %v2750 = vsub.s32 %v2747, %v2749
        %v2751 = vrot.slane %v2744, %v2750
        %v2752 = vcombine.low %v1704, %v1711
        %v2754 = vunpack.c.l.s4 1983009808
        %v2755 = vunpack.c.0.s8 %v2754
        %v2756 = vlaneseq
        %v2757 = vshrl.u32 %v2756, 7
        %v2758 = vsub.s32 %v2755, %v2757
        %v2759 = vrot.slane %v2752, %v2758
        %v2760 = vcombine.low %v1714, %v1715
        %v2762 = vunpack.c.l.s4 1983009808
        %v2763 = vunpack.c.0.s8 %v2762
        %v2764 = vlaneseq
        %v2765 = vshrl.u32 %v2764, 7
        %v2766 = vsub.s32 %v2763, %v2765
        %v2767 = vrot.slane %v2760, %v2766
        %v2768 = vcombine.low %v2743, %v2751
        %v2769 = vcombine.high %v2743, %v2751
        %v2771 = vunpack.c.l.s4 1934713408
        %v2772 = vunpack.c.0.s8 %v2771
        %v2773 = vlaneseq
        %v2774 = vshrl.u32 %v2773, 7
        %v2775 = vsub.s32 %v2772, %v2774
        %v2776 = vrot.slane %v2768, %v2775
        %v2778 = vunpack.c.l.s4 1934713408
        %v2779 = vunpack.c.0.s8 %v2778
        %v2780 = vlaneseq
        %v2781 = vshrl.u32 %v2780, 7
        %v2782 = vsub.s32 %v2779, %v2781
        %v2783 = vrot.slane %v2769, %v2782
        %v2784 = vcombine.low %v2759, %v2767
        %v2785 = vcombine.high %v2759, %v2767
        %v2787 = vunpack.c.l.s4 1934713408
        %v2788 = vunpack.c.0.s8 %v2787
        %v2789 = vlaneseq
        %v2790 = vshrl.u32 %v2789, 7
        %v2791 = vsub.s32 %v2788, %v2790
        %v2792 = vrot.slane %v2784, %v2791
        %v2794 = vunpack.c.l.s4 1934713408
        %v2795 = vunpack.c.0.s8 %v2794
        %v2796 = vlaneseq
        %v2797 = vshrl.u32 %v2796, 7
        %v2798 = vsub.s32 %v2795, %v2797
        %v2799 = vrot.slane %v2785, %v2798
        %v2800 = vcombine.low %v2776, %v2792
        %v2801 = vcombine.high %v2776, %v2792
        %v2802 = vcombine.low %v2783, %v2799
        %v2803 = vcombine.high %v2783, %v2799
        %v2804 = vcombine.low %v1756, %v1763
        %v2806 = vunpack.c.l.s4 1983009808
        %v2807 = vunpack.c.0.s8 %v2806
        %v2808 = vlaneseq
        %v2809 = vshrl.u32 %v2808, 7
        %v2810 = vsub.s32 %v2807, %v2809
        %v2811 = vrot.slane %v2804, %v2810
        %v2812 = vcombine.low %v1780, %v1781
        %v2814 = vunpack.c.l.s4 1983009808
        %v2815 = vunpack.c.0.s8 %v2814
        %v2816 = vlaneseq
        %v2817 = vshrl.u32 %v2816, 7
        %v2818 = vsub.s32 %v2815, %v2817
        %v2819 = vrot.slane %v2812, %v2818
        %v2820 = vcombine.low %v1772, %v1779
        %v2822 = vunpack.c.l.s4 1983009808
        %v2823 = vunpack.c.0.s8 %v2822
        %v2824 = vlaneseq
        %v2825 = vshrl.u32 %v2824, 7
        %v2826 = vsub.s32 %v2823, %v2825
        %v2827 = vrot.slane %v2820, %v2826
        %v2828 = vcombine.low %v1782, %v1783
        %v2830 = vunpack.c.l.s4 1983009808
        %v2831 = vunpack.c.0.s8 %v2830
        %v2832 = vlaneseq
        %v2833 = vshrl.u32 %v2832, 7
        %v2834 = vsub.s32 %v2831, %v2833
        %v2835 = vrot.slane %v2828, %v2834
        %v2836 = vcombine.low %v2811, %v2819
        %v2837 = vcombine.high %v2811, %v2819
        %v2839 = vunpack.c.l.s4 1934713408
        %v2840 = vunpack.c.0.s8 %v2839
        %v2841 = vlaneseq
        %v2842 = vshrl.u32 %v2841, 7
        %v2843 = vsub.s32 %v2840, %v2842
        %v2844 = vrot.slane %v2836, %v2843
        %v2846 = vunpack.c.l.s4 1934713408
        %v2847 = vunpack.c.0.s8 %v2846
        %v2848 = vlaneseq
        %v2849 = vshrl.u32 %v2848, 7
        %v2850 = vsub.s32 %v2847, %v2849
        %v2851 = vrot.slane %v2837, %v2850
        %v2852 = vcombine.low %v2827, %v2835
        %v2853 = vcombine.high %v2827, %v2835
        %v2855 = vunpack.c.l.s4 1934713408
        %v2856 = vunpack.c.0.s8 %v2855
        %v2857 = vlaneseq
        %v2858 = vshrl.u32 %v2857, 7
        %v2859 = vsub.s32 %v2856, %v2858
        %v2860 = vrot.slane %v2852, %v2859
        %v2862 = vunpack.c.l.s4 1934713408
        %v2863 = vunpack.c.0.s8 %v2862
        %v2864 = vlaneseq
        %v2865 = vshrl.u32 %v2864, 7
        %v2866 = vsub.s32 %v2863, %v2865
        %v2867 = vrot.slane %v2853, %v2866
        %v2868 = vcombine.low %v2844, %v2860
        %v2869 = vcombine.high %v2844, %v2860
        %v2870 = vcombine.low %v2851, %v2867
        %v2871 = vcombine.high %v2851, %v2867
        %v2872 = vcombine.low %v1824, %v1831
        %v2874 = vunpack.c.l.s4 1983009808
        %v2875 = vunpack.c.0.s8 %v2874
        %v2876 = vlaneseq
        %v2877 = vshrl.u32 %v2876, 7
        %v2878 = vsub.s32 %v2875, %v2877
        %v2879 = vrot.slane %v2872, %v2878
        %v2880 = vcombine.low %v1848, %v1849
        %v2882 = vunpack.c.l.s4 1983009808
        %v2883 = vunpack.c.0.s8 %v2882
        %v2884 = vlaneseq
        %v2885 = vshrl.u32 %v2884, 7
        %v2886 = vsub.s32 %v2883, %v2885
        %v2887 = vrot.slane %v2880, %v2886
        %v2888 = vcombine.low %v1840, %v1847
        %v2890 = vunpack.c.l.s4 1983009808
        %v2891 = vunpack.c.0.s8 %v2890
        %v2892 = vlaneseq
        %v2893 = vshrl.u32 %v2892, 7
        %v2894 = vsub.s32 %v2891, %v2893
        %v2895 = vrot.slane %v2888, %v2894
        %v2896 = vcombine.low %v1850, %v1851
        %v2898 = vunpack.c.l.s4 1983009808
        %v2899 = vunpack.c.0.s8 %v2898
        %v2900 = vlaneseq
        %v2901 = vshrl.u32 %v2900, 7
        %v2902 = vsub.s32 %v2899, %v2901
        %v2903 = vrot.slane %v2896, %v2902
        %v2904 = vcombine.low %v2879, %v2887
        %v2905 = vcombine.high %v2879, %v2887
        %v2907 = vunpack.c.l.s4 1934713408
        %v2908 = vunpack.c.0.s8 %v2907
        %v2909 = vlaneseq
        %v2910 = vshrl.u32 %v2909, 7
        %v2911 = vsub.s32 %v2908, %v2910
        %v2912 = vrot.slane %v2904, %v2911
        %v2914 = vunpack.c.l.s4 1934713408
        %v2915 = vunpack.c.0.s8 %v2914
        %v2916 = vlaneseq
        %v2917 = vshrl.u32 %v2916, 7
        %v2918 = vsub.s32 %v2915, %v2917
        %v2919 = vrot.slane %v2905, %v2918
        %v2920 = vcombine.low %v2895, %v2903
        %v2921 = vcombine.high %v2895, %v2903
        %v2923 = vunpack.c.l.s4 1934713408
        %v2924 = vunpack.c.0.s8 %v2923
        %v2925 = vlaneseq
        %v2926 = vshrl.u32 %v2925, 7
        %v2927 = vsub.s32 %v2924, %v2926
        %v2928 = vrot.slane %v2920, %v2927
        %v2930 = vunpack.c.l.s4 1934713408
        %v2931 = vunpack.c.0.s8 %v2930
        %v2932 = vlaneseq
        %v2933 = vshrl.u32 %v2932, 7
        %v2934 = vsub.s32 %v2931, %v2933
        %v2935 = vrot.slane %v2921, %v2934
        %v2936 = vcombine.low %v2912, %v2928
        %v2937 = vcombine.high %v2912, %v2928
        %v2938 = vcombine.low %v2919, %v2935
        %v2939 = vcombine.high %v2919, %v2935
        %v2940 = vcombine.low %v1892, %v1899
        %v2942 = vunpack.c.l.s4 1983009808
        %v2943 = vunpack.c.0.s8 %v2942
        %v2944 = vlaneseq
        %v2945 = vshrl.u32 %v2944, 7
        %v2946 = vsub.s32 %v2943, %v2945
        %v2947 = vrot.slane %v2940, %v2946
        %v2948 = vcombine.low %v1916, %v1917
        %v2950 = vunpack.c.l.s4 1983009808
        %v2951 = vunpack.c.0.s8 %v2950
        %v2952 = vlaneseq
        %v2953 = vshrl.u32 %v2952, 7
        %v2954 = vsub.s32 %v2951, %v2953
        %v2955 = vrot.slane %v2948, %v2954
        %v2956 = vcombine.low %v1908, %v1915
        %v2958 = vunpack.c.l.s4 1983009808
        %v2959 = vunpack.c.0.s8 %v2958
        %v2960 = vlaneseq
        %v2961 = vshrl.u32 %v2960, 7
        %v2962 = vsub.s32 %v2959, %v2961
        %v2963 = vrot.slane %v2956, %v2962
        %v2964 = vcombine.low %v1918, %v1919
        %v2966 = vunpack.c.l.s4 1983009808
        %v2967 = vunpack.c.0.s8 %v2966
        %v2968 = vlaneseq
        %v2969 = vshrl.u32 %v2968, 7
        %v2970 = vsub.s32 %v2967, %v2969
        %v2971 = vrot.slane %v2964, %v2970
        %v2972 = vcombine.low %v2947, %v2955
        %v2973 = vcombine.high %v2947, %v2955
        %v2975 = vunpack.c.l.s4 1934713408
        %v2976 = vunpack.c.0.s8 %v2975
        %v2977 = vlaneseq
        %v2978 = vshrl.u32 %v2977, 7
        %v2979 = vsub.s32 %v2976, %v2978
        %v2980 = vrot.slane %v2972, %v2979
        %v2982 = vunpack.c.l.s4 1934713408
        %v2983 = vunpack.c.0.s8 %v2982
        %v2984 = vlaneseq
        %v2985 = vshrl.u32 %v2984, 7
        %v2986 = vsub.s32 %v2983, %v2985
        %v2987 = vrot.slane %v2973, %v2986
        %v2988 = vcombine.low %v2963, %v2971
        %v2989 = vcombine.high %v2963, %v2971
        %v2991 = vunpack.c.l.s4 1934713408
        %v2992 = vunpack.c.0.s8 %v2991
        %v2993 = vlaneseq
        %v2994 = vshrl.u32 %v2993, 7
        %v2995 = vsub.s32 %v2992, %v2994
        %v2996 = vrot.slane %v2988, %v2995
        %v2998 = vunpack.c.l.s4 1934713408
        %v2999 = vunpack.c.0.s8 %v2998
        %v3000 = vlaneseq
        %v3001 = vshrl.u32 %v3000, 7
        %v3002 = vsub.s32 %v2999, %v3001
        %v3003 = vrot.slane %v2989, %v3002
        %v3004 = vcombine.low %v2980, %v2996
        %v3005 = vcombine.high %v2980, %v2996
        %v3006 = vcombine.low %v2987, %v3003
        %v3007 = vcombine.high %v2987, %v3003
        %v3008 = vcombine.low %v1960, %v1967
        %v3010 = vunpack.c.l.s4 1983009808
        %v3011 = vunpack.c.0.s8 %v3010
        %v3012 = vlaneseq
        %v3013 = vshrl.u32 %v3012, 7
        %v3014 = vsub.s32 %v3011, %v3013
        %v3015 = vrot.slane %v3008, %v3014
        %v3016 = vcombine.low %v1984, %v1985
        %v3018 = vunpack.c.l.s4 1983009808
        %v3019 = vunpack.c.0.s8 %v3018
        %v3020 = vlaneseq
        %v3021 = vshrl.u32 %v3020, 7
        %v3022 = vsub.s32 %v3019, %v3021
        %v3023 = vrot.slane %v3016, %v3022
        %v3024 = vcombine.low %v1976, %v1983
        %v3026 = vunpack.c.l.s4 1983009808
        %v3027 = vunpack.c.0.s8 %v3026
        %v3028 = vlaneseq
        %v3029 = vshrl.u32 %v3028, 7
        %v3030 = vsub.s32 %v3027, %v3029
        %v3031 = vrot.slane %v3024, %v3030
        %v3032 = vcombine.low %v1986, %v1987
        %v3034 = vunpack.c.l.s4 1983009808
        %v3035 = vunpack.c.0.s8 %v3034
        %v3036 = vlaneseq
        %v3037 = vshrl.u32 %v3036, 7
        %v3038 = vsub.s32 %v3035, %v3037
        %v3039 = vrot.slane %v3032, %v3038
        %v3040 = vcombine.low %v3015, %v3023
        %v3041 = vcombine.high %v3015, %v3023
        %v3043 = vunpack.c.l.s4 1934713408
        %v3044 = vunpack.c.0.s8 %v3043
        %v3045 = vlaneseq
        %v3046 = vshrl.u32 %v3045, 7
        %v3047 = vsub.s32 %v3044, %v3046
        %v3048 = vrot.slane %v3040, %v3047
        %v3050 = vunpack.c.l.s4 1934713408
        %v3051 = vunpack.c.0.s8 %v3050
        %v3052 = vlaneseq
        %v3053 = vshrl.u32 %v3052, 7
        %v3054 = vsub.s32 %v3051, %v3053
        %v3055 = vrot.slane %v3041, %v3054
        %v3056 = vcombine.low %v3031, %v3039
        %v3057 = vcombine.high %v3031, %v3039
        %v3059 = vunpack.c.l.s4 1934713408
        %v3060 = vunpack.c.0.s8 %v3059
        %v3061 = vlaneseq
        %v3062 = vshrl.u32 %v3061, 7
        %v3063 = vsub.s32 %v3060, %v3062
        %v3064 = vrot.slane %v3056, %v3063
        %v3066 = vunpack.c.l.s4 1934713408
        %v3067 = vunpack.c.0.s8 %v3066
        %v3068 = vlaneseq
        %v3069 = vshrl.u32 %v3068, 7
        %v3070 = vsub.s32 %v3067, %v3069
        %v3071 = vrot.slane %v3057, %v3070
        %v3072 = vcombine.low %v3048, %v3064
        %v3073 = vcombine.high %v3048, %v3064
        %v3074 = vcombine.low %v3055, %v3071
        %v3075 = vcombine.high %v3055, %v3071
        %v3076 = vpack.c.bf16 %v2120, %v2052
        %v3077 = vpack.c.bf16 %v2256, %v2188
        %v3078 = vpack.c.bf16 %v2392, %v2324
        %v3079 = vpack.c.bf16 %v2528, %v2460
        %v3080 = vpack.c.bf16 %v2664, %v2596
        %v3081 = vpack.c.bf16 %v2800, %v2732
        %v3082 = vpack.c.bf16 %v2936, %v2868
        %v3083 = vpack.c.bf16 %v3072, %v3004
        %v3084 = vpack.c.bf16 %v2121, %v2053
        %v3085 = vpack.c.bf16 %v2257, %v2189
        %v3086 = vpack.c.bf16 %v2393, %v2325
        %v3087 = vpack.c.bf16 %v2529, %v2461
        %v3088 = vpack.c.bf16 %v2665, %v2597
        %v3089 = vpack.c.bf16 %v2801, %v2733
        %v3090 = vpack.c.bf16 %v2937, %v2869
        %v3091 = vpack.c.bf16 %v3073, %v3005
        %v3092 = vpack.c.bf16 %v2122, %v2054
        %v3093 = vpack.c.bf16 %v2258, %v2190
        %v3094 = vpack.c.bf16 %v2394, %v2326
        %v3095 = vpack.c.bf16 %v2530, %v2462
        %v3096 = vpack.c.bf16 %v2666, %v2598
        %v3097 = vpack.c.bf16 %v2802, %v2734
        %v3098 = vpack.c.bf16 %v2938, %v2870
        %v3099 = vpack.c.bf16 %v3074, %v3006
        %v3100 = vpack.c.bf16 %v2123, %v2055
        %v3101 = vpack.c.bf16 %v2259, %v2191
        %v3102 = vpack.c.bf16 %v2395, %v2327
        %v3103 = vpack.c.bf16 %v2531, %v2463
        %v3104 = vpack.c.bf16 %v2667, %v2599
        %v3105 = vpack.c.bf16 %v2803, %v2735
        %v3106 = vpack.c.bf16 %v2939, %v2871
        %v3107 = vpack.c.bf16 %v3075, %v3007
        %3124 = vrot.lane.b32.xlu0 %v567, 96
        %v3125 = vpop.permute.xlu0 %3124
        %3126 = vrot.lane.b32.xlu0 %v571, 96
        %v3127 = vpop.permute.xlu0 %3126
        %3128 = vrot.lane.b32.xlu0 %v577, 96
        %v3129 = vpop.permute.xlu0 %3128
        %3130 = vrot.lane.b32.xlu0 %v581, 96
        %v3131 = vpop.permute.xlu0 %3130
        %3132 = vrot.lane.b32.xlu0 %v587, 96
        %v3133 = vpop.permute.xlu0 %3132
        %3134 = vrot.lane.b32.xlu0 %v591, 96
        %v3135 = vpop.permute.xlu0 %3134
        %3136 = vrot.lane.b32.xlu0 %v597, 96
        %v3137 = vpop.permute.xlu0 %3136
        %3138 = vrot.lane.b32.xlu0 %v601, 96
        %v3139 = vpop.permute.xlu0 %3138
        %3140 = vrot.lane.b32.xlu0 %v607, 96
        %v3141 = vpop.permute.xlu0 %3140
        %3142 = vrot.lane.b32.xlu0 %v611, 96
        %v3143 = vpop.permute.xlu0 %3142
        %3144 = vrot.lane.b32.xlu0 %v617, 96
        %v3145 = vpop.permute.xlu0 %3144
        %3146 = vrot.lane.b32.xlu0 %v621, 96
        %v3147 = vpop.permute.xlu0 %3146
        %3148 = vrot.lane.b32.xlu0 %v627, 96
        %v3149 = vpop.permute.xlu0 %3148
        %3150 = vrot.lane.b32.xlu0 %v631, 96
        %v3151 = vpop.permute.xlu0 %3150
        %3152 = vrot.lane.b32.xlu0 %v637, 96
        %v3153 = vpop.permute.xlu0 %3152
        %3154 = vrot.lane.b32.xlu0 %v641, 96
        %v3155 = vpop.permute.xlu0 %3154
        %3172 = vrot.lane.b32.xlu0 %v567, 64
        %v3173 = vpop.permute.xlu0 %3172
        %3174 = vrot.lane.b32.xlu0 %v571, 64
        %v3175 = vpop.permute.xlu0 %3174
        %3176 = vrot.lane.b32.xlu0 %v577, 64
        %v3177 = vpop.permute.xlu0 %3176
        %3178 = vrot.lane.b32.xlu0 %v581, 64
        %v3179 = vpop.permute.xlu0 %3178
        %3180 = vrot.lane.b32.xlu0 %v587, 64
        %v3181 = vpop.permute.xlu0 %3180
        %3182 = vrot.lane.b32.xlu0 %v591, 64
        %v3183 = vpop.permute.xlu0 %3182
        %3184 = vrot.lane.b32.xlu0 %v597, 64
        %v3185 = vpop.permute.xlu0 %3184
        %3186 = vrot.lane.b32.xlu0 %v601, 64
        %v3187 = vpop.permute.xlu0 %3186
        %3188 = vrot.lane.b32.xlu0 %v607, 64
        %v3189 = vpop.permute.xlu0 %3188
        %3190 = vrot.lane.b32.xlu0 %v611, 64
        %v3191 = vpop.permute.xlu0 %3190
        %3192 = vrot.lane.b32.xlu0 %v617, 64
        %v3193 = vpop.permute.xlu0 %3192
        %3194 = vrot.lane.b32.xlu0 %v621, 64
        %v3195 = vpop.permute.xlu0 %3194
        %3196 = vrot.lane.b32.xlu0 %v627, 64
        %v3197 = vpop.permute.xlu0 %3196
        %3198 = vrot.lane.b32.xlu0 %v631, 64
        %v3199 = vpop.permute.xlu0 %3198
        %3200 = vrot.lane.b32.xlu0 %v637, 64
        %v3201 = vpop.permute.xlu0 %3200
        %3202 = vrot.lane.b32.xlu0 %v641, 64
        %v3203 = vpop.permute.xlu0 %3202
        %3220 = vrot.lane.b32.xlu0 %v567, 32
        %v3221 = vpop.permute.xlu0 %3220
        %3222 = vrot.lane.b32.xlu0 %v571, 32
        %v3223 = vpop.permute.xlu0 %3222
        %3224 = vrot.lane.b32.xlu0 %v577, 32
        %v3225 = vpop.permute.xlu0 %3224
        %3226 = vrot.lane.b32.xlu0 %v581, 32
        %v3227 = vpop.permute.xlu0 %3226
        %3228 = vrot.lane.b32.xlu0 %v587, 32
        %v3229 = vpop.permute.xlu0 %3228
        %3230 = vrot.lane.b32.xlu0 %v591, 32
        %v3231 = vpop.permute.xlu0 %3230
        %3232 = vrot.lane.b32.xlu0 %v597, 32
        %v3233 = vpop.permute.xlu0 %3232
        %3234 = vrot.lane.b32.xlu0 %v601, 32
        %v3235 = vpop.permute.xlu0 %3234
        %3236 = vrot.lane.b32.xlu0 %v607, 32
        %v3237 = vpop.permute.xlu0 %3236
        %3238 = vrot.lane.b32.xlu0 %v611, 32
        %v3239 = vpop.permute.xlu0 %3238
        %3240 = vrot.lane.b32.xlu0 %v617, 32
        %v3241 = vpop.permute.xlu0 %3240
        %3242 = vrot.lane.b32.xlu0 %v621, 32
        %v3243 = vpop.permute.xlu0 %3242
        %3244 = vrot.lane.b32.xlu0 %v627, 32
        %v3245 = vpop.permute.xlu0 %3244
        %3246 = vrot.lane.b32.xlu0 %v631, 32
        %v3247 = vpop.permute.xlu0 %3246
        %3248 = vrot.lane.b32.xlu0 %v637, 32
        %v3249 = vpop.permute.xlu0 %3248
        %3250 = vrot.lane.b32.xlu0 %v641, 32
        %v3251 = vpop.permute.xlu0 %3250
        %v3268 = vcombine.low %v567, %v3173
        %v3269 = vcombine.high %v567, %v3173
        %v3271 = vunpack.c.l.s4 1983009808
        %v3272 = vunpack.c.0.s8 %v3271
        %v3273 = vlaneseq
        %v3274 = vshrl.u32 %v3273, 7
        %v3275 = vsub.s32 %v3272, %v3274
        %v3276 = vrot.slane %v3268, %v3275
        %v3278 = vunpack.c.l.s4 1983009808
        %v3279 = vunpack.c.0.s8 %v3278
        %v3280 = vlaneseq
        %v3281 = vshrl.u32 %v3280, 7
        %v3282 = vsub.s32 %v3279, %v3281
        %v3283 = vrot.slane %v3269, %v3282
        %v3284 = vcombine.low %v3125, %v3221
        %v3285 = vcombine.high %v3125, %v3221
        %v3287 = vunpack.c.l.s4 1983009808
        %v3288 = vunpack.c.0.s8 %v3287
        %v3289 = vlaneseq
        %v3290 = vshrl.u32 %v3289, 7
        %v3291 = vsub.s32 %v3288, %v3290
        %v3292 = vrot.slane %v3284, %v3291
        %v3294 = vunpack.c.l.s4 1983009808
        %v3295 = vunpack.c.0.s8 %v3294
        %v3296 = vlaneseq
        %v3297 = vshrl.u32 %v3296, 7
        %v3298 = vsub.s32 %v3295, %v3297
        %v3299 = vrot.slane %v3285, %v3298
        %v3300 = vcombine.low %v3276, %v3292
        %v3301 = vcombine.high %v3276, %v3292
        %v3303 = vunpack.c.l.s4 1934713408
        %v3304 = vunpack.c.0.s8 %v3303
        %v3305 = vlaneseq
        %v3306 = vshrl.u32 %v3305, 7
        %v3307 = vsub.s32 %v3304, %v3306
        %v3308 = vrot.slane %v3300, %v3307
        %v3310 = vunpack.c.l.s4 1934713408
        %v3311 = vunpack.c.0.s8 %v3310
        %v3312 = vlaneseq
        %v3313 = vshrl.u32 %v3312, 7
        %v3314 = vsub.s32 %v3311, %v3313
        %v3315 = vrot.slane %v3301, %v3314
        %v3316 = vcombine.low %v3283, %v3299
        %v3317 = vcombine.high %v3283, %v3299
        %v3319 = vunpack.c.l.s4 1934713408
        %v3320 = vunpack.c.0.s8 %v3319
        %v3321 = vlaneseq
        %v3322 = vshrl.u32 %v3321, 7
        %v3323 = vsub.s32 %v3320, %v3322
        %v3324 = vrot.slane %v3316, %v3323
        %v3326 = vunpack.c.l.s4 1934713408
        %v3327 = vunpack.c.0.s8 %v3326
        %v3328 = vlaneseq
        %v3329 = vshrl.u32 %v3328, 7
        %v3330 = vsub.s32 %v3327, %v3329
        %v3331 = vrot.slane %v3317, %v3330
        %v3332 = vcombine.high %v3308, 0.0
        %v3333 = vcombine.high %v3315, 0.0
        %v3334 = vcombine.high %v3324, 0.0
        %v3335 = vcombine.high %v3331, 0.0
        %v3336 = vcombine.low %v571, %v3175
        %v3337 = vcombine.high %v571, %v3175
        %v3339 = vunpack.c.l.s4 1983009808
        %v3340 = vunpack.c.0.s8 %v3339
        %v3341 = vlaneseq
        %v3342 = vshrl.u32 %v3341, 7
        %v3343 = vsub.s32 %v3340, %v3342
        %v3344 = vrot.slane %v3336, %v3343
        %v3346 = vunpack.c.l.s4 1983009808
        %v3347 = vunpack.c.0.s8 %v3346
        %v3348 = vlaneseq
        %v3349 = vshrl.u32 %v3348, 7
        %v3350 = vsub.s32 %v3347, %v3349
        %v3351 = vrot.slane %v3337, %v3350
        %v3352 = vcombine.low %v3127, %v3223
        %v3353 = vcombine.high %v3127, %v3223
        %v3355 = vunpack.c.l.s4 1983009808
        %v3356 = vunpack.c.0.s8 %v3355
        %v3357 = vlaneseq
        %v3358 = vshrl.u32 %v3357, 7
        %v3359 = vsub.s32 %v3356, %v3358
        %v3360 = vrot.slane %v3352, %v3359
        %v3362 = vunpack.c.l.s4 1983009808
        %v3363 = vunpack.c.0.s8 %v3362
        %v3364 = vlaneseq
        %v3365 = vshrl.u32 %v3364, 7
        %v3366 = vsub.s32 %v3363, %v3365
        %v3367 = vrot.slane %v3353, %v3366
        %v3368 = vcombine.low %v3344, %v3360
        %v3369 = vcombine.high %v3344, %v3360
        %v3371 = vunpack.c.l.s4 1934713408
        %v3372 = vunpack.c.0.s8 %v3371
        %v3373 = vlaneseq
        %v3374 = vshrl.u32 %v3373, 7
        %v3375 = vsub.s32 %v3372, %v3374
        %v3376 = vrot.slane %v3368, %v3375
        %v3378 = vunpack.c.l.s4 1934713408
        %v3379 = vunpack.c.0.s8 %v3378
        %v3380 = vlaneseq
        %v3381 = vshrl.u32 %v3380, 7
        %v3382 = vsub.s32 %v3379, %v3381
        %v3383 = vrot.slane %v3369, %v3382
        %v3384 = vcombine.low %v3351, %v3367
        %v3385 = vcombine.high %v3351, %v3367
        %v3387 = vunpack.c.l.s4 1934713408
        %v3388 = vunpack.c.0.s8 %v3387
        %v3389 = vlaneseq
        %v3390 = vshrl.u32 %v3389, 7
        %v3391 = vsub.s32 %v3388, %v3390
        %v3392 = vrot.slane %v3384, %v3391
        %v3394 = vunpack.c.l.s4 1934713408
        %v3395 = vunpack.c.0.s8 %v3394
        %v3396 = vlaneseq
        %v3397 = vshrl.u32 %v3396, 7
        %v3398 = vsub.s32 %v3395, %v3397
        %v3399 = vrot.slane %v3385, %v3398
        %v3400 = vcombine.high %v3376, 0.0
        %v3401 = vcombine.high %v3383, 0.0
        %v3402 = vcombine.high %v3392, 0.0
        %v3403 = vcombine.high %v3399, 0.0
        %v3404 = vcombine.low %v577, %v3177
        %v3405 = vcombine.high %v577, %v3177
        %v3407 = vunpack.c.l.s4 1983009808
        %v3408 = vunpack.c.0.s8 %v3407
        %v3409 = vlaneseq
        %v3410 = vshrl.u32 %v3409, 7
        %v3411 = vsub.s32 %v3408, %v3410
        %v3412 = vrot.slane %v3404, %v3411
        %v3414 = vunpack.c.l.s4 1983009808
        %v3415 = vunpack.c.0.s8 %v3414
        %v3416 = vlaneseq
        %v3417 = vshrl.u32 %v3416, 7
        %v3418 = vsub.s32 %v3415, %v3417
        %v3419 = vrot.slane %v3405, %v3418
        %v3420 = vcombine.low %v3129, %v3225
        %v3421 = vcombine.high %v3129, %v3225
        %v3423 = vunpack.c.l.s4 1983009808
        %v3424 = vunpack.c.0.s8 %v3423
        %v3425 = vlaneseq
        %v3426 = vshrl.u32 %v3425, 7
        %v3427 = vsub.s32 %v3424, %v3426
        %v3428 = vrot.slane %v3420, %v3427
        %v3430 = vunpack.c.l.s4 1983009808
        %v3431 = vunpack.c.0.s8 %v3430
        %v3432 = vlaneseq
        %v3433 = vshrl.u32 %v3432, 7
        %v3434 = vsub.s32 %v3431, %v3433
        %v3435 = vrot.slane %v3421, %v3434
        %v3436 = vcombine.low %v3412, %v3428
        %v3437 = vcombine.high %v3412, %v3428
        %v3439 = vunpack.c.l.s4 1934713408
        %v3440 = vunpack.c.0.s8 %v3439
        %v3441 = vlaneseq
        %v3442 = vshrl.u32 %v3441, 7
        %v3443 = vsub.s32 %v3440, %v3442
        %v3444 = vrot.slane %v3436, %v3443
        %v3446 = vunpack.c.l.s4 1934713408
        %v3447 = vunpack.c.0.s8 %v3446
        %v3448 = vlaneseq
        %v3449 = vshrl.u32 %v3448, 7
        %v3450 = vsub.s32 %v3447, %v3449
        %v3451 = vrot.slane %v3437, %v3450
        %v3452 = vcombine.low %v3419, %v3435
        %v3453 = vcombine.high %v3419, %v3435
        %v3455 = vunpack.c.l.s4 1934713408
        %v3456 = vunpack.c.0.s8 %v3455
        %v3457 = vlaneseq
        %v3458 = vshrl.u32 %v3457, 7
        %v3459 = vsub.s32 %v3456, %v3458
        %v3460 = vrot.slane %v3452, %v3459
        %v3462 = vunpack.c.l.s4 1934713408
        %v3463 = vunpack.c.0.s8 %v3462
        %v3464 = vlaneseq
        %v3465 = vshrl.u32 %v3464, 7
        %v3466 = vsub.s32 %v3463, %v3465
        %v3467 = vrot.slane %v3453, %v3466
        %v3468 = vcombine.high %v3444, 0.0
        %v3469 = vcombine.high %v3451, 0.0
        %v3470 = vcombine.high %v3460, 0.0
        %v3471 = vcombine.high %v3467, 0.0
        %v3472 = vcombine.low %v581, %v3179
        %v3473 = vcombine.high %v581, %v3179
        %v3475 = vunpack.c.l.s4 1983009808
        %v3476 = vunpack.c.0.s8 %v3475
        %v3477 = vlaneseq
        %v3478 = vshrl.u32 %v3477, 7
        %v3479 = vsub.s32 %v3476, %v3478
        %v3480 = vrot.slane %v3472, %v3479
        %v3482 = vunpack.c.l.s4 1983009808
        %v3483 = vunpack.c.0.s8 %v3482
        %v3484 = vlaneseq
        %v3485 = vshrl.u32 %v3484, 7
        %v3486 = vsub.s32 %v3483, %v3485
        %v3487 = vrot.slane %v3473, %v3486
        %v3488 = vcombine.low %v3131, %v3227
        %v3489 = vcombine.high %v3131, %v3227
        %v3491 = vunpack.c.l.s4 1983009808
        %v3492 = vunpack.c.0.s8 %v3491
        %v3493 = vlaneseq
        %v3494 = vshrl.u32 %v3493, 7
        %v3495 = vsub.s32 %v3492, %v3494
        %v3496 = vrot.slane %v3488, %v3495
        %v3498 = vunpack.c.l.s4 1983009808
        %v3499 = vunpack.c.0.s8 %v3498
        %v3500 = vlaneseq
        %v3501 = vshrl.u32 %v3500, 7
        %v3502 = vsub.s32 %v3499, %v3501
        %v3503 = vrot.slane %v3489, %v3502
        %v3504 = vcombine.low %v3480, %v3496
        %v3505 = vcombine.high %v3480, %v3496
        %v3507 = vunpack.c.l.s4 1934713408
        %v3508 = vunpack.c.0.s8 %v3507
        %v3509 = vlaneseq
        %v3510 = vshrl.u32 %v3509, 7
        %v3511 = vsub.s32 %v3508, %v3510
        %v3512 = vrot.slane %v3504, %v3511
        %v3514 = vunpack.c.l.s4 1934713408
        %v3515 = vunpack.c.0.s8 %v3514
        %v3516 = vlaneseq
        %v3517 = vshrl.u32 %v3516, 7
        %v3518 = vsub.s32 %v3515, %v3517
        %v3519 = vrot.slane %v3505, %v3518
        %v3520 = vcombine.low %v3487, %v3503
        %v3521 = vcombine.high %v3487, %v3503
        %v3523 = vunpack.c.l.s4 1934713408
        %v3524 = vunpack.c.0.s8 %v3523
        %v3525 = vlaneseq
        %v3526 = vshrl.u32 %v3525, 7
        %v3527 = vsub.s32 %v3524, %v3526
        %v3528 = vrot.slane %v3520, %v3527
        %v3530 = vunpack.c.l.s4 1934713408
        %v3531 = vunpack.c.0.s8 %v3530
        %v3532 = vlaneseq
        %v3533 = vshrl.u32 %v3532, 7
        %v3534 = vsub.s32 %v3531, %v3533
        %v3535 = vrot.slane %v3521, %v3534
        %v3536 = vcombine.high %v3512, 0.0
        %v3537 = vcombine.high %v3519, 0.0
        %v3538 = vcombine.high %v3528, 0.0
        %v3539 = vcombine.high %v3535, 0.0
        %v3540 = vcombine.low %v587, %v3181
        %v3541 = vcombine.high %v587, %v3181
        %v3543 = vunpack.c.l.s4 1983009808
        %v3544 = vunpack.c.0.s8 %v3543
        %v3545 = vlaneseq
        %v3546 = vshrl.u32 %v3545, 7
        %v3547 = vsub.s32 %v3544, %v3546
        %v3548 = vrot.slane %v3540, %v3547
        %v3550 = vunpack.c.l.s4 1983009808
        %v3551 = vunpack.c.0.s8 %v3550
        %v3552 = vlaneseq
        %v3553 = vshrl.u32 %v3552, 7
        %v3554 = vsub.s32 %v3551, %v3553
        %v3555 = vrot.slane %v3541, %v3554
        %v3556 = vcombine.low %v3133, %v3229
        %v3557 = vcombine.high %v3133, %v3229
        %v3559 = vunpack.c.l.s4 1983009808
        %v3560 = vunpack.c.0.s8 %v3559
        %v3561 = vlaneseq
        %v3562 = vshrl.u32 %v3561, 7
        %v3563 = vsub.s32 %v3560, %v3562
        %v3564 = vrot.slane %v3556, %v3563
        %v3566 = vunpack.c.l.s4 1983009808
        %v3567 = vunpack.c.0.s8 %v3566
        %v3568 = vlaneseq
        %v3569 = vshrl.u32 %v3568, 7
        %v3570 = vsub.s32 %v3567, %v3569
        %v3571 = vrot.slane %v3557, %v3570
        %v3572 = vcombine.low %v3548, %v3564
        %v3573 = vcombine.high %v3548, %v3564
        %v3575 = vunpack.c.l.s4 1934713408
        %v3576 = vunpack.c.0.s8 %v3575
        %v3577 = vlaneseq
        %v3578 = vshrl.u32 %v3577, 7
        %v3579 = vsub.s32 %v3576, %v3578
        %v3580 = vrot.slane %v3572, %v3579
        %v3582 = vunpack.c.l.s4 1934713408
        %v3583 = vunpack.c.0.s8 %v3582
        %v3584 = vlaneseq
        %v3585 = vshrl.u32 %v3584, 7
        %v3586 = vsub.s32 %v3583, %v3585
        %v3587 = vrot.slane %v3573, %v3586
        %v3588 = vcombine.low %v3555, %v3571
        %v3589 = vcombine.high %v3555, %v3571
        %v3591 = vunpack.c.l.s4 1934713408
        %v3592 = vunpack.c.0.s8 %v3591
        %v3593 = vlaneseq
        %v3594 = vshrl.u32 %v3593, 7
        %v3595 = vsub.s32 %v3592, %v3594
        %v3596 = vrot.slane %v3588, %v3595
        %v3598 = vunpack.c.l.s4 1934713408
        %v3599 = vunpack.c.0.s8 %v3598
        %v3600 = vlaneseq
        %v3601 = vshrl.u32 %v3600, 7
        %v3602 = vsub.s32 %v3599, %v3601
        %v3603 = vrot.slane %v3589, %v3602
        %v3604 = vcombine.high %v3580, 0.0
        %v3605 = vcombine.high %v3587, 0.0
        %v3606 = vcombine.high %v3596, 0.0
        %v3607 = vcombine.high %v3603, 0.0
        %v3608 = vcombine.low %v591, %v3183
        %v3609 = vcombine.high %v591, %v3183
        %v3611 = vunpack.c.l.s4 1983009808
        %v3612 = vunpack.c.0.s8 %v3611
        %v3613 = vlaneseq
        %v3614 = vshrl.u32 %v3613, 7
        %v3615 = vsub.s32 %v3612, %v3614
        %v3616 = vrot.slane %v3608, %v3615
        %v3618 = vunpack.c.l.s4 1983009808
        %v3619 = vunpack.c.0.s8 %v3618
        %v3620 = vlaneseq
        %v3621 = vshrl.u32 %v3620, 7
        %v3622 = vsub.s32 %v3619, %v3621
        %v3623 = vrot.slane %v3609, %v3622
        %v3624 = vcombine.low %v3135, %v3231
        %v3625 = vcombine.high %v3135, %v3231
        %v3627 = vunpack.c.l.s4 1983009808
        %v3628 = vunpack.c.0.s8 %v3627
        %v3629 = vlaneseq
        %v3630 = vshrl.u32 %v3629, 7
        %v3631 = vsub.s32 %v3628, %v3630
        %v3632 = vrot.slane %v3624, %v3631
        %v3634 = vunpack.c.l.s4 1983009808
        %v3635 = vunpack.c.0.s8 %v3634
        %v3636 = vlaneseq
        %v3637 = vshrl.u32 %v3636, 7
        %v3638 = vsub.s32 %v3635, %v3637
        %v3639 = vrot.slane %v3625, %v3638
        %v3640 = vcombine.low %v3616, %v3632
        %v3641 = vcombine.high %v3616, %v3632
        %v3643 = vunpack.c.l.s4 1934713408
        %v3644 = vunpack.c.0.s8 %v3643
        %v3645 = vlaneseq
        %v3646 = vshrl.u32 %v3645, 7
        %v3647 = vsub.s32 %v3644, %v3646
        %v3648 = vrot.slane %v3640, %v3647
        %v3650 = vunpack.c.l.s4 1934713408
        %v3651 = vunpack.c.0.s8 %v3650
        %v3652 = vlaneseq
        %v3653 = vshrl.u32 %v3652, 7
        %v3654 = vsub.s32 %v3651, %v3653
        %v3655 = vrot.slane %v3641, %v3654
        %v3656 = vcombine.low %v3623, %v3639
        %v3657 = vcombine.high %v3623, %v3639
        %v3659 = vunpack.c.l.s4 1934713408
        %v3660 = vunpack.c.0.s8 %v3659
        %v3661 = vlaneseq
        %v3662 = vshrl.u32 %v3661, 7
        %v3663 = vsub.s32 %v3660, %v3662
        %v3664 = vrot.slane %v3656, %v3663
        %v3666 = vunpack.c.l.s4 1934713408
        %v3667 = vunpack.c.0.s8 %v3666
        %v3668 = vlaneseq
        %v3669 = vshrl.u32 %v3668, 7
        %v3670 = vsub.s32 %v3667, %v3669
        %v3671 = vrot.slane %v3657, %v3670
        %v3672 = vcombine.high %v3648, 0.0
        %v3673 = vcombine.high %v3655, 0.0
        %v3674 = vcombine.high %v3664, 0.0
        %v3675 = vcombine.high %v3671, 0.0
        %v3676 = vcombine.low %v597, %v3185
        %v3677 = vcombine.high %v597, %v3185
        %v3679 = vunpack.c.l.s4 1983009808
        %v3680 = vunpack.c.0.s8 %v3679
        %v3681 = vlaneseq
        %v3682 = vshrl.u32 %v3681, 7
        %v3683 = vsub.s32 %v3680, %v3682
        %v3684 = vrot.slane %v3676, %v3683
        %v3686 = vunpack.c.l.s4 1983009808
        %v3687 = vunpack.c.0.s8 %v3686
        %v3688 = vlaneseq
        %v3689 = vshrl.u32 %v3688, 7
        %v3690 = vsub.s32 %v3687, %v3689
        %v3691 = vrot.slane %v3677, %v3690
        %v3692 = vcombine.low %v3137, %v3233
        %v3693 = vcombine.high %v3137, %v3233
        %v3695 = vunpack.c.l.s4 1983009808
        %v3696 = vunpack.c.0.s8 %v3695
        %v3697 = vlaneseq
        %v3698 = vshrl.u32 %v3697, 7
        %v3699 = vsub.s32 %v3696, %v3698
        %v3700 = vrot.slane %v3692, %v3699
        %v3702 = vunpack.c.l.s4 1983009808
        %v3703 = vunpack.c.0.s8 %v3702
        %v3704 = vlaneseq
        %v3705 = vshrl.u32 %v3704, 7
        %v3706 = vsub.s32 %v3703, %v3705
        %v3707 = vrot.slane %v3693, %v3706
        %v3708 = vcombine.low %v3684, %v3700
        %v3709 = vcombine.high %v3684, %v3700
        %v3711 = vunpack.c.l.s4 1934713408
        %v3712 = vunpack.c.0.s8 %v3711
        %v3713 = vlaneseq
        %v3714 = vshrl.u32 %v3713, 7
        %v3715 = vsub.s32 %v3712, %v3714
        %v3716 = vrot.slane %v3708, %v3715
        %v3718 = vunpack.c.l.s4 1934713408
        %v3719 = vunpack.c.0.s8 %v3718
        %v3720 = vlaneseq
        %v3721 = vshrl.u32 %v3720, 7
        %v3722 = vsub.s32 %v3719, %v3721
        %v3723 = vrot.slane %v3709, %v3722
        %v3724 = vcombine.low %v3691, %v3707
        %v3725 = vcombine.high %v3691, %v3707
        %v3727 = vunpack.c.l.s4 1934713408
        %v3728 = vunpack.c.0.s8 %v3727
        %v3729 = vlaneseq
        %v3730 = vshrl.u32 %v3729, 7
        %v3731 = vsub.s32 %v3728, %v3730
        %v3732 = vrot.slane %v3724, %v3731
        %v3734 = vunpack.c.l.s4 1934713408
        %v3735 = vunpack.c.0.s8 %v3734
        %v3736 = vlaneseq
        %v3737 = vshrl.u32 %v3736, 7
        %v3738 = vsub.s32 %v3735, %v3737
        %v3739 = vrot.slane %v3725, %v3738
        %v3740 = vcombine.high %v3716, 0.0
        %v3741 = vcombine.high %v3723, 0.0
        %v3742 = vcombine.high %v3732, 0.0
        %v3743 = vcombine.high %v3739, 0.0
        %v3744 = vcombine.low %v601, %v3187
        %v3745 = vcombine.high %v601, %v3187
        %v3747 = vunpack.c.l.s4 1983009808
        %v3748 = vunpack.c.0.s8 %v3747
        %v3749 = vlaneseq
        %v3750 = vshrl.u32 %v3749, 7
        %v3751 = vsub.s32 %v3748, %v3750
        %v3752 = vrot.slane %v3744, %v3751
        %v3754 = vunpack.c.l.s4 1983009808
        %v3755 = vunpack.c.0.s8 %v3754
        %v3756 = vlaneseq
        %v3757 = vshrl.u32 %v3756, 7
        %v3758 = vsub.s32 %v3755, %v3757
        %v3759 = vrot.slane %v3745, %v3758
        %v3760 = vcombine.low %v3139, %v3235
        %v3761 = vcombine.high %v3139, %v3235
        %v3763 = vunpack.c.l.s4 1983009808
        %v3764 = vunpack.c.0.s8 %v3763
        %v3765 = vlaneseq
        %v3766 = vshrl.u32 %v3765, 7
        %v3767 = vsub.s32 %v3764, %v3766
        %v3768 = vrot.slane %v3760, %v3767
        %v3770 = vunpack.c.l.s4 1983009808
        %v3771 = vunpack.c.0.s8 %v3770
        %v3772 = vlaneseq
        %v3773 = vshrl.u32 %v3772, 7
        %v3774 = vsub.s32 %v3771, %v3773
        %v3775 = vrot.slane %v3761, %v3774
        %v3776 = vcombine.low %v3752, %v3768
        %v3777 = vcombine.high %v3752, %v3768
        %v3779 = vunpack.c.l.s4 1934713408
        %v3780 = vunpack.c.0.s8 %v3779
        %v3781 = vlaneseq
        %v3782 = vshrl.u32 %v3781, 7
        %v3783 = vsub.s32 %v3780, %v3782
        %v3784 = vrot.slane %v3776, %v3783
        %v3786 = vunpack.c.l.s4 1934713408
        %v3787 = vunpack.c.0.s8 %v3786
        %v3788 = vlaneseq
        %v3789 = vshrl.u32 %v3788, 7
        %v3790 = vsub.s32 %v3787, %v3789
        %v3791 = vrot.slane %v3777, %v3790
        %v3792 = vcombine.low %v3759, %v3775
        %v3793 = vcombine.high %v3759, %v3775
        %v3795 = vunpack.c.l.s4 1934713408
        %v3796 = vunpack.c.0.s8 %v3795
        %v3797 = vlaneseq
        %v3798 = vshrl.u32 %v3797, 7
        %v3799 = vsub.s32 %v3796, %v3798
        %v3800 = vrot.slane %v3792, %v3799
        %v3802 = vunpack.c.l.s4 1934713408
        %v3803 = vunpack.c.0.s8 %v3802
        %v3804 = vlaneseq
        %v3805 = vshrl.u32 %v3804, 7
        %v3806 = vsub.s32 %v3803, %v3805
        %v3807 = vrot.slane %v3793, %v3806
        %v3808 = vcombine.high %v3784, 0.0
        %v3809 = vcombine.high %v3791, 0.0
        %v3810 = vcombine.high %v3800, 0.0
        %v3811 = vcombine.high %v3807, 0.0
        %v3812 = vcombine.low %v607, %v3189
        %v3813 = vcombine.high %v607, %v3189
        %v3815 = vunpack.c.l.s4 1983009808
        %v3816 = vunpack.c.0.s8 %v3815
        %v3817 = vlaneseq
        %v3818 = vshrl.u32 %v3817, 7
        %v3819 = vsub.s32 %v3816, %v3818
        %v3820 = vrot.slane %v3812, %v3819
        %v3822 = vunpack.c.l.s4 1983009808
        %v3823 = vunpack.c.0.s8 %v3822
        %v3824 = vlaneseq
        %v3825 = vshrl.u32 %v3824, 7
        %v3826 = vsub.s32 %v3823, %v3825
        %v3827 = vrot.slane %v3813, %v3826
        %v3828 = vcombine.low %v3141, %v3237
        %v3829 = vcombine.high %v3141, %v3237
        %v3831 = vunpack.c.l.s4 1983009808
        %v3832 = vunpack.c.0.s8 %v3831
        %v3833 = vlaneseq
        %v3834 = vshrl.u32 %v3833, 7
        %v3835 = vsub.s32 %v3832, %v3834
        %v3836 = vrot.slane %v3828, %v3835
        %v3838 = vunpack.c.l.s4 1983009808
        %v3839 = vunpack.c.0.s8 %v3838
        %v3840 = vlaneseq
        %v3841 = vshrl.u32 %v3840, 7
        %v3842 = vsub.s32 %v3839, %v3841
        %v3843 = vrot.slane %v3829, %v3842
        %v3844 = vcombine.low %v3820, %v3836
        %v3845 = vcombine.high %v3820, %v3836
        %v3847 = vunpack.c.l.s4 1934713408
        %v3848 = vunpack.c.0.s8 %v3847
        %v3849 = vlaneseq
        %v3850 = vshrl.u32 %v3849, 7
        %v3851 = vsub.s32 %v3848, %v3850
        %v3852 = vrot.slane %v3844, %v3851
        %v3854 = vunpack.c.l.s4 1934713408
        %v3855 = vunpack.c.0.s8 %v3854
        %v3856 = vlaneseq
        %v3857 = vshrl.u32 %v3856, 7
        %v3858 = vsub.s32 %v3855, %v3857
        %v3859 = vrot.slane %v3845, %v3858
        %v3860 = vcombine.low %v3827, %v3843
        %v3861 = vcombine.high %v3827, %v3843
        %v3863 = vunpack.c.l.s4 1934713408
        %v3864 = vunpack.c.0.s8 %v3863
        %v3865 = vlaneseq
        %v3866 = vshrl.u32 %v3865, 7
        %v3867 = vsub.s32 %v3864, %v3866
        %v3868 = vrot.slane %v3860, %v3867
        %v3870 = vunpack.c.l.s4 1934713408
        %v3871 = vunpack.c.0.s8 %v3870
        %v3872 = vlaneseq
        %v3873 = vshrl.u32 %v3872, 7
        %v3874 = vsub.s32 %v3871, %v3873
        %v3875 = vrot.slane %v3861, %v3874
        %v3876 = vcombine.high %v3852, 0.0
        %v3877 = vcombine.high %v3859, 0.0
        %v3878 = vcombine.high %v3868, 0.0
        %v3879 = vcombine.high %v3875, 0.0
        %v3880 = vcombine.low %v611, %v3191
        %v3881 = vcombine.high %v611, %v3191
        %v3883 = vunpack.c.l.s4 1983009808
        %v3884 = vunpack.c.0.s8 %v3883
        %v3885 = vlaneseq
        %v3886 = vshrl.u32 %v3885, 7
        %v3887 = vsub.s32 %v3884, %v3886
        %v3888 = vrot.slane %v3880, %v3887
        %v3890 = vunpack.c.l.s4 1983009808
        %v3891 = vunpack.c.0.s8 %v3890
        %v3892 = vlaneseq
        %v3893 = vshrl.u32 %v3892, 7
        %v3894 = vsub.s32 %v3891, %v3893
        %v3895 = vrot.slane %v3881, %v3894
        %v3896 = vcombine.low %v3143, %v3239
        %v3897 = vcombine.high %v3143, %v3239
        %v3899 = vunpack.c.l.s4 1983009808
        %v3900 = vunpack.c.0.s8 %v3899
        %v3901 = vlaneseq
        %v3902 = vshrl.u32 %v3901, 7
        %v3903 = vsub.s32 %v3900, %v3902
        %v3904 = vrot.slane %v3896, %v3903
        %v3906 = vunpack.c.l.s4 1983009808
        %v3907 = vunpack.c.0.s8 %v3906
        %v3908 = vlaneseq
        %v3909 = vshrl.u32 %v3908, 7
        %v3910 = vsub.s32 %v3907, %v3909
        %v3911 = vrot.slane %v3897, %v3910
        %v3912 = vcombine.low %v3888, %v3904
        %v3913 = vcombine.high %v3888, %v3904
        %v3915 = vunpack.c.l.s4 1934713408
        %v3916 = vunpack.c.0.s8 %v3915
        %v3917 = vlaneseq
        %v3918 = vshrl.u32 %v3917, 7
        %v3919 = vsub.s32 %v3916, %v3918
        %v3920 = vrot.slane %v3912, %v3919
        %v3922 = vunpack.c.l.s4 1934713408
        %v3923 = vunpack.c.0.s8 %v3922
        %v3924 = vlaneseq
        %v3925 = vshrl.u32 %v3924, 7
        %v3926 = vsub.s32 %v3923, %v3925
        %v3927 = vrot.slane %v3913, %v3926
        %v3928 = vcombine.low %v3895, %v3911
        %v3929 = vcombine.high %v3895, %v3911
        %v3931 = vunpack.c.l.s4 1934713408
        %v3932 = vunpack.c.0.s8 %v3931
        %v3933 = vlaneseq
        %v3934 = vshrl.u32 %v3933, 7
        %v3935 = vsub.s32 %v3932, %v3934
        %v3936 = vrot.slane %v3928, %v3935
        %v3938 = vunpack.c.l.s4 1934713408
        %v3939 = vunpack.c.0.s8 %v3938
        %v3940 = vlaneseq
        %v3941 = vshrl.u32 %v3940, 7
        %v3942 = vsub.s32 %v3939, %v3941
        %v3943 = vrot.slane %v3929, %v3942
        %v3944 = vcombine.high %v3920, 0.0
        %v3945 = vcombine.high %v3927, 0.0
        %v3946 = vcombine.high %v3936, 0.0
        %v3947 = vcombine.high %v3943, 0.0
        %v3948 = vcombine.low %v617, %v3193
        %v3949 = vcombine.high %v617, %v3193
        %v3951 = vunpack.c.l.s4 1983009808
        %v3952 = vunpack.c.0.s8 %v3951
        %v3953 = vlaneseq
        %v3954 = vshrl.u32 %v3953, 7
        %v3955 = vsub.s32 %v3952, %v3954
        %v3956 = vrot.slane %v3948, %v3955
        %v3958 = vunpack.c.l.s4 1983009808
        %v3959 = vunpack.c.0.s8 %v3958
        %v3960 = vlaneseq
        %v3961 = vshrl.u32 %v3960, 7
        %v3962 = vsub.s32 %v3959, %v3961
        %v3963 = vrot.slane %v3949, %v3962
        %v3964 = vcombine.low %v3145, %v3241
        %v3965 = vcombine.high %v3145, %v3241
        %v3967 = vunpack.c.l.s4 1983009808
        %v3968 = vunpack.c.0.s8 %v3967
        %v3969 = vlaneseq
        %v3970 = vshrl.u32 %v3969, 7
        %v3971 = vsub.s32 %v3968, %v3970
        %v3972 = vrot.slane %v3964, %v3971
        %v3974 = vunpack.c.l.s4 1983009808
        %v3975 = vunpack.c.0.s8 %v3974
        %v3976 = vlaneseq
        %v3977 = vshrl.u32 %v3976, 7
        %v3978 = vsub.s32 %v3975, %v3977
        %v3979 = vrot.slane %v3965, %v3978
        %v3980 = vcombine.low %v3956, %v3972
        %v3981 = vcombine.high %v3956, %v3972
        %v3983 = vunpack.c.l.s4 1934713408
        %v3984 = vunpack.c.0.s8 %v3983
        %v3985 = vlaneseq
        %v3986 = vshrl.u32 %v3985, 7
        %v3987 = vsub.s32 %v3984, %v3986
        %v3988 = vrot.slane %v3980, %v3987
        %v3990 = vunpack.c.l.s4 1934713408
        %v3991 = vunpack.c.0.s8 %v3990
        %v3992 = vlaneseq
        %v3993 = vshrl.u32 %v3992, 7
        %v3994 = vsub.s32 %v3991, %v3993
        %v3995 = vrot.slane %v3981, %v3994
        %v3996 = vcombine.low %v3963, %v3979
        %v3997 = vcombine.high %v3963, %v3979
        %v3999 = vunpack.c.l.s4 1934713408
        %v4000 = vunpack.c.0.s8 %v3999
        %v4001 = vlaneseq
        %v4002 = vshrl.u32 %v4001, 7
        %v4003 = vsub.s32 %v4000, %v4002
        %v4004 = vrot.slane %v3996, %v4003
        %v4006 = vunpack.c.l.s4 1934713408
        %v4007 = vunpack.c.0.s8 %v4006
        %v4008 = vlaneseq
        %v4009 = vshrl.u32 %v4008, 7
        %v4010 = vsub.s32 %v4007, %v4009
        %v4011 = vrot.slane %v3997, %v4010
        %v4012 = vcombine.high %v3988, 0.0
        %v4013 = vcombine.high %v3995, 0.0
        %v4014 = vcombine.high %v4004, 0.0
        %v4015 = vcombine.high %v4011, 0.0
        %v4016 = vcombine.low %v621, %v3195
        %v4017 = vcombine.high %v621, %v3195
        %v4019 = vunpack.c.l.s4 1983009808
        %v4020 = vunpack.c.0.s8 %v4019
        %v4021 = vlaneseq
        %v4022 = vshrl.u32 %v4021, 7
        %v4023 = vsub.s32 %v4020, %v4022
        %v4024 = vrot.slane %v4016, %v4023
        %v4026 = vunpack.c.l.s4 1983009808
        %v4027 = vunpack.c.0.s8 %v4026
        %v4028 = vlaneseq
        %v4029 = vshrl.u32 %v4028, 7
        %v4030 = vsub.s32 %v4027, %v4029
        %v4031 = vrot.slane %v4017, %v4030
        %v4032 = vcombine.low %v3147, %v3243
        %v4033 = vcombine.high %v3147, %v3243
        %v4035 = vunpack.c.l.s4 1983009808
        %v4036 = vunpack.c.0.s8 %v4035
        %v4037 = vlaneseq
        %v4038 = vshrl.u32 %v4037, 7
        %v4039 = vsub.s32 %v4036, %v4038
        %v4040 = vrot.slane %v4032, %v4039
        %v4042 = vunpack.c.l.s4 1983009808
        %v4043 = vunpack.c.0.s8 %v4042
        %v4044 = vlaneseq
        %v4045 = vshrl.u32 %v4044, 7
        %v4046 = vsub.s32 %v4043, %v4045
        %v4047 = vrot.slane %v4033, %v4046
        %v4048 = vcombine.low %v4024, %v4040
        %v4049 = vcombine.high %v4024, %v4040
        %v4051 = vunpack.c.l.s4 1934713408
        %v4052 = vunpack.c.0.s8 %v4051
        %v4053 = vlaneseq
        %v4054 = vshrl.u32 %v4053, 7
        %v4055 = vsub.s32 %v4052, %v4054
        %v4056 = vrot.slane %v4048, %v4055
        %v4058 = vunpack.c.l.s4 1934713408
        %v4059 = vunpack.c.0.s8 %v4058
        %v4060 = vlaneseq
        %v4061 = vshrl.u32 %v4060, 7
        %v4062 = vsub.s32 %v4059, %v4061
        %v4063 = vrot.slane %v4049, %v4062
        %v4064 = vcombine.low %v4031, %v4047
        %v4065 = vcombine.high %v4031, %v4047
        %v4067 = vunpack.c.l.s4 1934713408
        %v4068 = vunpack.c.0.s8 %v4067
        %v4069 = vlaneseq
        %v4070 = vshrl.u32 %v4069, 7
        %v4071 = vsub.s32 %v4068, %v4070
        %v4072 = vrot.slane %v4064, %v4071
        %v4074 = vunpack.c.l.s4 1934713408
        %v4075 = vunpack.c.0.s8 %v4074
        %v4076 = vlaneseq
        %v4077 = vshrl.u32 %v4076, 7
        %v4078 = vsub.s32 %v4075, %v4077
        %v4079 = vrot.slane %v4065, %v4078
        %v4080 = vcombine.high %v4056, 0.0
        %v4081 = vcombine.high %v4063, 0.0
        %v4082 = vcombine.high %v4072, 0.0
        %v4083 = vcombine.high %v4079, 0.0
        %v4084 = vcombine.low %v627, %v3197
        %v4085 = vcombine.high %v627, %v3197
        %v4087 = vunpack.c.l.s4 1983009808
        %v4088 = vunpack.c.0.s8 %v4087
        %v4089 = vlaneseq
        %v4090 = vshrl.u32 %v4089, 7
        %v4091 = vsub.s32 %v4088, %v4090
        %v4092 = vrot.slane %v4084, %v4091
        %v4094 = vunpack.c.l.s4 1983009808
        %v4095 = vunpack.c.0.s8 %v4094
        %v4096 = vlaneseq
        %v4097 = vshrl.u32 %v4096, 7
        %v4098 = vsub.s32 %v4095, %v4097
        %v4099 = vrot.slane %v4085, %v4098
        %v4100 = vcombine.low %v3149, %v3245
        %v4101 = vcombine.high %v3149, %v3245
        %v4103 = vunpack.c.l.s4 1983009808
        %v4104 = vunpack.c.0.s8 %v4103
        %v4105 = vlaneseq
        %v4106 = vshrl.u32 %v4105, 7
        %v4107 = vsub.s32 %v4104, %v4106
        %v4108 = vrot.slane %v4100, %v4107
        %v4110 = vunpack.c.l.s4 1983009808
        %v4111 = vunpack.c.0.s8 %v4110
        %v4112 = vlaneseq
        %v4113 = vshrl.u32 %v4112, 7
        %v4114 = vsub.s32 %v4111, %v4113
        %v4115 = vrot.slane %v4101, %v4114
        %v4116 = vcombine.low %v4092, %v4108
        %v4117 = vcombine.high %v4092, %v4108
        %v4119 = vunpack.c.l.s4 1934713408
        %v4120 = vunpack.c.0.s8 %v4119
        %v4121 = vlaneseq
        %v4122 = vshrl.u32 %v4121, 7
        %v4123 = vsub.s32 %v4120, %v4122
        %v4124 = vrot.slane %v4116, %v4123
        %v4126 = vunpack.c.l.s4 1934713408
        %v4127 = vunpack.c.0.s8 %v4126
        %v4128 = vlaneseq
        %v4129 = vshrl.u32 %v4128, 7
        %v4130 = vsub.s32 %v4127, %v4129
        %v4131 = vrot.slane %v4117, %v4130
        %v4132 = vcombine.low %v4099, %v4115
        %v4133 = vcombine.high %v4099, %v4115
        %v4135 = vunpack.c.l.s4 1934713408
        %v4136 = vunpack.c.0.s8 %v4135
        %v4137 = vlaneseq
        %v4138 = vshrl.u32 %v4137, 7
        %v4139 = vsub.s32 %v4136, %v4138
        %v4140 = vrot.slane %v4132, %v4139
        %v4142 = vunpack.c.l.s4 1934713408
        %v4143 = vunpack.c.0.s8 %v4142
        %v4144 = vlaneseq
        %v4145 = vshrl.u32 %v4144, 7
        %v4146 = vsub.s32 %v4143, %v4145
        %v4147 = vrot.slane %v4133, %v4146
        %v4148 = vcombine.high %v4124, 0.0
        %v4149 = vcombine.high %v4131, 0.0
        %v4150 = vcombine.high %v4140, 0.0
        %v4151 = vcombine.high %v4147, 0.0
        %v4152 = vcombine.low %v631, %v3199
        %v4153 = vcombine.high %v631, %v3199
        %v4155 = vunpack.c.l.s4 1983009808
        %v4156 = vunpack.c.0.s8 %v4155
        %v4157 = vlaneseq
        %v4158 = vshrl.u32 %v4157, 7
        %v4159 = vsub.s32 %v4156, %v4158
        %v4160 = vrot.slane %v4152, %v4159
        %v4162 = vunpack.c.l.s4 1983009808
        %v4163 = vunpack.c.0.s8 %v4162
        %v4164 = vlaneseq
        %v4165 = vshrl.u32 %v4164, 7
        %v4166 = vsub.s32 %v4163, %v4165
        %v4167 = vrot.slane %v4153, %v4166
        %v4168 = vcombine.low %v3151, %v3247
        %v4169 = vcombine.high %v3151, %v3247
        %v4171 = vunpack.c.l.s4 1983009808
        %v4172 = vunpack.c.0.s8 %v4171
        %v4173 = vlaneseq
        %v4174 = vshrl.u32 %v4173, 7
        %v4175 = vsub.s32 %v4172, %v4174
        %v4176 = vrot.slane %v4168, %v4175
        %v4178 = vunpack.c.l.s4 1983009808
        %v4179 = vunpack.c.0.s8 %v4178
        %v4180 = vlaneseq
        %v4181 = vshrl.u32 %v4180, 7
        %v4182 = vsub.s32 %v4179, %v4181
        %v4183 = vrot.slane %v4169, %v4182
        %v4184 = vcombine.low %v4160, %v4176
        %v4185 = vcombine.high %v4160, %v4176
        %v4187 = vunpack.c.l.s4 1934713408
        %v4188 = vunpack.c.0.s8 %v4187
        %v4189 = vlaneseq
        %v4190 = vshrl.u32 %v4189, 7
        %v4191 = vsub.s32 %v4188, %v4190
        %v4192 = vrot.slane %v4184, %v4191
        %v4194 = vunpack.c.l.s4 1934713408
        %v4195 = vunpack.c.0.s8 %v4194
        %v4196 = vlaneseq
        %v4197 = vshrl.u32 %v4196, 7
        %v4198 = vsub.s32 %v4195, %v4197
        %v4199 = vrot.slane %v4185, %v4198
        %v4200 = vcombine.low %v4167, %v4183
        %v4201 = vcombine.high %v4167, %v4183
        %v4203 = vunpack.c.l.s4 1934713408
        %v4204 = vunpack.c.0.s8 %v4203
        %v4205 = vlaneseq
        %v4206 = vshrl.u32 %v4205, 7
        %v4207 = vsub.s32 %v4204, %v4206
        %v4208 = vrot.slane %v4200, %v4207
        %v4210 = vunpack.c.l.s4 1934713408
        %v4211 = vunpack.c.0.s8 %v4210
        %v4212 = vlaneseq
        %v4213 = vshrl.u32 %v4212, 7
        %v4214 = vsub.s32 %v4211, %v4213
        %v4215 = vrot.slane %v4201, %v4214
        %v4216 = vcombine.high %v4192, 0.0
        %v4217 = vcombine.high %v4199, 0.0
        %v4218 = vcombine.high %v4208, 0.0
        %v4219 = vcombine.high %v4215, 0.0
        %v4220 = vcombine.low %v637, %v3201
        %v4221 = vcombine.high %v637, %v3201
        %v4223 = vunpack.c.l.s4 1983009808
        %v4224 = vunpack.c.0.s8 %v4223
        %v4225 = vlaneseq
        %v4226 = vshrl.u32 %v4225, 7
        %v4227 = vsub.s32 %v4224, %v4226
        %v4228 = vrot.slane %v4220, %v4227
        %v4230 = vunpack.c.l.s4 1983009808
        %v4231 = vunpack.c.0.s8 %v4230
        %v4232 = vlaneseq
        %v4233 = vshrl.u32 %v4232, 7
        %v4234 = vsub.s32 %v4231, %v4233
        %v4235 = vrot.slane %v4221, %v4234
        %v4236 = vcombine.low %v3153, %v3249
        %v4237 = vcombine.high %v3153, %v3249
        %v4239 = vunpack.c.l.s4 1983009808
        %v4240 = vunpack.c.0.s8 %v4239
        %v4241 = vlaneseq
        %v4242 = vshrl.u32 %v4241, 7
        %v4243 = vsub.s32 %v4240, %v4242
        %v4244 = vrot.slane %v4236, %v4243
        %v4246 = vunpack.c.l.s4 1983009808
        %v4247 = vunpack.c.0.s8 %v4246
        %v4248 = vlaneseq
        %v4249 = vshrl.u32 %v4248, 7
        %v4250 = vsub.s32 %v4247, %v4249
        %v4251 = vrot.slane %v4237, %v4250
        %v4252 = vcombine.low %v4228, %v4244
        %v4253 = vcombine.high %v4228, %v4244
        %v4255 = vunpack.c.l.s4 1934713408
        %v4256 = vunpack.c.0.s8 %v4255
        %v4257 = vlaneseq
        %v4258 = vshrl.u32 %v4257, 7
        %v4259 = vsub.s32 %v4256, %v4258
        %v4260 = vrot.slane %v4252, %v4259
        %v4262 = vunpack.c.l.s4 1934713408
        %v4263 = vunpack.c.0.s8 %v4262
        %v4264 = vlaneseq
        %v4265 = vshrl.u32 %v4264, 7
        %v4266 = vsub.s32 %v4263, %v4265
        %v4267 = vrot.slane %v4253, %v4266
        %v4268 = vcombine.low %v4235, %v4251
        %v4269 = vcombine.high %v4235, %v4251
        %v4271 = vunpack.c.l.s4 1934713408
        %v4272 = vunpack.c.0.s8 %v4271
        %v4273 = vlaneseq
        %v4274 = vshrl.u32 %v4273, 7
        %v4275 = vsub.s32 %v4272, %v4274
        %v4276 = vrot.slane %v4268, %v4275
        %v4278 = vunpack.c.l.s4 1934713408
        %v4279 = vunpack.c.0.s8 %v4278
        %v4280 = vlaneseq
        %v4281 = vshrl.u32 %v4280, 7
        %v4282 = vsub.s32 %v4279, %v4281
        %v4283 = vrot.slane %v4269, %v4282
        %v4284 = vcombine.high %v4260, 0.0
        %v4285 = vcombine.high %v4267, 0.0
        %v4286 = vcombine.high %v4276, 0.0
        %v4287 = vcombine.high %v4283, 0.0
        %v4288 = vcombine.low %v641, %v3203
        %v4289 = vcombine.high %v641, %v3203
        %v4291 = vunpack.c.l.s4 1983009808
        %v4292 = vunpack.c.0.s8 %v4291
        %v4293 = vlaneseq
        %v4294 = vshrl.u32 %v4293, 7
        %v4295 = vsub.s32 %v4292, %v4294
        %v4296 = vrot.slane %v4288, %v4295
        %v4298 = vunpack.c.l.s4 1983009808
        %v4299 = vunpack.c.0.s8 %v4298
        %v4300 = vlaneseq
        %v4301 = vshrl.u32 %v4300, 7
        %v4302 = vsub.s32 %v4299, %v4301
        %v4303 = vrot.slane %v4289, %v4302
        %v4304 = vcombine.low %v3155, %v3251
        %v4305 = vcombine.high %v3155, %v3251
        %v4307 = vunpack.c.l.s4 1983009808
        %v4308 = vunpack.c.0.s8 %v4307
        %v4309 = vlaneseq
        %v4310 = vshrl.u32 %v4309, 7
        %v4311 = vsub.s32 %v4308, %v4310
        %v4312 = vrot.slane %v4304, %v4311
        %v4314 = vunpack.c.l.s4 1983009808
        %v4315 = vunpack.c.0.s8 %v4314
        %v4316 = vlaneseq
        %v4317 = vshrl.u32 %v4316, 7
        %v4318 = vsub.s32 %v4315, %v4317
        %v4319 = vrot.slane %v4305, %v4318
        %v4320 = vcombine.low %v4296, %v4312
        %v4321 = vcombine.high %v4296, %v4312
        %v4323 = vunpack.c.l.s4 1934713408
        %v4324 = vunpack.c.0.s8 %v4323
        %v4325 = vlaneseq
        %v4326 = vshrl.u32 %v4325, 7
        %v4327 = vsub.s32 %v4324, %v4326
        %v4328 = vrot.slane %v4320, %v4327
        %v4330 = vunpack.c.l.s4 1934713408
        %v4331 = vunpack.c.0.s8 %v4330
        %v4332 = vlaneseq
        %v4333 = vshrl.u32 %v4332, 7
        %v4334 = vsub.s32 %v4331, %v4333
        %v4335 = vrot.slane %v4321, %v4334
        %v4336 = vcombine.low %v4303, %v4319
        %v4337 = vcombine.high %v4303, %v4319
        %v4339 = vunpack.c.l.s4 1934713408
        %v4340 = vunpack.c.0.s8 %v4339
        %v4341 = vlaneseq
        %v4342 = vshrl.u32 %v4341, 7
        %v4343 = vsub.s32 %v4340, %v4342
        %v4344 = vrot.slane %v4336, %v4343
        %v4346 = vunpack.c.l.s4 1934713408
        %v4347 = vunpack.c.0.s8 %v4346
        %v4348 = vlaneseq
        %v4349 = vshrl.u32 %v4348, 7
        %v4350 = vsub.s32 %v4347, %v4349
        %v4351 = vrot.slane %v4337, %v4350
        %v4352 = vcombine.high %v4328, 0.0
        %v4353 = vcombine.high %v4335, 0.0
        %v4354 = vcombine.high %v4344, 0.0
        %v4355 = vcombine.high %v4351, 0.0
        %v4356 = vcombine.low %v3308, %v3315
        %v4358 = vunpack.c.l.s4 1983009808
        %v4359 = vunpack.c.0.s8 %v4358
        %v4360 = vlaneseq
        %v4361 = vshrl.u32 %v4360, 7
        %v4362 = vsub.s32 %v4359, %v4361
        %v4363 = vrot.slane %v4356, %v4362
        %v4364 = vcombine.low %v3332, %v3333
        %v4366 = vunpack.c.l.s4 1983009808
        %v4367 = vunpack.c.0.s8 %v4366
        %v4368 = vlaneseq
        %v4369 = vshrl.u32 %v4368, 7
        %v4370 = vsub.s32 %v4367, %v4369
        %v4371 = vrot.slane %v4364, %v4370
        %v4372 = vcombine.low %v3324, %v3331
        %v4374 = vunpack.c.l.s4 1983009808
        %v4375 = vunpack.c.0.s8 %v4374
        %v4376 = vlaneseq
        %v4377 = vshrl.u32 %v4376, 7
        %v4378 = vsub.s32 %v4375, %v4377
        %v4379 = vrot.slane %v4372, %v4378
        %v4380 = vcombine.low %v3334, %v3335
        %v4382 = vunpack.c.l.s4 1983009808
        %v4383 = vunpack.c.0.s8 %v4382
        %v4384 = vlaneseq
        %v4385 = vshrl.u32 %v4384, 7
        %v4386 = vsub.s32 %v4383, %v4385
        %v4387 = vrot.slane %v4380, %v4386
        %v4388 = vcombine.low %v4363, %v4371
        %v4389 = vcombine.high %v4363, %v4371
        %v4391 = vunpack.c.l.s4 1934713408
        %v4392 = vunpack.c.0.s8 %v4391
        %v4393 = vlaneseq
        %v4394 = vshrl.u32 %v4393, 7
        %v4395 = vsub.s32 %v4392, %v4394
        %v4396 = vrot.slane %v4388, %v4395
        %v4398 = vunpack.c.l.s4 1934713408
        %v4399 = vunpack.c.0.s8 %v4398
        %v4400 = vlaneseq
        %v4401 = vshrl.u32 %v4400, 7
        %v4402 = vsub.s32 %v4399, %v4401
        %v4403 = vrot.slane %v4389, %v4402
        %v4404 = vcombine.low %v4379, %v4387
        %v4405 = vcombine.high %v4379, %v4387
        %v4407 = vunpack.c.l.s4 1934713408
        %v4408 = vunpack.c.0.s8 %v4407
        %v4409 = vlaneseq
        %v4410 = vshrl.u32 %v4409, 7
        %v4411 = vsub.s32 %v4408, %v4410
        %v4412 = vrot.slane %v4404, %v4411
        %v4414 = vunpack.c.l.s4 1934713408
        %v4415 = vunpack.c.0.s8 %v4414
        %v4416 = vlaneseq
        %v4417 = vshrl.u32 %v4416, 7
        %v4418 = vsub.s32 %v4415, %v4417
        %v4419 = vrot.slane %v4405, %v4418
        %v4420 = vcombine.low %v4396, %v4412
        %v4421 = vcombine.high %v4396, %v4412
        %v4422 = vcombine.low %v4403, %v4419
        %v4423 = vcombine.high %v4403, %v4419
        %v4424 = vcombine.low %v3376, %v3383
        %v4426 = vunpack.c.l.s4 1983009808
        %v4427 = vunpack.c.0.s8 %v4426
        %v4428 = vlaneseq
        %v4429 = vshrl.u32 %v4428, 7
        %v4430 = vsub.s32 %v4427, %v4429
        %v4431 = vrot.slane %v4424, %v4430
        %v4432 = vcombine.low %v3400, %v3401
        %v4434 = vunpack.c.l.s4 1983009808
        %v4435 = vunpack.c.0.s8 %v4434
        %v4436 = vlaneseq
        %v4437 = vshrl.u32 %v4436, 7
        %v4438 = vsub.s32 %v4435, %v4437
        %v4439 = vrot.slane %v4432, %v4438
        %v4440 = vcombine.low %v3392, %v3399
        %v4442 = vunpack.c.l.s4 1983009808
        %v4443 = vunpack.c.0.s8 %v4442
        %v4444 = vlaneseq
        %v4445 = vshrl.u32 %v4444, 7
        %v4446 = vsub.s32 %v4443, %v4445
        %v4447 = vrot.slane %v4440, %v4446
        %v4448 = vcombine.low %v3402, %v3403
        %v4450 = vunpack.c.l.s4 1983009808
        %v4451 = vunpack.c.0.s8 %v4450
        %v4452 = vlaneseq
        %v4453 = vshrl.u32 %v4452, 7
        %v4454 = vsub.s32 %v4451, %v4453
        %v4455 = vrot.slane %v4448, %v4454
        %v4456 = vcombine.low %v4431, %v4439
        %v4457 = vcombine.high %v4431, %v4439
        %v4459 = vunpack.c.l.s4 1934713408
        %v4460 = vunpack.c.0.s8 %v4459
        %v4461 = vlaneseq
        %v4462 = vshrl.u32 %v4461, 7
        %v4463 = vsub.s32 %v4460, %v4462
        %v4464 = vrot.slane %v4456, %v4463
        %v4466 = vunpack.c.l.s4 1934713408
        %v4467 = vunpack.c.0.s8 %v4466
        %v4468 = vlaneseq
        %v4469 = vshrl.u32 %v4468, 7
        %v4470 = vsub.s32 %v4467, %v4469
        %v4471 = vrot.slane %v4457, %v4470
        %v4472 = vcombine.low %v4447, %v4455
        %v4473 = vcombine.high %v4447, %v4455
        %v4475 = vunpack.c.l.s4 1934713408
        %v4476 = vunpack.c.0.s8 %v4475
        %v4477 = vlaneseq
        %v4478 = vshrl.u32 %v4477, 7
        %v4479 = vsub.s32 %v4476, %v4478
        %v4480 = vrot.slane %v4472, %v4479
        %v4482 = vunpack.c.l.s4 1934713408
        %v4483 = vunpack.c.0.s8 %v4482
        %v4484 = vlaneseq
        %v4485 = vshrl.u32 %v4484, 7
        %v4486 = vsub.s32 %v4483, %v4485
        %v4487 = vrot.slane %v4473, %v4486
        %v4488 = vcombine.low %v4464, %v4480
        %v4489 = vcombine.high %v4464, %v4480
        %v4490 = vcombine.low %v4471, %v4487
        %v4491 = vcombine.high %v4471, %v4487
        %v4492 = vcombine.low %v3444, %v3451
        %v4494 = vunpack.c.l.s4 1983009808
        %v4495 = vunpack.c.0.s8 %v4494
        %v4496 = vlaneseq
        %v4497 = vshrl.u32 %v4496, 7
        %v4498 = vsub.s32 %v4495, %v4497
        %v4499 = vrot.slane %v4492, %v4498
        %v4500 = vcombine.low %v3468, %v3469
        %v4502 = vunpack.c.l.s4 1983009808
        %v4503 = vunpack.c.0.s8 %v4502
        %v4504 = vlaneseq
        %v4505 = vshrl.u32 %v4504, 7
        %v4506 = vsub.s32 %v4503, %v4505
        %v4507 = vrot.slane %v4500, %v4506
        %v4508 = vcombine.low %v3460, %v3467
        %v4510 = vunpack.c.l.s4 1983009808
        %v4511 = vunpack.c.0.s8 %v4510
        %v4512 = vlaneseq
        %v4513 = vshrl.u32 %v4512, 7
        %v4514 = vsub.s32 %v4511, %v4513
        %v4515 = vrot.slane %v4508, %v4514
        %v4516 = vcombine.low %v3470, %v3471
        %v4518 = vunpack.c.l.s4 1983009808
        %v4519 = vunpack.c.0.s8 %v4518
        %v4520 = vlaneseq
        %v4521 = vshrl.u32 %v4520, 7
        %v4522 = vsub.s32 %v4519, %v4521
        %v4523 = vrot.slane %v4516, %v4522
        %v4524 = vcombine.low %v4499, %v4507
        %v4525 = vcombine.high %v4499, %v4507
        %v4527 = vunpack.c.l.s4 1934713408
        %v4528 = vunpack.c.0.s8 %v4527
        %v4529 = vlaneseq
        %v4530 = vshrl.u32 %v4529, 7
        %v4531 = vsub.s32 %v4528, %v4530
        %v4532 = vrot.slane %v4524, %v4531
        %v4534 = vunpack.c.l.s4 1934713408
        %v4535 = vunpack.c.0.s8 %v4534
        %v4536 = vlaneseq
        %v4537 = vshrl.u32 %v4536, 7
        %v4538 = vsub.s32 %v4535, %v4537
        %v4539 = vrot.slane %v4525, %v4538
        %v4540 = vcombine.low %v4515, %v4523
        %v4541 = vcombine.high %v4515, %v4523
        %v4543 = vunpack.c.l.s4 1934713408
        %v4544 = vunpack.c.0.s8 %v4543
        %v4545 = vlaneseq
        %v4546 = vshrl.u32 %v4545, 7
        %v4547 = vsub.s32 %v4544, %v4546
        %v4548 = vrot.slane %v4540, %v4547
        %v4550 = vunpack.c.l.s4 1934713408
        %v4551 = vunpack.c.0.s8 %v4550
        %v4552 = vlaneseq
        %v4553 = vshrl.u32 %v4552, 7
        %v4554 = vsub.s32 %v4551, %v4553
        %v4555 = vrot.slane %v4541, %v4554
        %v4556 = vcombine.low %v4532, %v4548
        %v4557 = vcombine.high %v4532, %v4548
        %v4558 = vcombine.low %v4539, %v4555
        %v4559 = vcombine.high %v4539, %v4555
        %v4560 = vcombine.low %v3512, %v3519
        %v4562 = vunpack.c.l.s4 1983009808
        %v4563 = vunpack.c.0.s8 %v4562
        %v4564 = vlaneseq
        %v4565 = vshrl.u32 %v4564, 7
        %v4566 = vsub.s32 %v4563, %v4565
        %v4567 = vrot.slane %v4560, %v4566
        %v4568 = vcombine.low %v3536, %v3537
        %v4570 = vunpack.c.l.s4 1983009808
        %v4571 = vunpack.c.0.s8 %v4570
        %v4572 = vlaneseq
        %v4573 = vshrl.u32 %v4572, 7
        %v4574 = vsub.s32 %v4571, %v4573
        %v4575 = vrot.slane %v4568, %v4574
        %v4576 = vcombine.low %v3528, %v3535
        %v4578 = vunpack.c.l.s4 1983009808
        %v4579 = vunpack.c.0.s8 %v4578
        %v4580 = vlaneseq
        %v4581 = vshrl.u32 %v4580, 7
        %v4582 = vsub.s32 %v4579, %v4581
        %v4583 = vrot.slane %v4576, %v4582
        %v4584 = vcombine.low %v3538, %v3539
        %v4586 = vunpack.c.l.s4 1983009808
        %v4587 = vunpack.c.0.s8 %v4586
        %v4588 = vlaneseq
        %v4589 = vshrl.u32 %v4588, 7
        %v4590 = vsub.s32 %v4587, %v4589
        %v4591 = vrot.slane %v4584, %v4590
        %v4592 = vcombine.low %v4567, %v4575
        %v4593 = vcombine.high %v4567, %v4575
        %v4595 = vunpack.c.l.s4 1934713408
        %v4596 = vunpack.c.0.s8 %v4595
        %v4597 = vlaneseq
        %v4598 = vshrl.u32 %v4597, 7
        %v4599 = vsub.s32 %v4596, %v4598
        %v4600 = vrot.slane %v4592, %v4599
        %v4602 = vunpack.c.l.s4 1934713408
        %v4603 = vunpack.c.0.s8 %v4602
        %v4604 = vlaneseq
        %v4605 = vshrl.u32 %v4604, 7
        %v4606 = vsub.s32 %v4603, %v4605
        %v4607 = vrot.slane %v4593, %v4606
        %v4608 = vcombine.low %v4583, %v4591
        %v4609 = vcombine.high %v4583, %v4591
        %v4611 = vunpack.c.l.s4 1934713408
        %v4612 = vunpack.c.0.s8 %v4611
        %v4613 = vlaneseq
        %v4614 = vshrl.u32 %v4613, 7
        %v4615 = vsub.s32 %v4612, %v4614
        %v4616 = vrot.slane %v4608, %v4615
        %v4618 = vunpack.c.l.s4 1934713408
        %v4619 = vunpack.c.0.s8 %v4618
        %v4620 = vlaneseq
        %v4621 = vshrl.u32 %v4620, 7
        %v4622 = vsub.s32 %v4619, %v4621
        %v4623 = vrot.slane %v4609, %v4622
        %v4624 = vcombine.low %v4600, %v4616
        %v4625 = vcombine.high %v4600, %v4616
        %v4626 = vcombine.low %v4607, %v4623
        %v4627 = vcombine.high %v4607, %v4623
        %v4628 = vcombine.low %v3580, %v3587
        %v4630 = vunpack.c.l.s4 1983009808
        %v4631 = vunpack.c.0.s8 %v4630
        %v4632 = vlaneseq
        %v4633 = vshrl.u32 %v4632, 7
        %v4634 = vsub.s32 %v4631, %v4633
        %v4635 = vrot.slane %v4628, %v4634
        %v4636 = vcombine.low %v3604, %v3605
        %v4638 = vunpack.c.l.s4 1983009808
        %v4639 = vunpack.c.0.s8 %v4638
        %v4640 = vlaneseq
        %v4641 = vshrl.u32 %v4640, 7
        %v4642 = vsub.s32 %v4639, %v4641
        %v4643 = vrot.slane %v4636, %v4642
        %v4644 = vcombine.low %v3596, %v3603
        %v4646 = vunpack.c.l.s4 1983009808
        %v4647 = vunpack.c.0.s8 %v4646
        %v4648 = vlaneseq
        %v4649 = vshrl.u32 %v4648, 7
        %v4650 = vsub.s32 %v4647, %v4649
        %v4651 = vrot.slane %v4644, %v4650
        %v4652 = vcombine.low %v3606, %v3607
        %v4654 = vunpack.c.l.s4 1983009808
        %v4655 = vunpack.c.0.s8 %v4654
        %v4656 = vlaneseq
        %v4657 = vshrl.u32 %v4656, 7
        %v4658 = vsub.s32 %v4655, %v4657
        %v4659 = vrot.slane %v4652, %v4658
        %v4660 = vcombine.low %v4635, %v4643
        %v4661 = vcombine.high %v4635, %v4643
        %v4663 = vunpack.c.l.s4 1934713408
        %v4664 = vunpack.c.0.s8 %v4663
        %v4665 = vlaneseq
        %v4666 = vshrl.u32 %v4665, 7
        %v4667 = vsub.s32 %v4664, %v4666
        %v4668 = vrot.slane %v4660, %v4667
        %v4670 = vunpack.c.l.s4 1934713408
        %v4671 = vunpack.c.0.s8 %v4670
        %v4672 = vlaneseq
        %v4673 = vshrl.u32 %v4672, 7
        %v4674 = vsub.s32 %v4671, %v4673
        %v4675 = vrot.slane %v4661, %v4674
        %v4676 = vcombine.low %v4651, %v4659
        %v4677 = vcombine.high %v4651, %v4659
        %v4679 = vunpack.c.l.s4 1934713408
        %v4680 = vunpack.c.0.s8 %v4679
        %v4681 = vlaneseq
        %v4682 = vshrl.u32 %v4681, 7
        %v4683 = vsub.s32 %v4680, %v4682
        %v4684 = vrot.slane %v4676, %v4683
        %v4686 = vunpack.c.l.s4 1934713408
        %v4687 = vunpack.c.0.s8 %v4686
        %v4688 = vlaneseq
        %v4689 = vshrl.u32 %v4688, 7
        %v4690 = vsub.s32 %v4687, %v4689
        %v4691 = vrot.slane %v4677, %v4690
        %v4692 = vcombine.low %v4668, %v4684
        %v4693 = vcombine.high %v4668, %v4684
        %v4694 = vcombine.low %v4675, %v4691
        %v4695 = vcombine.high %v4675, %v4691
        %v4696 = vcombine.low %v3648, %v3655
        %v4698 = vunpack.c.l.s4 1983009808
        %v4699 = vunpack.c.0.s8 %v4698
        %v4700 = vlaneseq
        %v4701 = vshrl.u32 %v4700, 7
        %v4702 = vsub.s32 %v4699, %v4701
        %v4703 = vrot.slane %v4696, %v4702
        %v4704 = vcombine.low %v3672, %v3673
        %v4706 = vunpack.c.l.s4 1983009808
        %v4707 = vunpack.c.0.s8 %v4706
        %v4708 = vlaneseq
        %v4709 = vshrl.u32 %v4708, 7
        %v4710 = vsub.s32 %v4707, %v4709
        %v4711 = vrot.slane %v4704, %v4710
        %v4712 = vcombine.low %v3664, %v3671
        %v4714 = vunpack.c.l.s4 1983009808
        %v4715 = vunpack.c.0.s8 %v4714
        %v4716 = vlaneseq
        %v4717 = vshrl.u32 %v4716, 7
        %v4718 = vsub.s32 %v4715, %v4717
        %v4719 = vrot.slane %v4712, %v4718
        %v4720 = vcombine.low %v3674, %v3675
        %v4722 = vunpack.c.l.s4 1983009808
        %v4723 = vunpack.c.0.s8 %v4722
        %v4724 = vlaneseq
        %v4725 = vshrl.u32 %v4724, 7
        %v4726 = vsub.s32 %v4723, %v4725
        %v4727 = vrot.slane %v4720, %v4726
        %v4728 = vcombine.low %v4703, %v4711
        %v4729 = vcombine.high %v4703, %v4711
        %v4731 = vunpack.c.l.s4 1934713408
        %v4732 = vunpack.c.0.s8 %v4731
        %v4733 = vlaneseq
        %v4734 = vshrl.u32 %v4733, 7
        %v4735 = vsub.s32 %v4732, %v4734
        %v4736 = vrot.slane %v4728, %v4735
        %v4738 = vunpack.c.l.s4 1934713408
        %v4739 = vunpack.c.0.s8 %v4738
        %v4740 = vlaneseq
        %v4741 = vshrl.u32 %v4740, 7
        %v4742 = vsub.s32 %v4739, %v4741
        %v4743 = vrot.slane %v4729, %v4742
        %v4744 = vcombine.low %v4719, %v4727
        %v4745 = vcombine.high %v4719, %v4727
        %v4747 = vunpack.c.l.s4 1934713408
        %v4748 = vunpack.c.0.s8 %v4747
        %v4749 = vlaneseq
        %v4750 = vshrl.u32 %v4749, 7
        %v4751 = vsub.s32 %v4748, %v4750
        %v4752 = vrot.slane %v4744, %v4751
        %v4754 = vunpack.c.l.s4 1934713408
        %v4755 = vunpack.c.0.s8 %v4754
        %v4756 = vlaneseq
        %v4757 = vshrl.u32 %v4756, 7
        %v4758 = vsub.s32 %v4755, %v4757
        %v4759 = vrot.slane %v4745, %v4758
        %v4760 = vcombine.low %v4736, %v4752
        %v4761 = vcombine.high %v4736, %v4752
        %v4762 = vcombine.low %v4743, %v4759
        %v4763 = vcombine.high %v4743, %v4759
        %v4764 = vcombine.low %v3716, %v3723
        %v4766 = vunpack.c.l.s4 1983009808
        %v4767 = vunpack.c.0.s8 %v4766
        %v4768 = vlaneseq
        %v4769 = vshrl.u32 %v4768, 7
        %v4770 = vsub.s32 %v4767, %v4769
        %v4771 = vrot.slane %v4764, %v4770
        %v4772 = vcombine.low %v3740, %v3741
        %v4774 = vunpack.c.l.s4 1983009808
        %v4775 = vunpack.c.0.s8 %v4774
        %v4776 = vlaneseq
        %v4777 = vshrl.u32 %v4776, 7
        %v4778 = vsub.s32 %v4775, %v4777
        %v4779 = vrot.slane %v4772, %v4778
        %v4780 = vcombine.low %v3732, %v3739
        %v4782 = vunpack.c.l.s4 1983009808
        %v4783 = vunpack.c.0.s8 %v4782
        %v4784 = vlaneseq
        %v4785 = vshrl.u32 %v4784, 7
        %v4786 = vsub.s32 %v4783, %v4785
        %v4787 = vrot.slane %v4780, %v4786
        %v4788 = vcombine.low %v3742, %v3743
        %v4790 = vunpack.c.l.s4 1983009808
        %v4791 = vunpack.c.0.s8 %v4790
        %v4792 = vlaneseq
        %v4793 = vshrl.u32 %v4792, 7
        %v4794 = vsub.s32 %v4791, %v4793
        %v4795 = vrot.slane %v4788, %v4794
        %v4796 = vcombine.low %v4771, %v4779
        %v4797 = vcombine.high %v4771, %v4779
        %v4799 = vunpack.c.l.s4 1934713408
        %v4800 = vunpack.c.0.s8 %v4799
        %v4801 = vlaneseq
        %v4802 = vshrl.u32 %v4801, 7
        %v4803 = vsub.s32 %v4800, %v4802
        %v4804 = vrot.slane %v4796, %v4803
        %v4806 = vunpack.c.l.s4 1934713408
        %v4807 = vunpack.c.0.s8 %v4806
        %v4808 = vlaneseq
        %v4809 = vshrl.u32 %v4808, 7
        %v4810 = vsub.s32 %v4807, %v4809
        %v4811 = vrot.slane %v4797, %v4810
        %v4812 = vcombine.low %v4787, %v4795
        %v4813 = vcombine.high %v4787, %v4795
        %v4815 = vunpack.c.l.s4 1934713408
        %v4816 = vunpack.c.0.s8 %v4815
        %v4817 = vlaneseq
        %v4818 = vshrl.u32 %v4817, 7
        %v4819 = vsub.s32 %v4816, %v4818
        %v4820 = vrot.slane %v4812, %v4819
        %v4822 = vunpack.c.l.s4 1934713408
        %v4823 = vunpack.c.0.s8 %v4822
        %v4824 = vlaneseq
        %v4825 = vshrl.u32 %v4824, 7
        %v4826 = vsub.s32 %v4823, %v4825
        %v4827 = vrot.slane %v4813, %v4826
        %v4828 = vcombine.low %v4804, %v4820
        %v4829 = vcombine.high %v4804, %v4820
        %v4830 = vcombine.low %v4811, %v4827
        %v4831 = vcombine.high %v4811, %v4827
        %v4832 = vcombine.low %v3784, %v3791
        %v4834 = vunpack.c.l.s4 1983009808
        %v4835 = vunpack.c.0.s8 %v4834
        %v4836 = vlaneseq
        %v4837 = vshrl.u32 %v4836, 7
        %v4838 = vsub.s32 %v4835, %v4837
        %v4839 = vrot.slane %v4832, %v4838
        %v4840 = vcombine.low %v3808, %v3809
        %v4842 = vunpack.c.l.s4 1983009808
        %v4843 = vunpack.c.0.s8 %v4842
        %v4844 = vlaneseq
        %v4845 = vshrl.u32 %v4844, 7
        %v4846 = vsub.s32 %v4843, %v4845
        %v4847 = vrot.slane %v4840, %v4846
        %v4848 = vcombine.low %v3800, %v3807
        %v4850 = vunpack.c.l.s4 1983009808
        %v4851 = vunpack.c.0.s8 %v4850
        %v4852 = vlaneseq
        %v4853 = vshrl.u32 %v4852, 7
        %v4854 = vsub.s32 %v4851, %v4853
        %v4855 = vrot.slane %v4848, %v4854
        %v4856 = vcombine.low %v3810, %v3811
        %v4858 = vunpack.c.l.s4 1983009808
        %v4859 = vunpack.c.0.s8 %v4858
        %v4860 = vlaneseq
        %v4861 = vshrl.u32 %v4860, 7
        %v4862 = vsub.s32 %v4859, %v4861
        %v4863 = vrot.slane %v4856, %v4862
        %v4864 = vcombine.low %v4839, %v4847
        %v4865 = vcombine.high %v4839, %v4847
        %v4867 = vunpack.c.l.s4 1934713408
        %v4868 = vunpack.c.0.s8 %v4867
        %v4869 = vlaneseq
        %v4870 = vshrl.u32 %v4869, 7
        %v4871 = vsub.s32 %v4868, %v4870
        %v4872 = vrot.slane %v4864, %v4871
        %v4874 = vunpack.c.l.s4 1934713408
        %v4875 = vunpack.c.0.s8 %v4874
        %v4876 = vlaneseq
        %v4877 = vshrl.u32 %v4876, 7
        %v4878 = vsub.s32 %v4875, %v4877
        %v4879 = vrot.slane %v4865, %v4878
        %v4880 = vcombine.low %v4855, %v4863
        %v4881 = vcombine.high %v4855, %v4863
        %v4883 = vunpack.c.l.s4 1934713408
        %v4884 = vunpack.c.0.s8 %v4883
        %v4885 = vlaneseq
        %v4886 = vshrl.u32 %v4885, 7
        %v4887 = vsub.s32 %v4884, %v4886
        %v4888 = vrot.slane %v4880, %v4887
        %v4890 = vunpack.c.l.s4 1934713408
        %v4891 = vunpack.c.0.s8 %v4890
        %v4892 = vlaneseq
        %v4893 = vshrl.u32 %v4892, 7
        %v4894 = vsub.s32 %v4891, %v4893
        %v4895 = vrot.slane %v4881, %v4894
        %v4896 = vcombine.low %v4872, %v4888
        %v4897 = vcombine.high %v4872, %v4888
        %v4898 = vcombine.low %v4879, %v4895
        %v4899 = vcombine.high %v4879, %v4895
        %v4900 = vcombine.low %v3852, %v3859
        %v4902 = vunpack.c.l.s4 1983009808
        %v4903 = vunpack.c.0.s8 %v4902
        %v4904 = vlaneseq
        %v4905 = vshrl.u32 %v4904, 7
        %v4906 = vsub.s32 %v4903, %v4905
        %v4907 = vrot.slane %v4900, %v4906
        %v4908 = vcombine.low %v3876, %v3877
        %v4910 = vunpack.c.l.s4 1983009808
        %v4911 = vunpack.c.0.s8 %v4910
        %v4912 = vlaneseq
        %v4913 = vshrl.u32 %v4912, 7
        %v4914 = vsub.s32 %v4911, %v4913
        %v4915 = vrot.slane %v4908, %v4914
        %v4916 = vcombine.low %v3868, %v3875
        %v4918 = vunpack.c.l.s4 1983009808
        %v4919 = vunpack.c.0.s8 %v4918
        %v4920 = vlaneseq
        %v4921 = vshrl.u32 %v4920, 7
        %v4922 = vsub.s32 %v4919, %v4921
        %v4923 = vrot.slane %v4916, %v4922
        %v4924 = vcombine.low %v3878, %v3879
        %v4926 = vunpack.c.l.s4 1983009808
        %v4927 = vunpack.c.0.s8 %v4926
        %v4928 = vlaneseq
        %v4929 = vshrl.u32 %v4928, 7
        %v4930 = vsub.s32 %v4927, %v4929
        %v4931 = vrot.slane %v4924, %v4930
        %v4932 = vcombine.low %v4907, %v4915
        %v4933 = vcombine.high %v4907, %v4915
        %v4935 = vunpack.c.l.s4 1934713408
        %v4936 = vunpack.c.0.s8 %v4935
        %v4937 = vlaneseq
        %v4938 = vshrl.u32 %v4937, 7
        %v4939 = vsub.s32 %v4936, %v4938
        %v4940 = vrot.slane %v4932, %v4939
        %v4942 = vunpack.c.l.s4 1934713408
        %v4943 = vunpack.c.0.s8 %v4942
        %v4944 = vlaneseq
        %v4945 = vshrl.u32 %v4944, 7
        %v4946 = vsub.s32 %v4943, %v4945
        %v4947 = vrot.slane %v4933, %v4946
        %v4948 = vcombine.low %v4923, %v4931
        %v4949 = vcombine.high %v4923, %v4931
        %v4951 = vunpack.c.l.s4 1934713408
        %v4952 = vunpack.c.0.s8 %v4951
        %v4953 = vlaneseq
        %v4954 = vshrl.u32 %v4953, 7
        %v4955 = vsub.s32 %v4952, %v4954
        %v4956 = vrot.slane %v4948, %v4955
        %v4958 = vunpack.c.l.s4 1934713408
        %v4959 = vunpack.c.0.s8 %v4958
        %v4960 = vlaneseq
        %v4961 = vshrl.u32 %v4960, 7
        %v4962 = vsub.s32 %v4959, %v4961
        %v4963 = vrot.slane %v4949, %v4962
        %v4964 = vcombine.low %v4940, %v4956
        %v4965 = vcombine.high %v4940, %v4956
        %v4966 = vcombine.low %v4947, %v4963
        %v4967 = vcombine.high %v4947, %v4963
        %v4968 = vcombine.low %v3920, %v3927
        %v4970 = vunpack.c.l.s4 1983009808
        %v4971 = vunpack.c.0.s8 %v4970
        %v4972 = vlaneseq
        %v4973 = vshrl.u32 %v4972, 7
        %v4974 = vsub.s32 %v4971, %v4973
        %v4975 = vrot.slane %v4968, %v4974
        %v4976 = vcombine.low %v3944, %v3945
        %v4978 = vunpack.c.l.s4 1983009808
        %v4979 = vunpack.c.0.s8 %v4978
        %v4980 = vlaneseq
        %v4981 = vshrl.u32 %v4980, 7
        %v4982 = vsub.s32 %v4979, %v4981
        %v4983 = vrot.slane %v4976, %v4982
        %v4984 = vcombine.low %v3936, %v3943
        %v4986 = vunpack.c.l.s4 1983009808
        %v4987 = vunpack.c.0.s8 %v4986
        %v4988 = vlaneseq
        %v4989 = vshrl.u32 %v4988, 7
        %v4990 = vsub.s32 %v4987, %v4989
        %v4991 = vrot.slane %v4984, %v4990
        %v4992 = vcombine.low %v3946, %v3947
        %v4994 = vunpack.c.l.s4 1983009808
        %v4995 = vunpack.c.0.s8 %v4994
        %v4996 = vlaneseq
        %v4997 = vshrl.u32 %v4996, 7
        %v4998 = vsub.s32 %v4995, %v4997
        %v4999 = vrot.slane %v4992, %v4998
        %v5000 = vcombine.low %v4975, %v4983
        %v5001 = vcombine.high %v4975, %v4983
        %v5003 = vunpack.c.l.s4 1934713408
        %v5004 = vunpack.c.0.s8 %v5003
        %v5005 = vlaneseq
        %v5006 = vshrl.u32 %v5005, 7
        %v5007 = vsub.s32 %v5004, %v5006
        %v5008 = vrot.slane %v5000, %v5007
        %v5010 = vunpack.c.l.s4 1934713408
        %v5011 = vunpack.c.0.s8 %v5010
        %v5012 = vlaneseq
        %v5013 = vshrl.u32 %v5012, 7
        %v5014 = vsub.s32 %v5011, %v5013
        %v5015 = vrot.slane %v5001, %v5014
        %v5016 = vcombine.low %v4991, %v4999
        %v5017 = vcombine.high %v4991, %v4999
        %v5019 = vunpack.c.l.s4 1934713408
        %v5020 = vunpack.c.0.s8 %v5019
        %v5021 = vlaneseq
        %v5022 = vshrl.u32 %v5021, 7
        %v5023 = vsub.s32 %v5020, %v5022
        %v5024 = vrot.slane %v5016, %v5023
        %v5026 = vunpack.c.l.s4 1934713408
        %v5027 = vunpack.c.0.s8 %v5026
        %v5028 = vlaneseq
        %v5029 = vshrl.u32 %v5028, 7
        %v5030 = vsub.s32 %v5027, %v5029
        %v5031 = vrot.slane %v5017, %v5030
        %v5032 = vcombine.low %v5008, %v5024
        %v5033 = vcombine.high %v5008, %v5024
        %v5034 = vcombine.low %v5015, %v5031
        %v5035 = vcombine.high %v5015, %v5031
        %v5036 = vcombine.low %v3988, %v3995
        %v5038 = vunpack.c.l.s4 1983009808
        %v5039 = vunpack.c.0.s8 %v5038
        %v5040 = vlaneseq
        %v5041 = vshrl.u32 %v5040, 7
        %v5042 = vsub.s32 %v5039, %v5041
        %v5043 = vrot.slane %v5036, %v5042
        %v5044 = vcombine.low %v4012, %v4013
        %v5046 = vunpack.c.l.s4 1983009808
        %v5047 = vunpack.c.0.s8 %v5046
        %v5048 = vlaneseq
        %v5049 = vshrl.u32 %v5048, 7
        %v5050 = vsub.s32 %v5047, %v5049
        %v5051 = vrot.slane %v5044, %v5050
        %v5052 = vcombine.low %v4004, %v4011
        %v5054 = vunpack.c.l.s4 1983009808
        %v5055 = vunpack.c.0.s8 %v5054
        %v5056 = vlaneseq
        %v5057 = vshrl.u32 %v5056, 7
        %v5058 = vsub.s32 %v5055, %v5057
        %v5059 = vrot.slane %v5052, %v5058
        %v5060 = vcombine.low %v4014, %v4015
        %v5062 = vunpack.c.l.s4 1983009808
        %v5063 = vunpack.c.0.s8 %v5062
        %v5064 = vlaneseq
        %v5065 = vshrl.u32 %v5064, 7
        %v5066 = vsub.s32 %v5063, %v5065
        %v5067 = vrot.slane %v5060, %v5066
        %v5068 = vcombine.low %v5043, %v5051
        %v5069 = vcombine.high %v5043, %v5051
        %v5071 = vunpack.c.l.s4 1934713408
        %v5072 = vunpack.c.0.s8 %v5071
        %v5073 = vlaneseq
        %v5074 = vshrl.u32 %v5073, 7
        %v5075 = vsub.s32 %v5072, %v5074
        %v5076 = vrot.slane %v5068, %v5075
        %v5078 = vunpack.c.l.s4 1934713408
        %v5079 = vunpack.c.0.s8 %v5078
        %v5080 = vlaneseq
        %v5081 = vshrl.u32 %v5080, 7
        %v5082 = vsub.s32 %v5079, %v5081
        %v5083 = vrot.slane %v5069, %v5082
        %v5084 = vcombine.low %v5059, %v5067
        %v5085 = vcombine.high %v5059, %v5067
        %v5087 = vunpack.c.l.s4 1934713408
        %v5088 = vunpack.c.0.s8 %v5087
        %v5089 = vlaneseq
        %v5090 = vshrl.u32 %v5089, 7
        %v5091 = vsub.s32 %v5088, %v5090
        %v5092 = vrot.slane %v5084, %v5091
        %v5094 = vunpack.c.l.s4 1934713408
        %v5095 = vunpack.c.0.s8 %v5094
        %v5096 = vlaneseq
        %v5097 = vshrl.u32 %v5096, 7
        %v5098 = vsub.s32 %v5095, %v5097
        %v5099 = vrot.slane %v5085, %v5098
        %v5100 = vcombine.low %v5076, %v5092
        %v5101 = vcombine.high %v5076, %v5092
        %v5102 = vcombine.low %v5083, %v5099
        %v5103 = vcombine.high %v5083, %v5099
        %v5104 = vcombine.low %v4056, %v4063
        %v5106 = vunpack.c.l.s4 1983009808
        %v5107 = vunpack.c.0.s8 %v5106
        %v5108 = vlaneseq
        %v5109 = vshrl.u32 %v5108, 7
        %v5110 = vsub.s32 %v5107, %v5109
        %v5111 = vrot.slane %v5104, %v5110
        %v5112 = vcombine.low %v4080, %v4081
        %v5114 = vunpack.c.l.s4 1983009808
        %v5115 = vunpack.c.0.s8 %v5114
        %v5116 = vlaneseq
        %v5117 = vshrl.u32 %v5116, 7
        %v5118 = vsub.s32 %v5115, %v5117
        %v5119 = vrot.slane %v5112, %v5118
        %v5120 = vcombine.low %v4072, %v4079
        %v5122 = vunpack.c.l.s4 1983009808
        %v5123 = vunpack.c.0.s8 %v5122
        %v5124 = vlaneseq
        %v5125 = vshrl.u32 %v5124, 7
        %v5126 = vsub.s32 %v5123, %v5125
        %v5127 = vrot.slane %v5120, %v5126
        %v5128 = vcombine.low %v4082, %v4083
        %v5130 = vunpack.c.l.s4 1983009808
        %v5131 = vunpack.c.0.s8 %v5130
        %v5132 = vlaneseq
        %v5133 = vshrl.u32 %v5132, 7
        %v5134 = vsub.s32 %v5131, %v5133
        %v5135 = vrot.slane %v5128, %v5134
        %v5136 = vcombine.low %v5111, %v5119
        %v5137 = vcombine.high %v5111, %v5119
        %v5139 = vunpack.c.l.s4 1934713408
        %v5140 = vunpack.c.0.s8 %v5139
        %v5141 = vlaneseq
        %v5142 = vshrl.u32 %v5141, 7
        %v5143 = vsub.s32 %v5140, %v5142
        %v5144 = vrot.slane %v5136, %v5143
        %v5146 = vunpack.c.l.s4 1934713408
        %v5147 = vunpack.c.0.s8 %v5146
        %v5148 = vlaneseq
        %v5149 = vshrl.u32 %v5148, 7
        %v5150 = vsub.s32 %v5147, %v5149
        %v5151 = vrot.slane %v5137, %v5150
        %v5152 = vcombine.low %v5127, %v5135
        %v5153 = vcombine.high %v5127, %v5135
        %v5155 = vunpack.c.l.s4 1934713408
        %v5156 = vunpack.c.0.s8 %v5155
        %v5157 = vlaneseq
        %v5158 = vshrl.u32 %v5157, 7
        %v5159 = vsub.s32 %v5156, %v5158
        %v5160 = vrot.slane %v5152, %v5159
        %v5162 = vunpack.c.l.s4 1934713408
        %v5163 = vunpack.c.0.s8 %v5162
        %v5164 = vlaneseq
        %v5165 = vshrl.u32 %v5164, 7
        %v5166 = vsub.s32 %v5163, %v5165
        %v5167 = vrot.slane %v5153, %v5166
        %v5168 = vcombine.low %v5144, %v5160
        %v5169 = vcombine.high %v5144, %v5160
        %v5170 = vcombine.low %v5151, %v5167
        %v5171 = vcombine.high %v5151, %v5167
        %v5172 = vcombine.low %v4124, %v4131
        %v5174 = vunpack.c.l.s4 1983009808
        %v5175 = vunpack.c.0.s8 %v5174
        %v5176 = vlaneseq
        %v5177 = vshrl.u32 %v5176, 7
        %v5178 = vsub.s32 %v5175, %v5177
        %v5179 = vrot.slane %v5172, %v5178
        %v5180 = vcombine.low %v4148, %v4149
        %v5182 = vunpack.c.l.s4 1983009808
        %v5183 = vunpack.c.0.s8 %v5182
        %v5184 = vlaneseq
        %v5185 = vshrl.u32 %v5184, 7
        %v5186 = vsub.s32 %v5183, %v5185
        %v5187 = vrot.slane %v5180, %v5186
        %v5188 = vcombine.low %v4140, %v4147
        %v5190 = vunpack.c.l.s4 1983009808
        %v5191 = vunpack.c.0.s8 %v5190
        %v5192 = vlaneseq
        %v5193 = vshrl.u32 %v5192, 7
        %v5194 = vsub.s32 %v5191, %v5193
        %v5195 = vrot.slane %v5188, %v5194
        %v5196 = vcombine.low %v4150, %v4151
        %v5198 = vunpack.c.l.s4 1983009808
        %v5199 = vunpack.c.0.s8 %v5198
        %v5200 = vlaneseq
        %v5201 = vshrl.u32 %v5200, 7
        %v5202 = vsub.s32 %v5199, %v5201
        %v5203 = vrot.slane %v5196, %v5202
        %v5204 = vcombine.low %v5179, %v5187
        %v5205 = vcombine.high %v5179, %v5187
        %v5207 = vunpack.c.l.s4 1934713408
        %v5208 = vunpack.c.0.s8 %v5207
        %v5209 = vlaneseq
        %v5210 = vshrl.u32 %v5209, 7
        %v5211 = vsub.s32 %v5208, %v5210
        %v5212 = vrot.slane %v5204, %v5211
        %v5214 = vunpack.c.l.s4 1934713408
        %v5215 = vunpack.c.0.s8 %v5214
        %v5216 = vlaneseq
        %v5217 = vshrl.u32 %v5216, 7
        %v5218 = vsub.s32 %v5215, %v5217
        %v5219 = vrot.slane %v5205, %v5218
        %v5220 = vcombine.low %v5195, %v5203
        %v5221 = vcombine.high %v5195, %v5203
        %v5223 = vunpack.c.l.s4 1934713408
        %v5224 = vunpack.c.0.s8 %v5223
        %v5225 = vlaneseq
        %v5226 = vshrl.u32 %v5225, 7
        %v5227 = vsub.s32 %v5224, %v5226
        %v5228 = vrot.slane %v5220, %v5227
        %v5230 = vunpack.c.l.s4 1934713408
        %v5231 = vunpack.c.0.s8 %v5230
        %v5232 = vlaneseq
        %v5233 = vshrl.u32 %v5232, 7
        %v5234 = vsub.s32 %v5231, %v5233
        %v5235 = vrot.slane %v5221, %v5234
        %v5236 = vcombine.low %v5212, %v5228
        %v5237 = vcombine.high %v5212, %v5228
        %v5238 = vcombine.low %v5219, %v5235
        %v5239 = vcombine.high %v5219, %v5235
        %v5240 = vcombine.low %v4192, %v4199
        %v5242 = vunpack.c.l.s4 1983009808
        %v5243 = vunpack.c.0.s8 %v5242
        %v5244 = vlaneseq
        %v5245 = vshrl.u32 %v5244, 7
        %v5246 = vsub.s32 %v5243, %v5245
        %v5247 = vrot.slane %v5240, %v5246
        %v5248 = vcombine.low %v4216, %v4217
        %v5250 = vunpack.c.l.s4 1983009808
        %v5251 = vunpack.c.0.s8 %v5250
        %v5252 = vlaneseq
        %v5253 = vshrl.u32 %v5252, 7
        %v5254 = vsub.s32 %v5251, %v5253
        %v5255 = vrot.slane %v5248, %v5254
        %v5256 = vcombine.low %v4208, %v4215
        %v5258 = vunpack.c.l.s4 1983009808
        %v5259 = vunpack.c.0.s8 %v5258
        %v5260 = vlaneseq
        %v5261 = vshrl.u32 %v5260, 7
        %v5262 = vsub.s32 %v5259, %v5261
        %v5263 = vrot.slane %v5256, %v5262
        %v5264 = vcombine.low %v4218, %v4219
        %v5266 = vunpack.c.l.s4 1983009808
        %v5267 = vunpack.c.0.s8 %v5266
        %v5268 = vlaneseq
        %v5269 = vshrl.u32 %v5268, 7
        %v5270 = vsub.s32 %v5267, %v5269
        %v5271 = vrot.slane %v5264, %v5270
        %v5272 = vcombine.low %v5247, %v5255
        %v5273 = vcombine.high %v5247, %v5255
        %v5275 = vunpack.c.l.s4 1934713408
        %v5276 = vunpack.c.0.s8 %v5275
        %v5277 = vlaneseq
        %v5278 = vshrl.u32 %v5277, 7
        %v5279 = vsub.s32 %v5276, %v5278
        %v5280 = vrot.slane %v5272, %v5279
        %v5282 = vunpack.c.l.s4 1934713408
        %v5283 = vunpack.c.0.s8 %v5282
        %v5284 = vlaneseq
        %v5285 = vshrl.u32 %v5284, 7
        %v5286 = vsub.s32 %v5283, %v5285
        %v5287 = vrot.slane %v5273, %v5286
        %v5288 = vcombine.low %v5263, %v5271
        %v5289 = vcombine.high %v5263, %v5271
        %v5291 = vunpack.c.l.s4 1934713408
        %v5292 = vunpack.c.0.s8 %v5291
        %v5293 = vlaneseq
        %v5294 = vshrl.u32 %v5293, 7
        %v5295 = vsub.s32 %v5292, %v5294
        %v5296 = vrot.slane %v5288, %v5295
        %v5298 = vunpack.c.l.s4 1934713408
        %v5299 = vunpack.c.0.s8 %v5298
        %v5300 = vlaneseq
        %v5301 = vshrl.u32 %v5300, 7
        %v5302 = vsub.s32 %v5299, %v5301
        %v5303 = vrot.slane %v5289, %v5302
        %v5304 = vcombine.low %v5280, %v5296
        %v5305 = vcombine.high %v5280, %v5296
        %v5306 = vcombine.low %v5287, %v5303
        %v5307 = vcombine.high %v5287, %v5303
        %v5308 = vcombine.low %v4260, %v4267
        %v5310 = vunpack.c.l.s4 1983009808
        %v5311 = vunpack.c.0.s8 %v5310
        %v5312 = vlaneseq
        %v5313 = vshrl.u32 %v5312, 7
        %v5314 = vsub.s32 %v5311, %v5313
        %v5315 = vrot.slane %v5308, %v5314
        %v5316 = vcombine.low %v4284, %v4285
        %v5318 = vunpack.c.l.s4 1983009808
        %v5319 = vunpack.c.0.s8 %v5318
        %v5320 = vlaneseq
        %v5321 = vshrl.u32 %v5320, 7
        %v5322 = vsub.s32 %v5319, %v5321
        %v5323 = vrot.slane %v5316, %v5322
        %v5324 = vcombine.low %v4276, %v4283
        %v5326 = vunpack.c.l.s4 1983009808
        %v5327 = vunpack.c.0.s8 %v5326
        %v5328 = vlaneseq
        %v5329 = vshrl.u32 %v5328, 7
        %v5330 = vsub.s32 %v5327, %v5329
        %v5331 = vrot.slane %v5324, %v5330
        %v5332 = vcombine.low %v4286, %v4287
        %v5334 = vunpack.c.l.s4 1983009808
        %v5335 = vunpack.c.0.s8 %v5334
        %v5336 = vlaneseq
        %v5337 = vshrl.u32 %v5336, 7
        %v5338 = vsub.s32 %v5335, %v5337
        %v5339 = vrot.slane %v5332, %v5338
        %v5340 = vcombine.low %v5315, %v5323
        %v5341 = vcombine.high %v5315, %v5323
        %v5343 = vunpack.c.l.s4 1934713408
        %v5344 = vunpack.c.0.s8 %v5343
        %v5345 = vlaneseq
        %v5346 = vshrl.u32 %v5345, 7
        %v5347 = vsub.s32 %v5344, %v5346
        %v5348 = vrot.slane %v5340, %v5347
        %v5350 = vunpack.c.l.s4 1934713408
        %v5351 = vunpack.c.0.s8 %v5350
        %v5352 = vlaneseq
        %v5353 = vshrl.u32 %v5352, 7
        %v5354 = vsub.s32 %v5351, %v5353
        %v5355 = vrot.slane %v5341, %v5354
        %v5356 = vcombine.low %v5331, %v5339
        %v5357 = vcombine.high %v5331, %v5339
        %v5359 = vunpack.c.l.s4 1934713408
        %v5360 = vunpack.c.0.s8 %v5359
        %v5361 = vlaneseq
        %v5362 = vshrl.u32 %v5361, 7
        %v5363 = vsub.s32 %v5360, %v5362
        %v5364 = vrot.slane %v5356, %v5363
        %v5366 = vunpack.c.l.s4 1934713408
        %v5367 = vunpack.c.0.s8 %v5366
        %v5368 = vlaneseq
        %v5369 = vshrl.u32 %v5368, 7
        %v5370 = vsub.s32 %v5367, %v5369
        %v5371 = vrot.slane %v5357, %v5370
        %v5372 = vcombine.low %v5348, %v5364
        %v5373 = vcombine.high %v5348, %v5364
        %v5374 = vcombine.low %v5355, %v5371
        %v5375 = vcombine.high %v5355, %v5371
        %v5376 = vcombine.low %v4328, %v4335
        %v5378 = vunpack.c.l.s4 1983009808
        %v5379 = vunpack.c.0.s8 %v5378
        %v5380 = vlaneseq
        %v5381 = vshrl.u32 %v5380, 7
        %v5382 = vsub.s32 %v5379, %v5381
        %v5383 = vrot.slane %v5376, %v5382
        %v5384 = vcombine.low %v4352, %v4353
        %v5386 = vunpack.c.l.s4 1983009808
        %v5387 = vunpack.c.0.s8 %v5386
        %v5388 = vlaneseq
        %v5389 = vshrl.u32 %v5388, 7
        %v5390 = vsub.s32 %v5387, %v5389
        %v5391 = vrot.slane %v5384, %v5390
        %v5392 = vcombine.low %v4344, %v4351
        %v5394 = vunpack.c.l.s4 1983009808
        %v5395 = vunpack.c.0.s8 %v5394
        %v5396 = vlaneseq
        %v5397 = vshrl.u32 %v5396, 7
        %v5398 = vsub.s32 %v5395, %v5397
        %v5399 = vrot.slane %v5392, %v5398
        %v5400 = vcombine.low %v4354, %v4355
        %v5402 = vunpack.c.l.s4 1983009808
        %v5403 = vunpack.c.0.s8 %v5402
        %v5404 = vlaneseq
        %v5405 = vshrl.u32 %v5404, 7
        %v5406 = vsub.s32 %v5403, %v5405
        %v5407 = vrot.slane %v5400, %v5406
        %v5408 = vcombine.low %v5383, %v5391
        %v5409 = vcombine.high %v5383, %v5391
        %v5411 = vunpack.c.l.s4 1934713408
        %v5412 = vunpack.c.0.s8 %v5411
        %v5413 = vlaneseq
        %v5414 = vshrl.u32 %v5413, 7
        %v5415 = vsub.s32 %v5412, %v5414
        %v5416 = vrot.slane %v5408, %v5415
        %v5418 = vunpack.c.l.s4 1934713408
        %v5419 = vunpack.c.0.s8 %v5418
        %v5420 = vlaneseq
        %v5421 = vshrl.u32 %v5420, 7
        %v5422 = vsub.s32 %v5419, %v5421
        %v5423 = vrot.slane %v5409, %v5422
        %v5424 = vcombine.low %v5399, %v5407
        %v5425 = vcombine.high %v5399, %v5407
        %v5427 = vunpack.c.l.s4 1934713408
        %v5428 = vunpack.c.0.s8 %v5427
        %v5429 = vlaneseq
        %v5430 = vshrl.u32 %v5429, 7
        %v5431 = vsub.s32 %v5428, %v5430
        %v5432 = vrot.slane %v5424, %v5431
        %v5434 = vunpack.c.l.s4 1934713408
        %v5435 = vunpack.c.0.s8 %v5434
        %v5436 = vlaneseq
        %v5437 = vshrl.u32 %v5436, 7
        %v5438 = vsub.s32 %v5435, %v5437
        %v5439 = vrot.slane %v5425, %v5438
        %v5440 = vcombine.low %v5416, %v5432
        %v5441 = vcombine.high %v5416, %v5432
        %v5442 = vcombine.low %v5423, %v5439
        %v5443 = vcombine.high %v5423, %v5439
        %5444 = vxpose.xlu0.b32.start [1/16] %v4420, 128
        %5445 = vxpose.xlu0.b32.cont [2/16] %v4488, 128
        %5446 = vxpose.xlu0.b32.cont [3/16] %v4556, 128
        %5447 = vxpose.xlu0.b32.cont [4/16] %v4624, 128
        %5448 = vxpose.xlu0.b32.cont [5/16] %v4692, 128
        %5449 = vxpose.xlu0.b32.cont [6/16] %v4760, 128
        %5450 = vxpose.xlu0.b32.cont [7/16] %v4828, 128
        %5451 = vxpose.xlu0.b32.cont [8/16] %v4896, 128
        %5452 = vxpose.xlu0.b32.cont [9/16] %v4964, 128
        %5453 = vxpose.xlu0.b32.cont [10/16] %v5032, 128
        %5454 = vxpose.xlu0.b32.cont [11/16] %v5100, 128
        %5455 = vxpose.xlu0.b32.cont [12/16] %v5168, 128
        %5456 = vxpose.xlu0.b32.cont [13/16] %v5236, 128
        %5457 = vxpose.xlu0.b32.cont [14/16] %v5304, 128
        %5458 = vxpose.xlu0.b32.cont [15/16] %v5372, 128
        %5459 = vxpose.xlu0.b32.end [16/16] %v5440, 128
        %v5460 = vpop.trf.xlu0
        %v5461 = vpop.trf.xlu0
        %v5462 = vpop.trf.xlu0
        %v5463 = vpop.trf.xlu0
        %v5464 = vpop.trf.xlu0
        %v5465 = vpop.trf.xlu0
        %v5466 = vpop.trf.xlu0
        %v5467 = vpop.trf.xlu0
        %v5468 = vpop.trf.xlu0
        %v5469 = vpop.trf.xlu0
        %v5470 = vpop.trf.xlu0
        %v5471 = vpop.trf.xlu0
        %v5472 = vpop.trf.xlu0
        %v5473 = vpop.trf.xlu0
        %v5474 = vpop.trf.xlu0
        %v5475 = vpop.trf.xlu0
        %5476 = vxpose.xlu0.b32.start [1/16] %v4421, 128
        %5477 = vxpose.xlu0.b32.cont [2/16] %v4489, 128
        %5478 = vxpose.xlu0.b32.cont [3/16] %v4557, 128
        %5479 = vxpose.xlu0.b32.cont [4/16] %v4625, 128
        %5480 = vxpose.xlu0.b32.cont [5/16] %v4693, 128
        %5481 = vxpose.xlu0.b32.cont [6/16] %v4761, 128
        %5482 = vxpose.xlu0.b32.cont [7/16] %v4829, 128
        %5483 = vxpose.xlu0.b32.cont [8/16] %v4897, 128
        %5484 = vxpose.xlu0.b32.cont [9/16] %v4965, 128
        %5485 = vxpose.xlu0.b32.cont [10/16] %v5033, 128
        %5486 = vxpose.xlu0.b32.cont [11/16] %v5101, 128
        %5487 = vxpose.xlu0.b32.cont [12/16] %v5169, 128
        %5488 = vxpose.xlu0.b32.cont [13/16] %v5237, 128
        %5489 = vxpose.xlu0.b32.cont [14/16] %v5305, 128
        %5490 = vxpose.xlu0.b32.cont [15/16] %v5373, 128
        %5491 = vxpose.xlu0.b32.end [16/16] %v5441, 128
        %v5492 = vpop.trf.xlu0
        %v5493 = vpop.trf.xlu0
        %v5494 = vpop.trf.xlu0
        %v5495 = vpop.trf.xlu0
        %v5496 = vpop.trf.xlu0
        %v5497 = vpop.trf.xlu0
        %v5498 = vpop.trf.xlu0
        %v5499 = vpop.trf.xlu0
        %v5500 = vpop.trf.xlu0
        %v5501 = vpop.trf.xlu0
        %v5502 = vpop.trf.xlu0
        %v5503 = vpop.trf.xlu0
        %v5504 = vpop.trf.xlu0
        %v5505 = vpop.trf.xlu0
        %v5506 = vpop.trf.xlu0
        %v5507 = vpop.trf.xlu0
        %5508 = vxpose.xlu0.b32.start [1/16] %v4422, 128
        %5509 = vxpose.xlu0.b32.cont [2/16] %v4490, 128
        %5510 = vxpose.xlu0.b32.cont [3/16] %v4558, 128
        %5511 = vxpose.xlu0.b32.cont [4/16] %v4626, 128
        %5512 = vxpose.xlu0.b32.cont [5/16] %v4694, 128
        %5513 = vxpose.xlu0.b32.cont [6/16] %v4762, 128
        %5514 = vxpose.xlu0.b32.cont [7/16] %v4830, 128
        %5515 = vxpose.xlu0.b32.cont [8/16] %v4898, 128
        %5516 = vxpose.xlu0.b32.cont [9/16] %v4966, 128
        %5517 = vxpose.xlu0.b32.cont [10/16] %v5034, 128
        %5518 = vxpose.xlu0.b32.cont [11/16] %v5102, 128
        %5519 = vxpose.xlu0.b32.cont [12/16] %v5170, 128
        %5520 = vxpose.xlu0.b32.cont [13/16] %v5238, 128
        %5521 = vxpose.xlu0.b32.cont [14/16] %v5306, 128
        %5522 = vxpose.xlu0.b32.cont [15/16] %v5374, 128
        %5523 = vxpose.xlu0.b32.end [16/16] %v5442, 128
        %v5524 = vpop.trf.xlu0
        %v5525 = vpop.trf.xlu0
        %v5526 = vpop.trf.xlu0
        %v5527 = vpop.trf.xlu0
        %v5528 = vpop.trf.xlu0
        %v5529 = vpop.trf.xlu0
        %v5530 = vpop.trf.xlu0
        %v5531 = vpop.trf.xlu0
        %v5532 = vpop.trf.xlu0
        %v5533 = vpop.trf.xlu0
        %v5534 = vpop.trf.xlu0
        %v5535 = vpop.trf.xlu0
        %v5536 = vpop.trf.xlu0
        %v5537 = vpop.trf.xlu0
        %v5538 = vpop.trf.xlu0
        %v5539 = vpop.trf.xlu0
        %5540 = vxpose.xlu0.b32.start [1/16] %v4423, 128
        %5541 = vxpose.xlu0.b32.cont [2/16] %v4491, 128
        %5542 = vxpose.xlu0.b32.cont [3/16] %v4559, 128
        %5543 = vxpose.xlu0.b32.cont [4/16] %v4627, 128
        %5544 = vxpose.xlu0.b32.cont [5/16] %v4695, 128
        %5545 = vxpose.xlu0.b32.cont [6/16] %v4763, 128
        %5546 = vxpose.xlu0.b32.cont [7/16] %v4831, 128
        %5547 = vxpose.xlu0.b32.cont [8/16] %v4899, 128
        %5548 = vxpose.xlu0.b32.cont [9/16] %v4967, 128
        %5549 = vxpose.xlu0.b32.cont [10/16] %v5035, 128
        %5550 = vxpose.xlu0.b32.cont [11/16] %v5103, 128
        %5551 = vxpose.xlu0.b32.cont [12/16] %v5171, 128
        %5552 = vxpose.xlu0.b32.cont [13/16] %v5239, 128
        %5553 = vxpose.xlu0.b32.cont [14/16] %v5307, 128
        %5554 = vxpose.xlu0.b32.cont [15/16] %v5375, 128
        %5555 = vxpose.xlu0.b32.end [16/16] %v5443, 128
        %v5556 = vpop.trf.xlu0
        %v5557 = vpop.trf.xlu0
        %v5558 = vpop.trf.xlu0
        %v5559 = vpop.trf.xlu0
        %v5560 = vpop.trf.xlu0
        %v5561 = vpop.trf.xlu0
        %v5562 = vpop.trf.xlu0
        %v5563 = vpop.trf.xlu0
        %v5564 = vpop.trf.xlu0
        %v5565 = vpop.trf.xlu0
        %v5566 = vpop.trf.xlu0
        %v5567 = vpop.trf.xlu0
        %v5568 = vpop.trf.xlu0
        %v5569 = vpop.trf.xlu0
        %v5570 = vpop.trf.xlu0
        %v5571 = vpop.trf.xlu0
        %v5572 = vpack.c.bf16 %v5461, %v5460
        %v5573 = vpack.c.bf16 %v5463, %v5462
        %v5574 = vpack.c.bf16 %v5493, %v5492
        %v5575 = vpack.c.bf16 %v5495, %v5494
        %v5576 = vpack.c.bf16 %v5525, %v5524
        %v5577 = vpack.c.bf16 %v5527, %v5526
        %v5578 = vpack.c.bf16 %v5557, %v5556
        %v5579 = vpack.c.bf16 %v5559, %v5558
        %5596 = vrot.lane.b32.xlu0 %v678, 96
        %v5597 = vpop.permute.xlu0 %5596
        %5598 = vrot.lane.b32.xlu0 %v681, 96
        %v5599 = vpop.permute.xlu0 %5598
        %5600 = vrot.lane.b32.xlu0 %v686, 96
        %v5601 = vpop.permute.xlu0 %5600
        %5602 = vrot.lane.b32.xlu0 %v689, 96
        %v5603 = vpop.permute.xlu0 %5602
        %5604 = vrot.lane.b32.xlu0 %v694, 96
        %v5605 = vpop.permute.xlu0 %5604
        %5606 = vrot.lane.b32.xlu0 %v697, 96
        %v5607 = vpop.permute.xlu0 %5606
        %5608 = vrot.lane.b32.xlu0 %v702, 96
        %v5609 = vpop.permute.xlu0 %5608
        %5610 = vrot.lane.b32.xlu0 %v705, 96
        %v5611 = vpop.permute.xlu0 %5610
        %5612 = vrot.lane.b32.xlu0 %v710, 96
        %v5613 = vpop.permute.xlu0 %5612
        %5614 = vrot.lane.b32.xlu0 %v713, 96
        %v5615 = vpop.permute.xlu0 %5614
        %5616 = vrot.lane.b32.xlu0 %v718, 96
        %v5617 = vpop.permute.xlu0 %5616
        %5618 = vrot.lane.b32.xlu0 %v721, 96
        %v5619 = vpop.permute.xlu0 %5618
        %5620 = vrot.lane.b32.xlu0 %v726, 96
        %v5621 = vpop.permute.xlu0 %5620
        %5622 = vrot.lane.b32.xlu0 %v729, 96
        %v5623 = vpop.permute.xlu0 %5622
        %5624 = vrot.lane.b32.xlu0 %v734, 96
        %v5625 = vpop.permute.xlu0 %5624
        %5626 = vrot.lane.b32.xlu0 %v737, 96
        %v5627 = vpop.permute.xlu0 %5626
        %5644 = vrot.lane.b32.xlu0 %v678, 64
        %v5645 = vpop.permute.xlu0 %5644
        %5646 = vrot.lane.b32.xlu0 %v681, 64
        %v5647 = vpop.permute.xlu0 %5646
        %5648 = vrot.lane.b32.xlu0 %v686, 64
        %v5649 = vpop.permute.xlu0 %5648
        %5650 = vrot.lane.b32.xlu0 %v689, 64
        %v5651 = vpop.permute.xlu0 %5650
        %5652 = vrot.lane.b32.xlu0 %v694, 64
        %v5653 = vpop.permute.xlu0 %5652
        %5654 = vrot.lane.b32.xlu0 %v697, 64
        %v5655 = vpop.permute.xlu0 %5654
        %5656 = vrot.lane.b32.xlu0 %v702, 64
        %v5657 = vpop.permute.xlu0 %5656
        %5658 = vrot.lane.b32.xlu0 %v705, 64
        %v5659 = vpop.permute.xlu0 %5658
        %5660 = vrot.lane.b32.xlu0 %v710, 64
        %v5661 = vpop.permute.xlu0 %5660
        %5662 = vrot.lane.b32.xlu0 %v713, 64
        %v5663 = vpop.permute.xlu0 %5662
        %5664 = vrot.lane.b32.xlu0 %v718, 64
        %v5665 = vpop.permute.xlu0 %5664
        %5666 = vrot.lane.b32.xlu0 %v721, 64
        %v5667 = vpop.permute.xlu0 %5666
        %5668 = vrot.lane.b32.xlu0 %v726, 64
        %v5669 = vpop.permute.xlu0 %5668
        %5670 = vrot.lane.b32.xlu0 %v729, 64
        %v5671 = vpop.permute.xlu0 %5670
        %5672 = vrot.lane.b32.xlu0 %v734, 64
        %v5673 = vpop.permute.xlu0 %5672
        %5674 = vrot.lane.b32.xlu0 %v737, 64
        %v5675 = vpop.permute.xlu0 %5674
        %5692 = vrot.lane.b32.xlu0 %v678, 32
        %v5693 = vpop.permute.xlu0 %5692
        %5694 = vrot.lane.b32.xlu0 %v681, 32
        %v5695 = vpop.permute.xlu0 %5694
        %5696 = vrot.lane.b32.xlu0 %v686, 32
        %v5697 = vpop.permute.xlu0 %5696
        %5698 = vrot.lane.b32.xlu0 %v689, 32
        %v5699 = vpop.permute.xlu0 %5698
        %5700 = vrot.lane.b32.xlu0 %v694, 32
        %v5701 = vpop.permute.xlu0 %5700
        %5702 = vrot.lane.b32.xlu0 %v697, 32
        %v5703 = vpop.permute.xlu0 %5702
        %5704 = vrot.lane.b32.xlu0 %v702, 32
        %v5705 = vpop.permute.xlu0 %5704
        %5706 = vrot.lane.b32.xlu0 %v705, 32
        %v5707 = vpop.permute.xlu0 %5706
        %5708 = vrot.lane.b32.xlu0 %v710, 32
        %v5709 = vpop.permute.xlu0 %5708
        %5710 = vrot.lane.b32.xlu0 %v713, 32
        %v5711 = vpop.permute.xlu0 %5710
        %5712 = vrot.lane.b32.xlu0 %v718, 32
        %v5713 = vpop.permute.xlu0 %5712
        %5714 = vrot.lane.b32.xlu0 %v721, 32
        %v5715 = vpop.permute.xlu0 %5714
        %5716 = vrot.lane.b32.xlu0 %v726, 32
        %v5717 = vpop.permute.xlu0 %5716
        %5718 = vrot.lane.b32.xlu0 %v729, 32
        %v5719 = vpop.permute.xlu0 %5718
        %5720 = vrot.lane.b32.xlu0 %v734, 32
        %v5721 = vpop.permute.xlu0 %5720
        %5722 = vrot.lane.b32.xlu0 %v737, 32
        %v5723 = vpop.permute.xlu0 %5722
        %v5740 = vcombine.low %v678, %v5645
        %v5741 = vcombine.high %v678, %v5645
        %v5743 = vunpack.c.l.s4 1983009808
        %v5744 = vunpack.c.0.s8 %v5743
        %v5745 = vlaneseq
        %v5746 = vshrl.u32 %v5745, 7
        %v5747 = vsub.s32 %v5744, %v5746
        %v5748 = vrot.slane %v5740, %v5747
        %v5750 = vunpack.c.l.s4 1983009808
        %v5751 = vunpack.c.0.s8 %v5750
        %v5752 = vlaneseq
        %v5753 = vshrl.u32 %v5752, 7
        %v5754 = vsub.s32 %v5751, %v5753
        %v5755 = vrot.slane %v5741, %v5754
        %v5756 = vcombine.low %v5597, %v5693
        %v5757 = vcombine.high %v5597, %v5693
        %v5759 = vunpack.c.l.s4 1983009808
        %v5760 = vunpack.c.0.s8 %v5759
        %v5761 = vlaneseq
        %v5762 = vshrl.u32 %v5761, 7
        %v5763 = vsub.s32 %v5760, %v5762
        %v5764 = vrot.slane %v5756, %v5763
        %v5766 = vunpack.c.l.s4 1983009808
        %v5767 = vunpack.c.0.s8 %v5766
        %v5768 = vlaneseq
        %v5769 = vshrl.u32 %v5768, 7
        %v5770 = vsub.s32 %v5767, %v5769
        %v5771 = vrot.slane %v5757, %v5770
        %v5772 = vcombine.low %v5748, %v5764
        %v5773 = vcombine.high %v5748, %v5764
        %v5775 = vunpack.c.l.s4 1934713408
        %v5776 = vunpack.c.0.s8 %v5775
        %v5777 = vlaneseq
        %v5778 = vshrl.u32 %v5777, 7
        %v5779 = vsub.s32 %v5776, %v5778
        %v5780 = vrot.slane %v5772, %v5779
        %v5782 = vunpack.c.l.s4 1934713408
        %v5783 = vunpack.c.0.s8 %v5782
        %v5784 = vlaneseq
        %v5785 = vshrl.u32 %v5784, 7
        %v5786 = vsub.s32 %v5783, %v5785
        %v5787 = vrot.slane %v5773, %v5786
        %v5788 = vcombine.low %v5755, %v5771
        %v5789 = vcombine.high %v5755, %v5771
        %v5791 = vunpack.c.l.s4 1934713408
        %v5792 = vunpack.c.0.s8 %v5791
        %v5793 = vlaneseq
        %v5794 = vshrl.u32 %v5793, 7
        %v5795 = vsub.s32 %v5792, %v5794
        %v5796 = vrot.slane %v5788, %v5795
        %v5798 = vunpack.c.l.s4 1934713408
        %v5799 = vunpack.c.0.s8 %v5798
        %v5800 = vlaneseq
        %v5801 = vshrl.u32 %v5800, 7
        %v5802 = vsub.s32 %v5799, %v5801
        %v5803 = vrot.slane %v5789, %v5802
        %v5804 = vcombine.high %v5780, 0.0
        %v5805 = vcombine.high %v5787, 0.0
        %v5806 = vcombine.high %v5796, 0.0
        %v5807 = vcombine.high %v5803, 0.0
        %v5808 = vcombine.low %v681, %v5647
        %v5809 = vcombine.high %v681, %v5647
        %v5811 = vunpack.c.l.s4 1983009808
        %v5812 = vunpack.c.0.s8 %v5811
        %v5813 = vlaneseq
        %v5814 = vshrl.u32 %v5813, 7
        %v5815 = vsub.s32 %v5812, %v5814
        %v5816 = vrot.slane %v5808, %v5815
        %v5818 = vunpack.c.l.s4 1983009808
        %v5819 = vunpack.c.0.s8 %v5818
        %v5820 = vlaneseq
        %v5821 = vshrl.u32 %v5820, 7
        %v5822 = vsub.s32 %v5819, %v5821
        %v5823 = vrot.slane %v5809, %v5822
        %v5824 = vcombine.low %v5599, %v5695
        %v5825 = vcombine.high %v5599, %v5695
        %v5827 = vunpack.c.l.s4 1983009808
        %v5828 = vunpack.c.0.s8 %v5827
        %v5829 = vlaneseq
        %v5830 = vshrl.u32 %v5829, 7
        %v5831 = vsub.s32 %v5828, %v5830
        %v5832 = vrot.slane %v5824, %v5831
        %v5834 = vunpack.c.l.s4 1983009808
        %v5835 = vunpack.c.0.s8 %v5834
        %v5836 = vlaneseq
        %v5837 = vshrl.u32 %v5836, 7
        %v5838 = vsub.s32 %v5835, %v5837
        %v5839 = vrot.slane %v5825, %v5838
        %v5840 = vcombine.low %v5816, %v5832
        %v5841 = vcombine.high %v5816, %v5832
        %v5843 = vunpack.c.l.s4 1934713408
        %v5844 = vunpack.c.0.s8 %v5843
        %v5845 = vlaneseq
        %v5846 = vshrl.u32 %v5845, 7
        %v5847 = vsub.s32 %v5844, %v5846
        %v5848 = vrot.slane %v5840, %v5847
        %v5850 = vunpack.c.l.s4 1934713408
        %v5851 = vunpack.c.0.s8 %v5850
        %v5852 = vlaneseq
        %v5853 = vshrl.u32 %v5852, 7
        %v5854 = vsub.s32 %v5851, %v5853
        %v5855 = vrot.slane %v5841, %v5854
        %v5856 = vcombine.low %v5823, %v5839
        %v5857 = vcombine.high %v5823, %v5839
        %v5859 = vunpack.c.l.s4 1934713408
        %v5860 = vunpack.c.0.s8 %v5859
        %v5861 = vlaneseq
        %v5862 = vshrl.u32 %v5861, 7
        %v5863 = vsub.s32 %v5860, %v5862
        %v5864 = vrot.slane %v5856, %v5863
        %v5866 = vunpack.c.l.s4 1934713408
        %v5867 = vunpack.c.0.s8 %v5866
        %v5868 = vlaneseq
        %v5869 = vshrl.u32 %v5868, 7
        %v5870 = vsub.s32 %v5867, %v5869
        %v5871 = vrot.slane %v5857, %v5870
        %v5872 = vcombine.high %v5848, 0.0
        %v5873 = vcombine.high %v5855, 0.0
        %v5874 = vcombine.high %v5864, 0.0
        %v5875 = vcombine.high %v5871, 0.0
        %v5876 = vcombine.low %v686, %v5649
        %v5877 = vcombine.high %v686, %v5649
        %v5879 = vunpack.c.l.s4 1983009808
        %v5880 = vunpack.c.0.s8 %v5879
        %v5881 = vlaneseq
        %v5882 = vshrl.u32 %v5881, 7
        %v5883 = vsub.s32 %v5880, %v5882
        %v5884 = vrot.slane %v5876, %v5883
        %v5886 = vunpack.c.l.s4 1983009808
        %v5887 = vunpack.c.0.s8 %v5886
        %v5888 = vlaneseq
        %v5889 = vshrl.u32 %v5888, 7
        %v5890 = vsub.s32 %v5887, %v5889
        %v5891 = vrot.slane %v5877, %v5890
        %v5892 = vcombine.low %v5601, %v5697
        %v5893 = vcombine.high %v5601, %v5697
        %v5895 = vunpack.c.l.s4 1983009808
        %v5896 = vunpack.c.0.s8 %v5895
        %v5897 = vlaneseq
        %v5898 = vshrl.u32 %v5897, 7
        %v5899 = vsub.s32 %v5896, %v5898
        %v5900 = vrot.slane %v5892, %v5899
        %v5902 = vunpack.c.l.s4 1983009808
        %v5903 = vunpack.c.0.s8 %v5902
        %v5904 = vlaneseq
        %v5905 = vshrl.u32 %v5904, 7
        %v5906 = vsub.s32 %v5903, %v5905
        %v5907 = vrot.slane %v5893, %v5906
        %v5908 = vcombine.low %v5884, %v5900
        %v5909 = vcombine.high %v5884, %v5900
        %v5911 = vunpack.c.l.s4 1934713408
        %v5912 = vunpack.c.0.s8 %v5911
        %v5913 = vlaneseq
        %v5914 = vshrl.u32 %v5913, 7
        %v5915 = vsub.s32 %v5912, %v5914
        %v5916 = vrot.slane %v5908, %v5915
        %v5918 = vunpack.c.l.s4 1934713408
        %v5919 = vunpack.c.0.s8 %v5918
        %v5920 = vlaneseq
        %v5921 = vshrl.u32 %v5920, 7
        %v5922 = vsub.s32 %v5919, %v5921
        %v5923 = vrot.slane %v5909, %v5922
        %v5924 = vcombine.low %v5891, %v5907
        %v5925 = vcombine.high %v5891, %v5907
        %v5927 = vunpack.c.l.s4 1934713408
        %v5928 = vunpack.c.0.s8 %v5927
        %v5929 = vlaneseq
        %v5930 = vshrl.u32 %v5929, 7
        %v5931 = vsub.s32 %v5928, %v5930
        %v5932 = vrot.slane %v5924, %v5931
        %v5934 = vunpack.c.l.s4 1934713408
        %v5935 = vunpack.c.0.s8 %v5934
        %v5936 = vlaneseq
        %v5937 = vshrl.u32 %v5936, 7
        %v5938 = vsub.s32 %v5935, %v5937
        %v5939 = vrot.slane %v5925, %v5938
        %v5940 = vcombine.high %v5916, 0.0
        %v5941 = vcombine.high %v5923, 0.0
        %v5942 = vcombine.high %v5932, 0.0
        %v5943 = vcombine.high %v5939, 0.0
        %v5944 = vcombine.low %v689, %v5651
        %v5945 = vcombine.high %v689, %v5651
        %v5947 = vunpack.c.l.s4 1983009808
        %v5948 = vunpack.c.0.s8 %v5947
        %v5949 = vlaneseq
        %v5950 = vshrl.u32 %v5949, 7
        %v5951 = vsub.s32 %v5948, %v5950
        %v5952 = vrot.slane %v5944, %v5951
        %v5954 = vunpack.c.l.s4 1983009808
        %v5955 = vunpack.c.0.s8 %v5954
        %v5956 = vlaneseq
        %v5957 = vshrl.u32 %v5956, 7
        %v5958 = vsub.s32 %v5955, %v5957
        %v5959 = vrot.slane %v5945, %v5958
        %v5960 = vcombine.low %v5603, %v5699
        %v5961 = vcombine.high %v5603, %v5699
        %v5963 = vunpack.c.l.s4 1983009808
        %v5964 = vunpack.c.0.s8 %v5963
        %v5965 = vlaneseq
        %v5966 = vshrl.u32 %v5965, 7
        %v5967 = vsub.s32 %v5964, %v5966
        %v5968 = vrot.slane %v5960, %v5967
        %v5970 = vunpack.c.l.s4 1983009808
        %v5971 = vunpack.c.0.s8 %v5970
        %v5972 = vlaneseq
        %v5973 = vshrl.u32 %v5972, 7
        %v5974 = vsub.s32 %v5971, %v5973
        %v5975 = vrot.slane %v5961, %v5974
        %v5976 = vcombine.low %v5952, %v5968
        %v5977 = vcombine.high %v5952, %v5968
        %v5979 = vunpack.c.l.s4 1934713408
        %v5980 = vunpack.c.0.s8 %v5979
        %v5981 = vlaneseq
        %v5982 = vshrl.u32 %v5981, 7
        %v5983 = vsub.s32 %v5980, %v5982
        %v5984 = vrot.slane %v5976, %v5983
        %v5986 = vunpack.c.l.s4 1934713408
        %v5987 = vunpack.c.0.s8 %v5986
        %v5988 = vlaneseq
        %v5989 = vshrl.u32 %v5988, 7
        %v5990 = vsub.s32 %v5987, %v5989
        %v5991 = vrot.slane %v5977, %v5990
        %v5992 = vcombine.low %v5959, %v5975
        %v5993 = vcombine.high %v5959, %v5975
        %v5995 = vunpack.c.l.s4 1934713408
        %v5996 = vunpack.c.0.s8 %v5995
        %v5997 = vlaneseq
        %v5998 = vshrl.u32 %v5997, 7
        %v5999 = vsub.s32 %v5996, %v5998
        %v6000 = vrot.slane %v5992, %v5999
        %v6002 = vunpack.c.l.s4 1934713408
        %v6003 = vunpack.c.0.s8 %v6002
        %v6004 = vlaneseq
        %v6005 = vshrl.u32 %v6004, 7
        %v6006 = vsub.s32 %v6003, %v6005
        %v6007 = vrot.slane %v5993, %v6006
        %v6008 = vcombine.high %v5984, 0.0
        %v6009 = vcombine.high %v5991, 0.0
        %v6010 = vcombine.high %v6000, 0.0
        %v6011 = vcombine.high %v6007, 0.0
        %v6012 = vcombine.low %v694, %v5653
        %v6013 = vcombine.high %v694, %v5653
        %v6015 = vunpack.c.l.s4 1983009808
        %v6016 = vunpack.c.0.s8 %v6015
        %v6017 = vlaneseq
        %v6018 = vshrl.u32 %v6017, 7
        %v6019 = vsub.s32 %v6016, %v6018
        %v6020 = vrot.slane %v6012, %v6019
        %v6022 = vunpack.c.l.s4 1983009808
        %v6023 = vunpack.c.0.s8 %v6022
        %v6024 = vlaneseq
        %v6025 = vshrl.u32 %v6024, 7
        %v6026 = vsub.s32 %v6023, %v6025
        %v6027 = vrot.slane %v6013, %v6026
        %v6028 = vcombine.low %v5605, %v5701
        %v6029 = vcombine.high %v5605, %v5701
        %v6031 = vunpack.c.l.s4 1983009808
        %v6032 = vunpack.c.0.s8 %v6031
        %v6033 = vlaneseq
        %v6034 = vshrl.u32 %v6033, 7
        %v6035 = vsub.s32 %v6032, %v6034
        %v6036 = vrot.slane %v6028, %v6035
        %v6038 = vunpack.c.l.s4 1983009808
        %v6039 = vunpack.c.0.s8 %v6038
        %v6040 = vlaneseq
        %v6041 = vshrl.u32 %v6040, 7
        %v6042 = vsub.s32 %v6039, %v6041
        %v6043 = vrot.slane %v6029, %v6042
        %v6044 = vcombine.low %v6020, %v6036
        %v6045 = vcombine.high %v6020, %v6036
        %v6047 = vunpack.c.l.s4 1934713408
        %v6048 = vunpack.c.0.s8 %v6047
        %v6049 = vlaneseq
        %v6050 = vshrl.u32 %v6049, 7
        %v6051 = vsub.s32 %v6048, %v6050
        %v6052 = vrot.slane %v6044, %v6051
        %v6054 = vunpack.c.l.s4 1934713408
        %v6055 = vunpack.c.0.s8 %v6054
        %v6056 = vlaneseq
        %v6057 = vshrl.u32 %v6056, 7
        %v6058 = vsub.s32 %v6055, %v6057
        %v6059 = vrot.slane %v6045, %v6058
        %v6060 = vcombine.low %v6027, %v6043
        %v6061 = vcombine.high %v6027, %v6043
        %v6063 = vunpack.c.l.s4 1934713408
        %v6064 = vunpack.c.0.s8 %v6063
        %v6065 = vlaneseq
        %v6066 = vshrl.u32 %v6065, 7
        %v6067 = vsub.s32 %v6064, %v6066
        %v6068 = vrot.slane %v6060, %v6067
        %v6070 = vunpack.c.l.s4 1934713408
        %v6071 = vunpack.c.0.s8 %v6070
        %v6072 = vlaneseq
        %v6073 = vshrl.u32 %v6072, 7
        %v6074 = vsub.s32 %v6071, %v6073
        %v6075 = vrot.slane %v6061, %v6074
        %v6076 = vcombine.high %v6052, 0.0
        %v6077 = vcombine.high %v6059, 0.0
        %v6078 = vcombine.high %v6068, 0.0
        %v6079 = vcombine.high %v6075, 0.0
        %v6080 = vcombine.low %v697, %v5655
        %v6081 = vcombine.high %v697, %v5655
        %v6083 = vunpack.c.l.s4 1983009808
        %v6084 = vunpack.c.0.s8 %v6083
        %v6085 = vlaneseq
        %v6086 = vshrl.u32 %v6085, 7
        %v6087 = vsub.s32 %v6084, %v6086
        %v6088 = vrot.slane %v6080, %v6087
        %v6090 = vunpack.c.l.s4 1983009808
        %v6091 = vunpack.c.0.s8 %v6090
        %v6092 = vlaneseq
        %v6093 = vshrl.u32 %v6092, 7
        %v6094 = vsub.s32 %v6091, %v6093
        %v6095 = vrot.slane %v6081, %v6094
        %v6096 = vcombine.low %v5607, %v5703
        %v6097 = vcombine.high %v5607, %v5703
        %v6099 = vunpack.c.l.s4 1983009808
        %v6100 = vunpack.c.0.s8 %v6099
        %v6101 = vlaneseq
        %v6102 = vshrl.u32 %v6101, 7
        %v6103 = vsub.s32 %v6100, %v6102
        %v6104 = vrot.slane %v6096, %v6103
        %v6106 = vunpack.c.l.s4 1983009808
        %v6107 = vunpack.c.0.s8 %v6106
        %v6108 = vlaneseq
        %v6109 = vshrl.u32 %v6108, 7
        %v6110 = vsub.s32 %v6107, %v6109
        %v6111 = vrot.slane %v6097, %v6110
        %v6112 = vcombine.low %v6088, %v6104
        %v6113 = vcombine.high %v6088, %v6104
        %v6115 = vunpack.c.l.s4 1934713408
        %v6116 = vunpack.c.0.s8 %v6115
        %v6117 = vlaneseq
        %v6118 = vshrl.u32 %v6117, 7
        %v6119 = vsub.s32 %v6116, %v6118
        %v6120 = vrot.slane %v6112, %v6119
        %v6122 = vunpack.c.l.s4 1934713408
        %v6123 = vunpack.c.0.s8 %v6122
        %v6124 = vlaneseq
        %v6125 = vshrl.u32 %v6124, 7
        %v6126 = vsub.s32 %v6123, %v6125
        %v6127 = vrot.slane %v6113, %v6126
        %v6128 = vcombine.low %v6095, %v6111
        %v6129 = vcombine.high %v6095, %v6111
        %v6131 = vunpack.c.l.s4 1934713408
        %v6132 = vunpack.c.0.s8 %v6131
        %v6133 = vlaneseq
        %v6134 = vshrl.u32 %v6133, 7
        %v6135 = vsub.s32 %v6132, %v6134
        %v6136 = vrot.slane %v6128, %v6135
        %v6138 = vunpack.c.l.s4 1934713408
        %v6139 = vunpack.c.0.s8 %v6138
        %v6140 = vlaneseq
        %v6141 = vshrl.u32 %v6140, 7
        %v6142 = vsub.s32 %v6139, %v6141
        %v6143 = vrot.slane %v6129, %v6142
        %v6144 = vcombine.high %v6120, 0.0
        %v6145 = vcombine.high %v6127, 0.0
        %v6146 = vcombine.high %v6136, 0.0
        %v6147 = vcombine.high %v6143, 0.0
        %v6148 = vcombine.low %v702, %v5657
        %v6149 = vcombine.high %v702, %v5657
        %v6151 = vunpack.c.l.s4 1983009808
        %v6152 = vunpack.c.0.s8 %v6151
        %v6153 = vlaneseq
        %v6154 = vshrl.u32 %v6153, 7
        %v6155 = vsub.s32 %v6152, %v6154
        %v6156 = vrot.slane %v6148, %v6155
        %v6158 = vunpack.c.l.s4 1983009808
        %v6159 = vunpack.c.0.s8 %v6158
        %v6160 = vlaneseq
        %v6161 = vshrl.u32 %v6160, 7
        %v6162 = vsub.s32 %v6159, %v6161
        %v6163 = vrot.slane %v6149, %v6162
        %v6164 = vcombine.low %v5609, %v5705
        %v6165 = vcombine.high %v5609, %v5705
        %v6167 = vunpack.c.l.s4 1983009808
        %v6168 = vunpack.c.0.s8 %v6167
        %v6169 = vlaneseq
        %v6170 = vshrl.u32 %v6169, 7
        %v6171 = vsub.s32 %v6168, %v6170
        %v6172 = vrot.slane %v6164, %v6171
        %v6174 = vunpack.c.l.s4 1983009808
        %v6175 = vunpack.c.0.s8 %v6174
        %v6176 = vlaneseq
        %v6177 = vshrl.u32 %v6176, 7
        %v6178 = vsub.s32 %v6175, %v6177
        %v6179 = vrot.slane %v6165, %v6178
        %v6180 = vcombine.low %v6156, %v6172
        %v6181 = vcombine.high %v6156, %v6172
        %v6183 = vunpack.c.l.s4 1934713408
        %v6184 = vunpack.c.0.s8 %v6183
        %v6185 = vlaneseq
        %v6186 = vshrl.u32 %v6185, 7
        %v6187 = vsub.s32 %v6184, %v6186
        %v6188 = vrot.slane %v6180, %v6187
        %v6190 = vunpack.c.l.s4 1934713408
        %v6191 = vunpack.c.0.s8 %v6190
        %v6192 = vlaneseq
        %v6193 = vshrl.u32 %v6192, 7
        %v6194 = vsub.s32 %v6191, %v6193
        %v6195 = vrot.slane %v6181, %v6194
        %v6196 = vcombine.low %v6163, %v6179
        %v6197 = vcombine.high %v6163, %v6179
        %v6199 = vunpack.c.l.s4 1934713408
        %v6200 = vunpack.c.0.s8 %v6199
        %v6201 = vlaneseq
        %v6202 = vshrl.u32 %v6201, 7
        %v6203 = vsub.s32 %v6200, %v6202
        %v6204 = vrot.slane %v6196, %v6203
        %v6206 = vunpack.c.l.s4 1934713408
        %v6207 = vunpack.c.0.s8 %v6206
        %v6208 = vlaneseq
        %v6209 = vshrl.u32 %v6208, 7
        %v6210 = vsub.s32 %v6207, %v6209
        %v6211 = vrot.slane %v6197, %v6210
        %v6212 = vcombine.high %v6188, 0.0
        %v6213 = vcombine.high %v6195, 0.0
        %v6214 = vcombine.high %v6204, 0.0
        %v6215 = vcombine.high %v6211, 0.0
        %v6216 = vcombine.low %v705, %v5659
        %v6217 = vcombine.high %v705, %v5659
        %v6219 = vunpack.c.l.s4 1983009808
        %v6220 = vunpack.c.0.s8 %v6219
        %v6221 = vlaneseq
        %v6222 = vshrl.u32 %v6221, 7
        %v6223 = vsub.s32 %v6220, %v6222
        %v6224 = vrot.slane %v6216, %v6223
        %v6226 = vunpack.c.l.s4 1983009808
        %v6227 = vunpack.c.0.s8 %v6226
        %v6228 = vlaneseq
        %v6229 = vshrl.u32 %v6228, 7
        %v6230 = vsub.s32 %v6227, %v6229
        %v6231 = vrot.slane %v6217, %v6230
        %v6232 = vcombine.low %v5611, %v5707
        %v6233 = vcombine.high %v5611, %v5707
        %v6235 = vunpack.c.l.s4 1983009808
        %v6236 = vunpack.c.0.s8 %v6235
        %v6237 = vlaneseq
        %v6238 = vshrl.u32 %v6237, 7
        %v6239 = vsub.s32 %v6236, %v6238
        %v6240 = vrot.slane %v6232, %v6239
        %v6242 = vunpack.c.l.s4 1983009808
        %v6243 = vunpack.c.0.s8 %v6242
        %v6244 = vlaneseq
        %v6245 = vshrl.u32 %v6244, 7
        %v6246 = vsub.s32 %v6243, %v6245
        %v6247 = vrot.slane %v6233, %v6246
        %v6248 = vcombine.low %v6224, %v6240
        %v6249 = vcombine.high %v6224, %v6240
        %v6251 = vunpack.c.l.s4 1934713408
        %v6252 = vunpack.c.0.s8 %v6251
        %v6253 = vlaneseq
        %v6254 = vshrl.u32 %v6253, 7
        %v6255 = vsub.s32 %v6252, %v6254
        %v6256 = vrot.slane %v6248, %v6255
        %v6258 = vunpack.c.l.s4 1934713408
        %v6259 = vunpack.c.0.s8 %v6258
        %v6260 = vlaneseq
        %v6261 = vshrl.u32 %v6260, 7
        %v6262 = vsub.s32 %v6259, %v6261
        %v6263 = vrot.slane %v6249, %v6262
        %v6264 = vcombine.low %v6231, %v6247
        %v6265 = vcombine.high %v6231, %v6247
        %v6267 = vunpack.c.l.s4 1934713408
        %v6268 = vunpack.c.0.s8 %v6267
        %v6269 = vlaneseq
        %v6270 = vshrl.u32 %v6269, 7
        %v6271 = vsub.s32 %v6268, %v6270
        %v6272 = vrot.slane %v6264, %v6271
        %v6274 = vunpack.c.l.s4 1934713408
        %v6275 = vunpack.c.0.s8 %v6274
        %v6276 = vlaneseq
        %v6277 = vshrl.u32 %v6276, 7
        %v6278 = vsub.s32 %v6275, %v6277
        %v6279 = vrot.slane %v6265, %v6278
        %v6280 = vcombine.high %v6256, 0.0
        %v6281 = vcombine.high %v6263, 0.0
        %v6282 = vcombine.high %v6272, 0.0
        %v6283 = vcombine.high %v6279, 0.0
        %v6284 = vcombine.low %v710, %v5661
        %v6285 = vcombine.high %v710, %v5661
        %v6287 = vunpack.c.l.s4 1983009808
        %v6288 = vunpack.c.0.s8 %v6287
        %v6289 = vlaneseq
        %v6290 = vshrl.u32 %v6289, 7
        %v6291 = vsub.s32 %v6288, %v6290
        %v6292 = vrot.slane %v6284, %v6291
        %v6294 = vunpack.c.l.s4 1983009808
        %v6295 = vunpack.c.0.s8 %v6294
        %v6296 = vlaneseq
        %v6297 = vshrl.u32 %v6296, 7
        %v6298 = vsub.s32 %v6295, %v6297
        %v6299 = vrot.slane %v6285, %v6298
        %v6300 = vcombine.low %v5613, %v5709
        %v6301 = vcombine.high %v5613, %v5709
        %v6303 = vunpack.c.l.s4 1983009808
        %v6304 = vunpack.c.0.s8 %v6303
        %v6305 = vlaneseq
        %v6306 = vshrl.u32 %v6305, 7
        %v6307 = vsub.s32 %v6304, %v6306
        %v6308 = vrot.slane %v6300, %v6307
        %v6310 = vunpack.c.l.s4 1983009808
        %v6311 = vunpack.c.0.s8 %v6310
        %v6312 = vlaneseq
        %v6313 = vshrl.u32 %v6312, 7
        %v6314 = vsub.s32 %v6311, %v6313
        %v6315 = vrot.slane %v6301, %v6314
        %v6316 = vcombine.low %v6292, %v6308
        %v6317 = vcombine.high %v6292, %v6308
        %v6319 = vunpack.c.l.s4 1934713408
        %v6320 = vunpack.c.0.s8 %v6319
        %v6321 = vlaneseq
        %v6322 = vshrl.u32 %v6321, 7
        %v6323 = vsub.s32 %v6320, %v6322
        %v6324 = vrot.slane %v6316, %v6323
        %v6326 = vunpack.c.l.s4 1934713408
        %v6327 = vunpack.c.0.s8 %v6326
        %v6328 = vlaneseq
        %v6329 = vshrl.u32 %v6328, 7
        %v6330 = vsub.s32 %v6327, %v6329
        %v6331 = vrot.slane %v6317, %v6330
        %v6332 = vcombine.low %v6299, %v6315
        %v6333 = vcombine.high %v6299, %v6315
        %v6335 = vunpack.c.l.s4 1934713408
        %v6336 = vunpack.c.0.s8 %v6335
        %v6337 = vlaneseq
        %v6338 = vshrl.u32 %v6337, 7
        %v6339 = vsub.s32 %v6336, %v6338
        %v6340 = vrot.slane %v6332, %v6339
        %v6342 = vunpack.c.l.s4 1934713408
        %v6343 = vunpack.c.0.s8 %v6342
        %v6344 = vlaneseq
        %v6345 = vshrl.u32 %v6344, 7
        %v6346 = vsub.s32 %v6343, %v6345
        %v6347 = vrot.slane %v6333, %v6346
        %v6348 = vcombine.high %v6324, 0.0
        %v6349 = vcombine.high %v6331, 0.0
        %v6350 = vcombine.high %v6340, 0.0
        %v6351 = vcombine.high %v6347, 0.0
        %v6352 = vcombine.low %v713, %v5663
        %v6353 = vcombine.high %v713, %v5663
        %v6355 = vunpack.c.l.s4 1983009808
        %v6356 = vunpack.c.0.s8 %v6355
        %v6357 = vlaneseq
        %v6358 = vshrl.u32 %v6357, 7
        %v6359 = vsub.s32 %v6356, %v6358
        %v6360 = vrot.slane %v6352, %v6359
        %v6362 = vunpack.c.l.s4 1983009808
        %v6363 = vunpack.c.0.s8 %v6362
        %v6364 = vlaneseq
        %v6365 = vshrl.u32 %v6364, 7
        %v6366 = vsub.s32 %v6363, %v6365
        %v6367 = vrot.slane %v6353, %v6366
        %v6368 = vcombine.low %v5615, %v5711
        %v6369 = vcombine.high %v5615, %v5711
        %v6371 = vunpack.c.l.s4 1983009808
        %v6372 = vunpack.c.0.s8 %v6371
        %v6373 = vlaneseq
        %v6374 = vshrl.u32 %v6373, 7
        %v6375 = vsub.s32 %v6372, %v6374
        %v6376 = vrot.slane %v6368, %v6375
        %v6378 = vunpack.c.l.s4 1983009808
        %v6379 = vunpack.c.0.s8 %v6378
        %v6380 = vlaneseq
        %v6381 = vshrl.u32 %v6380, 7
        %v6382 = vsub.s32 %v6379, %v6381
        %v6383 = vrot.slane %v6369, %v6382
        %v6384 = vcombine.low %v6360, %v6376
        %v6385 = vcombine.high %v6360, %v6376
        %v6387 = vunpack.c.l.s4 1934713408
        %v6388 = vunpack.c.0.s8 %v6387
        %v6389 = vlaneseq
        %v6390 = vshrl.u32 %v6389, 7
        %v6391 = vsub.s32 %v6388, %v6390
        %v6392 = vrot.slane %v6384, %v6391
        %v6394 = vunpack.c.l.s4 1934713408
        %v6395 = vunpack.c.0.s8 %v6394
        %v6396 = vlaneseq
        %v6397 = vshrl.u32 %v6396, 7
        %v6398 = vsub.s32 %v6395, %v6397
        %v6399 = vrot.slane %v6385, %v6398
        %v6400 = vcombine.low %v6367, %v6383
        %v6401 = vcombine.high %v6367, %v6383
        %v6403 = vunpack.c.l.s4 1934713408
        %v6404 = vunpack.c.0.s8 %v6403
        %v6405 = vlaneseq
        %v6406 = vshrl.u32 %v6405, 7
        %v6407 = vsub.s32 %v6404, %v6406
        %v6408 = vrot.slane %v6400, %v6407
        %v6410 = vunpack.c.l.s4 1934713408
        %v6411 = vunpack.c.0.s8 %v6410
        %v6412 = vlaneseq
        %v6413 = vshrl.u32 %v6412, 7
        %v6414 = vsub.s32 %v6411, %v6413
        %v6415 = vrot.slane %v6401, %v6414
        %v6416 = vcombine.high %v6392, 0.0
        %v6417 = vcombine.high %v6399, 0.0
        %v6418 = vcombine.high %v6408, 0.0
        %v6419 = vcombine.high %v6415, 0.0
        %v6420 = vcombine.low %v718, %v5665
        %v6421 = vcombine.high %v718, %v5665
        %v6423 = vunpack.c.l.s4 1983009808
        %v6424 = vunpack.c.0.s8 %v6423
        %v6425 = vlaneseq
        %v6426 = vshrl.u32 %v6425, 7
        %v6427 = vsub.s32 %v6424, %v6426
        %v6428 = vrot.slane %v6420, %v6427
        %v6430 = vunpack.c.l.s4 1983009808
        %v6431 = vunpack.c.0.s8 %v6430
        %v6432 = vlaneseq
        %v6433 = vshrl.u32 %v6432, 7
        %v6434 = vsub.s32 %v6431, %v6433
        %v6435 = vrot.slane %v6421, %v6434
        %v6436 = vcombine.low %v5617, %v5713
        %v6437 = vcombine.high %v5617, %v5713
        %v6439 = vunpack.c.l.s4 1983009808
        %v6440 = vunpack.c.0.s8 %v6439
        %v6441 = vlaneseq
        %v6442 = vshrl.u32 %v6441, 7
        %v6443 = vsub.s32 %v6440, %v6442
        %v6444 = vrot.slane %v6436, %v6443
        %v6446 = vunpack.c.l.s4 1983009808
        %v6447 = vunpack.c.0.s8 %v6446
        %v6448 = vlaneseq
        %v6449 = vshrl.u32 %v6448, 7
        %v6450 = vsub.s32 %v6447, %v6449
        %v6451 = vrot.slane %v6437, %v6450
        %v6452 = vcombine.low %v6428, %v6444
        %v6453 = vcombine.high %v6428, %v6444
        %v6455 = vunpack.c.l.s4 1934713408
        %v6456 = vunpack.c.0.s8 %v6455
        %v6457 = vlaneseq
        %v6458 = vshrl.u32 %v6457, 7
        %v6459 = vsub.s32 %v6456, %v6458
        %v6460 = vrot.slane %v6452, %v6459
        %v6462 = vunpack.c.l.s4 1934713408
        %v6463 = vunpack.c.0.s8 %v6462
        %v6464 = vlaneseq
        %v6465 = vshrl.u32 %v6464, 7
        %v6466 = vsub.s32 %v6463, %v6465
        %v6467 = vrot.slane %v6453, %v6466
        %v6468 = vcombine.low %v6435, %v6451
        %v6469 = vcombine.high %v6435, %v6451
        %v6471 = vunpack.c.l.s4 1934713408
        %v6472 = vunpack.c.0.s8 %v6471
        %v6473 = vlaneseq
        %v6474 = vshrl.u32 %v6473, 7
        %v6475 = vsub.s32 %v6472, %v6474
        %v6476 = vrot.slane %v6468, %v6475
        %v6478 = vunpack.c.l.s4 1934713408
        %v6479 = vunpack.c.0.s8 %v6478
        %v6480 = vlaneseq
        %v6481 = vshrl.u32 %v6480, 7
        %v6482 = vsub.s32 %v6479, %v6481
        %v6483 = vrot.slane %v6469, %v6482
        %v6484 = vcombine.high %v6460, 0.0
        %v6485 = vcombine.high %v6467, 0.0
        %v6486 = vcombine.high %v6476, 0.0
        %v6487 = vcombine.high %v6483, 0.0
        %v6488 = vcombine.low %v721, %v5667
        %v6489 = vcombine.high %v721, %v5667
        %v6491 = vunpack.c.l.s4 1983009808
        %v6492 = vunpack.c.0.s8 %v6491
        %v6493 = vlaneseq
        %v6494 = vshrl.u32 %v6493, 7
        %v6495 = vsub.s32 %v6492, %v6494
        %v6496 = vrot.slane %v6488, %v6495
        %v6498 = vunpack.c.l.s4 1983009808
        %v6499 = vunpack.c.0.s8 %v6498
        %v6500 = vlaneseq
        %v6501 = vshrl.u32 %v6500, 7
        %v6502 = vsub.s32 %v6499, %v6501
        %v6503 = vrot.slane %v6489, %v6502
        %v6504 = vcombine.low %v5619, %v5715
        %v6505 = vcombine.high %v5619, %v5715
        %v6507 = vunpack.c.l.s4 1983009808
        %v6508 = vunpack.c.0.s8 %v6507
        %v6509 = vlaneseq
        %v6510 = vshrl.u32 %v6509, 7
        %v6511 = vsub.s32 %v6508, %v6510
        %v6512 = vrot.slane %v6504, %v6511
        %v6514 = vunpack.c.l.s4 1983009808
        %v6515 = vunpack.c.0.s8 %v6514
        %v6516 = vlaneseq
        %v6517 = vshrl.u32 %v6516, 7
        %v6518 = vsub.s32 %v6515, %v6517
        %v6519 = vrot.slane %v6505, %v6518
        %v6520 = vcombine.low %v6496, %v6512
        %v6521 = vcombine.high %v6496, %v6512
        %v6523 = vunpack.c.l.s4 1934713408
        %v6524 = vunpack.c.0.s8 %v6523
        %v6525 = vlaneseq
        %v6526 = vshrl.u32 %v6525, 7
        %v6527 = vsub.s32 %v6524, %v6526
        %v6528 = vrot.slane %v6520, %v6527
        %v6530 = vunpack.c.l.s4 1934713408
        %v6531 = vunpack.c.0.s8 %v6530
        %v6532 = vlaneseq
        %v6533 = vshrl.u32 %v6532, 7
        %v6534 = vsub.s32 %v6531, %v6533
        %v6535 = vrot.slane %v6521, %v6534
        %v6536 = vcombine.low %v6503, %v6519
        %v6537 = vcombine.high %v6503, %v6519
        %v6539 = vunpack.c.l.s4 1934713408
        %v6540 = vunpack.c.0.s8 %v6539
        %v6541 = vlaneseq
        %v6542 = vshrl.u32 %v6541, 7
        %v6543 = vsub.s32 %v6540, %v6542
        %v6544 = vrot.slane %v6536, %v6543
        %v6546 = vunpack.c.l.s4 1934713408
        %v6547 = vunpack.c.0.s8 %v6546
        %v6548 = vlaneseq
        %v6549 = vshrl.u32 %v6548, 7
        %v6550 = vsub.s32 %v6547, %v6549
        %v6551 = vrot.slane %v6537, %v6550
        %v6552 = vcombine.high %v6528, 0.0
        %v6553 = vcombine.high %v6535, 0.0
        %v6554 = vcombine.high %v6544, 0.0
        %v6555 = vcombine.high %v6551, 0.0
        %v6556 = vcombine.low %v726, %v5669
        %v6557 = vcombine.high %v726, %v5669
        %v6559 = vunpack.c.l.s4 1983009808
        %v6560 = vunpack.c.0.s8 %v6559
        %v6561 = vlaneseq
        %v6562 = vshrl.u32 %v6561, 7
        %v6563 = vsub.s32 %v6560, %v6562
        %v6564 = vrot.slane %v6556, %v6563
        %v6566 = vunpack.c.l.s4 1983009808
        %v6567 = vunpack.c.0.s8 %v6566
        %v6568 = vlaneseq
        %v6569 = vshrl.u32 %v6568, 7
        %v6570 = vsub.s32 %v6567, %v6569
        %v6571 = vrot.slane %v6557, %v6570
        %v6572 = vcombine.low %v5621, %v5717
        %v6573 = vcombine.high %v5621, %v5717
        %v6575 = vunpack.c.l.s4 1983009808
        %v6576 = vunpack.c.0.s8 %v6575
        %v6577 = vlaneseq
        %v6578 = vshrl.u32 %v6577, 7
        %v6579 = vsub.s32 %v6576, %v6578
        %v6580 = vrot.slane %v6572, %v6579
        %v6582 = vunpack.c.l.s4 1983009808
        %v6583 = vunpack.c.0.s8 %v6582
        %v6584 = vlaneseq
        %v6585 = vshrl.u32 %v6584, 7
        %v6586 = vsub.s32 %v6583, %v6585
        %v6587 = vrot.slane %v6573, %v6586
        %v6588 = vcombine.low %v6564, %v6580
        %v6589 = vcombine.high %v6564, %v6580
        %v6591 = vunpack.c.l.s4 1934713408
        %v6592 = vunpack.c.0.s8 %v6591
        %v6593 = vlaneseq
        %v6594 = vshrl.u32 %v6593, 7
        %v6595 = vsub.s32 %v6592, %v6594
        %v6596 = vrot.slane %v6588, %v6595
        %v6598 = vunpack.c.l.s4 1934713408
        %v6599 = vunpack.c.0.s8 %v6598
        %v6600 = vlaneseq
        %v6601 = vshrl.u32 %v6600, 7
        %v6602 = vsub.s32 %v6599, %v6601
        %v6603 = vrot.slane %v6589, %v6602
        %v6604 = vcombine.low %v6571, %v6587
        %v6605 = vcombine.high %v6571, %v6587
        %v6607 = vunpack.c.l.s4 1934713408
        %v6608 = vunpack.c.0.s8 %v6607
        %v6609 = vlaneseq
        %v6610 = vshrl.u32 %v6609, 7
        %v6611 = vsub.s32 %v6608, %v6610
        %v6612 = vrot.slane %v6604, %v6611
        %v6614 = vunpack.c.l.s4 1934713408
        %v6615 = vunpack.c.0.s8 %v6614
        %v6616 = vlaneseq
        %v6617 = vshrl.u32 %v6616, 7
        %v6618 = vsub.s32 %v6615, %v6617
        %v6619 = vrot.slane %v6605, %v6618
        %v6620 = vcombine.high %v6596, 0.0
        %v6621 = vcombine.high %v6603, 0.0
        %v6622 = vcombine.high %v6612, 0.0
        %v6623 = vcombine.high %v6619, 0.0
        %v6624 = vcombine.low %v729, %v5671
        %v6625 = vcombine.high %v729, %v5671
        %v6627 = vunpack.c.l.s4 1983009808
        %v6628 = vunpack.c.0.s8 %v6627
        %v6629 = vlaneseq
        %v6630 = vshrl.u32 %v6629, 7
        %v6631 = vsub.s32 %v6628, %v6630
        %v6632 = vrot.slane %v6624, %v6631
        %v6634 = vunpack.c.l.s4 1983009808
        %v6635 = vunpack.c.0.s8 %v6634
        %v6636 = vlaneseq
        %v6637 = vshrl.u32 %v6636, 7
        %v6638 = vsub.s32 %v6635, %v6637
        %v6639 = vrot.slane %v6625, %v6638
        %v6640 = vcombine.low %v5623, %v5719
        %v6641 = vcombine.high %v5623, %v5719
        %v6643 = vunpack.c.l.s4 1983009808
        %v6644 = vunpack.c.0.s8 %v6643
        %v6645 = vlaneseq
        %v6646 = vshrl.u32 %v6645, 7
        %v6647 = vsub.s32 %v6644, %v6646
        %v6648 = vrot.slane %v6640, %v6647
        %v6650 = vunpack.c.l.s4 1983009808
        %v6651 = vunpack.c.0.s8 %v6650
        %v6652 = vlaneseq
        %v6653 = vshrl.u32 %v6652, 7
        %v6654 = vsub.s32 %v6651, %v6653
        %v6655 = vrot.slane %v6641, %v6654
        %v6656 = vcombine.low %v6632, %v6648
        %v6657 = vcombine.high %v6632, %v6648
        %v6659 = vunpack.c.l.s4 1934713408
        %v6660 = vunpack.c.0.s8 %v6659
        %v6661 = vlaneseq
        %v6662 = vshrl.u32 %v6661, 7
        %v6663 = vsub.s32 %v6660, %v6662
        %v6664 = vrot.slane %v6656, %v6663
        %v6666 = vunpack.c.l.s4 1934713408
        %v6667 = vunpack.c.0.s8 %v6666
        %v6668 = vlaneseq
        %v6669 = vshrl.u32 %v6668, 7
        %v6670 = vsub.s32 %v6667, %v6669
        %v6671 = vrot.slane %v6657, %v6670
        %v6672 = vcombine.low %v6639, %v6655
        %v6673 = vcombine.high %v6639, %v6655
        %v6675 = vunpack.c.l.s4 1934713408
        %v6676 = vunpack.c.0.s8 %v6675
        %v6677 = vlaneseq
        %v6678 = vshrl.u32 %v6677, 7
        %v6679 = vsub.s32 %v6676, %v6678
        %v6680 = vrot.slane %v6672, %v6679
        %v6682 = vunpack.c.l.s4 1934713408
        %v6683 = vunpack.c.0.s8 %v6682
        %v6684 = vlaneseq
        %v6685 = vshrl.u32 %v6684, 7
        %v6686 = vsub.s32 %v6683, %v6685
        %v6687 = vrot.slane %v6673, %v6686
        %v6688 = vcombine.high %v6664, 0.0
        %v6689 = vcombine.high %v6671, 0.0
        %v6690 = vcombine.high %v6680, 0.0
        %v6691 = vcombine.high %v6687, 0.0
        %v6692 = vcombine.low %v734, %v5673
        %v6693 = vcombine.high %v734, %v5673
        %v6695 = vunpack.c.l.s4 1983009808
        %v6696 = vunpack.c.0.s8 %v6695
        %v6697 = vlaneseq
        %v6698 = vshrl.u32 %v6697, 7
        %v6699 = vsub.s32 %v6696, %v6698
        %v6700 = vrot.slane %v6692, %v6699
        %v6702 = vunpack.c.l.s4 1983009808
        %v6703 = vunpack.c.0.s8 %v6702
        %v6704 = vlaneseq
        %v6705 = vshrl.u32 %v6704, 7
        %v6706 = vsub.s32 %v6703, %v6705
        %v6707 = vrot.slane %v6693, %v6706
        %v6708 = vcombine.low %v5625, %v5721
        %v6709 = vcombine.high %v5625, %v5721
        %v6711 = vunpack.c.l.s4 1983009808
        %v6712 = vunpack.c.0.s8 %v6711
        %v6713 = vlaneseq
        %v6714 = vshrl.u32 %v6713, 7
        %v6715 = vsub.s32 %v6712, %v6714
        %v6716 = vrot.slane %v6708, %v6715
        %v6718 = vunpack.c.l.s4 1983009808
        %v6719 = vunpack.c.0.s8 %v6718
        %v6720 = vlaneseq
        %v6721 = vshrl.u32 %v6720, 7
        %v6722 = vsub.s32 %v6719, %v6721
        %v6723 = vrot.slane %v6709, %v6722
        %v6724 = vcombine.low %v6700, %v6716
        %v6725 = vcombine.high %v6700, %v6716
        %v6727 = vunpack.c.l.s4 1934713408
        %v6728 = vunpack.c.0.s8 %v6727
        %v6729 = vlaneseq
        %v6730 = vshrl.u32 %v6729, 7
        %v6731 = vsub.s32 %v6728, %v6730
        %v6732 = vrot.slane %v6724, %v6731
        %v6734 = vunpack.c.l.s4 1934713408
        %v6735 = vunpack.c.0.s8 %v6734
        %v6736 = vlaneseq
        %v6737 = vshrl.u32 %v6736, 7
        %v6738 = vsub.s32 %v6735, %v6737
        %v6739 = vrot.slane %v6725, %v6738
        %v6740 = vcombine.low %v6707, %v6723
        %v6741 = vcombine.high %v6707, %v6723
        %v6743 = vunpack.c.l.s4 1934713408
        %v6744 = vunpack.c.0.s8 %v6743
        %v6745 = vlaneseq
        %v6746 = vshrl.u32 %v6745, 7
        %v6747 = vsub.s32 %v6744, %v6746
        %v6748 = vrot.slane %v6740, %v6747
        %v6750 = vunpack.c.l.s4 1934713408
        %v6751 = vunpack.c.0.s8 %v6750
        %v6752 = vlaneseq
        %v6753 = vshrl.u32 %v6752, 7
        %v6754 = vsub.s32 %v6751, %v6753
        %v6755 = vrot.slane %v6741, %v6754
        %v6756 = vcombine.high %v6732, 0.0
        %v6757 = vcombine.high %v6739, 0.0
        %v6758 = vcombine.high %v6748, 0.0
        %v6759 = vcombine.high %v6755, 0.0
        %v6760 = vcombine.low %v737, %v5675
        %v6761 = vcombine.high %v737, %v5675
        %v6763 = vunpack.c.l.s4 1983009808
        %v6764 = vunpack.c.0.s8 %v6763
        %v6765 = vlaneseq
        %v6766 = vshrl.u32 %v6765, 7
        %v6767 = vsub.s32 %v6764, %v6766
        %v6768 = vrot.slane %v6760, %v6767
        %v6770 = vunpack.c.l.s4 1983009808
        %v6771 = vunpack.c.0.s8 %v6770
        %v6772 = vlaneseq
        %v6773 = vshrl.u32 %v6772, 7
        %v6774 = vsub.s32 %v6771, %v6773
        %v6775 = vrot.slane %v6761, %v6774
        %v6776 = vcombine.low %v5627, %v5723
        %v6777 = vcombine.high %v5627, %v5723
        %v6779 = vunpack.c.l.s4 1983009808
        %v6780 = vunpack.c.0.s8 %v6779
        %v6781 = vlaneseq
        %v6782 = vshrl.u32 %v6781, 7
        %v6783 = vsub.s32 %v6780, %v6782
        %v6784 = vrot.slane %v6776, %v6783
        %v6786 = vunpack.c.l.s4 1983009808
        %v6787 = vunpack.c.0.s8 %v6786
        %v6788 = vlaneseq
        %v6789 = vshrl.u32 %v6788, 7
        %v6790 = vsub.s32 %v6787, %v6789
        %v6791 = vrot.slane %v6777, %v6790
        %v6792 = vcombine.low %v6768, %v6784
        %v6793 = vcombine.high %v6768, %v6784
        %v6795 = vunpack.c.l.s4 1934713408
        %v6796 = vunpack.c.0.s8 %v6795
        %v6797 = vlaneseq
        %v6798 = vshrl.u32 %v6797, 7
        %v6799 = vsub.s32 %v6796, %v6798
        %v6800 = vrot.slane %v6792, %v6799
        %v6802 = vunpack.c.l.s4 1934713408
        %v6803 = vunpack.c.0.s8 %v6802
        %v6804 = vlaneseq
        %v6805 = vshrl.u32 %v6804, 7
        %v6806 = vsub.s32 %v6803, %v6805
        %v6807 = vrot.slane %v6793, %v6806
        %v6808 = vcombine.low %v6775, %v6791
        %v6809 = vcombine.high %v6775, %v6791
        %v6811 = vunpack.c.l.s4 1934713408
        %v6812 = vunpack.c.0.s8 %v6811
        %v6813 = vlaneseq
        %v6814 = vshrl.u32 %v6813, 7
        %v6815 = vsub.s32 %v6812, %v6814
        %v6816 = vrot.slane %v6808, %v6815
        %v6818 = vunpack.c.l.s4 1934713408
        %v6819 = vunpack.c.0.s8 %v6818
        %v6820 = vlaneseq
        %v6821 = vshrl.u32 %v6820, 7
        %v6822 = vsub.s32 %v6819, %v6821
        %v6823 = vrot.slane %v6809, %v6822
        %v6824 = vcombine.high %v6800, 0.0
        %v6825 = vcombine.high %v6807, 0.0
        %v6826 = vcombine.high %v6816, 0.0
        %v6827 = vcombine.high %v6823, 0.0
        %v6828 = vcombine.low %v5780, %v5787
        %v6830 = vunpack.c.l.s4 1983009808
        %v6831 = vunpack.c.0.s8 %v6830
        %v6832 = vlaneseq
        %v6833 = vshrl.u32 %v6832, 7
        %v6834 = vsub.s32 %v6831, %v6833
        %v6835 = vrot.slane %v6828, %v6834
        %v6836 = vcombine.low %v5804, %v5805
        %v6838 = vunpack.c.l.s4 1983009808
        %v6839 = vunpack.c.0.s8 %v6838
        %v6840 = vlaneseq
        %v6841 = vshrl.u32 %v6840, 7
        %v6842 = vsub.s32 %v6839, %v6841
        %v6843 = vrot.slane %v6836, %v6842
        %v6844 = vcombine.low %v5796, %v5803
        %v6846 = vunpack.c.l.s4 1983009808
        %v6847 = vunpack.c.0.s8 %v6846
        %v6848 = vlaneseq
        %v6849 = vshrl.u32 %v6848, 7
        %v6850 = vsub.s32 %v6847, %v6849
        %v6851 = vrot.slane %v6844, %v6850
        %v6852 = vcombine.low %v5806, %v5807
        %v6854 = vunpack.c.l.s4 1983009808
        %v6855 = vunpack.c.0.s8 %v6854
        %v6856 = vlaneseq
        %v6857 = vshrl.u32 %v6856, 7
        %v6858 = vsub.s32 %v6855, %v6857
        %v6859 = vrot.slane %v6852, %v6858
        %v6860 = vcombine.low %v6835, %v6843
        %v6861 = vcombine.high %v6835, %v6843
        %v6863 = vunpack.c.l.s4 1934713408
        %v6864 = vunpack.c.0.s8 %v6863
        %v6865 = vlaneseq
        %v6866 = vshrl.u32 %v6865, 7
        %v6867 = vsub.s32 %v6864, %v6866
        %v6868 = vrot.slane %v6860, %v6867
        %v6870 = vunpack.c.l.s4 1934713408
        %v6871 = vunpack.c.0.s8 %v6870
        %v6872 = vlaneseq
        %v6873 = vshrl.u32 %v6872, 7
        %v6874 = vsub.s32 %v6871, %v6873
        %v6875 = vrot.slane %v6861, %v6874
        %v6876 = vcombine.low %v6851, %v6859
        %v6877 = vcombine.high %v6851, %v6859
        %v6879 = vunpack.c.l.s4 1934713408
        %v6880 = vunpack.c.0.s8 %v6879
        %v6881 = vlaneseq
        %v6882 = vshrl.u32 %v6881, 7
        %v6883 = vsub.s32 %v6880, %v6882
        %v6884 = vrot.slane %v6876, %v6883
        %v6886 = vunpack.c.l.s4 1934713408
        %v6887 = vunpack.c.0.s8 %v6886
        %v6888 = vlaneseq
        %v6889 = vshrl.u32 %v6888, 7
        %v6890 = vsub.s32 %v6887, %v6889
        %v6891 = vrot.slane %v6877, %v6890
        %v6892 = vcombine.low %v6868, %v6884
        %v6893 = vcombine.high %v6868, %v6884
        %v6894 = vcombine.low %v6875, %v6891
        %v6895 = vcombine.high %v6875, %v6891
        %v6896 = vcombine.low %v5848, %v5855
        %v6898 = vunpack.c.l.s4 1983009808
        %v6899 = vunpack.c.0.s8 %v6898
        %v6900 = vlaneseq
        %v6901 = vshrl.u32 %v6900, 7
        %v6902 = vsub.s32 %v6899, %v6901
        %v6903 = vrot.slane %v6896, %v6902
        %v6904 = vcombine.low %v5872, %v5873
        %v6906 = vunpack.c.l.s4 1983009808
        %v6907 = vunpack.c.0.s8 %v6906
        %v6908 = vlaneseq
        %v6909 = vshrl.u32 %v6908, 7
        %v6910 = vsub.s32 %v6907, %v6909
        %v6911 = vrot.slane %v6904, %v6910
        %v6912 = vcombine.low %v5864, %v5871
        %v6914 = vunpack.c.l.s4 1983009808
        %v6915 = vunpack.c.0.s8 %v6914
        %v6916 = vlaneseq
        %v6917 = vshrl.u32 %v6916, 7
        %v6918 = vsub.s32 %v6915, %v6917
        %v6919 = vrot.slane %v6912, %v6918
        %v6920 = vcombine.low %v5874, %v5875
        %v6922 = vunpack.c.l.s4 1983009808
        %v6923 = vunpack.c.0.s8 %v6922
        %v6924 = vlaneseq
        %v6925 = vshrl.u32 %v6924, 7
        %v6926 = vsub.s32 %v6923, %v6925
        %v6927 = vrot.slane %v6920, %v6926
        %v6928 = vcombine.low %v6903, %v6911
        %v6929 = vcombine.high %v6903, %v6911
        %v6931 = vunpack.c.l.s4 1934713408
        %v6932 = vunpack.c.0.s8 %v6931
        %v6933 = vlaneseq
        %v6934 = vshrl.u32 %v6933, 7
        %v6935 = vsub.s32 %v6932, %v6934
        %v6936 = vrot.slane %v6928, %v6935
        %v6938 = vunpack.c.l.s4 1934713408
        %v6939 = vunpack.c.0.s8 %v6938
        %v6940 = vlaneseq
        %v6941 = vshrl.u32 %v6940, 7
        %v6942 = vsub.s32 %v6939, %v6941
        %v6943 = vrot.slane %v6929, %v6942
        %v6944 = vcombine.low %v6919, %v6927
        %v6945 = vcombine.high %v6919, %v6927
        %v6947 = vunpack.c.l.s4 1934713408
        %v6948 = vunpack.c.0.s8 %v6947
        %v6949 = vlaneseq
        %v6950 = vshrl.u32 %v6949, 7
        %v6951 = vsub.s32 %v6948, %v6950
        %v6952 = vrot.slane %v6944, %v6951
        %v6954 = vunpack.c.l.s4 1934713408
        %v6955 = vunpack.c.0.s8 %v6954
        %v6956 = vlaneseq
        %v6957 = vshrl.u32 %v6956, 7
        %v6958 = vsub.s32 %v6955, %v6957
        %v6959 = vrot.slane %v6945, %v6958
        %v6960 = vcombine.low %v6936, %v6952
        %v6961 = vcombine.high %v6936, %v6952
        %v6962 = vcombine.low %v6943, %v6959
        %v6963 = vcombine.high %v6943, %v6959
        %v6964 = vcombine.low %v5916, %v5923
        %v6966 = vunpack.c.l.s4 1983009808
        %v6967 = vunpack.c.0.s8 %v6966
        %v6968 = vlaneseq
        %v6969 = vshrl.u32 %v6968, 7
        %v6970 = vsub.s32 %v6967, %v6969
        %v6971 = vrot.slane %v6964, %v6970
        %v6972 = vcombine.low %v5940, %v5941
        %v6974 = vunpack.c.l.s4 1983009808
        %v6975 = vunpack.c.0.s8 %v6974
        %v6976 = vlaneseq
        %v6977 = vshrl.u32 %v6976, 7
        %v6978 = vsub.s32 %v6975, %v6977
        %v6979 = vrot.slane %v6972, %v6978
        %v6980 = vcombine.low %v5932, %v5939
        %v6982 = vunpack.c.l.s4 1983009808
        %v6983 = vunpack.c.0.s8 %v6982
        %v6984 = vlaneseq
        %v6985 = vshrl.u32 %v6984, 7
        %v6986 = vsub.s32 %v6983, %v6985
        %v6987 = vrot.slane %v6980, %v6986
        %v6988 = vcombine.low %v5942, %v5943
        %v6990 = vunpack.c.l.s4 1983009808
        %v6991 = vunpack.c.0.s8 %v6990
        %v6992 = vlaneseq
        %v6993 = vshrl.u32 %v6992, 7
        %v6994 = vsub.s32 %v6991, %v6993
        %v6995 = vrot.slane %v6988, %v6994
        %v6996 = vcombine.low %v6971, %v6979
        %v6997 = vcombine.high %v6971, %v6979
        %v6999 = vunpack.c.l.s4 1934713408
        %v7000 = vunpack.c.0.s8 %v6999
        %v7001 = vlaneseq
        %v7002 = vshrl.u32 %v7001, 7
        %v7003 = vsub.s32 %v7000, %v7002
        %v7004 = vrot.slane %v6996, %v7003
        %v7006 = vunpack.c.l.s4 1934713408
        %v7007 = vunpack.c.0.s8 %v7006
        %v7008 = vlaneseq
        %v7009 = vshrl.u32 %v7008, 7
        %v7010 = vsub.s32 %v7007, %v7009
        %v7011 = vrot.slane %v6997, %v7010
        %v7012 = vcombine.low %v6987, %v6995
        %v7013 = vcombine.high %v6987, %v6995
        %v7015 = vunpack.c.l.s4 1934713408
        %v7016 = vunpack.c.0.s8 %v7015
        %v7017 = vlaneseq
        %v7018 = vshrl.u32 %v7017, 7
        %v7019 = vsub.s32 %v7016, %v7018
        %v7020 = vrot.slane %v7012, %v7019
        %v7022 = vunpack.c.l.s4 1934713408
        %v7023 = vunpack.c.0.s8 %v7022
        %v7024 = vlaneseq
        %v7025 = vshrl.u32 %v7024, 7
        %v7026 = vsub.s32 %v7023, %v7025
        %v7027 = vrot.slane %v7013, %v7026
        %v7028 = vcombine.low %v7004, %v7020
        %v7029 = vcombine.high %v7004, %v7020
        %v7030 = vcombine.low %v7011, %v7027
        %v7031 = vcombine.high %v7011, %v7027
        %v7032 = vcombine.low %v5984, %v5991
        %v7034 = vunpack.c.l.s4 1983009808
        %v7035 = vunpack.c.0.s8 %v7034
        %v7036 = vlaneseq
        %v7037 = vshrl.u32 %v7036, 7
        %v7038 = vsub.s32 %v7035, %v7037
        %v7039 = vrot.slane %v7032, %v7038
        %v7040 = vcombine.low %v6008, %v6009
        %v7042 = vunpack.c.l.s4 1983009808
        %v7043 = vunpack.c.0.s8 %v7042
        %v7044 = vlaneseq
        %v7045 = vshrl.u32 %v7044, 7
        %v7046 = vsub.s32 %v7043, %v7045
        %v7047 = vrot.slane %v7040, %v7046
        %v7048 = vcombine.low %v6000, %v6007
        %v7050 = vunpack.c.l.s4 1983009808
        %v7051 = vunpack.c.0.s8 %v7050
        %v7052 = vlaneseq
        %v7053 = vshrl.u32 %v7052, 7
        %v7054 = vsub.s32 %v7051, %v7053
        %v7055 = vrot.slane %v7048, %v7054
        %v7056 = vcombine.low %v6010, %v6011
        %v7058 = vunpack.c.l.s4 1983009808
        %v7059 = vunpack.c.0.s8 %v7058
        %v7060 = vlaneseq
        %v7061 = vshrl.u32 %v7060, 7
        %v7062 = vsub.s32 %v7059, %v7061
        %v7063 = vrot.slane %v7056, %v7062
        %v7064 = vcombine.low %v7039, %v7047
        %v7065 = vcombine.high %v7039, %v7047
        %v7067 = vunpack.c.l.s4 1934713408
        %v7068 = vunpack.c.0.s8 %v7067
        %v7069 = vlaneseq
        %v7070 = vshrl.u32 %v7069, 7
        %v7071 = vsub.s32 %v7068, %v7070
        %v7072 = vrot.slane %v7064, %v7071
        %v7074 = vunpack.c.l.s4 1934713408
        %v7075 = vunpack.c.0.s8 %v7074
        %v7076 = vlaneseq
        %v7077 = vshrl.u32 %v7076, 7
        %v7078 = vsub.s32 %v7075, %v7077
        %v7079 = vrot.slane %v7065, %v7078
        %v7080 = vcombine.low %v7055, %v7063
        %v7081 = vcombine.high %v7055, %v7063
        %v7083 = vunpack.c.l.s4 1934713408
        %v7084 = vunpack.c.0.s8 %v7083
        %v7085 = vlaneseq
        %v7086 = vshrl.u32 %v7085, 7
        %v7087 = vsub.s32 %v7084, %v7086
        %v7088 = vrot.slane %v7080, %v7087
        %v7090 = vunpack.c.l.s4 1934713408
        %v7091 = vunpack.c.0.s8 %v7090
        %v7092 = vlaneseq
        %v7093 = vshrl.u32 %v7092, 7
        %v7094 = vsub.s32 %v7091, %v7093
        %v7095 = vrot.slane %v7081, %v7094
        %v7096 = vcombine.low %v7072, %v7088
        %v7097 = vcombine.high %v7072, %v7088
        %v7098 = vcombine.low %v7079, %v7095
        %v7099 = vcombine.high %v7079, %v7095
        %v7100 = vcombine.low %v6052, %v6059
        %v7102 = vunpack.c.l.s4 1983009808
        %v7103 = vunpack.c.0.s8 %v7102
        %v7104 = vlaneseq
        %v7105 = vshrl.u32 %v7104, 7
        %v7106 = vsub.s32 %v7103, %v7105
        %v7107 = vrot.slane %v7100, %v7106
        %v7108 = vcombine.low %v6076, %v6077
        %v7110 = vunpack.c.l.s4 1983009808
        %v7111 = vunpack.c.0.s8 %v7110
        %v7112 = vlaneseq
        %v7113 = vshrl.u32 %v7112, 7
        %v7114 = vsub.s32 %v7111, %v7113
        %v7115 = vrot.slane %v7108, %v7114
        %v7116 = vcombine.low %v6068, %v6075
        %v7118 = vunpack.c.l.s4 1983009808
        %v7119 = vunpack.c.0.s8 %v7118
        %v7120 = vlaneseq
        %v7121 = vshrl.u32 %v7120, 7
        %v7122 = vsub.s32 %v7119, %v7121
        %v7123 = vrot.slane %v7116, %v7122
        %v7124 = vcombine.low %v6078, %v6079
        %v7126 = vunpack.c.l.s4 1983009808
        %v7127 = vunpack.c.0.s8 %v7126
        %v7128 = vlaneseq
        %v7129 = vshrl.u32 %v7128, 7
        %v7130 = vsub.s32 %v7127, %v7129
        %v7131 = vrot.slane %v7124, %v7130
        %v7132 = vcombine.low %v7107, %v7115
        %v7133 = vcombine.high %v7107, %v7115
        %v7135 = vunpack.c.l.s4 1934713408
        %v7136 = vunpack.c.0.s8 %v7135
        %v7137 = vlaneseq
        %v7138 = vshrl.u32 %v7137, 7
        %v7139 = vsub.s32 %v7136, %v7138
        %v7140 = vrot.slane %v7132, %v7139
        %v7142 = vunpack.c.l.s4 1934713408
        %v7143 = vunpack.c.0.s8 %v7142
        %v7144 = vlaneseq
        %v7145 = vshrl.u32 %v7144, 7
        %v7146 = vsub.s32 %v7143, %v7145
        %v7147 = vrot.slane %v7133, %v7146
        %v7148 = vcombine.low %v7123, %v7131
        %v7149 = vcombine.high %v7123, %v7131
        %v7151 = vunpack.c.l.s4 1934713408
        %v7152 = vunpack.c.0.s8 %v7151
        %v7153 = vlaneseq
        %v7154 = vshrl.u32 %v7153, 7
        %v7155 = vsub.s32 %v7152, %v7154
        %v7156 = vrot.slane %v7148, %v7155
        %v7158 = vunpack.c.l.s4 1934713408
        %v7159 = vunpack.c.0.s8 %v7158
        %v7160 = vlaneseq
        %v7161 = vshrl.u32 %v7160, 7
        %v7162 = vsub.s32 %v7159, %v7161
        %v7163 = vrot.slane %v7149, %v7162
        %v7164 = vcombine.low %v7140, %v7156
        %v7165 = vcombine.high %v7140, %v7156
        %v7166 = vcombine.low %v7147, %v7163
        %v7167 = vcombine.high %v7147, %v7163
        %v7168 = vcombine.low %v6120, %v6127
        %v7170 = vunpack.c.l.s4 1983009808
        %v7171 = vunpack.c.0.s8 %v7170
        %v7172 = vlaneseq
        %v7173 = vshrl.u32 %v7172, 7
        %v7174 = vsub.s32 %v7171, %v7173
        %v7175 = vrot.slane %v7168, %v7174
        %v7176 = vcombine.low %v6144, %v6145
        %v7178 = vunpack.c.l.s4 1983009808
        %v7179 = vunpack.c.0.s8 %v7178
        %v7180 = vlaneseq
        %v7181 = vshrl.u32 %v7180, 7
        %v7182 = vsub.s32 %v7179, %v7181
        %v7183 = vrot.slane %v7176, %v7182
        %v7184 = vcombine.low %v6136, %v6143
        %v7186 = vunpack.c.l.s4 1983009808
        %v7187 = vunpack.c.0.s8 %v7186
        %v7188 = vlaneseq
        %v7189 = vshrl.u32 %v7188, 7
        %v7190 = vsub.s32 %v7187, %v7189
        %v7191 = vrot.slane %v7184, %v7190
        %v7192 = vcombine.low %v6146, %v6147
        %v7194 = vunpack.c.l.s4 1983009808
        %v7195 = vunpack.c.0.s8 %v7194
        %v7196 = vlaneseq
        %v7197 = vshrl.u32 %v7196, 7
        %v7198 = vsub.s32 %v7195, %v7197
        %v7199 = vrot.slane %v7192, %v7198
        %v7200 = vcombine.low %v7175, %v7183
        %v7201 = vcombine.high %v7175, %v7183
        %v7203 = vunpack.c.l.s4 1934713408
        %v7204 = vunpack.c.0.s8 %v7203
        %v7205 = vlaneseq
        %v7206 = vshrl.u32 %v7205, 7
        %v7207 = vsub.s32 %v7204, %v7206
        %v7208 = vrot.slane %v7200, %v7207
        %v7210 = vunpack.c.l.s4 1934713408
        %v7211 = vunpack.c.0.s8 %v7210
        %v7212 = vlaneseq
        %v7213 = vshrl.u32 %v7212, 7
        %v7214 = vsub.s32 %v7211, %v7213
        %v7215 = vrot.slane %v7201, %v7214
        %v7216 = vcombine.low %v7191, %v7199
        %v7217 = vcombine.high %v7191, %v7199
        %v7219 = vunpack.c.l.s4 1934713408
        %v7220 = vunpack.c.0.s8 %v7219
        %v7221 = vlaneseq
        %v7222 = vshrl.u32 %v7221, 7
        %v7223 = vsub.s32 %v7220, %v7222
        %v7224 = vrot.slane %v7216, %v7223
        %v7226 = vunpack.c.l.s4 1934713408
        %v7227 = vunpack.c.0.s8 %v7226
        %v7228 = vlaneseq
        %v7229 = vshrl.u32 %v7228, 7
        %v7230 = vsub.s32 %v7227, %v7229
        %v7231 = vrot.slane %v7217, %v7230
        %v7232 = vcombine.low %v7208, %v7224
        %v7233 = vcombine.high %v7208, %v7224
        %v7234 = vcombine.low %v7215, %v7231
        %v7235 = vcombine.high %v7215, %v7231
        %v7236 = vcombine.low %v6188, %v6195
        %v7238 = vunpack.c.l.s4 1983009808
        %v7239 = vunpack.c.0.s8 %v7238
        %v7240 = vlaneseq
        %v7241 = vshrl.u32 %v7240, 7
        %v7242 = vsub.s32 %v7239, %v7241
        %v7243 = vrot.slane %v7236, %v7242
        %v7244 = vcombine.low %v6212, %v6213
        %v7246 = vunpack.c.l.s4 1983009808
        %v7247 = vunpack.c.0.s8 %v7246
        %v7248 = vlaneseq
        %v7249 = vshrl.u32 %v7248, 7
        %v7250 = vsub.s32 %v7247, %v7249
        %v7251 = vrot.slane %v7244, %v7250
        %v7252 = vcombine.low %v6204, %v6211
        %v7254 = vunpack.c.l.s4 1983009808
        %v7255 = vunpack.c.0.s8 %v7254
        %v7256 = vlaneseq
        %v7257 = vshrl.u32 %v7256, 7
        %v7258 = vsub.s32 %v7255, %v7257
        %v7259 = vrot.slane %v7252, %v7258
        %v7260 = vcombine.low %v6214, %v6215
        %v7262 = vunpack.c.l.s4 1983009808
        %v7263 = vunpack.c.0.s8 %v7262
        %v7264 = vlaneseq
        %v7265 = vshrl.u32 %v7264, 7
        %v7266 = vsub.s32 %v7263, %v7265
        %v7267 = vrot.slane %v7260, %v7266
        %v7268 = vcombine.low %v7243, %v7251
        %v7269 = vcombine.high %v7243, %v7251
        %v7271 = vunpack.c.l.s4 1934713408
        %v7272 = vunpack.c.0.s8 %v7271
        %v7273 = vlaneseq
        %v7274 = vshrl.u32 %v7273, 7
        %v7275 = vsub.s32 %v7272, %v7274
        %v7276 = vrot.slane %v7268, %v7275
        %v7278 = vunpack.c.l.s4 1934713408
        %v7279 = vunpack.c.0.s8 %v7278
        %v7280 = vlaneseq
        %v7281 = vshrl.u32 %v7280, 7
        %v7282 = vsub.s32 %v7279, %v7281
        %v7283 = vrot.slane %v7269, %v7282
        %v7284 = vcombine.low %v7259, %v7267
        %v7285 = vcombine.high %v7259, %v7267
        %v7287 = vunpack.c.l.s4 1934713408
        %v7288 = vunpack.c.0.s8 %v7287
        %v7289 = vlaneseq
        %v7290 = vshrl.u32 %v7289, 7
        %v7291 = vsub.s32 %v7288, %v7290
        %v7292 = vrot.slane %v7284, %v7291
        %v7294 = vunpack.c.l.s4 1934713408
        %v7295 = vunpack.c.0.s8 %v7294
        %v7296 = vlaneseq
        %v7297 = vshrl.u32 %v7296, 7
        %v7298 = vsub.s32 %v7295, %v7297
        %v7299 = vrot.slane %v7285, %v7298
        %v7300 = vcombine.low %v7276, %v7292
        %v7301 = vcombine.high %v7276, %v7292
        %v7302 = vcombine.low %v7283, %v7299
        %v7303 = vcombine.high %v7283, %v7299
        %v7304 = vcombine.low %v6256, %v6263
        %v7306 = vunpack.c.l.s4 1983009808
        %v7307 = vunpack.c.0.s8 %v7306
        %v7308 = vlaneseq
        %v7309 = vshrl.u32 %v7308, 7
        %v7310 = vsub.s32 %v7307, %v7309
        %v7311 = vrot.slane %v7304, %v7310
        %v7312 = vcombine.low %v6280, %v6281
        %v7314 = vunpack.c.l.s4 1983009808
        %v7315 = vunpack.c.0.s8 %v7314
        %v7316 = vlaneseq
        %v7317 = vshrl.u32 %v7316, 7
        %v7318 = vsub.s32 %v7315, %v7317
        %v7319 = vrot.slane %v7312, %v7318
        %v7320 = vcombine.low %v6272, %v6279
        %v7322 = vunpack.c.l.s4 1983009808
        %v7323 = vunpack.c.0.s8 %v7322
        %v7324 = vlaneseq
        %v7325 = vshrl.u32 %v7324, 7
        %v7326 = vsub.s32 %v7323, %v7325
        %v7327 = vrot.slane %v7320, %v7326
        %v7328 = vcombine.low %v6282, %v6283
        %v7330 = vunpack.c.l.s4 1983009808
        %v7331 = vunpack.c.0.s8 %v7330
        %v7332 = vlaneseq
        %v7333 = vshrl.u32 %v7332, 7
        %v7334 = vsub.s32 %v7331, %v7333
        %v7335 = vrot.slane %v7328, %v7334
        %v7336 = vcombine.low %v7311, %v7319
        %v7337 = vcombine.high %v7311, %v7319
        %v7339 = vunpack.c.l.s4 1934713408
        %v7340 = vunpack.c.0.s8 %v7339
        %v7341 = vlaneseq
        %v7342 = vshrl.u32 %v7341, 7
        %v7343 = vsub.s32 %v7340, %v7342
        %v7344 = vrot.slane %v7336, %v7343
        %v7346 = vunpack.c.l.s4 1934713408
        %v7347 = vunpack.c.0.s8 %v7346
        %v7348 = vlaneseq
        %v7349 = vshrl.u32 %v7348, 7
        %v7350 = vsub.s32 %v7347, %v7349
        %v7351 = vrot.slane %v7337, %v7350
        %v7352 = vcombine.low %v7327, %v7335
        %v7353 = vcombine.high %v7327, %v7335
        %v7355 = vunpack.c.l.s4 1934713408
        %v7356 = vunpack.c.0.s8 %v7355
        %v7357 = vlaneseq
        %v7358 = vshrl.u32 %v7357, 7
        %v7359 = vsub.s32 %v7356, %v7358
        %v7360 = vrot.slane %v7352, %v7359
        %v7362 = vunpack.c.l.s4 1934713408
        %v7363 = vunpack.c.0.s8 %v7362
        %v7364 = vlaneseq
        %v7365 = vshrl.u32 %v7364, 7
        %v7366 = vsub.s32 %v7363, %v7365
        %v7367 = vrot.slane %v7353, %v7366
        %v7368 = vcombine.low %v7344, %v7360
        %v7369 = vcombine.high %v7344, %v7360
        %v7370 = vcombine.low %v7351, %v7367
        %v7371 = vcombine.high %v7351, %v7367
        %v7372 = vcombine.low %v6324, %v6331
        %v7374 = vunpack.c.l.s4 1983009808
        %v7375 = vunpack.c.0.s8 %v7374
        %v7376 = vlaneseq
        %v7377 = vshrl.u32 %v7376, 7
        %v7378 = vsub.s32 %v7375, %v7377
        %v7379 = vrot.slane %v7372, %v7378
        %v7380 = vcombine.low %v6348, %v6349
        %v7382 = vunpack.c.l.s4 1983009808
        %v7383 = vunpack.c.0.s8 %v7382
        %v7384 = vlaneseq
        %v7385 = vshrl.u32 %v7384, 7
        %v7386 = vsub.s32 %v7383, %v7385
        %v7387 = vrot.slane %v7380, %v7386
        %v7388 = vcombine.low %v6340, %v6347
        %v7390 = vunpack.c.l.s4 1983009808
        %v7391 = vunpack.c.0.s8 %v7390
        %v7392 = vlaneseq
        %v7393 = vshrl.u32 %v7392, 7
        %v7394 = vsub.s32 %v7391, %v7393
        %v7395 = vrot.slane %v7388, %v7394
        %v7396 = vcombine.low %v6350, %v6351
        %v7398 = vunpack.c.l.s4 1983009808
        %v7399 = vunpack.c.0.s8 %v7398
        %v7400 = vlaneseq
        %v7401 = vshrl.u32 %v7400, 7
        %v7402 = vsub.s32 %v7399, %v7401
        %v7403 = vrot.slane %v7396, %v7402
        %v7404 = vcombine.low %v7379, %v7387
        %v7405 = vcombine.high %v7379, %v7387
        %v7407 = vunpack.c.l.s4 1934713408
        %v7408 = vunpack.c.0.s8 %v7407
        %v7409 = vlaneseq
        %v7410 = vshrl.u32 %v7409, 7
        %v7411 = vsub.s32 %v7408, %v7410
        %v7412 = vrot.slane %v7404, %v7411
        %v7414 = vunpack.c.l.s4 1934713408
        %v7415 = vunpack.c.0.s8 %v7414
        %v7416 = vlaneseq
        %v7417 = vshrl.u32 %v7416, 7
        %v7418 = vsub.s32 %v7415, %v7417
        %v7419 = vrot.slane %v7405, %v7418
        %v7420 = vcombine.low %v7395, %v7403
        %v7421 = vcombine.high %v7395, %v7403
        %v7423 = vunpack.c.l.s4 1934713408
        %v7424 = vunpack.c.0.s8 %v7423
        %v7425 = vlaneseq
        %v7426 = vshrl.u32 %v7425, 7
        %v7427 = vsub.s32 %v7424, %v7426
        %v7428 = vrot.slane %v7420, %v7427
        %v7430 = vunpack.c.l.s4 1934713408
        %v7431 = vunpack.c.0.s8 %v7430
        %v7432 = vlaneseq
        %v7433 = vshrl.u32 %v7432, 7
        %v7434 = vsub.s32 %v7431, %v7433
        %v7435 = vrot.slane %v7421, %v7434
        %v7436 = vcombine.low %v7412, %v7428
        %v7437 = vcombine.high %v7412, %v7428
        %v7438 = vcombine.low %v7419, %v7435
        %v7439 = vcombine.high %v7419, %v7435
        %v7440 = vcombine.low %v6392, %v6399
        %v7442 = vunpack.c.l.s4 1983009808
        %v7443 = vunpack.c.0.s8 %v7442
        %v7444 = vlaneseq
        %v7445 = vshrl.u32 %v7444, 7
        %v7446 = vsub.s32 %v7443, %v7445
        %v7447 = vrot.slane %v7440, %v7446
        %v7448 = vcombine.low %v6416, %v6417
        %v7450 = vunpack.c.l.s4 1983009808
        %v7451 = vunpack.c.0.s8 %v7450
        %v7452 = vlaneseq
        %v7453 = vshrl.u32 %v7452, 7
        %v7454 = vsub.s32 %v7451, %v7453
        %v7455 = vrot.slane %v7448, %v7454
        %v7456 = vcombine.low %v6408, %v6415
        %v7458 = vunpack.c.l.s4 1983009808
        %v7459 = vunpack.c.0.s8 %v7458
        %v7460 = vlaneseq
        %v7461 = vshrl.u32 %v7460, 7
        %v7462 = vsub.s32 %v7459, %v7461
        %v7463 = vrot.slane %v7456, %v7462
        %v7464 = vcombine.low %v6418, %v6419
        %v7466 = vunpack.c.l.s4 1983009808
        %v7467 = vunpack.c.0.s8 %v7466
        %v7468 = vlaneseq
        %v7469 = vshrl.u32 %v7468, 7
        %v7470 = vsub.s32 %v7467, %v7469
        %v7471 = vrot.slane %v7464, %v7470
        %v7472 = vcombine.low %v7447, %v7455
        %v7473 = vcombine.high %v7447, %v7455
        %v7475 = vunpack.c.l.s4 1934713408
        %v7476 = vunpack.c.0.s8 %v7475
        %v7477 = vlaneseq
        %v7478 = vshrl.u32 %v7477, 7
        %v7479 = vsub.s32 %v7476, %v7478
        %v7480 = vrot.slane %v7472, %v7479
        %v7482 = vunpack.c.l.s4 1934713408
        %v7483 = vunpack.c.0.s8 %v7482
        %v7484 = vlaneseq
        %v7485 = vshrl.u32 %v7484, 7
        %v7486 = vsub.s32 %v7483, %v7485
        %v7487 = vrot.slane %v7473, %v7486
        %v7488 = vcombine.low %v7463, %v7471
        %v7489 = vcombine.high %v7463, %v7471
        %v7491 = vunpack.c.l.s4 1934713408
        %v7492 = vunpack.c.0.s8 %v7491
        %v7493 = vlaneseq
        %v7494 = vshrl.u32 %v7493, 7
        %v7495 = vsub.s32 %v7492, %v7494
        %v7496 = vrot.slane %v7488, %v7495
        %v7498 = vunpack.c.l.s4 1934713408
        %v7499 = vunpack.c.0.s8 %v7498
        %v7500 = vlaneseq
        %v7501 = vshrl.u32 %v7500, 7
        %v7502 = vsub.s32 %v7499, %v7501
        %v7503 = vrot.slane %v7489, %v7502
        %v7504 = vcombine.low %v7480, %v7496
        %v7505 = vcombine.high %v7480, %v7496
        %v7506 = vcombine.low %v7487, %v7503
        %v7507 = vcombine.high %v7487, %v7503
        %v7508 = vcombine.low %v6460, %v6467
        %v7510 = vunpack.c.l.s4 1983009808
        %v7511 = vunpack.c.0.s8 %v7510
        %v7512 = vlaneseq
        %v7513 = vshrl.u32 %v7512, 7
        %v7514 = vsub.s32 %v7511, %v7513
        %v7515 = vrot.slane %v7508, %v7514
        %v7516 = vcombine.low %v6484, %v6485
        %v7518 = vunpack.c.l.s4 1983009808
        %v7519 = vunpack.c.0.s8 %v7518
        %v7520 = vlaneseq
        %v7521 = vshrl.u32 %v7520, 7
        %v7522 = vsub.s32 %v7519, %v7521
        %v7523 = vrot.slane %v7516, %v7522
        %v7524 = vcombine.low %v6476, %v6483
        %v7526 = vunpack.c.l.s4 1983009808
        %v7527 = vunpack.c.0.s8 %v7526
        %v7528 = vlaneseq
        %v7529 = vshrl.u32 %v7528, 7
        %v7530 = vsub.s32 %v7527, %v7529
        %v7531 = vrot.slane %v7524, %v7530
        %v7532 = vcombine.low %v6486, %v6487
        %v7534 = vunpack.c.l.s4 1983009808
        %v7535 = vunpack.c.0.s8 %v7534
        %v7536 = vlaneseq
        %v7537 = vshrl.u32 %v7536, 7
        %v7538 = vsub.s32 %v7535, %v7537
        %v7539 = vrot.slane %v7532, %v7538
        %v7540 = vcombine.low %v7515, %v7523
        %v7541 = vcombine.high %v7515, %v7523
        %v7543 = vunpack.c.l.s4 1934713408
        %v7544 = vunpack.c.0.s8 %v7543
        %v7545 = vlaneseq
        %v7546 = vshrl.u32 %v7545, 7
        %v7547 = vsub.s32 %v7544, %v7546
        %v7548 = vrot.slane %v7540, %v7547
        %v7550 = vunpack.c.l.s4 1934713408
        %v7551 = vunpack.c.0.s8 %v7550
        %v7552 = vlaneseq
        %v7553 = vshrl.u32 %v7552, 7
        %v7554 = vsub.s32 %v7551, %v7553
        %v7555 = vrot.slane %v7541, %v7554
        %v7556 = vcombine.low %v7531, %v7539
        %v7557 = vcombine.high %v7531, %v7539
        %v7559 = vunpack.c.l.s4 1934713408
        %v7560 = vunpack.c.0.s8 %v7559
        %v7561 = vlaneseq
        %v7562 = vshrl.u32 %v7561, 7
        %v7563 = vsub.s32 %v7560, %v7562
        %v7564 = vrot.slane %v7556, %v7563
        %v7566 = vunpack.c.l.s4 1934713408
        %v7567 = vunpack.c.0.s8 %v7566
        %v7568 = vlaneseq
        %v7569 = vshrl.u32 %v7568, 7
        %v7570 = vsub.s32 %v7567, %v7569
        %v7571 = vrot.slane %v7557, %v7570
        %v7572 = vcombine.low %v7548, %v7564
        %v7573 = vcombine.high %v7548, %v7564
        %v7574 = vcombine.low %v7555, %v7571
        %v7575 = vcombine.high %v7555, %v7571
        %v7576 = vcombine.low %v6528, %v6535
        %v7578 = vunpack.c.l.s4 1983009808
        %v7579 = vunpack.c.0.s8 %v7578
        %v7580 = vlaneseq
        %v7581 = vshrl.u32 %v7580, 7
        %v7582 = vsub.s32 %v7579, %v7581
        %v7583 = vrot.slane %v7576, %v7582
        %v7584 = vcombine.low %v6552, %v6553
        %v7586 = vunpack.c.l.s4 1983009808
        %v7587 = vunpack.c.0.s8 %v7586
        %v7588 = vlaneseq
        %v7589 = vshrl.u32 %v7588, 7
        %v7590 = vsub.s32 %v7587, %v7589
        %v7591 = vrot.slane %v7584, %v7590
        %v7592 = vcombine.low %v6544, %v6551
        %v7594 = vunpack.c.l.s4 1983009808
        %v7595 = vunpack.c.0.s8 %v7594
        %v7596 = vlaneseq
        %v7597 = vshrl.u32 %v7596, 7
        %v7598 = vsub.s32 %v7595, %v7597
        %v7599 = vrot.slane %v7592, %v7598
        %v7600 = vcombine.low %v6554, %v6555
        %v7602 = vunpack.c.l.s4 1983009808
        %v7603 = vunpack.c.0.s8 %v7602
        %v7604 = vlaneseq
        %v7605 = vshrl.u32 %v7604, 7
        %v7606 = vsub.s32 %v7603, %v7605
        %v7607 = vrot.slane %v7600, %v7606
        %v7608 = vcombine.low %v7583, %v7591
        %v7609 = vcombine.high %v7583, %v7591
        %v7611 = vunpack.c.l.s4 1934713408
        %v7612 = vunpack.c.0.s8 %v7611
        %v7613 = vlaneseq
        %v7614 = vshrl.u32 %v7613, 7
        %v7615 = vsub.s32 %v7612, %v7614
        %v7616 = vrot.slane %v7608, %v7615
        %v7618 = vunpack.c.l.s4 1934713408
        %v7619 = vunpack.c.0.s8 %v7618
        %v7620 = vlaneseq
        %v7621 = vshrl.u32 %v7620, 7
        %v7622 = vsub.s32 %v7619, %v7621
        %v7623 = vrot.slane %v7609, %v7622
        %v7624 = vcombine.low %v7599, %v7607
        %v7625 = vcombine.high %v7599, %v7607
        %v7627 = vunpack.c.l.s4 1934713408
        %v7628 = vunpack.c.0.s8 %v7627
        %v7629 = vlaneseq
        %v7630 = vshrl.u32 %v7629, 7
        %v7631 = vsub.s32 %v7628, %v7630
        %v7632 = vrot.slane %v7624, %v7631
        %v7634 = vunpack.c.l.s4 1934713408
        %v7635 = vunpack.c.0.s8 %v7634
        %v7636 = vlaneseq
        %v7637 = vshrl.u32 %v7636, 7
        %v7638 = vsub.s32 %v7635, %v7637
        %v7639 = vrot.slane %v7625, %v7638
        %v7640 = vcombine.low %v7616, %v7632
        %v7641 = vcombine.high %v7616, %v7632
        %v7642 = vcombine.low %v7623, %v7639
        %v7643 = vcombine.high %v7623, %v7639
        %v7644 = vcombine.low %v6596, %v6603
        %v7646 = vunpack.c.l.s4 1983009808
        %v7647 = vunpack.c.0.s8 %v7646
        %v7648 = vlaneseq
        %v7649 = vshrl.u32 %v7648, 7
        %v7650 = vsub.s32 %v7647, %v7649
        %v7651 = vrot.slane %v7644, %v7650
        %v7652 = vcombine.low %v6620, %v6621
        %v7654 = vunpack.c.l.s4 1983009808
        %v7655 = vunpack.c.0.s8 %v7654
        %v7656 = vlaneseq
        %v7657 = vshrl.u32 %v7656, 7
        %v7658 = vsub.s32 %v7655, %v7657
        %v7659 = vrot.slane %v7652, %v7658
        %v7660 = vcombine.low %v6612, %v6619
        %v7662 = vunpack.c.l.s4 1983009808
        %v7663 = vunpack.c.0.s8 %v7662
        %v7664 = vlaneseq
        %v7665 = vshrl.u32 %v7664, 7
        %v7666 = vsub.s32 %v7663, %v7665
        %v7667 = vrot.slane %v7660, %v7666
        %v7668 = vcombine.low %v6622, %v6623
        %v7670 = vunpack.c.l.s4 1983009808
        %v7671 = vunpack.c.0.s8 %v7670
        %v7672 = vlaneseq
        %v7673 = vshrl.u32 %v7672, 7
        %v7674 = vsub.s32 %v7671, %v7673
        %v7675 = vrot.slane %v7668, %v7674
        %v7676 = vcombine.low %v7651, %v7659
        %v7677 = vcombine.high %v7651, %v7659
        %v7679 = vunpack.c.l.s4 1934713408
        %v7680 = vunpack.c.0.s8 %v7679
        %v7681 = vlaneseq
        %v7682 = vshrl.u32 %v7681, 7
        %v7683 = vsub.s32 %v7680, %v7682
        %v7684 = vrot.slane %v7676, %v7683
        %v7686 = vunpack.c.l.s4 1934713408
        %v7687 = vunpack.c.0.s8 %v7686
        %v7688 = vlaneseq
        %v7689 = vshrl.u32 %v7688, 7
        %v7690 = vsub.s32 %v7687, %v7689
        %v7691 = vrot.slane %v7677, %v7690
        %v7692 = vcombine.low %v7667, %v7675
        %v7693 = vcombine.high %v7667, %v7675
        %v7695 = vunpack.c.l.s4 1934713408
        %v7696 = vunpack.c.0.s8 %v7695
        %v7697 = vlaneseq
        %v7698 = vshrl.u32 %v7697, 7
        %v7699 = vsub.s32 %v7696, %v7698
        %v7700 = vrot.slane %v7692, %v7699
        %v7702 = vunpack.c.l.s4 1934713408
        %v7703 = vunpack.c.0.s8 %v7702
        %v7704 = vlaneseq
        %v7705 = vshrl.u32 %v7704, 7
        %v7706 = vsub.s32 %v7703, %v7705
        %v7707 = vrot.slane %v7693, %v7706
        %v7708 = vcombine.low %v7684, %v7700
        %v7709 = vcombine.high %v7684, %v7700
        %v7710 = vcombine.low %v7691, %v7707
        %v7711 = vcombine.high %v7691, %v7707
        %v7712 = vcombine.low %v6664, %v6671
        %v7714 = vunpack.c.l.s4 1983009808
        %v7715 = vunpack.c.0.s8 %v7714
        %v7716 = vlaneseq
        %v7717 = vshrl.u32 %v7716, 7
        %v7718 = vsub.s32 %v7715, %v7717
        %v7719 = vrot.slane %v7712, %v7718
        %v7720 = vcombine.low %v6688, %v6689
        %v7722 = vunpack.c.l.s4 1983009808
        %v7723 = vunpack.c.0.s8 %v7722
        %v7724 = vlaneseq
        %v7725 = vshrl.u32 %v7724, 7
        %v7726 = vsub.s32 %v7723, %v7725
        %v7727 = vrot.slane %v7720, %v7726
        %v7728 = vcombine.low %v6680, %v6687
        %v7730 = vunpack.c.l.s4 1983009808
        %v7731 = vunpack.c.0.s8 %v7730
        %v7732 = vlaneseq
        %v7733 = vshrl.u32 %v7732, 7
        %v7734 = vsub.s32 %v7731, %v7733
        %v7735 = vrot.slane %v7728, %v7734
        %v7736 = vcombine.low %v6690, %v6691
        %v7738 = vunpack.c.l.s4 1983009808
        %v7739 = vunpack.c.0.s8 %v7738
        %v7740 = vlaneseq
        %v7741 = vshrl.u32 %v7740, 7
        %v7742 = vsub.s32 %v7739, %v7741
        %v7743 = vrot.slane %v7736, %v7742
        %v7744 = vcombine.low %v7719, %v7727
        %v7745 = vcombine.high %v7719, %v7727
        %v7747 = vunpack.c.l.s4 1934713408
        %v7748 = vunpack.c.0.s8 %v7747
        %v7749 = vlaneseq
        %v7750 = vshrl.u32 %v7749, 7
        %v7751 = vsub.s32 %v7748, %v7750
        %v7752 = vrot.slane %v7744, %v7751
        %v7754 = vunpack.c.l.s4 1934713408
        %v7755 = vunpack.c.0.s8 %v7754
        %v7756 = vlaneseq
        %v7757 = vshrl.u32 %v7756, 7
        %v7758 = vsub.s32 %v7755, %v7757
        %v7759 = vrot.slane %v7745, %v7758
        %v7760 = vcombine.low %v7735, %v7743
        %v7761 = vcombine.high %v7735, %v7743
        %v7763 = vunpack.c.l.s4 1934713408
        %v7764 = vunpack.c.0.s8 %v7763
        %v7765 = vlaneseq
        %v7766 = vshrl.u32 %v7765, 7
        %v7767 = vsub.s32 %v7764, %v7766
        %v7768 = vrot.slane %v7760, %v7767
        %v7770 = vunpack.c.l.s4 1934713408
        %v7771 = vunpack.c.0.s8 %v7770
        %v7772 = vlaneseq
        %v7773 = vshrl.u32 %v7772, 7
        %v7774 = vsub.s32 %v7771, %v7773
        %v7775 = vrot.slane %v7761, %v7774
        %v7776 = vcombine.low %v7752, %v7768
        %v7777 = vcombine.high %v7752, %v7768
        %v7778 = vcombine.low %v7759, %v7775
        %v7779 = vcombine.high %v7759, %v7775
        %v7780 = vcombine.low %v6732, %v6739
        %v7782 = vunpack.c.l.s4 1983009808
        %v7783 = vunpack.c.0.s8 %v7782
        %v7784 = vlaneseq
        %v7785 = vshrl.u32 %v7784, 7
        %v7786 = vsub.s32 %v7783, %v7785
        %v7787 = vrot.slane %v7780, %v7786
        %v7788 = vcombine.low %v6756, %v6757
        %v7790 = vunpack.c.l.s4 1983009808
        %v7791 = vunpack.c.0.s8 %v7790
        %v7792 = vlaneseq
        %v7793 = vshrl.u32 %v7792, 7
        %v7794 = vsub.s32 %v7791, %v7793
        %v7795 = vrot.slane %v7788, %v7794
        %v7796 = vcombine.low %v6748, %v6755
        %v7798 = vunpack.c.l.s4 1983009808
        %v7799 = vunpack.c.0.s8 %v7798
        %v7800 = vlaneseq
        %v7801 = vshrl.u32 %v7800, 7
        %v7802 = vsub.s32 %v7799, %v7801
        %v7803 = vrot.slane %v7796, %v7802
        %v7804 = vcombine.low %v6758, %v6759
        %v7806 = vunpack.c.l.s4 1983009808
        %v7807 = vunpack.c.0.s8 %v7806
        %v7808 = vlaneseq
        %v7809 = vshrl.u32 %v7808, 7
        %v7810 = vsub.s32 %v7807, %v7809
        %v7811 = vrot.slane %v7804, %v7810
        %v7812 = vcombine.low %v7787, %v7795
        %v7813 = vcombine.high %v7787, %v7795
        %v7815 = vunpack.c.l.s4 1934713408
        %v7816 = vunpack.c.0.s8 %v7815
        %v7817 = vlaneseq
        %v7818 = vshrl.u32 %v7817, 7
        %v7819 = vsub.s32 %v7816, %v7818
        %v7820 = vrot.slane %v7812, %v7819
        %v7822 = vunpack.c.l.s4 1934713408
        %v7823 = vunpack.c.0.s8 %v7822
        %v7824 = vlaneseq
        %v7825 = vshrl.u32 %v7824, 7
        %v7826 = vsub.s32 %v7823, %v7825
        %v7827 = vrot.slane %v7813, %v7826
        %v7828 = vcombine.low %v7803, %v7811
        %v7829 = vcombine.high %v7803, %v7811
        %v7831 = vunpack.c.l.s4 1934713408
        %v7832 = vunpack.c.0.s8 %v7831
        %v7833 = vlaneseq
        %v7834 = vshrl.u32 %v7833, 7
        %v7835 = vsub.s32 %v7832, %v7834
        %v7836 = vrot.slane %v7828, %v7835
        %v7838 = vunpack.c.l.s4 1934713408
        %v7839 = vunpack.c.0.s8 %v7838
        %v7840 = vlaneseq
        %v7841 = vshrl.u32 %v7840, 7
        %v7842 = vsub.s32 %v7839, %v7841
        %v7843 = vrot.slane %v7829, %v7842
        %v7844 = vcombine.low %v7820, %v7836
        %v7845 = vcombine.high %v7820, %v7836
        %v7846 = vcombine.low %v7827, %v7843
        %v7847 = vcombine.high %v7827, %v7843
        %v7848 = vcombine.low %v6800, %v6807
        %v7850 = vunpack.c.l.s4 1983009808
        %v7851 = vunpack.c.0.s8 %v7850
        %v7852 = vlaneseq
        %v7853 = vshrl.u32 %v7852, 7
        %v7854 = vsub.s32 %v7851, %v7853
        %v7855 = vrot.slane %v7848, %v7854
        %v7856 = vcombine.low %v6824, %v6825
        %v7858 = vunpack.c.l.s4 1983009808
        %v7859 = vunpack.c.0.s8 %v7858
        %v7860 = vlaneseq
        %v7861 = vshrl.u32 %v7860, 7
        %v7862 = vsub.s32 %v7859, %v7861
        %v7863 = vrot.slane %v7856, %v7862
        %v7864 = vcombine.low %v6816, %v6823
        %v7866 = vunpack.c.l.s4 1983009808
        %v7867 = vunpack.c.0.s8 %v7866
        %v7868 = vlaneseq
        %v7869 = vshrl.u32 %v7868, 7
        %v7870 = vsub.s32 %v7867, %v7869
        %v7871 = vrot.slane %v7864, %v7870
        %v7872 = vcombine.low %v6826, %v6827
        %v7874 = vunpack.c.l.s4 1983009808
        %v7875 = vunpack.c.0.s8 %v7874
        %v7876 = vlaneseq
        %v7877 = vshrl.u32 %v7876, 7
        %v7878 = vsub.s32 %v7875, %v7877
        %v7879 = vrot.slane %v7872, %v7878
        %v7880 = vcombine.low %v7855, %v7863
        %v7881 = vcombine.high %v7855, %v7863
        %v7883 = vunpack.c.l.s4 1934713408
        %v7884 = vunpack.c.0.s8 %v7883
        %v7885 = vlaneseq
        %v7886 = vshrl.u32 %v7885, 7
        %v7887 = vsub.s32 %v7884, %v7886
        %v7888 = vrot.slane %v7880, %v7887
        %v7890 = vunpack.c.l.s4 1934713408
        %v7891 = vunpack.c.0.s8 %v7890
        %v7892 = vlaneseq
        %v7893 = vshrl.u32 %v7892, 7
        %v7894 = vsub.s32 %v7891, %v7893
        %v7895 = vrot.slane %v7881, %v7894
        %v7896 = vcombine.low %v7871, %v7879
        %v7897 = vcombine.high %v7871, %v7879
        %v7899 = vunpack.c.l.s4 1934713408
        %v7900 = vunpack.c.0.s8 %v7899
        %v7901 = vlaneseq
        %v7902 = vshrl.u32 %v7901, 7
        %v7903 = vsub.s32 %v7900, %v7902
        %v7904 = vrot.slane %v7896, %v7903
        %v7906 = vunpack.c.l.s4 1934713408
        %v7907 = vunpack.c.0.s8 %v7906
        %v7908 = vlaneseq
        %v7909 = vshrl.u32 %v7908, 7
        %v7910 = vsub.s32 %v7907, %v7909
        %v7911 = vrot.slane %v7897, %v7910
        %v7912 = vcombine.low %v7888, %v7904
        %v7913 = vcombine.high %v7888, %v7904
        %v7914 = vcombine.low %v7895, %v7911
        %v7915 = vcombine.high %v7895, %v7911
        %v7916 = vpack.c.bf16 %v6960, %v6892
        %v7917 = vpack.c.bf16 %v7096, %v7028
        %v7918 = vpack.c.bf16 %v7232, %v7164
        %v7919 = vpack.c.bf16 %v7368, %v7300
        %v7920 = vpack.c.bf16 %v7504, %v7436
        %v7921 = vpack.c.bf16 %v7640, %v7572
        %v7922 = vpack.c.bf16 %v7776, %v7708
        %v7923 = vpack.c.bf16 %v7912, %v7844
        %v7924 = vpack.c.bf16 %v6961, %v6893
        %v7925 = vpack.c.bf16 %v7097, %v7029
        %v7926 = vpack.c.bf16 %v7233, %v7165
        %v7927 = vpack.c.bf16 %v7369, %v7301
        %v7928 = vpack.c.bf16 %v7505, %v7437
        %v7929 = vpack.c.bf16 %v7641, %v7573
        %v7930 = vpack.c.bf16 %v7777, %v7709
        %v7931 = vpack.c.bf16 %v7913, %v7845
        %v7932 = vpack.c.bf16 %v6962, %v6894
        %v7933 = vpack.c.bf16 %v7098, %v7030
        %v7934 = vpack.c.bf16 %v7234, %v7166
        %v7935 = vpack.c.bf16 %v7370, %v7302
        %v7936 = vpack.c.bf16 %v7506, %v7438
        %v7937 = vpack.c.bf16 %v7642, %v7574
        %v7938 = vpack.c.bf16 %v7778, %v7710
        %v7939 = vpack.c.bf16 %v7914, %v7846
        %v7940 = vpack.c.bf16 %v6963, %v6895
        %v7941 = vpack.c.bf16 %v7099, %v7031
        %v7942 = vpack.c.bf16 %v7235, %v7167
        %v7943 = vpack.c.bf16 %v7371, %v7303
        %v7944 = vpack.c.bf16 %v7507, %v7439
        %v7945 = vpack.c.bf16 %v7643, %v7575
        %v7946 = vpack.c.bf16 %v7779, %v7711
        %v7947 = vpack.c.bf16 %v7915, %v7847
        %vm7948 = vcmask 261120
        %v7950 = vsel %vm7948, %v3076, 0
        %v7953 = vsel %vm7948, %v3077, 0
        %v7956 = vsel %vm7948, %v3078, 0
        %v7959 = vsel %vm7948, %v3079, 0
        %v7962 = vsel %vm7948, %v3080, 0
        %v7965 = vsel %vm7948, %v3081, 0
        %v7968 = vsel %vm7948, %v3082, 0
        %v7971 = vsel %vm7948, %v3083, 0
        %7973 = vmatprep.subr.bf16.mxu0 0
        %7974 = vmatpush1.bf16.msra.mxu0 0
        %7975 = vmatprep.subr.bf16.mxu0 0
        %7976 = vmatpush1.bf16.msra.mxu0 0
        %7977 = vmatprep.subr.bf16.mxu0 0
        %7978 = vmatpush1.bf16.msra.mxu0 0
        %7979 = vmatprep.subr.bf16.mxu0 0
        %7980 = vmatpush1.bf16.msra.mxu0 0
        %7981 = vmatprep.subr.bf16.mxu0 0
        %7982 = vmatpush1.bf16.msra.mxu0 0
        %7983 = vmatprep.subr.bf16.mxu0 0
        %7984 = vmatpush1.bf16.msra.mxu0 0
        %7985 = vmatprep.subr.bf16.mxu0 0
        %7986 = vmatpush1.bf16.msra.mxu0 %v5573
        %7987 = vmatprep.subr.bf16.mxu0 0
        %7988 = vmatpush1.bf16.msra.mxu0 %v5572
        %7989 = vmatprep.subr.bf16.mxu0 0
        %7990 = vmatpush2.bf16.msra.mxu0 0
        %7991 = vmatprep.subr.bf16.mxu0 0
        %7992 = vmatpush2.bf16.msra.mxu0 0
        %7993 = vmatprep.subr.bf16.mxu0 0
        %7994 = vmatpush2.bf16.msra.mxu0 0
        %7995 = vmatprep.subr.bf16.mxu0 0
        %7996 = vmatpush2.bf16.msra.mxu0 0
        %7997 = vmatprep.subr.bf16.mxu0 0
        %7998 = vmatpush2.bf16.msra.mxu0 0
        %7999 = vmatprep.subr.bf16.mxu0 0
        %8000 = vmatpush2.bf16.msra.mxu0 0
        %8001 = vmatprep.subr.bf16.mxu0 0
        %8002 = vmatpush2.bf16.msra.mxu0 0
        %8003 = vmatprep.subr.bf16.mxu0 0
        %8004 = vmatpush2.bf16.msra.mxu0 0
        %8005 = vmatprep.mubr.bf16.mxu0 0
        %8006 = vmatmul.mubr.bf16.gmra.mxu0 %v7950
        %v8007 = vpop.f32.mrf.mxu0
        %v8008 = vadd.f32 0.0, %v8007
        %v8009 = vpop.f32.mrf.mxu0
        %v8010 = vpop.f32.mrf.mxu0
        %v8011 = vadd.f32 0.0, %v8010
        %v8012 = vpop.f32.mrf.mxu0
        %8013 = vmatprep.mubr.bf16.mxu0 0
        %8014 = vmatmul.mubr.bf16.gmra.mxu0 %v7953
        %v8015 = vpop.f32.mrf.mxu0
        %v8016 = vadd.f32 0.0, %v8015
        %v8017 = vpop.f32.mrf.mxu0
        %v8018 = vpop.f32.mrf.mxu0
        %v8019 = vadd.f32 0.0, %v8018
        %v8020 = vpop.f32.mrf.mxu0
        %8021 = vmatprep.mubr.bf16.mxu0 0
        %8022 = vmatmul.mubr.bf16.gmra.mxu0 %v7956
        %v8023 = vpop.f32.mrf.mxu0
        %v8024 = vadd.f32 0.0, %v8023
        %v8025 = vpop.f32.mrf.mxu0
        %v8026 = vpop.f32.mrf.mxu0
        %v8027 = vadd.f32 0.0, %v8026
        %v8028 = vpop.f32.mrf.mxu0
        %8029 = vmatprep.mubr.bf16.mxu0 0
        %8030 = vmatmul.mubr.bf16.gmra.mxu0 %v7959
        %v8031 = vpop.f32.mrf.mxu0
        %v8032 = vadd.f32 0.0, %v8031
        %v8033 = vpop.f32.mrf.mxu0
        %v8034 = vpop.f32.mrf.mxu0
        %v8035 = vadd.f32 0.0, %v8034
        %v8036 = vpop.f32.mrf.mxu0
        %8037 = vmatprep.mubr.bf16.mxu0 0
        %8038 = vmatmul.mubr.bf16.gmra.mxu0 %v7962
        %v8039 = vpop.f32.mrf.mxu0
        %v8040 = vadd.f32 0.0, %v8039
        %v8041 = vpop.f32.mrf.mxu0
        %v8042 = vpop.f32.mrf.mxu0
        %v8043 = vadd.f32 0.0, %v8042
        %v8044 = vpop.f32.mrf.mxu0
        %8045 = vmatprep.mubr.bf16.mxu0 0
        %8046 = vmatmul.mubr.bf16.gmra.mxu0 %v7965
        %v8047 = vpop.f32.mrf.mxu0
        %v8048 = vadd.f32 0.0, %v8047
        %v8049 = vpop.f32.mrf.mxu0
        %v8050 = vpop.f32.mrf.mxu0
        %v8051 = vadd.f32 0.0, %v8050
        %v8052 = vpop.f32.mrf.mxu0
        %8053 = vmatprep.mubr.bf16.mxu0 0
        %8054 = vmatmul.mubr.bf16.gmra.mxu0 %v7968
        %v8055 = vpop.f32.mrf.mxu0
        %v8056 = vadd.f32 0.0, %v8055
        %v8057 = vpop.f32.mrf.mxu0
        %v8058 = vpop.f32.mrf.mxu0
        %v8059 = vadd.f32 0.0, %v8058
        %v8060 = vpop.f32.mrf.mxu0
        %8061 = vmatprep.mubr.bf16.mxu0 0
        %8062 = vmatmul.mubr.bf16.gmra.mxu0 %v7971
        %v8063 = vpop.f32.mrf.mxu0
        %v8064 = vadd.f32 0.0, %v8063
        %v8065 = vpop.f32.mrf.mxu0
        %v8066 = vpop.f32.mrf.mxu0
        %v8067 = vadd.f32 0.0, %v8066
        %v8068 = vpop.f32.mrf.mxu0
        %8069 = vdwg.mxu0
        %v8071 = vsel %vm7948, %v3084, 0
        %v8074 = vsel %vm7948, %v3085, 0
        %v8077 = vsel %vm7948, %v3086, 0
        %v8080 = vsel %vm7948, %v3087, 0
        %v8083 = vsel %vm7948, %v3088, 0
        %v8086 = vsel %vm7948, %v3089, 0
        %v8089 = vsel %vm7948, %v3090, 0
        %v8092 = vsel %vm7948, %v3091, 0
        %8094 = vmatprep.subr.bf16.mxu0 0
        %8095 = vmatpush1.bf16.msra.mxu0 0
        %8096 = vmatprep.subr.bf16.mxu0 0
        %8097 = vmatpush1.bf16.msra.mxu0 0
        %8098 = vmatprep.subr.bf16.mxu0 0
        %8099 = vmatpush1.bf16.msra.mxu0 0
        %8100 = vmatprep.subr.bf16.mxu0 0
        %8101 = vmatpush1.bf16.msra.mxu0 0
        %8102 = vmatprep.subr.bf16.mxu0 0
        %8103 = vmatpush1.bf16.msra.mxu0 0
        %8104 = vmatprep.subr.bf16.mxu0 0
        %8105 = vmatpush1.bf16.msra.mxu0 0
        %8106 = vmatprep.subr.bf16.mxu0 0
        %8107 = vmatpush1.bf16.msra.mxu0 %v5575
        %8108 = vmatprep.subr.bf16.mxu0 0
        %8109 = vmatpush1.bf16.msra.mxu0 %v5574
        %8110 = vmatprep.subr.bf16.mxu0 0
        %8111 = vmatpush2.bf16.msra.mxu0 0
        %8112 = vmatprep.subr.bf16.mxu0 0
        %8113 = vmatpush2.bf16.msra.mxu0 0
        %8114 = vmatprep.subr.bf16.mxu0 0
        %8115 = vmatpush2.bf16.msra.mxu0 0
        %8116 = vmatprep.subr.bf16.mxu0 0
        %8117 = vmatpush2.bf16.msra.mxu0 0
        %8118 = vmatprep.subr.bf16.mxu0 0
        %8119 = vmatpush2.bf16.msra.mxu0 0
        %8120 = vmatprep.subr.bf16.mxu0 0
        %8121 = vmatpush2.bf16.msra.mxu0 0
        %8122 = vmatprep.subr.bf16.mxu0 0
        %8123 = vmatpush2.bf16.msra.mxu0 0
        %8124 = vmatprep.subr.bf16.mxu0 0
        %8125 = vmatpush2.bf16.msra.mxu0 0
        %8126 = vmatprep.mubr.bf16.mxu0 0
        %8127 = vmatmul.mubr.bf16.gmra.mxu0 %v8071
        %v8128 = vpop.f32.mrf.mxu0
        %v8129 = vadd.f32 0.0, %v8128
        %v8130 = vpop.f32.mrf.mxu0
        %v8131 = vpop.f32.mrf.mxu0
        %v8132 = vadd.f32 0.0, %v8131
        %v8133 = vpop.f32.mrf.mxu0
        %8134 = vmatprep.mubr.bf16.mxu0 0
        %8135 = vmatmul.mubr.bf16.gmra.mxu0 %v8074
        %v8136 = vpop.f32.mrf.mxu0
        %v8137 = vadd.f32 0.0, %v8136
        %v8138 = vpop.f32.mrf.mxu0
        %v8139 = vpop.f32.mrf.mxu0
        %v8140 = vadd.f32 0.0, %v8139
        %v8141 = vpop.f32.mrf.mxu0
        %8142 = vmatprep.mubr.bf16.mxu0 0
        %8143 = vmatmul.mubr.bf16.gmra.mxu0 %v8077
        %v8144 = vpop.f32.mrf.mxu0
        %v8145 = vadd.f32 0.0, %v8144
        %v8146 = vpop.f32.mrf.mxu0
        %v8147 = vpop.f32.mrf.mxu0
        %v8148 = vadd.f32 0.0, %v8147
        %v8149 = vpop.f32.mrf.mxu0
        %8150 = vmatprep.mubr.bf16.mxu0 0
        %8151 = vmatmul.mubr.bf16.gmra.mxu0 %v8080
        %v8152 = vpop.f32.mrf.mxu0
        %v8153 = vadd.f32 0.0, %v8152
        %v8154 = vpop.f32.mrf.mxu0
        %v8155 = vpop.f32.mrf.mxu0
        %v8156 = vadd.f32 0.0, %v8155
        %v8157 = vpop.f32.mrf.mxu0
        %8158 = vmatprep.mubr.bf16.mxu0 0
        %8159 = vmatmul.mubr.bf16.gmra.mxu0 %v8083
        %v8160 = vpop.f32.mrf.mxu0
        %v8161 = vadd.f32 0.0, %v8160
        %v8162 = vpop.f32.mrf.mxu0
        %v8163 = vpop.f32.mrf.mxu0
        %v8164 = vadd.f32 0.0, %v8163
        %v8165 = vpop.f32.mrf.mxu0
        %8166 = vmatprep.mubr.bf16.mxu0 0
        %8167 = vmatmul.mubr.bf16.gmra.mxu0 %v8086
        %v8168 = vpop.f32.mrf.mxu0
        %v8169 = vadd.f32 0.0, %v8168
        %v8170 = vpop.f32.mrf.mxu0
        %v8171 = vpop.f32.mrf.mxu0
        %v8172 = vadd.f32 0.0, %v8171
        %v8173 = vpop.f32.mrf.mxu0
        %8174 = vmatprep.mubr.bf16.mxu0 0
        %8175 = vmatmul.mubr.bf16.gmra.mxu0 %v8089
        %v8176 = vpop.f32.mrf.mxu0
        %v8177 = vadd.f32 0.0, %v8176
        %v8178 = vpop.f32.mrf.mxu0
        %v8179 = vpop.f32.mrf.mxu0
        %v8180 = vadd.f32 0.0, %v8179
        %v8181 = vpop.f32.mrf.mxu0
        %8182 = vmatprep.mubr.bf16.mxu0 0
        %8183 = vmatmul.mubr.bf16.gmra.mxu0 %v8092
        %v8184 = vpop.f32.mrf.mxu0
        %v8185 = vadd.f32 0.0, %v8184
        %v8186 = vpop.f32.mrf.mxu0
        %v8187 = vpop.f32.mrf.mxu0
        %v8188 = vadd.f32 0.0, %v8187
        %v8189 = vpop.f32.mrf.mxu0
        %8190 = vdwg.mxu0
        %v8192 = vsel %vm7948, %v3092, 0
        %v8195 = vsel %vm7948, %v3093, 0
        %v8198 = vsel %vm7948, %v3094, 0
        %v8201 = vsel %vm7948, %v3095, 0
        %v8204 = vsel %vm7948, %v3096, 0
        %v8207 = vsel %vm7948, %v3097, 0
        %v8210 = vsel %vm7948, %v3098, 0
        %v8213 = vsel %vm7948, %v3099, 0
        %8215 = vmatprep.subr.bf16.mxu0 0
        %8216 = vmatpush1.bf16.msra.mxu0 0
        %8217 = vmatprep.subr.bf16.mxu0 0
        %8218 = vmatpush1.bf16.msra.mxu0 0
        %8219 = vmatprep.subr.bf16.mxu0 0
        %8220 = vmatpush1.bf16.msra.mxu0 0
        %8221 = vmatprep.subr.bf16.mxu0 0
        %8222 = vmatpush1.bf16.msra.mxu0 0
        %8223 = vmatprep.subr.bf16.mxu0 0
        %8224 = vmatpush1.bf16.msra.mxu0 0
        %8225 = vmatprep.subr.bf16.mxu0 0
        %8226 = vmatpush1.bf16.msra.mxu0 0
        %8227 = vmatprep.subr.bf16.mxu0 0
        %8228 = vmatpush1.bf16.msra.mxu0 %v5577
        %8229 = vmatprep.subr.bf16.mxu0 0
        %8230 = vmatpush1.bf16.msra.mxu0 %v5576
        %8231 = vmatprep.subr.bf16.mxu0 0
        %8232 = vmatpush2.bf16.msra.mxu0 0
        %8233 = vmatprep.subr.bf16.mxu0 0
        %8234 = vmatpush2.bf16.msra.mxu0 0
        %8235 = vmatprep.subr.bf16.mxu0 0
        %8236 = vmatpush2.bf16.msra.mxu0 0
        %8237 = vmatprep.subr.bf16.mxu0 0
        %8238 = vmatpush2.bf16.msra.mxu0 0
        %8239 = vmatprep.subr.bf16.mxu0 0
        %8240 = vmatpush2.bf16.msra.mxu0 0
        %8241 = vmatprep.subr.bf16.mxu0 0
        %8242 = vmatpush2.bf16.msra.mxu0 0
        %8243 = vmatprep.subr.bf16.mxu0 0
        %8244 = vmatpush2.bf16.msra.mxu0 0
        %8245 = vmatprep.subr.bf16.mxu0 0
        %8246 = vmatpush2.bf16.msra.mxu0 0
        %8247 = vmatprep.mubr.bf16.mxu0 0
        %8248 = vmatmul.mubr.bf16.gmra.mxu0 %v8192
        %v8249 = vpop.f32.mrf.mxu0
        %v8250 = vadd.f32 0.0, %v8249
        %v8251 = vpop.f32.mrf.mxu0
        %v8252 = vpop.f32.mrf.mxu0
        %v8253 = vadd.f32 0.0, %v8252
        %v8254 = vpop.f32.mrf.mxu0
        %8255 = vmatprep.mubr.bf16.mxu0 0
        %8256 = vmatmul.mubr.bf16.gmra.mxu0 %v8195
        %v8257 = vpop.f32.mrf.mxu0
        %v8258 = vadd.f32 0.0, %v8257
        %v8259 = vpop.f32.mrf.mxu0
        %v8260 = vpop.f32.mrf.mxu0
        %v8261 = vadd.f32 0.0, %v8260
        %v8262 = vpop.f32.mrf.mxu0
        %8263 = vmatprep.mubr.bf16.mxu0 0
        %8264 = vmatmul.mubr.bf16.gmra.mxu0 %v8198
        %v8265 = vpop.f32.mrf.mxu0
        %v8266 = vadd.f32 0.0, %v8265
        %v8267 = vpop.f32.mrf.mxu0
        %v8268 = vpop.f32.mrf.mxu0
        %v8269 = vadd.f32 0.0, %v8268
        %v8270 = vpop.f32.mrf.mxu0
        %8271 = vmatprep.mubr.bf16.mxu0 0
        %8272 = vmatmul.mubr.bf16.gmra.mxu0 %v8201
        %v8273 = vpop.f32.mrf.mxu0
        %v8274 = vadd.f32 0.0, %v8273
        %v8275 = vpop.f32.mrf.mxu0
        %v8276 = vpop.f32.mrf.mxu0
        %v8277 = vadd.f32 0.0, %v8276
        %v8278 = vpop.f32.mrf.mxu0
        %8279 = vmatprep.mubr.bf16.mxu0 0
        %8280 = vmatmul.mubr.bf16.gmra.mxu0 %v8204
        %v8281 = vpop.f32.mrf.mxu0
        %v8282 = vadd.f32 0.0, %v8281
        %v8283 = vpop.f32.mrf.mxu0
        %v8284 = vpop.f32.mrf.mxu0
        %v8285 = vadd.f32 0.0, %v8284
        %v8286 = vpop.f32.mrf.mxu0
        %8287 = vmatprep.mubr.bf16.mxu0 0
        %8288 = vmatmul.mubr.bf16.gmra.mxu0 %v8207
        %v8289 = vpop.f32.mrf.mxu0
        %v8290 = vadd.f32 0.0, %v8289
        %v8291 = vpop.f32.mrf.mxu0
        %v8292 = vpop.f32.mrf.mxu0
        %v8293 = vadd.f32 0.0, %v8292
        %v8294 = vpop.f32.mrf.mxu0
        %8295 = vmatprep.mubr.bf16.mxu0 0
        %8296 = vmatmul.mubr.bf16.gmra.mxu0 %v8210
        %v8297 = vpop.f32.mrf.mxu0
        %v8298 = vadd.f32 0.0, %v8297
        %v8299 = vpop.f32.mrf.mxu0
        %v8300 = vpop.f32.mrf.mxu0
        %v8301 = vadd.f32 0.0, %v8300
        %v8302 = vpop.f32.mrf.mxu0
        %8303 = vmatprep.mubr.bf16.mxu0 0
        %8304 = vmatmul.mubr.bf16.gmra.mxu0 %v8213
        %v8305 = vpop.f32.mrf.mxu0
        %v8306 = vadd.f32 0.0, %v8305
        %v8307 = vpop.f32.mrf.mxu0
        %v8308 = vpop.f32.mrf.mxu0
        %v8309 = vadd.f32 0.0, %v8308
        %v8310 = vpop.f32.mrf.mxu0
        %8311 = vdwg.mxu0
        %v8313 = vsel %vm7948, %v3100, 0
        %v8316 = vsel %vm7948, %v3101, 0
        %v8319 = vsel %vm7948, %v3102, 0
        %v8322 = vsel %vm7948, %v3103, 0
        %v8325 = vsel %vm7948, %v3104, 0
        %v8328 = vsel %vm7948, %v3105, 0
        %v8331 = vsel %vm7948, %v3106, 0
        %v8334 = vsel %vm7948, %v3107, 0
        %8336 = vmatprep.subr.bf16.mxu0 0
        %8337 = vmatpush1.bf16.msra.mxu0 0
        %8338 = vmatprep.subr.bf16.mxu0 0
        %8339 = vmatpush1.bf16.msra.mxu0 0
        %8340 = vmatprep.subr.bf16.mxu0 0
        %8341 = vmatpush1.bf16.msra.mxu0 0
        %8342 = vmatprep.subr.bf16.mxu0 0
        %8343 = vmatpush1.bf16.msra.mxu0 0
        %8344 = vmatprep.subr.bf16.mxu0 0
        %8345 = vmatpush1.bf16.msra.mxu0 0
        %8346 = vmatprep.subr.bf16.mxu0 0
        %8347 = vmatpush1.bf16.msra.mxu0 0
        %8348 = vmatprep.subr.bf16.mxu0 0
        %8349 = vmatpush1.bf16.msra.mxu0 %v5579
        %8350 = vmatprep.subr.bf16.mxu0 0
        %8351 = vmatpush1.bf16.msra.mxu0 %v5578
        %8352 = vmatprep.subr.bf16.mxu0 0
        %8353 = vmatpush2.bf16.msra.mxu0 0
        %8354 = vmatprep.subr.bf16.mxu0 0
        %8355 = vmatpush2.bf16.msra.mxu0 0
        %8356 = vmatprep.subr.bf16.mxu0 0
        %8357 = vmatpush2.bf16.msra.mxu0 0
        %8358 = vmatprep.subr.bf16.mxu0 0
        %8359 = vmatpush2.bf16.msra.mxu0 0
        %8360 = vmatprep.subr.bf16.mxu0 0
        %8361 = vmatpush2.bf16.msra.mxu0 0
        %8362 = vmatprep.subr.bf16.mxu0 0
        %8363 = vmatpush2.bf16.msra.mxu0 0
        %8364 = vmatprep.subr.bf16.mxu0 0
        %8365 = vmatpush2.bf16.msra.mxu0 0
        %8366 = vmatprep.subr.bf16.mxu0 0
        %8367 = vmatpush2.bf16.msra.mxu0 0
        %8368 = vmatprep.mubr.bf16.mxu0 0
        %8369 = vmatmul.mubr.bf16.gmra.mxu0 %v8313
        %v8370 = vpop.f32.mrf.mxu0
        %v8371 = vadd.f32 0.0, %v8370
        %v8372 = vpop.f32.mrf.mxu0
        %v8373 = vpop.f32.mrf.mxu0
        %v8374 = vadd.f32 0.0, %v8373
        %v8375 = vpop.f32.mrf.mxu0
        %8376 = vmatprep.mubr.bf16.mxu0 0
        %8377 = vmatmul.mubr.bf16.gmra.mxu0 %v8316
        %v8378 = vpop.f32.mrf.mxu0
        %v8379 = vadd.f32 0.0, %v8378
        %v8380 = vpop.f32.mrf.mxu0
        %v8381 = vpop.f32.mrf.mxu0
        %v8382 = vadd.f32 0.0, %v8381
        %v8383 = vpop.f32.mrf.mxu0
        %8384 = vmatprep.mubr.bf16.mxu0 0
        %8385 = vmatmul.mubr.bf16.gmra.mxu0 %v8319
        %v8386 = vpop.f32.mrf.mxu0
        %v8387 = vadd.f32 0.0, %v8386
        %v8388 = vpop.f32.mrf.mxu0
        %v8389 = vpop.f32.mrf.mxu0
        %v8390 = vadd.f32 0.0, %v8389
        %v8391 = vpop.f32.mrf.mxu0
        %8392 = vmatprep.mubr.bf16.mxu0 0
        %8393 = vmatmul.mubr.bf16.gmra.mxu0 %v8322
        %v8394 = vpop.f32.mrf.mxu0
        %v8395 = vadd.f32 0.0, %v8394
        %v8396 = vpop.f32.mrf.mxu0
        %v8397 = vpop.f32.mrf.mxu0
        %v8398 = vadd.f32 0.0, %v8397
        %v8399 = vpop.f32.mrf.mxu0
        %8400 = vmatprep.mubr.bf16.mxu0 0
        %8401 = vmatmul.mubr.bf16.gmra.mxu0 %v8325
        %v8402 = vpop.f32.mrf.mxu0
        %v8403 = vadd.f32 0.0, %v8402
        %v8404 = vpop.f32.mrf.mxu0
        %v8405 = vpop.f32.mrf.mxu0
        %v8406 = vadd.f32 0.0, %v8405
        %v8407 = vpop.f32.mrf.mxu0
        %8408 = vmatprep.mubr.bf16.mxu0 0
        %8409 = vmatmul.mubr.bf16.gmra.mxu0 %v8328
        %v8410 = vpop.f32.mrf.mxu0
        %v8411 = vadd.f32 0.0, %v8410
        %v8412 = vpop.f32.mrf.mxu0
        %v8413 = vpop.f32.mrf.mxu0
        %v8414 = vadd.f32 0.0, %v8413
        %v8415 = vpop.f32.mrf.mxu0
        %8416 = vmatprep.mubr.bf16.mxu0 0
        %8417 = vmatmul.mubr.bf16.gmra.mxu0 %v8331
        %v8418 = vpop.f32.mrf.mxu0
        %v8419 = vadd.f32 0.0, %v8418
        %v8420 = vpop.f32.mrf.mxu0
        %v8421 = vpop.f32.mrf.mxu0
        %v8422 = vadd.f32 0.0, %v8421
        %v8423 = vpop.f32.mrf.mxu0
        %8424 = vmatprep.mubr.bf16.mxu0 0
        %8425 = vmatmul.mubr.bf16.gmra.mxu0 %v8334
        %v8426 = vpop.f32.mrf.mxu0
        %v8427 = vadd.f32 0.0, %v8426
        %v8428 = vpop.f32.mrf.mxu0
        %v8429 = vpop.f32.mrf.mxu0
        %v8430 = vadd.f32 0.0, %v8429
        %v8431 = vpop.f32.mrf.mxu0
        %8432 = vdwg.mxu0
        %8433 = vmax.xlane.f32.xlu0 %v8008
        %v8434 = vpop.xlane.xlu0 %8433
        %8435 = vmax.xlane.f32.xlu0 %v8011
        %v8436 = vpop.xlane.xlu0 %8435
        %8437 = vmax.xlane.f32.xlu0 %v8016
        %v8438 = vpop.xlane.xlu0 %8437
        %8439 = vmax.xlane.f32.xlu0 %v8019
        %v8440 = vpop.xlane.xlu0 %8439
        %8441 = vmax.xlane.f32.xlu0 %v8024
        %v8442 = vpop.xlane.xlu0 %8441
        %8443 = vmax.xlane.f32.xlu0 %v8027
        %v8444 = vpop.xlane.xlu0 %8443
        %8445 = vmax.xlane.f32.xlu0 %v8032
        %v8446 = vpop.xlane.xlu0 %8445
        %8447 = vmax.xlane.f32.xlu0 %v8035
        %v8448 = vpop.xlane.xlu0 %8447
        %8449 = vmax.xlane.f32.xlu0 %v8040
        %v8450 = vpop.xlane.xlu0 %8449
        %8451 = vmax.xlane.f32.xlu0 %v8043
        %v8452 = vpop.xlane.xlu0 %8451
        %8453 = vmax.xlane.f32.xlu0 %v8048
        %v8454 = vpop.xlane.xlu0 %8453
        %8455 = vmax.xlane.f32.xlu0 %v8051
        %v8456 = vpop.xlane.xlu0 %8455
        %8457 = vmax.xlane.f32.xlu0 %v8056
        %v8458 = vpop.xlane.xlu0 %8457
        %8459 = vmax.xlane.f32.xlu0 %v8059
        %v8460 = vpop.xlane.xlu0 %8459
        %8461 = vmax.xlane.f32.xlu0 %v8064
        %v8462 = vpop.xlane.xlu0 %8461
        %8463 = vmax.xlane.f32.xlu0 %v8067
        %v8464 = vpop.xlane.xlu0 %8463
        %8465 = vmax.xlane.f32.xlu0 %v8129
        %v8466 = vpop.xlane.xlu0 %8465
        %8467 = vmax.xlane.f32.xlu0 %v8132
        %v8468 = vpop.xlane.xlu0 %8467
        %8469 = vmax.xlane.f32.xlu0 %v8137
        %v8470 = vpop.xlane.xlu0 %8469
        %8471 = vmax.xlane.f32.xlu0 %v8140
        %v8472 = vpop.xlane.xlu0 %8471
        %8473 = vmax.xlane.f32.xlu0 %v8145
        %v8474 = vpop.xlane.xlu0 %8473
        %8475 = vmax.xlane.f32.xlu0 %v8148
        %v8476 = vpop.xlane.xlu0 %8475
        %8477 = vmax.xlane.f32.xlu0 %v8153
        %v8478 = vpop.xlane.xlu0 %8477
        %8479 = vmax.xlane.f32.xlu0 %v8156
        %v8480 = vpop.xlane.xlu0 %8479
        %8481 = vmax.xlane.f32.xlu0 %v8161
        %v8482 = vpop.xlane.xlu0 %8481
        %8483 = vmax.xlane.f32.xlu0 %v8164
        %v8484 = vpop.xlane.xlu0 %8483
        %8485 = vmax.xlane.f32.xlu0 %v8169
        %v8486 = vpop.xlane.xlu0 %8485
        %8487 = vmax.xlane.f32.xlu0 %v8172
        %v8488 = vpop.xlane.xlu0 %8487
        %8489 = vmax.xlane.f32.xlu0 %v8177
        %v8490 = vpop.xlane.xlu0 %8489
        %8491 = vmax.xlane.f32.xlu0 %v8180
        %v8492 = vpop.xlane.xlu0 %8491
        %8493 = vmax.xlane.f32.xlu0 %v8185
        %v8494 = vpop.xlane.xlu0 %8493
        %8495 = vmax.xlane.f32.xlu0 %v8188
        %v8496 = vpop.xlane.xlu0 %8495
        %8497 = vmax.xlane.f32.xlu0 %v8250
        %v8498 = vpop.xlane.xlu0 %8497
        %8499 = vmax.xlane.f32.xlu0 %v8253
        %v8500 = vpop.xlane.xlu0 %8499
        %8501 = vmax.xlane.f32.xlu0 %v8258
        %v8502 = vpop.xlane.xlu0 %8501
        %8503 = vmax.xlane.f32.xlu0 %v8261
        %v8504 = vpop.xlane.xlu0 %8503
        %8505 = vmax.xlane.f32.xlu0 %v8266
        %v8506 = vpop.xlane.xlu0 %8505
        %8507 = vmax.xlane.f32.xlu0 %v8269
        %v8508 = vpop.xlane.xlu0 %8507
        %8509 = vmax.xlane.f32.xlu0 %v8274
        %v8510 = vpop.xlane.xlu0 %8509
        %8511 = vmax.xlane.f32.xlu0 %v8277
        %v8512 = vpop.xlane.xlu0 %8511
        %8513 = vmax.xlane.f32.xlu0 %v8282
        %v8514 = vpop.xlane.xlu0 %8513
        %8515 = vmax.xlane.f32.xlu0 %v8285
        %v8516 = vpop.xlane.xlu0 %8515
        %8517 = vmax.xlane.f32.xlu0 %v8290
        %v8518 = vpop.xlane.xlu0 %8517
        %8519 = vmax.xlane.f32.xlu0 %v8293
        %v8520 = vpop.xlane.xlu0 %8519
        %8521 = vmax.xlane.f32.xlu0 %v8298
        %v8522 = vpop.xlane.xlu0 %8521
        %8523 = vmax.xlane.f32.xlu0 %v8301
        %v8524 = vpop.xlane.xlu0 %8523
        %8525 = vmax.xlane.f32.xlu0 %v8306
        %v8526 = vpop.xlane.xlu0 %8525
        %8527 = vmax.xlane.f32.xlu0 %v8309
        %v8528 = vpop.xlane.xlu0 %8527
        %8529 = vmax.xlane.f32.xlu0 %v8371
        %v8530 = vpop.xlane.xlu0 %8529
        %8531 = vmax.xlane.f32.xlu0 %v8374
        %v8532 = vpop.xlane.xlu0 %8531
        %8533 = vmax.xlane.f32.xlu0 %v8379
        %v8534 = vpop.xlane.xlu0 %8533
        %8535 = vmax.xlane.f32.xlu0 %v8382
        %v8536 = vpop.xlane.xlu0 %8535
        %8537 = vmax.xlane.f32.xlu0 %v8387
        %v8538 = vpop.xlane.xlu0 %8537
        %8539 = vmax.xlane.f32.xlu0 %v8390
        %v8540 = vpop.xlane.xlu0 %8539
        %8541 = vmax.xlane.f32.xlu0 %v8395
        %v8542 = vpop.xlane.xlu0 %8541
        %8543 = vmax.xlane.f32.xlu0 %v8398
        %v8544 = vpop.xlane.xlu0 %8543
        %8545 = vmax.xlane.f32.xlu0 %v8403
        %v8546 = vpop.xlane.xlu0 %8545
        %8547 = vmax.xlane.f32.xlu0 %v8406
        %v8548 = vpop.xlane.xlu0 %8547
        %8549 = vmax.xlane.f32.xlu0 %v8411
        %v8550 = vpop.xlane.xlu0 %8549
        %8551 = vmax.xlane.f32.xlu0 %v8414
        %v8552 = vpop.xlane.xlu0 %8551
        %8553 = vmax.xlane.f32.xlu0 %v8419
        %v8554 = vpop.xlane.xlu0 %8553
        %8555 = vmax.xlane.f32.xlu0 %v8422
        %v8556 = vpop.xlane.xlu0 %8555
        %8557 = vmax.xlane.f32.xlu0 %v8427
        %v8558 = vpop.xlane.xlu0 %8557
        %8559 = vmax.xlane.f32.xlu0 %v8430
        %v8560 = vpop.xlane.xlu0 %8559
        %v8561 = vsub.f32 %v8008, %v8434
        %v8562 = vsub.f32 %v8011, %v8436
        %v8563 = vsub.f32 %v8016, %v8438
        %v8564 = vsub.f32 %v8019, %v8440
        %v8565 = vsub.f32 %v8024, %v8442
        %v8566 = vsub.f32 %v8027, %v8444
        %v8567 = vsub.f32 %v8032, %v8446
        %v8568 = vsub.f32 %v8035, %v8448
        %v8569 = vsub.f32 %v8040, %v8450
        %v8570 = vsub.f32 %v8043, %v8452
        %v8571 = vsub.f32 %v8048, %v8454
        %v8572 = vsub.f32 %v8051, %v8456
        %v8573 = vsub.f32 %v8056, %v8458
        %v8574 = vsub.f32 %v8059, %v8460
        %v8575 = vsub.f32 %v8064, %v8462
        %v8576 = vsub.f32 %v8067, %v8464
        %v8577 = vsub.f32 %v8129, %v8466
        %v8578 = vsub.f32 %v8132, %v8468
        %v8579 = vsub.f32 %v8137, %v8470
        %v8580 = vsub.f32 %v8140, %v8472
        %v8581 = vsub.f32 %v8145, %v8474
        %v8582 = vsub.f32 %v8148, %v8476
        %v8583 = vsub.f32 %v8153, %v8478
        %v8584 = vsub.f32 %v8156, %v8480
        %v8585 = vsub.f32 %v8161, %v8482
        %v8586 = vsub.f32 %v8164, %v8484
        %v8587 = vsub.f32 %v8169, %v8486
        %v8588 = vsub.f32 %v8172, %v8488
        %v8589 = vsub.f32 %v8177, %v8490
        %v8590 = vsub.f32 %v8180, %v8492
        %v8591 = vsub.f32 %v8185, %v8494
        %v8592 = vsub.f32 %v8188, %v8496
        %v8593 = vsub.f32 %v8250, %v8498
        %v8594 = vsub.f32 %v8253, %v8500
        %v8595 = vsub.f32 %v8258, %v8502
        %v8596 = vsub.f32 %v8261, %v8504
        %v8597 = vsub.f32 %v8266, %v8506
        %v8598 = vsub.f32 %v8269, %v8508
        %v8599 = vsub.f32 %v8274, %v8510
        %v8600 = vsub.f32 %v8277, %v8512
        %v8601 = vsub.f32 %v8282, %v8514
        %v8602 = vsub.f32 %v8285, %v8516
        %v8603 = vsub.f32 %v8290, %v8518
        %v8604 = vsub.f32 %v8293, %v8520
        %v8605 = vsub.f32 %v8298, %v8522
        %v8606 = vsub.f32 %v8301, %v8524
        %v8607 = vsub.f32 %v8306, %v8526
        %v8608 = vsub.f32 %v8309, %v8528
        %v8609 = vsub.f32 %v8371, %v8530
        %v8610 = vsub.f32 %v8374, %v8532
        %v8611 = vsub.f32 %v8379, %v8534
        %v8612 = vsub.f32 %v8382, %v8536
        %v8613 = vsub.f32 %v8387, %v8538
        %v8614 = vsub.f32 %v8390, %v8540
        %v8615 = vsub.f32 %v8395, %v8542
        %v8616 = vsub.f32 %v8398, %v8544
        %v8617 = vsub.f32 %v8403, %v8546
        %v8618 = vsub.f32 %v8406, %v8548
        %v8619 = vsub.f32 %v8411, %v8550
        %v8620 = vsub.f32 %v8414, %v8552
        %v8621 = vsub.f32 %v8419, %v8554
        %v8622 = vsub.f32 %v8422, %v8556
        %v8623 = vsub.f32 %v8427, %v8558
        %v8624 = vsub.f32 %v8430, %v8560
        %v8625 = vmul.f32 %v8561, 1.442695
        %v8626 = vpow.pop %v8625
        %v8627 = vmul.f32 %v8562, 1.442695
        %v8628 = vpow.pop %v8627
        %v8629 = vmul.f32 %v8563, 1.442695
        %v8630 = vpow.pop %v8629
        %v8631 = vmul.f32 %v8564, 1.442695
        %v8632 = vpow.pop %v8631
        %v8633 = vmul.f32 %v8565, 1.442695
        %v8634 = vpow.pop %v8633
        %v8635 = vmul.f32 %v8566, 1.442695
        %v8636 = vpow.pop %v8635
        %v8637 = vmul.f32 %v8567, 1.442695
        %v8638 = vpow.pop %v8637
        %v8639 = vmul.f32 %v8568, 1.442695
        %v8640 = vpow.pop %v8639
        %v8641 = vmul.f32 %v8569, 1.442695
        %v8642 = vpow.pop %v8641
        %v8643 = vmul.f32 %v8570, 1.442695
        %v8644 = vpow.pop %v8643
        %v8645 = vmul.f32 %v8571, 1.442695
        %v8646 = vpow.pop %v8645
        %v8647 = vmul.f32 %v8572, 1.442695
        %v8648 = vpow.pop %v8647
        %v8649 = vmul.f32 %v8573, 1.442695
        %v8650 = vpow.pop %v8649
        %v8651 = vmul.f32 %v8574, 1.442695
        %v8652 = vpow.pop %v8651
        %v8653 = vmul.f32 %v8575, 1.442695
        %v8654 = vpow.pop %v8653
        %v8655 = vmul.f32 %v8576, 1.442695
        %v8656 = vpow.pop %v8655
        %v8657 = vmul.f32 %v8577, 1.442695
        %v8658 = vpow.pop %v8657
        %v8659 = vmul.f32 %v8578, 1.442695
        %v8660 = vpow.pop %v8659
        %v8661 = vmul.f32 %v8579, 1.442695
        %v8662 = vpow.pop %v8661
        %v8663 = vmul.f32 %v8580, 1.442695
        %v8664 = vpow.pop %v8663
        %v8665 = vmul.f32 %v8581, 1.442695
        %v8666 = vpow.pop %v8665
        %v8667 = vmul.f32 %v8582, 1.442695
        %v8668 = vpow.pop %v8667
        %v8669 = vmul.f32 %v8583, 1.442695
        %v8670 = vpow.pop %v8669
        %v8671 = vmul.f32 %v8584, 1.442695
        %v8672 = vpow.pop %v8671
        %v8673 = vmul.f32 %v8585, 1.442695
        %v8674 = vpow.pop %v8673
        %v8675 = vmul.f32 %v8586, 1.442695
        %v8676 = vpow.pop %v8675
        %v8677 = vmul.f32 %v8587, 1.442695
        %v8678 = vpow.pop %v8677
        %v8679 = vmul.f32 %v8588, 1.442695
        %v8680 = vpow.pop %v8679
        %v8681 = vmul.f32 %v8589, 1.442695
        %v8682 = vpow.pop %v8681
        %v8683 = vmul.f32 %v8590, 1.442695
        %v8684 = vpow.pop %v8683
        %v8685 = vmul.f32 %v8591, 1.442695
        %v8686 = vpow.pop %v8685
        %v8687 = vmul.f32 %v8592, 1.442695
        %v8688 = vpow.pop %v8687
        %v8689 = vmul.f32 %v8593, 1.442695
        %v8690 = vpow.pop %v8689
        %v8691 = vmul.f32 %v8594, 1.442695
        %v8692 = vpow.pop %v8691
        %v8693 = vmul.f32 %v8595, 1.442695
        %v8694 = vpow.pop %v8693
        %v8695 = vmul.f32 %v8596, 1.442695
        %v8696 = vpow.pop %v8695
        %v8697 = vmul.f32 %v8597, 1.442695
        %v8698 = vpow.pop %v8697
        %v8699 = vmul.f32 %v8598, 1.442695
        %v8700 = vpow.pop %v8699
        %v8701 = vmul.f32 %v8599, 1.442695
        %v8702 = vpow.pop %v8701
        %v8703 = vmul.f32 %v8600, 1.442695
        %v8704 = vpow.pop %v8703
        %v8705 = vmul.f32 %v8601, 1.442695
        %v8706 = vpow.pop %v8705
        %v8707 = vmul.f32 %v8602, 1.442695
        %v8708 = vpow.pop %v8707
        %v8709 = vmul.f32 %v8603, 1.442695
        %v8710 = vpow.pop %v8709
        %v8711 = vmul.f32 %v8604, 1.442695
        %v8712 = vpow.pop %v8711
        %v8713 = vmul.f32 %v8605, 1.442695
        %v8714 = vpow.pop %v8713
        %v8715 = vmul.f32 %v8606, 1.442695
        %v8716 = vpow.pop %v8715
        %v8717 = vmul.f32 %v8607, 1.442695
        %v8718 = vpow.pop %v8717
        %v8719 = vmul.f32 %v8608, 1.442695
        %v8720 = vpow.pop %v8719
        %v8721 = vmul.f32 %v8609, 1.442695
        %v8722 = vpow.pop %v8721
        %v8723 = vmul.f32 %v8610, 1.442695
        %v8724 = vpow.pop %v8723
        %v8725 = vmul.f32 %v8611, 1.442695
        %v8726 = vpow.pop %v8725
        %v8727 = vmul.f32 %v8612, 1.442695
        %v8728 = vpow.pop %v8727
        %v8729 = vmul.f32 %v8613, 1.442695
        %v8730 = vpow.pop %v8729
        %v8731 = vmul.f32 %v8614, 1.442695
        %v8732 = vpow.pop %v8731
        %v8733 = vmul.f32 %v8615, 1.442695
        %v8734 = vpow.pop %v8733
        %v8735 = vmul.f32 %v8616, 1.442695
        %v8736 = vpow.pop %v8735
        %v8737 = vmul.f32 %v8617, 1.442695
        %v8738 = vpow.pop %v8737
        %v8739 = vmul.f32 %v8618, 1.442695
        %v8740 = vpow.pop %v8739
        %v8741 = vmul.f32 %v8619, 1.442695
        %v8742 = vpow.pop %v8741
        %v8743 = vmul.f32 %v8620, 1.442695
        %v8744 = vpow.pop %v8743
        %v8745 = vmul.f32 %v8621, 1.442695
        %v8746 = vpow.pop %v8745
        %v8747 = vmul.f32 %v8622, 1.442695
        %v8748 = vpow.pop %v8747
        %v8749 = vmul.f32 %v8623, 1.442695
        %v8750 = vpow.pop %v8749
        %v8751 = vmul.f32 %v8624, 1.442695
        %v8752 = vpow.pop %v8751
        %8753 = vadd.xlane.f32.xlu0 %v8626
        %v8754 = vpop.xlane.xlu0 %8753
        %8755 = vadd.xlane.f32.xlu0 %v8628
        %v8756 = vpop.xlane.xlu0 %8755
        %8757 = vadd.xlane.f32.xlu0 %v8630
        %v8758 = vpop.xlane.xlu0 %8757
        %8759 = vadd.xlane.f32.xlu0 %v8632
        %v8760 = vpop.xlane.xlu0 %8759
        %8761 = vadd.xlane.f32.xlu0 %v8634
        %v8762 = vpop.xlane.xlu0 %8761
        %8763 = vadd.xlane.f32.xlu0 %v8636
        %v8764 = vpop.xlane.xlu0 %8763
        %8765 = vadd.xlane.f32.xlu0 %v8638
        %v8766 = vpop.xlane.xlu0 %8765
        %8767 = vadd.xlane.f32.xlu0 %v8640
        %v8768 = vpop.xlane.xlu0 %8767
        %8769 = vadd.xlane.f32.xlu0 %v8642
        %v8770 = vpop.xlane.xlu0 %8769
        %8771 = vadd.xlane.f32.xlu0 %v8644
        %v8772 = vpop.xlane.xlu0 %8771
        %8773 = vadd.xlane.f32.xlu0 %v8646
        %v8774 = vpop.xlane.xlu0 %8773
        %8775 = vadd.xlane.f32.xlu0 %v8648
        %v8776 = vpop.xlane.xlu0 %8775
        %8777 = vadd.xlane.f32.xlu0 %v8650
        %v8778 = vpop.xlane.xlu0 %8777
        %8779 = vadd.xlane.f32.xlu0 %v8652
        %v8780 = vpop.xlane.xlu0 %8779
        %8781 = vadd.xlane.f32.xlu0 %v8654
        %v8782 = vpop.xlane.xlu0 %8781
        %8783 = vadd.xlane.f32.xlu0 %v8656
        %v8784 = vpop.xlane.xlu0 %8783
        %8785 = vadd.xlane.f32.xlu0 %v8658
        %v8786 = vpop.xlane.xlu0 %8785
        %8787 = vadd.xlane.f32.xlu0 %v8660
        %v8788 = vpop.xlane.xlu0 %8787
        %8789 = vadd.xlane.f32.xlu0 %v8662
        %v8790 = vpop.xlane.xlu0 %8789
        %8791 = vadd.xlane.f32.xlu0 %v8664
        %v8792 = vpop.xlane.xlu0 %8791
        %8793 = vadd.xlane.f32.xlu0 %v8666
        %v8794 = vpop.xlane.xlu0 %8793
        %8795 = vadd.xlane.f32.xlu0 %v8668
        %v8796 = vpop.xlane.xlu0 %8795
        %8797 = vadd.xlane.f32.xlu0 %v8670
        %v8798 = vpop.xlane.xlu0 %8797
        %8799 = vadd.xlane.f32.xlu0 %v8672
        %v8800 = vpop.xlane.xlu0 %8799
        %8801 = vadd.xlane.f32.xlu0 %v8674
        %v8802 = vpop.xlane.xlu0 %8801
        %8803 = vadd.xlane.f32.xlu0 %v8676
        %v8804 = vpop.xlane.xlu0 %8803
        %8805 = vadd.xlane.f32.xlu0 %v8678
        %v8806 = vpop.xlane.xlu0 %8805
        %8807 = vadd.xlane.f32.xlu0 %v8680
        %v8808 = vpop.xlane.xlu0 %8807
        %8809 = vadd.xlane.f32.xlu0 %v8682
        %v8810 = vpop.xlane.xlu0 %8809
        %8811 = vadd.xlane.f32.xlu0 %v8684
        %v8812 = vpop.xlane.xlu0 %8811
        %8813 = vadd.xlane.f32.xlu0 %v8686
        %v8814 = vpop.xlane.xlu0 %8813
        %8815 = vadd.xlane.f32.xlu0 %v8688
        %v8816 = vpop.xlane.xlu0 %8815
        %8817 = vadd.xlane.f32.xlu0 %v8690
        %v8818 = vpop.xlane.xlu0 %8817
        %8819 = vadd.xlane.f32.xlu0 %v8692
        %v8820 = vpop.xlane.xlu0 %8819
        %8821 = vadd.xlane.f32.xlu0 %v8694
        %v8822 = vpop.xlane.xlu0 %8821
        %8823 = vadd.xlane.f32.xlu0 %v8696
        %v8824 = vpop.xlane.xlu0 %8823
        %8825 = vadd.xlane.f32.xlu0 %v8698
        %v8826 = vpop.xlane.xlu0 %8825
        %8827 = vadd.xlane.f32.xlu0 %v8700
        %v8828 = vpop.xlane.xlu0 %8827
        %8829 = vadd.xlane.f32.xlu0 %v8702
        %v8830 = vpop.xlane.xlu0 %8829
        %8831 = vadd.xlane.f32.xlu0 %v8704
        %v8832 = vpop.xlane.xlu0 %8831
        %8833 = vadd.xlane.f32.xlu0 %v8706
        %v8834 = vpop.xlane.xlu0 %8833
        %8835 = vadd.xlane.f32.xlu0 %v8708
        %v8836 = vpop.xlane.xlu0 %8835
        %8837 = vadd.xlane.f32.xlu0 %v8710
        %v8838 = vpop.xlane.xlu0 %8837
        %8839 = vadd.xlane.f32.xlu0 %v8712
        %v8840 = vpop.xlane.xlu0 %8839
        %8841 = vadd.xlane.f32.xlu0 %v8714
        %v8842 = vpop.xlane.xlu0 %8841
        %8843 = vadd.xlane.f32.xlu0 %v8716
        %v8844 = vpop.xlane.xlu0 %8843
        %8845 = vadd.xlane.f32.xlu0 %v8718
        %v8846 = vpop.xlane.xlu0 %8845
        %8847 = vadd.xlane.f32.xlu0 %v8720
        %v8848 = vpop.xlane.xlu0 %8847
        %8849 = vadd.xlane.f32.xlu0 %v8722
        %v8850 = vpop.xlane.xlu0 %8849
        %8851 = vadd.xlane.f32.xlu0 %v8724
        %v8852 = vpop.xlane.xlu0 %8851
        %8853 = vadd.xlane.f32.xlu0 %v8726
        %v8854 = vpop.xlane.xlu0 %8853
        %8855 = vadd.xlane.f32.xlu0 %v8728
        %v8856 = vpop.xlane.xlu0 %8855
        %8857 = vadd.xlane.f32.xlu0 %v8730
        %v8858 = vpop.xlane.xlu0 %8857
        %8859 = vadd.xlane.f32.xlu0 %v8732
        %v8860 = vpop.xlane.xlu0 %8859
        %8861 = vadd.xlane.f32.xlu0 %v8734
        %v8862 = vpop.xlane.xlu0 %8861
        %8863 = vadd.xlane.f32.xlu0 %v8736
        %v8864 = vpop.xlane.xlu0 %8863
        %8865 = vadd.xlane.f32.xlu0 %v8738
        %v8866 = vpop.xlane.xlu0 %8865
        %8867 = vadd.xlane.f32.xlu0 %v8740
        %v8868 = vpop.xlane.xlu0 %8867
        %8869 = vadd.xlane.f32.xlu0 %v8742
        %v8870 = vpop.xlane.xlu0 %8869
        %8871 = vadd.xlane.f32.xlu0 %v8744
        %v8872 = vpop.xlane.xlu0 %8871
        %8873 = vadd.xlane.f32.xlu0 %v8746
        %v8874 = vpop.xlane.xlu0 %8873
        %8875 = vadd.xlane.f32.xlu0 %v8748
        %v8876 = vpop.xlane.xlu0 %8875
        %8877 = vadd.xlane.f32.xlu0 %v8750
        %v8878 = vpop.xlane.xlu0 %8877
        %8879 = vadd.xlane.f32.xlu0 %v8752
        %v8880 = vpop.xlane.xlu0 %8879
        %v8881 = vrcp.pop %v8754
        %v8882 = vrcp.pop %v8756
        %v8883 = vrcp.pop %v8758
        %v8884 = vrcp.pop %v8760
        %v8885 = vrcp.pop %v8762
        %v8886 = vrcp.pop %v8764
        %v8887 = vrcp.pop %v8766
        %v8888 = vrcp.pop %v8768
        %v8889 = vrcp.pop %v8770
        %v8890 = vrcp.pop %v8772
        %v8891 = vrcp.pop %v8774
        %v8892 = vrcp.pop %v8776
        %v8893 = vrcp.pop %v8778
        %v8894 = vrcp.pop %v8780
        %v8895 = vrcp.pop %v8782
        %v8896 = vrcp.pop %v8784
        %v8897 = vrcp.pop %v8786
        %v8898 = vrcp.pop %v8788
        %v8899 = vrcp.pop %v8790
        %v8900 = vrcp.pop %v8792
        %v8901 = vrcp.pop %v8794
        %v8902 = vrcp.pop %v8796
        %v8903 = vrcp.pop %v8798
        %v8904 = vrcp.pop %v8800
        %v8905 = vrcp.pop %v8802
        %v8906 = vrcp.pop %v8804
        %v8907 = vrcp.pop %v8806
        %v8908 = vrcp.pop %v8808
        %v8909 = vrcp.pop %v8810
        %v8910 = vrcp.pop %v8812
        %v8911 = vrcp.pop %v8814
        %v8912 = vrcp.pop %v8816
        %v8913 = vrcp.pop %v8818
        %v8914 = vrcp.pop %v8820
        %v8915 = vrcp.pop %v8822
        %v8916 = vrcp.pop %v8824
        %v8917 = vrcp.pop %v8826
        %v8918 = vrcp.pop %v8828
        %v8919 = vrcp.pop %v8830
        %v8920 = vrcp.pop %v8832
        %v8921 = vrcp.pop %v8834
        %v8922 = vrcp.pop %v8836
        %v8923 = vrcp.pop %v8838
        %v8924 = vrcp.pop %v8840
        %v8925 = vrcp.pop %v8842
        %v8926 = vrcp.pop %v8844
        %v8927 = vrcp.pop %v8846
        %v8928 = vrcp.pop %v8848
        %v8929 = vrcp.pop %v8850
        %v8930 = vrcp.pop %v8852
        %v8931 = vrcp.pop %v8854
        %v8932 = vrcp.pop %v8856
        %v8933 = vrcp.pop %v8858
        %v8934 = vrcp.pop %v8860
        %v8935 = vrcp.pop %v8862
        %v8936 = vrcp.pop %v8864
        %v8937 = vrcp.pop %v8866
        %v8938 = vrcp.pop %v8868
        %v8939 = vrcp.pop %v8870
        %v8940 = vrcp.pop %v8872
        %v8941 = vrcp.pop %v8874
        %v8942 = vrcp.pop %v8876
        %v8943 = vrcp.pop %v8878
        %v8944 = vrcp.pop %v8880
        %v8945 = vmul.f32 %v8626, %v8881
        %v8946 = vmul.f32 %v8628, %v8882
        %v8947 = vmul.f32 %v8630, %v8883
        %v8948 = vmul.f32 %v8632, %v8884
        %v8949 = vmul.f32 %v8634, %v8885
        %v8950 = vmul.f32 %v8636, %v8886
        %v8951 = vmul.f32 %v8638, %v8887
        %v8952 = vmul.f32 %v8640, %v8888
        %v8953 = vmul.f32 %v8642, %v8889
        %v8954 = vmul.f32 %v8644, %v8890
        %v8955 = vmul.f32 %v8646, %v8891
        %v8956 = vmul.f32 %v8648, %v8892
        %v8957 = vmul.f32 %v8650, %v8893
        %v8958 = vmul.f32 %v8652, %v8894
        %v8959 = vmul.f32 %v8654, %v8895
        %v8960 = vmul.f32 %v8656, %v8896
        %v8961 = vmul.f32 %v8658, %v8897
        %v8962 = vmul.f32 %v8660, %v8898
        %v8963 = vmul.f32 %v8662, %v8899
        %v8964 = vmul.f32 %v8664, %v8900
        %v8965 = vmul.f32 %v8666, %v8901
        %v8966 = vmul.f32 %v8668, %v8902
        %v8967 = vmul.f32 %v8670, %v8903
        %v8968 = vmul.f32 %v8672, %v8904
        %v8969 = vmul.f32 %v8674, %v8905
        %v8970 = vmul.f32 %v8676, %v8906
        %v8971 = vmul.f32 %v8678, %v8907
        %v8972 = vmul.f32 %v8680, %v8908
        %v8973 = vmul.f32 %v8682, %v8909
        %v8974 = vmul.f32 %v8684, %v8910
        %v8975 = vmul.f32 %v8686, %v8911
        %v8976 = vmul.f32 %v8688, %v8912
        %v8977 = vmul.f32 %v8690, %v8913
        %v8978 = vmul.f32 %v8692, %v8914
        %v8979 = vmul.f32 %v8694, %v8915
        %v8980 = vmul.f32 %v8696, %v8916
        %v8981 = vmul.f32 %v8698, %v8917
        %v8982 = vmul.f32 %v8700, %v8918
        %v8983 = vmul.f32 %v8702, %v8919
        %v8984 = vmul.f32 %v8704, %v8920
        %v8985 = vmul.f32 %v8706, %v8921
        %v8986 = vmul.f32 %v8708, %v8922
        %v8987 = vmul.f32 %v8710, %v8923
        %v8988 = vmul.f32 %v8712, %v8924
        %v8989 = vmul.f32 %v8714, %v8925
        %v8990 = vmul.f32 %v8716, %v8926
        %v8991 = vmul.f32 %v8718, %v8927
        %v8992 = vmul.f32 %v8720, %v8928
        %v8993 = vmul.f32 %v8722, %v8929
        %v8994 = vmul.f32 %v8724, %v8930
        %v8995 = vmul.f32 %v8726, %v8931
        %v8996 = vmul.f32 %v8728, %v8932
        %v8997 = vmul.f32 %v8730, %v8933
        %v8998 = vmul.f32 %v8732, %v8934
        %v8999 = vmul.f32 %v8734, %v8935
        %v9000 = vmul.f32 %v8736, %v8936
        %v9001 = vmul.f32 %v8738, %v8937
        %v9002 = vmul.f32 %v8740, %v8938
        %v9003 = vmul.f32 %v8742, %v8939
        %v9004 = vmul.f32 %v8744, %v8940
        %v9005 = vmul.f32 %v8746, %v8941
        %v9006 = vmul.f32 %v8748, %v8942
        %v9007 = vmul.f32 %v8750, %v8943
        %v9008 = vmul.f32 %v8752, %v8944
        %9009 = vst [vmem:[%s325] sm:$0xff] %v8945
        %9010 = vst [vmem:[%s325 + $0x20] sm:$0xff] %v8946
        %9011 = vst [vmem:[%s325 + $0x40] sm:$0xff] %v8947
        %9012 = vst [vmem:[%s325 + $0x60] sm:$0xff] %v8948
        %9013 = vst [vmem:[%s325 + $0x80] sm:$0xff] %v8949
        %9014 = vst [vmem:[%s325 + $0xa0] sm:$0xff] %v8950
        %9015 = vst [vmem:[%s325 + $0xc0] sm:$0xff] %v8951
        %9016 = vst [vmem:[%s325 + $0xe0] sm:$0xff] %v8952
        %9017 = vst [vmem:[%s325 + $0x100] sm:$0xff] %v8953
        %9018 = vst [vmem:[%s325 + $0x120] sm:$0xff] %v8954
        %9019 = vst [vmem:[%s325 + $0x140] sm:$0xff] %v8955
        %9020 = vst [vmem:[%s325 + $0x160] sm:$0xff] %v8956
        %9021 = vst [vmem:[%s325 + $0x180] sm:$0xff] %v8957
        %9022 = vst [vmem:[%s325 + $0x1a0] sm:$0xff] %v8958
        %9023 = vst [vmem:[%s325 + $0x1c0] sm:$0xff] %v8959
        %9024 = vst [vmem:[%s325 + $0x1e0] sm:$0xff] %v8960
        %9025 = vst [vmem:[%s325 + $0x8] sm:$0xff] %v8961
        %9026 = vst [vmem:[%s325 + $0x28] sm:$0xff] %v8962
        %9027 = vst [vmem:[%s325 + $0x48] sm:$0xff] %v8963
        %9028 = vst [vmem:[%s325 + $0x68] sm:$0xff] %v8964
        %9029 = vst [vmem:[%s325 + $0x88] sm:$0xff] %v8965
        %9030 = vst [vmem:[%s325 + $0xa8] sm:$0xff] %v8966
        %9031 = vst [vmem:[%s325 + $0xc8] sm:$0xff] %v8967
        %9032 = vst [vmem:[%s325 + $0xe8] sm:$0xff] %v8968
        %9033 = vst [vmem:[%s325 + $0x108] sm:$0xff] %v8969
        %9034 = vst [vmem:[%s325 + $0x128] sm:$0xff] %v8970
        %9035 = vst [vmem:[%s325 + $0x148] sm:$0xff] %v8971
        %9036 = vst [vmem:[%s325 + $0x168] sm:$0xff] %v8972
        %9037 = vst [vmem:[%s325 + $0x188] sm:$0xff] %v8973
        %9038 = vst [vmem:[%s325 + $0x1a8] sm:$0xff] %v8974
        %9039 = vst [vmem:[%s325 + $0x1c8] sm:$0xff] %v8975
        %9040 = vst [vmem:[%s325 + $0x1e8] sm:$0xff] %v8976
        %9041 = vst [vmem:[%s325 + $0x10] sm:$0xff] %v8977
        %9042 = vst [vmem:[%s325 + $0x30] sm:$0xff] %v8978
        %9043 = vst [vmem:[%s325 + $0x50] sm:$0xff] %v8979
        %9044 = vst [vmem:[%s325 + $0x70] sm:$0xff] %v8980
        %9045 = vst [vmem:[%s325 + $0x90] sm:$0xff] %v8981
        %9046 = vst [vmem:[%s325 + $0xb0] sm:$0xff] %v8982
        %9047 = vst [vmem:[%s325 + $0xd0] sm:$0xff] %v8983
        %9048 = vst [vmem:[%s325 + $0xf0] sm:$0xff] %v8984
        %9049 = vst [vmem:[%s325 + $0x110] sm:$0xff] %v8985
        %9050 = vst [vmem:[%s325 + $0x130] sm:$0xff] %v8986
        %9051 = vst [vmem:[%s325 + $0x150] sm:$0xff] %v8987
        %9052 = vst [vmem:[%s325 + $0x170] sm:$0xff] %v8988
        %9053 = vst [vmem:[%s325 + $0x190] sm:$0xff] %v8989
        %9054 = vst [vmem:[%s325 + $0x1b0] sm:$0xff] %v8990
        %9055 = vst [vmem:[%s325 + $0x1d0] sm:$0xff] %v8991
        %9056 = vst [vmem:[%s325 + $0x1f0] sm:$0xff] %v8992
        %9057 = vst [vmem:[%s325 + $0x18] sm:$0xff] %v8993
        %9058 = vst [vmem:[%s325 + $0x38] sm:$0xff] %v8994
        %9059 = vst [vmem:[%s325 + $0x58] sm:$0xff] %v8995
        %9060 = vst [vmem:[%s325 + $0x78] sm:$0xff] %v8996
        %9061 = vst [vmem:[%s325 + $0x98] sm:$0xff] %v8997
        %9062 = vst [vmem:[%s325 + $0xb8] sm:$0xff] %v8998
        %9063 = vst [vmem:[%s325 + $0xd8] sm:$0xff] %v8999
        %9064 = vst [vmem:[%s325 + $0xf8] sm:$0xff] %v9000
        %9065 = vst [vmem:[%s325 + $0x118] sm:$0xff] %v9001
        %9066 = vst [vmem:[%s325 + $0x138] sm:$0xff] %v9002
        %9067 = vst [vmem:[%s325 + $0x158] sm:$0xff] %v9003
        %9068 = vst [vmem:[%s325 + $0x178] sm:$0xff] %v9004
        %9069 = vst [vmem:[%s325 + $0x198] sm:$0xff] %v9005
        %9070 = vst [vmem:[%s325 + $0x1b8] sm:$0xff] %v9006
        %9071 = vst [vmem:[%s325 + $0x1d8] sm:$0xff] %v9007
        %9072 = vst [vmem:[%s325 + $0x1f8] sm:$0xff] %v9008
        %v9073 = vpack.c.bf16 %v8946, %v8945
        %v9074 = vpack.c.bf16 %v8948, %v8947
        %v9075 = vpack.c.bf16 %v8950, %v8949
        %v9076 = vpack.c.bf16 %v8952, %v8951
        %v9077 = vpack.c.bf16 %v8954, %v8953
        %v9078 = vpack.c.bf16 %v8956, %v8955
        %v9079 = vpack.c.bf16 %v8958, %v8957
        %v9080 = vpack.c.bf16 %v8960, %v8959
        %v9081 = vpack.c.bf16 %v8962, %v8961
        %v9082 = vpack.c.bf16 %v8964, %v8963
        %v9083 = vpack.c.bf16 %v8966, %v8965
        %v9084 = vpack.c.bf16 %v8968, %v8967
        %v9085 = vpack.c.bf16 %v8970, %v8969
        %v9086 = vpack.c.bf16 %v8972, %v8971
        %v9087 = vpack.c.bf16 %v8974, %v8973
        %v9088 = vpack.c.bf16 %v8976, %v8975
        %v9089 = vpack.c.bf16 %v8978, %v8977
        %v9090 = vpack.c.bf16 %v8980, %v8979
        %v9091 = vpack.c.bf16 %v8982, %v8981
        %v9092 = vpack.c.bf16 %v8984, %v8983
        %v9093 = vpack.c.bf16 %v8986, %v8985
        %v9094 = vpack.c.bf16 %v8988, %v8987
        %v9095 = vpack.c.bf16 %v8990, %v8989
        %v9096 = vpack.c.bf16 %v8992, %v8991
        %v9097 = vpack.c.bf16 %v8994, %v8993
        %v9098 = vpack.c.bf16 %v8996, %v8995
        %v9099 = vpack.c.bf16 %v8998, %v8997
        %v9100 = vpack.c.bf16 %v9000, %v8999
        %v9101 = vpack.c.bf16 %v9002, %v9001
        %v9102 = vpack.c.bf16 %v9004, %v9003
        %v9103 = vpack.c.bf16 %v9006, %v9005
        %v9104 = vpack.c.bf16 %v9008, %v9007
        %9105 = vmatprep.subr.bf16.mxu0 0
        %9106 = vmatpush1.bf16.msra.mxu0 %v7923
        %9107 = vmatprep.subr.bf16.mxu0 0
        %9108 = vmatpush1.bf16.msra.mxu0 %v7922
        %9109 = vmatprep.subr.bf16.mxu0 0
        %9110 = vmatpush1.bf16.msra.mxu0 %v7921
        %9111 = vmatprep.subr.bf16.mxu0 0
        %9112 = vmatpush1.bf16.msra.mxu0 %v7920
        %9113 = vmatprep.subr.bf16.mxu0 0
        %9114 = vmatpush1.bf16.msra.mxu0 %v7919
        %9115 = vmatprep.subr.bf16.mxu0 0
        %9116 = vmatpush1.bf16.msra.mxu0 %v7918
        %9117 = vmatprep.subr.bf16.mxu0 0
        %9118 = vmatpush1.bf16.msra.mxu0 %v7917
        %9119 = vmatprep.subr.bf16.mxu0 0
        %9120 = vmatpush1.bf16.msra.mxu0 %v7916
        %9121 = vmatprep.subr.bf16.mxu0 0
        %9122 = vmatpush2.bf16.msra.mxu0 0
        %9123 = vmatprep.subr.bf16.mxu0 0
        %9124 = vmatpush2.bf16.msra.mxu0 0
        %9125 = vmatprep.subr.bf16.mxu0 0
        %9126 = vmatpush2.bf16.msra.mxu0 0
        %9127 = vmatprep.subr.bf16.mxu0 0
        %9128 = vmatpush2.bf16.msra.mxu0 0
        %9129 = vmatprep.subr.bf16.mxu0 0
        %9130 = vmatpush2.bf16.msra.mxu0 0
        %9131 = vmatprep.subr.bf16.mxu0 0
        %9132 = vmatpush2.bf16.msra.mxu0 0
        %9133 = vmatprep.subr.bf16.mxu0 0
        %9134 = vmatpush2.bf16.msra.mxu0 0
        %9135 = vmatprep.subr.bf16.mxu0 0
        %9136 = vmatpush2.bf16.msra.mxu0 0
        %9137 = vmatprep.mubr.bf16.mxu0 0
        %9138 = vmatmul.mubr.bf16.gmra.mxu0 %v9073
        %v9139 = vpop.f32.mrf.mxu0
        %v9140 = vadd.f32 0.0, %v9139
        %v9141 = vpop.f32.mrf.mxu0
        %v9142 = vpop.f32.mrf.mxu0
        %v9143 = vadd.f32 0.0, %v9142
        %v9144 = vpop.f32.mrf.mxu0
        %9145 = vmatprep.mubr.bf16.mxu0 0
        %9146 = vmatmul.mubr.bf16.gmra.mxu0 %v9074
        %v9147 = vpop.f32.mrf.mxu0
        %v9148 = vadd.f32 0.0, %v9147
        %v9149 = vpop.f32.mrf.mxu0
        %v9150 = vpop.f32.mrf.mxu0
        %v9151 = vadd.f32 0.0, %v9150
        %v9152 = vpop.f32.mrf.mxu0
        %9153 = vmatprep.mubr.bf16.mxu0 0
        %9154 = vmatmul.mubr.bf16.gmra.mxu0 %v9075
        %v9155 = vpop.f32.mrf.mxu0
        %v9156 = vadd.f32 0.0, %v9155
        %v9157 = vpop.f32.mrf.mxu0
        %v9158 = vpop.f32.mrf.mxu0
        %v9159 = vadd.f32 0.0, %v9158
        %v9160 = vpop.f32.mrf.mxu0
        %9161 = vmatprep.mubr.bf16.mxu0 0
        %9162 = vmatmul.mubr.bf16.gmra.mxu0 %v9076
        %v9163 = vpop.f32.mrf.mxu0
        %v9164 = vadd.f32 0.0, %v9163
        %v9165 = vpop.f32.mrf.mxu0
        %v9166 = vpop.f32.mrf.mxu0
        %v9167 = vadd.f32 0.0, %v9166
        %v9168 = vpop.f32.mrf.mxu0
        %9169 = vmatprep.mubr.bf16.mxu0 0
        %9170 = vmatmul.mubr.bf16.gmra.mxu0 %v9077
        %v9171 = vpop.f32.mrf.mxu0
        %v9172 = vadd.f32 0.0, %v9171
        %v9173 = vpop.f32.mrf.mxu0
        %v9174 = vpop.f32.mrf.mxu0
        %v9175 = vadd.f32 0.0, %v9174
        %v9176 = vpop.f32.mrf.mxu0
        %9177 = vmatprep.mubr.bf16.mxu0 0
        %9178 = vmatmul.mubr.bf16.gmra.mxu0 %v9078
        %v9179 = vpop.f32.mrf.mxu0
        %v9180 = vadd.f32 0.0, %v9179
        %v9181 = vpop.f32.mrf.mxu0
        %v9182 = vpop.f32.mrf.mxu0
        %v9183 = vadd.f32 0.0, %v9182
        %v9184 = vpop.f32.mrf.mxu0
        %9185 = vmatprep.mubr.bf16.mxu0 0
        %9186 = vmatmul.mubr.bf16.gmra.mxu0 %v9079
        %v9187 = vpop.f32.mrf.mxu0
        %v9188 = vadd.f32 0.0, %v9187
        %v9189 = vpop.f32.mrf.mxu0
        %v9190 = vpop.f32.mrf.mxu0
        %v9191 = vadd.f32 0.0, %v9190
        %v9192 = vpop.f32.mrf.mxu0
        %9193 = vmatprep.mubr.bf16.mxu0 0
        %9194 = vmatmul.mubr.bf16.gmra.mxu0 %v9080
        %v9195 = vpop.f32.mrf.mxu0
        %v9196 = vadd.f32 0.0, %v9195
        %v9197 = vpop.f32.mrf.mxu0
        %v9198 = vpop.f32.mrf.mxu0
        %v9199 = vadd.f32 0.0, %v9198
        %v9200 = vpop.f32.mrf.mxu0
        %9201 = vdwg.mxu0
        %9202 = vmatprep.subr.bf16.mxu0 0
        %9203 = vmatpush1.bf16.msra.mxu0 %v7931
        %9204 = vmatprep.subr.bf16.mxu0 0
        %9205 = vmatpush1.bf16.msra.mxu0 %v7930
        %9206 = vmatprep.subr.bf16.mxu0 0
        %9207 = vmatpush1.bf16.msra.mxu0 %v7929
        %9208 = vmatprep.subr.bf16.mxu0 0
        %9209 = vmatpush1.bf16.msra.mxu0 %v7928
        %9210 = vmatprep.subr.bf16.mxu0 0
        %9211 = vmatpush1.bf16.msra.mxu0 %v7927
        %9212 = vmatprep.subr.bf16.mxu0 0
        %9213 = vmatpush1.bf16.msra.mxu0 %v7926
        %9214 = vmatprep.subr.bf16.mxu0 0
        %9215 = vmatpush1.bf16.msra.mxu0 %v7925
        %9216 = vmatprep.subr.bf16.mxu0 0
        %9217 = vmatpush1.bf16.msra.mxu0 %v7924
        %9218 = vmatprep.subr.bf16.mxu0 0
        %9219 = vmatpush2.bf16.msra.mxu0 0
        %9220 = vmatprep.subr.bf16.mxu0 0
        %9221 = vmatpush2.bf16.msra.mxu0 0
        %9222 = vmatprep.subr.bf16.mxu0 0
        %9223 = vmatpush2.bf16.msra.mxu0 0
        %9224 = vmatprep.subr.bf16.mxu0 0
        %9225 = vmatpush2.bf16.msra.mxu0 0
        %9226 = vmatprep.subr.bf16.mxu0 0
        %9227 = vmatpush2.bf16.msra.mxu0 0
        %9228 = vmatprep.subr.bf16.mxu0 0
        %9229 = vmatpush2.bf16.msra.mxu0 0
        %9230 = vmatprep.subr.bf16.mxu0 0
        %9231 = vmatpush2.bf16.msra.mxu0 0
        %9232 = vmatprep.subr.bf16.mxu0 0
        %9233 = vmatpush2.bf16.msra.mxu0 0
        %9234 = vmatprep.mubr.bf16.mxu0 0
        %9235 = vmatmul.mubr.bf16.gmra.mxu0 %v9081
        %v9236 = vpop.f32.mrf.mxu0
        %v9237 = vadd.f32 0.0, %v9236
        %v9238 = vpop.f32.mrf.mxu0
        %v9239 = vpop.f32.mrf.mxu0
        %v9240 = vadd.f32 0.0, %v9239
        %v9241 = vpop.f32.mrf.mxu0
        %9242 = vmatprep.mubr.bf16.mxu0 0
        %9243 = vmatmul.mubr.bf16.gmra.mxu0 %v9082
        %v9244 = vpop.f32.mrf.mxu0
        %v9245 = vadd.f32 0.0, %v9244
        %v9246 = vpop.f32.mrf.mxu0
        %v9247 = vpop.f32.mrf.mxu0
        %v9248 = vadd.f32 0.0, %v9247
        %v9249 = vpop.f32.mrf.mxu0
        %9250 = vmatprep.mubr.bf16.mxu0 0
        %9251 = vmatmul.mubr.bf16.gmra.mxu0 %v9083
        %v9252 = vpop.f32.mrf.mxu0
        %v9253 = vadd.f32 0.0, %v9252
        %v9254 = vpop.f32.mrf.mxu0
        %v9255 = vpop.f32.mrf.mxu0
        %v9256 = vadd.f32 0.0, %v9255
        %v9257 = vpop.f32.mrf.mxu0
        %9258 = vmatprep.mubr.bf16.mxu0 0
        %9259 = vmatmul.mubr.bf16.gmra.mxu0 %v9084
        %v9260 = vpop.f32.mrf.mxu0
        %v9261 = vadd.f32 0.0, %v9260
        %v9262 = vpop.f32.mrf.mxu0
        %v9263 = vpop.f32.mrf.mxu0
        %v9264 = vadd.f32 0.0, %v9263
        %v9265 = vpop.f32.mrf.mxu0
        %9266 = vmatprep.mubr.bf16.mxu0 0
        %9267 = vmatmul.mubr.bf16.gmra.mxu0 %v9085
        %v9268 = vpop.f32.mrf.mxu0
        %v9269 = vadd.f32 0.0, %v9268
        %v9270 = vpop.f32.mrf.mxu0
        %v9271 = vpop.f32.mrf.mxu0
        %v9272 = vadd.f32 0.0, %v9271
        %v9273 = vpop.f32.mrf.mxu0
        %9274 = vmatprep.mubr.bf16.mxu0 0
        %9275 = vmatmul.mubr.bf16.gmra.mxu0 %v9086
        %v9276 = vpop.f32.mrf.mxu0
        %v9277 = vadd.f32 0.0, %v9276
        %v9278 = vpop.f32.mrf.mxu0
        %v9279 = vpop.f32.mrf.mxu0
        %v9280 = vadd.f32 0.0, %v9279
        %v9281 = vpop.f32.mrf.mxu0
        %9282 = vmatprep.mubr.bf16.mxu0 0
        %9283 = vmatmul.mubr.bf16.gmra.mxu0 %v9087
        %v9284 = vpop.f32.mrf.mxu0
        %v9285 = vadd.f32 0.0, %v9284
        %v9286 = vpop.f32.mrf.mxu0
        %v9287 = vpop.f32.mrf.mxu0
        %v9288 = vadd.f32 0.0, %v9287
        %v9289 = vpop.f32.mrf.mxu0
        %9290 = vmatprep.mubr.bf16.mxu0 0
        %9291 = vmatmul.mubr.bf16.gmra.mxu0 %v9088
        %v9292 = vpop.f32.mrf.mxu0
        %v9293 = vadd.f32 0.0, %v9292
        %v9294 = vpop.f32.mrf.mxu0
        %v9295 = vpop.f32.mrf.mxu0
        %v9296 = vadd.f32 0.0, %v9295
        %v9297 = vpop.f32.mrf.mxu0
        %9298 = vdwg.mxu0
        %9299 = vmatprep.subr.bf16.mxu0 0
        %9300 = vmatpush1.bf16.msra.mxu0 %v7939
        %9301 = vmatprep.subr.bf16.mxu0 0
        %9302 = vmatpush1.bf16.msra.mxu0 %v7938
        %9303 = vmatprep.subr.bf16.mxu0 0
        %9304 = vmatpush1.bf16.msra.mxu0 %v7937
        %9305 = vmatprep.subr.bf16.mxu0 0
        %9306 = vmatpush1.bf16.msra.mxu0 %v7936
        %9307 = vmatprep.subr.bf16.mxu0 0
        %9308 = vmatpush1.bf16.msra.mxu0 %v7935
        %9309 = vmatprep.subr.bf16.mxu0 0
        %9310 = vmatpush1.bf16.msra.mxu0 %v7934
        %9311 = vmatprep.subr.bf16.mxu0 0
        %9312 = vmatpush1.bf16.msra.mxu0 %v7933
        %9313 = vmatprep.subr.bf16.mxu0 0
        %9314 = vmatpush1.bf16.msra.mxu0 %v7932
        %9315 = vmatprep.subr.bf16.mxu0 0
        %9316 = vmatpush2.bf16.msra.mxu0 0
        %9317 = vmatprep.subr.bf16.mxu0 0
        %9318 = vmatpush2.bf16.msra.mxu0 0
        %9319 = vmatprep.subr.bf16.mxu0 0
        %9320 = vmatpush2.bf16.msra.mxu0 0
        %9321 = vmatprep.subr.bf16.mxu0 0
        %9322 = vmatpush2.bf16.msra.mxu0 0
        %9323 = vmatprep.subr.bf16.mxu0 0
        %9324 = vmatpush2.bf16.msra.mxu0 0
        %9325 = vmatprep.subr.bf16.mxu0 0
        %9326 = vmatpush2.bf16.msra.mxu0 0
        %9327 = vmatprep.subr.bf16.mxu0 0
        %9328 = vmatpush2.bf16.msra.mxu0 0
        %9329 = vmatprep.subr.bf16.mxu0 0
        %9330 = vmatpush2.bf16.msra.mxu0 0
        %9331 = vmatprep.mubr.bf16.mxu0 0
        %9332 = vmatmul.mubr.bf16.gmra.mxu0 %v9089
        %v9333 = vpop.f32.mrf.mxu0
        %v9334 = vadd.f32 0.0, %v9333
        %v9335 = vpop.f32.mrf.mxu0
        %v9336 = vpop.f32.mrf.mxu0
        %v9337 = vadd.f32 0.0, %v9336
        %v9338 = vpop.f32.mrf.mxu0
        %9339 = vmatprep.mubr.bf16.mxu0 0
        %9340 = vmatmul.mubr.bf16.gmra.mxu0 %v9090
        %v9341 = vpop.f32.mrf.mxu0
        %v9342 = vadd.f32 0.0, %v9341
        %v9343 = vpop.f32.mrf.mxu0
        %v9344 = vpop.f32.mrf.mxu0
        %v9345 = vadd.f32 0.0, %v9344
        %v9346 = vpop.f32.mrf.mxu0
        %9347 = vmatprep.mubr.bf16.mxu0 0
        %9348 = vmatmul.mubr.bf16.gmra.mxu0 %v9091
        %v9349 = vpop.f32.mrf.mxu0
        %v9350 = vadd.f32 0.0, %v9349
        %v9351 = vpop.f32.mrf.mxu0
        %v9352 = vpop.f32.mrf.mxu0
        %v9353 = vadd.f32 0.0, %v9352
        %v9354 = vpop.f32.mrf.mxu0
        %9355 = vmatprep.mubr.bf16.mxu0 0
        %9356 = vmatmul.mubr.bf16.gmra.mxu0 %v9092
        %v9357 = vpop.f32.mrf.mxu0
        %v9358 = vadd.f32 0.0, %v9357
        %v9359 = vpop.f32.mrf.mxu0
        %v9360 = vpop.f32.mrf.mxu0
        %v9361 = vadd.f32 0.0, %v9360
        %v9362 = vpop.f32.mrf.mxu0
        %9363 = vmatprep.mubr.bf16.mxu0 0
        %9364 = vmatmul.mubr.bf16.gmra.mxu0 %v9093
        %v9365 = vpop.f32.mrf.mxu0
        %v9366 = vadd.f32 0.0, %v9365
        %v9367 = vpop.f32.mrf.mxu0
        %v9368 = vpop.f32.mrf.mxu0
        %v9369 = vadd.f32 0.0, %v9368
        %v9370 = vpop.f32.mrf.mxu0
        %9371 = vmatprep.mubr.bf16.mxu0 0
        %9372 = vmatmul.mubr.bf16.gmra.mxu0 %v9094
        %v9373 = vpop.f32.mrf.mxu0
        %v9374 = vadd.f32 0.0, %v9373
        %v9375 = vpop.f32.mrf.mxu0
        %v9376 = vpop.f32.mrf.mxu0
        %v9377 = vadd.f32 0.0, %v9376
        %v9378 = vpop.f32.mrf.mxu0
        %9379 = vmatprep.mubr.bf16.mxu0 0
        %9380 = vmatmul.mubr.bf16.gmra.mxu0 %v9095
        %v9381 = vpop.f32.mrf.mxu0
        %v9382 = vadd.f32 0.0, %v9381
        %v9383 = vpop.f32.mrf.mxu0
        %v9384 = vpop.f32.mrf.mxu0
        %v9385 = vadd.f32 0.0, %v9384
        %v9386 = vpop.f32.mrf.mxu0
        %9387 = vmatprep.mubr.bf16.mxu0 0
        %9388 = vmatmul.mubr.bf16.gmra.mxu0 %v9096
        %v9389 = vpop.f32.mrf.mxu0
        %v9390 = vadd.f32 0.0, %v9389
        %v9391 = vpop.f32.mrf.mxu0
        %v9392 = vpop.f32.mrf.mxu0
        %v9393 = vadd.f32 0.0, %v9392
        %v9394 = vpop.f32.mrf.mxu0
        %9395 = vdwg.mxu0
        %9396 = vmatprep.subr.bf16.mxu0 0
        %9397 = vmatpush1.bf16.msra.mxu0 %v7947
        %9398 = vmatprep.subr.bf16.mxu0 0
        %9399 = vmatpush1.bf16.msra.mxu0 %v7946
        %9400 = vmatprep.subr.bf16.mxu0 0
        %9401 = vmatpush1.bf16.msra.mxu0 %v7945
        %9402 = vmatprep.subr.bf16.mxu0 0
        %9403 = vmatpush1.bf16.msra.mxu0 %v7944
        %9404 = vmatprep.subr.bf16.mxu0 0
        %9405 = vmatpush1.bf16.msra.mxu0 %v7943
        %9406 = vmatprep.subr.bf16.mxu0 0
        %9407 = vmatpush1.bf16.msra.mxu0 %v7942
        %9408 = vmatprep.subr.bf16.mxu0 0
        %9409 = vmatpush1.bf16.msra.mxu0 %v7941
        %9410 = vmatprep.subr.bf16.mxu0 0
        %9411 = vmatpush1.bf16.msra.mxu0 %v7940
        %9412 = vmatprep.subr.bf16.mxu0 0
        %9413 = vmatpush2.bf16.msra.mxu0 0
        %9414 = vmatprep.subr.bf16.mxu0 0
        %9415 = vmatpush2.bf16.msra.mxu0 0
        %9416 = vmatprep.subr.bf16.mxu0 0
        %9417 = vmatpush2.bf16.msra.mxu0 0
        %9418 = vmatprep.subr.bf16.mxu0 0
        %9419 = vmatpush2.bf16.msra.mxu0 0
        %9420 = vmatprep.subr.bf16.mxu0 0
        %9421 = vmatpush2.bf16.msra.mxu0 0
        %9422 = vmatprep.subr.bf16.mxu0 0
        %9423 = vmatpush2.bf16.msra.mxu0 0
        %9424 = vmatprep.subr.bf16.mxu0 0
        %9425 = vmatpush2.bf16.msra.mxu0 0
        %9426 = vmatprep.subr.bf16.mxu0 0
        %9427 = vmatpush2.bf16.msra.mxu0 0
        %9428 = vmatprep.mubr.bf16.mxu0 0
        %9429 = vmatmul.mubr.bf16.gmra.mxu0 %v9097
        %v9430 = vpop.f32.mrf.mxu0
        %v9431 = vadd.f32 0.0, %v9430
        %v9432 = vpop.f32.mrf.mxu0
        %v9433 = vpop.f32.mrf.mxu0
        %v9434 = vadd.f32 0.0, %v9433
        %v9435 = vpop.f32.mrf.mxu0
        %9436 = vmatprep.mubr.bf16.mxu0 0
        %9437 = vmatmul.mubr.bf16.gmra.mxu0 %v9098
        %v9438 = vpop.f32.mrf.mxu0
        %v9439 = vadd.f32 0.0, %v9438
        %v9440 = vpop.f32.mrf.mxu0
        %v9441 = vpop.f32.mrf.mxu0
        %v9442 = vadd.f32 0.0, %v9441
        %v9443 = vpop.f32.mrf.mxu0
        %9444 = vmatprep.mubr.bf16.mxu0 0
        %9445 = vmatmul.mubr.bf16.gmra.mxu0 %v9099
        %v9446 = vpop.f32.mrf.mxu0
        %v9447 = vadd.f32 0.0, %v9446
        %v9448 = vpop.f32.mrf.mxu0
        %v9449 = vpop.f32.mrf.mxu0
        %v9450 = vadd.f32 0.0, %v9449
        %v9451 = vpop.f32.mrf.mxu0
        %9452 = vmatprep.mubr.bf16.mxu0 0
        %9453 = vmatmul.mubr.bf16.gmra.mxu0 %v9100
        %v9454 = vpop.f32.mrf.mxu0
        %v9455 = vadd.f32 0.0, %v9454
        %v9456 = vpop.f32.mrf.mxu0
        %v9457 = vpop.f32.mrf.mxu0
        %v9458 = vadd.f32 0.0, %v9457
        %v9459 = vpop.f32.mrf.mxu0
        %9460 = vmatprep.mubr.bf16.mxu0 0
        %9461 = vmatmul.mubr.bf16.gmra.mxu0 %v9101
        %v9462 = vpop.f32.mrf.mxu0
        %v9463 = vadd.f32 0.0, %v9462
        %v9464 = vpop.f32.mrf.mxu0
        %v9465 = vpop.f32.mrf.mxu0
        %v9466 = vadd.f32 0.0, %v9465
        %v9467 = vpop.f32.mrf.mxu0
        %9468 = vmatprep.mubr.bf16.mxu0 0
        %9469 = vmatmul.mubr.bf16.gmra.mxu0 %v9102
        %v9470 = vpop.f32.mrf.mxu0
        %v9471 = vadd.f32 0.0, %v9470
        %v9472 = vpop.f32.mrf.mxu0
        %v9473 = vpop.f32.mrf.mxu0
        %v9474 = vadd.f32 0.0, %v9473
        %v9475 = vpop.f32.mrf.mxu0
        %9476 = vmatprep.mubr.bf16.mxu0 0
        %9477 = vmatmul.mubr.bf16.gmra.mxu0 %v9103
        %v9478 = vpop.f32.mrf.mxu0
        %v9479 = vadd.f32 0.0, %v9478
        %v9480 = vpop.f32.mrf.mxu0
        %v9481 = vpop.f32.mrf.mxu0
        %v9482 = vadd.f32 0.0, %v9481
        %v9483 = vpop.f32.mrf.mxu0
        %9484 = vmatprep.mubr.bf16.mxu0 0
        %9485 = vmatmul.mubr.bf16.gmra.mxu0 %v9104
        %v9486 = vpop.f32.mrf.mxu0
        %v9487 = vadd.f32 0.0, %v9486
        %v9488 = vpop.f32.mrf.mxu0
        %v9489 = vpop.f32.mrf.mxu0
        %v9490 = vadd.f32 0.0, %v9489
        %v9491 = vpop.f32.mrf.mxu0
        %9492 = vdwg.mxu0
        %v9493 = vcombine.low %v9140, %v9334
        %v9494 = vcombine.high %v9140, %v9334
        %v9496 = vunpack.c.l.s4 1983009808
        %v9497 = vunpack.c.0.s8 %v9496
        %v9498 = vlaneseq
        %v9499 = vshrl.u32 %v9498, 7
        %v9500 = vsub.s32 %v9497, %v9499
        %v9501 = vrot.slane %v9493, %v9500
        %v9503 = vunpack.c.l.s4 1983009808
        %v9504 = vunpack.c.0.s8 %v9503
        %v9505 = vlaneseq
        %v9506 = vshrl.u32 %v9505, 7
        %v9507 = vsub.s32 %v9504, %v9506
        %v9508 = vrot.slane %v9494, %v9507
        %v9509 = vcombine.low %v9237, %v9431
        %v9510 = vcombine.high %v9237, %v9431
        %v9512 = vunpack.c.l.s4 1983009808
        %v9513 = vunpack.c.0.s8 %v9512
        %v9514 = vlaneseq
        %v9515 = vshrl.u32 %v9514, 7
        %v9516 = vsub.s32 %v9513, %v9515
        %v9517 = vrot.slane %v9509, %v9516
        %v9519 = vunpack.c.l.s4 1983009808
        %v9520 = vunpack.c.0.s8 %v9519
        %v9521 = vlaneseq
        %v9522 = vshrl.u32 %v9521, 7
        %v9523 = vsub.s32 %v9520, %v9522
        %v9524 = vrot.slane %v9510, %v9523
        %v9525 = vcombine.low %v9501, %v9517
        %v9526 = vcombine.high %v9501, %v9517
        %v9528 = vunpack.c.l.s4 1934713408
        %v9529 = vunpack.c.0.s8 %v9528
        %v9530 = vlaneseq
        %v9531 = vshrl.u32 %v9530, 7
        %v9532 = vsub.s32 %v9529, %v9531
        %v9533 = vrot.slane %v9525, %v9532
        %v9535 = vunpack.c.l.s4 1934713408
        %v9536 = vunpack.c.0.s8 %v9535
        %v9537 = vlaneseq
        %v9538 = vshrl.u32 %v9537, 7
        %v9539 = vsub.s32 %v9536, %v9538
        %v9540 = vrot.slane %v9526, %v9539
        %v9541 = vcombine.low %v9508, %v9524
        %v9542 = vcombine.high %v9508, %v9524
        %v9544 = vunpack.c.l.s4 1934713408
        %v9545 = vunpack.c.0.s8 %v9544
        %v9546 = vlaneseq
        %v9547 = vshrl.u32 %v9546, 7
        %v9548 = vsub.s32 %v9545, %v9547
        %v9549 = vrot.slane %v9541, %v9548
        %v9551 = vunpack.c.l.s4 1934713408
        %v9552 = vunpack.c.0.s8 %v9551
        %v9553 = vlaneseq
        %v9554 = vshrl.u32 %v9553, 7
        %v9555 = vsub.s32 %v9552, %v9554
        %v9556 = vrot.slane %v9542, %v9555
        %v9557 = vcombine.high %v9533, 0.0
        %v9558 = vcombine.high %v9540, 0.0
        %v9559 = vcombine.high %v9549, 0.0
        %v9560 = vcombine.high %v9556, 0.0
        %v9561 = vcombine.low %v9143, %v9337
        %v9562 = vcombine.high %v9143, %v9337
        %v9564 = vunpack.c.l.s4 1983009808
        %v9565 = vunpack.c.0.s8 %v9564
        %v9566 = vlaneseq
        %v9567 = vshrl.u32 %v9566, 7
        %v9568 = vsub.s32 %v9565, %v9567
        %v9569 = vrot.slane %v9561, %v9568
        %v9571 = vunpack.c.l.s4 1983009808
        %v9572 = vunpack.c.0.s8 %v9571
        %v9573 = vlaneseq
        %v9574 = vshrl.u32 %v9573, 7
        %v9575 = vsub.s32 %v9572, %v9574
        %v9576 = vrot.slane %v9562, %v9575
        %v9577 = vcombine.low %v9240, %v9434
        %v9578 = vcombine.high %v9240, %v9434
        %v9580 = vunpack.c.l.s4 1983009808
        %v9581 = vunpack.c.0.s8 %v9580
        %v9582 = vlaneseq
        %v9583 = vshrl.u32 %v9582, 7
        %v9584 = vsub.s32 %v9581, %v9583
        %v9585 = vrot.slane %v9577, %v9584
        %v9587 = vunpack.c.l.s4 1983009808
        %v9588 = vunpack.c.0.s8 %v9587
        %v9589 = vlaneseq
        %v9590 = vshrl.u32 %v9589, 7
        %v9591 = vsub.s32 %v9588, %v9590
        %v9592 = vrot.slane %v9578, %v9591
        %v9593 = vcombine.low %v9569, %v9585
        %v9594 = vcombine.high %v9569, %v9585
        %v9596 = vunpack.c.l.s4 1934713408
        %v9597 = vunpack.c.0.s8 %v9596
        %v9598 = vlaneseq
        %v9599 = vshrl.u32 %v9598, 7
        %v9600 = vsub.s32 %v9597, %v9599
        %v9601 = vrot.slane %v9593, %v9600
        %v9603 = vunpack.c.l.s4 1934713408
        %v9604 = vunpack.c.0.s8 %v9603
        %v9605 = vlaneseq
        %v9606 = vshrl.u32 %v9605, 7
        %v9607 = vsub.s32 %v9604, %v9606
        %v9608 = vrot.slane %v9594, %v9607
        %v9609 = vcombine.low %v9576, %v9592
        %v9610 = vcombine.high %v9576, %v9592
        %v9612 = vunpack.c.l.s4 1934713408
        %v9613 = vunpack.c.0.s8 %v9612
        %v9614 = vlaneseq
        %v9615 = vshrl.u32 %v9614, 7
        %v9616 = vsub.s32 %v9613, %v9615
        %v9617 = vrot.slane %v9609, %v9616
        %v9619 = vunpack.c.l.s4 1934713408
        %v9620 = vunpack.c.0.s8 %v9619
        %v9621 = vlaneseq
        %v9622 = vshrl.u32 %v9621, 7
        %v9623 = vsub.s32 %v9620, %v9622
        %v9624 = vrot.slane %v9610, %v9623
        %v9625 = vcombine.high %v9601, 0.0
        %v9626 = vcombine.high %v9608, 0.0
        %v9627 = vcombine.high %v9617, 0.0
        %v9628 = vcombine.high %v9624, 0.0
        %v9629 = vcombine.low %v9148, %v9342
        %v9630 = vcombine.high %v9148, %v9342
        %v9632 = vunpack.c.l.s4 1983009808
        %v9633 = vunpack.c.0.s8 %v9632
        %v9634 = vlaneseq
        %v9635 = vshrl.u32 %v9634, 7
        %v9636 = vsub.s32 %v9633, %v9635
        %v9637 = vrot.slane %v9629, %v9636
        %v9639 = vunpack.c.l.s4 1983009808
        %v9640 = vunpack.c.0.s8 %v9639
        %v9641 = vlaneseq
        %v9642 = vshrl.u32 %v9641, 7
        %v9643 = vsub.s32 %v9640, %v9642
        %v9644 = vrot.slane %v9630, %v9643
        %v9645 = vcombine.low %v9245, %v9439
        %v9646 = vcombine.high %v9245, %v9439
        %v9648 = vunpack.c.l.s4 1983009808
        %v9649 = vunpack.c.0.s8 %v9648
        %v9650 = vlaneseq
        %v9651 = vshrl.u32 %v9650, 7
        %v9652 = vsub.s32 %v9649, %v9651
        %v9653 = vrot.slane %v9645, %v9652
        %v9655 = vunpack.c.l.s4 1983009808
        %v9656 = vunpack.c.0.s8 %v9655
        %v9657 = vlaneseq
        %v9658 = vshrl.u32 %v9657, 7
        %v9659 = vsub.s32 %v9656, %v9658
        %v9660 = vrot.slane %v9646, %v9659
        %v9661 = vcombine.low %v9637, %v9653
        %v9662 = vcombine.high %v9637, %v9653
        %v9664 = vunpack.c.l.s4 1934713408
        %v9665 = vunpack.c.0.s8 %v9664
        %v9666 = vlaneseq
        %v9667 = vshrl.u32 %v9666, 7
        %v9668 = vsub.s32 %v9665, %v9667
        %v9669 = vrot.slane %v9661, %v9668
        %v9671 = vunpack.c.l.s4 1934713408
        %v9672 = vunpack.c.0.s8 %v9671
        %v9673 = vlaneseq
        %v9674 = vshrl.u32 %v9673, 7
        %v9675 = vsub.s32 %v9672, %v9674
        %v9676 = vrot.slane %v9662, %v9675
        %v9677 = vcombine.low %v9644, %v9660
        %v9678 = vcombine.high %v9644, %v9660
        %v9680 = vunpack.c.l.s4 1934713408
        %v9681 = vunpack.c.0.s8 %v9680
        %v9682 = vlaneseq
        %v9683 = vshrl.u32 %v9682, 7
        %v9684 = vsub.s32 %v9681, %v9683
        %v9685 = vrot.slane %v9677, %v9684
        %v9687 = vunpack.c.l.s4 1934713408
        %v9688 = vunpack.c.0.s8 %v9687
        %v9689 = vlaneseq
        %v9690 = vshrl.u32 %v9689, 7
        %v9691 = vsub.s32 %v9688, %v9690
        %v9692 = vrot.slane %v9678, %v9691
        %v9693 = vcombine.high %v9669, 0.0
        %v9694 = vcombine.high %v9676, 0.0
        %v9695 = vcombine.high %v9685, 0.0
        %v9696 = vcombine.high %v9692, 0.0
        %v9697 = vcombine.low %v9151, %v9345
        %v9698 = vcombine.high %v9151, %v9345
        %v9700 = vunpack.c.l.s4 1983009808
        %v9701 = vunpack.c.0.s8 %v9700
        %v9702 = vlaneseq
        %v9703 = vshrl.u32 %v9702, 7
        %v9704 = vsub.s32 %v9701, %v9703
        %v9705 = vrot.slane %v9697, %v9704
        %v9707 = vunpack.c.l.s4 1983009808
        %v9708 = vunpack.c.0.s8 %v9707
        %v9709 = vlaneseq
        %v9710 = vshrl.u32 %v9709, 7
        %v9711 = vsub.s32 %v9708, %v9710
        %v9712 = vrot.slane %v9698, %v9711
        %v9713 = vcombine.low %v9248, %v9442
        %v9714 = vcombine.high %v9248, %v9442
        %v9716 = vunpack.c.l.s4 1983009808
        %v9717 = vunpack.c.0.s8 %v9716
        %v9718 = vlaneseq
        %v9719 = vshrl.u32 %v9718, 7
        %v9720 = vsub.s32 %v9717, %v9719
        %v9721 = vrot.slane %v9713, %v9720
        %v9723 = vunpack.c.l.s4 1983009808
        %v9724 = vunpack.c.0.s8 %v9723
        %v9725 = vlaneseq
        %v9726 = vshrl.u32 %v9725, 7
        %v9727 = vsub.s32 %v9724, %v9726
        %v9728 = vrot.slane %v9714, %v9727
        %v9729 = vcombine.low %v9705, %v9721
        %v9730 = vcombine.high %v9705, %v9721
        %v9732 = vunpack.c.l.s4 1934713408
        %v9733 = vunpack.c.0.s8 %v9732
        %v9734 = vlaneseq
        %v9735 = vshrl.u32 %v9734, 7
        %v9736 = vsub.s32 %v9733, %v9735
        %v9737 = vrot.slane %v9729, %v9736
        %v9739 = vunpack.c.l.s4 1934713408
        %v9740 = vunpack.c.0.s8 %v9739
        %v9741 = vlaneseq
        %v9742 = vshrl.u32 %v9741, 7
        %v9743 = vsub.s32 %v9740, %v9742
        %v9744 = vrot.slane %v9730, %v9743
        %v9745 = vcombine.low %v9712, %v9728
        %v9746 = vcombine.high %v9712, %v9728
        %v9748 = vunpack.c.l.s4 1934713408
        %v9749 = vunpack.c.0.s8 %v9748
        %v9750 = vlaneseq
        %v9751 = vshrl.u32 %v9750, 7
        %v9752 = vsub.s32 %v9749, %v9751
        %v9753 = vrot.slane %v9745, %v9752
        %v9755 = vunpack.c.l.s4 1934713408
        %v9756 = vunpack.c.0.s8 %v9755
        %v9757 = vlaneseq
        %v9758 = vshrl.u32 %v9757, 7
        %v9759 = vsub.s32 %v9756, %v9758
        %v9760 = vrot.slane %v9746, %v9759
        %v9761 = vcombine.high %v9737, 0.0
        %v9762 = vcombine.high %v9744, 0.0
        %v9763 = vcombine.high %v9753, 0.0
        %v9764 = vcombine.high %v9760, 0.0
        %v9765 = vcombine.low %v9156, %v9350
        %v9766 = vcombine.high %v9156, %v9350
        %v9768 = vunpack.c.l.s4 1983009808
        %v9769 = vunpack.c.0.s8 %v9768
        %v9770 = vlaneseq
        %v9771 = vshrl.u32 %v9770, 7
        %v9772 = vsub.s32 %v9769, %v9771
        %v9773 = vrot.slane %v9765, %v9772
        %v9775 = vunpack.c.l.s4 1983009808
        %v9776 = vunpack.c.0.s8 %v9775
        %v9777 = vlaneseq
        %v9778 = vshrl.u32 %v9777, 7
        %v9779 = vsub.s32 %v9776, %v9778
        %v9780 = vrot.slane %v9766, %v9779
        %v9781 = vcombine.low %v9253, %v9447
        %v9782 = vcombine.high %v9253, %v9447
        %v9784 = vunpack.c.l.s4 1983009808
        %v9785 = vunpack.c.0.s8 %v9784
        %v9786 = vlaneseq
        %v9787 = vshrl.u32 %v9786, 7
        %v9788 = vsub.s32 %v9785, %v9787
        %v9789 = vrot.slane %v9781, %v9788
        %v9791 = vunpack.c.l.s4 1983009808
        %v9792 = vunpack.c.0.s8 %v9791
        %v9793 = vlaneseq
        %v9794 = vshrl.u32 %v9793, 7
        %v9795 = vsub.s32 %v9792, %v9794
        %v9796 = vrot.slane %v9782, %v9795
        %v9797 = vcombine.low %v9773, %v9789
        %v9798 = vcombine.high %v9773, %v9789
        %v9800 = vunpack.c.l.s4 1934713408
        %v9801 = vunpack.c.0.s8 %v9800
        %v9802 = vlaneseq
        %v9803 = vshrl.u32 %v9802, 7
        %v9804 = vsub.s32 %v9801, %v9803
        %v9805 = vrot.slane %v9797, %v9804
        %v9807 = vunpack.c.l.s4 1934713408
        %v9808 = vunpack.c.0.s8 %v9807
        %v9809 = vlaneseq
        %v9810 = vshrl.u32 %v9809, 7
        %v9811 = vsub.s32 %v9808, %v9810
        %v9812 = vrot.slane %v9798, %v9811
        %v9813 = vcombine.low %v9780, %v9796
        %v9814 = vcombine.high %v9780, %v9796
        %v9816 = vunpack.c.l.s4 1934713408
        %v9817 = vunpack.c.0.s8 %v9816
        %v9818 = vlaneseq
        %v9819 = vshrl.u32 %v9818, 7
        %v9820 = vsub.s32 %v9817, %v9819
        %v9821 = vrot.slane %v9813, %v9820
        %v9823 = vunpack.c.l.s4 1934713408
        %v9824 = vunpack.c.0.s8 %v9823
        %v9825 = vlaneseq
        %v9826 = vshrl.u32 %v9825, 7
        %v9827 = vsub.s32 %v9824, %v9826
        %v9828 = vrot.slane %v9814, %v9827
        %v9829 = vcombine.high %v9805, 0.0
        %v9830 = vcombine.high %v9812, 0.0
        %v9831 = vcombine.high %v9821, 0.0
        %v9832 = vcombine.high %v9828, 0.0
        %v9833 = vcombine.low %v9159, %v9353
        %v9834 = vcombine.high %v9159, %v9353
        %v9836 = vunpack.c.l.s4 1983009808
        %v9837 = vunpack.c.0.s8 %v9836
        %v9838 = vlaneseq
        %v9839 = vshrl.u32 %v9838, 7
        %v9840 = vsub.s32 %v9837, %v9839
        %v9841 = vrot.slane %v9833, %v9840
        %v9843 = vunpack.c.l.s4 1983009808
        %v9844 = vunpack.c.0.s8 %v9843
        %v9845 = vlaneseq
        %v9846 = vshrl.u32 %v9845, 7
        %v9847 = vsub.s32 %v9844, %v9846
        %v9848 = vrot.slane %v9834, %v9847
        %v9849 = vcombine.low %v9256, %v9450
        %v9850 = vcombine.high %v9256, %v9450
        %v9852 = vunpack.c.l.s4 1983009808
        %v9853 = vunpack.c.0.s8 %v9852
        %v9854 = vlaneseq
        %v9855 = vshrl.u32 %v9854, 7
        %v9856 = vsub.s32 %v9853, %v9855
        %v9857 = vrot.slane %v9849, %v9856
        %v9859 = vunpack.c.l.s4 1983009808
        %v9860 = vunpack.c.0.s8 %v9859
        %v9861 = vlaneseq
        %v9862 = vshrl.u32 %v9861, 7
        %v9863 = vsub.s32 %v9860, %v9862
        %v9864 = vrot.slane %v9850, %v9863
        %v9865 = vcombine.low %v9841, %v9857
        %v9866 = vcombine.high %v9841, %v9857
        %v9868 = vunpack.c.l.s4 1934713408
        %v9869 = vunpack.c.0.s8 %v9868
        %v9870 = vlaneseq
        %v9871 = vshrl.u32 %v9870, 7
        %v9872 = vsub.s32 %v9869, %v9871
        %v9873 = vrot.slane %v9865, %v9872
        %v9875 = vunpack.c.l.s4 1934713408
        %v9876 = vunpack.c.0.s8 %v9875
        %v9877 = vlaneseq
        %v9878 = vshrl.u32 %v9877, 7
        %v9879 = vsub.s32 %v9876, %v9878
        %v9880 = vrot.slane %v9866, %v9879
        %v9881 = vcombine.low %v9848, %v9864
        %v9882 = vcombine.high %v9848, %v9864
        %v9884 = vunpack.c.l.s4 1934713408
        %v9885 = vunpack.c.0.s8 %v9884
        %v9886 = vlaneseq
        %v9887 = vshrl.u32 %v9886, 7
        %v9888 = vsub.s32 %v9885, %v9887
        %v9889 = vrot.slane %v9881, %v9888
        %v9891 = vunpack.c.l.s4 1934713408
        %v9892 = vunpack.c.0.s8 %v9891
        %v9893 = vlaneseq
        %v9894 = vshrl.u32 %v9893, 7
        %v9895 = vsub.s32 %v9892, %v9894
        %v9896 = vrot.slane %v9882, %v9895
        %v9897 = vcombine.high %v9873, 0.0
        %v9898 = vcombine.high %v9880, 0.0
        %v9899 = vcombine.high %v9889, 0.0
        %v9900 = vcombine.high %v9896, 0.0
        %v9901 = vcombine.low %v9164, %v9358
        %v9902 = vcombine.high %v9164, %v9358
        %v9904 = vunpack.c.l.s4 1983009808
        %v9905 = vunpack.c.0.s8 %v9904
        %v9906 = vlaneseq
        %v9907 = vshrl.u32 %v9906, 7
        %v9908 = vsub.s32 %v9905, %v9907
        %v9909 = vrot.slane %v9901, %v9908
        %v9911 = vunpack.c.l.s4 1983009808
        %v9912 = vunpack.c.0.s8 %v9911
        %v9913 = vlaneseq
        %v9914 = vshrl.u32 %v9913, 7
        %v9915 = vsub.s32 %v9912, %v9914
        %v9916 = vrot.slane %v9902, %v9915
        %v9917 = vcombine.low %v9261, %v9455
        %v9918 = vcombine.high %v9261, %v9455
        %v9920 = vunpack.c.l.s4 1983009808
        %v9921 = vunpack.c.0.s8 %v9920
        %v9922 = vlaneseq
        %v9923 = vshrl.u32 %v9922, 7
        %v9924 = vsub.s32 %v9921, %v9923
        %v9925 = vrot.slane %v9917, %v9924
        %v9927 = vunpack.c.l.s4 1983009808
        %v9928 = vunpack.c.0.s8 %v9927
        %v9929 = vlaneseq
        %v9930 = vshrl.u32 %v9929, 7
        %v9931 = vsub.s32 %v9928, %v9930
        %v9932 = vrot.slane %v9918, %v9931
        %v9933 = vcombine.low %v9909, %v9925
        %v9934 = vcombine.high %v9909, %v9925
        %v9936 = vunpack.c.l.s4 1934713408
        %v9937 = vunpack.c.0.s8 %v9936
        %v9938 = vlaneseq
        %v9939 = vshrl.u32 %v9938, 7
        %v9940 = vsub.s32 %v9937, %v9939
        %v9941 = vrot.slane %v9933, %v9940
        %v9943 = vunpack.c.l.s4 1934713408
        %v9944 = vunpack.c.0.s8 %v9943
        %v9945 = vlaneseq
        %v9946 = vshrl.u32 %v9945, 7
        %v9947 = vsub.s32 %v9944, %v9946
        %v9948 = vrot.slane %v9934, %v9947
        %v9949 = vcombine.low %v9916, %v9932
        %v9950 = vcombine.high %v9916, %v9932
        %v9952 = vunpack.c.l.s4 1934713408
        %v9953 = vunpack.c.0.s8 %v9952
        %v9954 = vlaneseq
        %v9955 = vshrl.u32 %v9954, 7
        %v9956 = vsub.s32 %v9953, %v9955
        %v9957 = vrot.slane %v9949, %v9956
        %v9959 = vunpack.c.l.s4 1934713408
        %v9960 = vunpack.c.0.s8 %v9959
        %v9961 = vlaneseq
        %v9962 = vshrl.u32 %v9961, 7
        %v9963 = vsub.s32 %v9960, %v9962
        %v9964 = vrot.slane %v9950, %v9963
        %v9965 = vcombine.high %v9941, 0.0
        %v9966 = vcombine.high %v9948, 0.0
        %v9967 = vcombine.high %v9957, 0.0
        %v9968 = vcombine.high %v9964, 0.0
        %v9969 = vcombine.low %v9167, %v9361
        %v9970 = vcombine.high %v9167, %v9361
        %v9972 = vunpack.c.l.s4 1983009808
        %v9973 = vunpack.c.0.s8 %v9972
        %v9974 = vlaneseq
        %v9975 = vshrl.u32 %v9974, 7
        %v9976 = vsub.s32 %v9973, %v9975
        %v9977 = vrot.slane %v9969, %v9976
        %v9979 = vunpack.c.l.s4 1983009808
        %v9980 = vunpack.c.0.s8 %v9979
        %v9981 = vlaneseq
        %v9982 = vshrl.u32 %v9981, 7
        %v9983 = vsub.s32 %v9980, %v9982
        %v9984 = vrot.slane %v9970, %v9983
        %v9985 = vcombine.low %v9264, %v9458
        %v9986 = vcombine.high %v9264, %v9458
        %v9988 = vunpack.c.l.s4 1983009808
        %v9989 = vunpack.c.0.s8 %v9988
        %v9990 = vlaneseq
        %v9991 = vshrl.u32 %v9990, 7
        %v9992 = vsub.s32 %v9989, %v9991
        %v9993 = vrot.slane %v9985, %v9992
        %v9995 = vunpack.c.l.s4 1983009808
        %v9996 = vunpack.c.0.s8 %v9995
        %v9997 = vlaneseq
        %v9998 = vshrl.u32 %v9997, 7
        %v9999 = vsub.s32 %v9996, %v9998
        %v10000 = vrot.slane %v9986, %v9999
        %v10001 = vcombine.low %v9977, %v9993
        %v10002 = vcombine.high %v9977, %v9993
        %v10004 = vunpack.c.l.s4 1934713408
        %v10005 = vunpack.c.0.s8 %v10004
        %v10006 = vlaneseq
        %v10007 = vshrl.u32 %v10006, 7
        %v10008 = vsub.s32 %v10005, %v10007
        %v10009 = vrot.slane %v10001, %v10008
        %v10011 = vunpack.c.l.s4 1934713408
        %v10012 = vunpack.c.0.s8 %v10011
        %v10013 = vlaneseq
        %v10014 = vshrl.u32 %v10013, 7
        %v10015 = vsub.s32 %v10012, %v10014
        %v10016 = vrot.slane %v10002, %v10015
        %v10017 = vcombine.low %v9984, %v10000
        %v10018 = vcombine.high %v9984, %v10000
        %v10020 = vunpack.c.l.s4 1934713408
        %v10021 = vunpack.c.0.s8 %v10020
        %v10022 = vlaneseq
        %v10023 = vshrl.u32 %v10022, 7
        %v10024 = vsub.s32 %v10021, %v10023
        %v10025 = vrot.slane %v10017, %v10024
        %v10027 = vunpack.c.l.s4 1934713408
        %v10028 = vunpack.c.0.s8 %v10027
        %v10029 = vlaneseq
        %v10030 = vshrl.u32 %v10029, 7
        %v10031 = vsub.s32 %v10028, %v10030
        %v10032 = vrot.slane %v10018, %v10031
        %v10033 = vcombine.high %v10009, 0.0
        %v10034 = vcombine.high %v10016, 0.0
        %v10035 = vcombine.high %v10025, 0.0
        %v10036 = vcombine.high %v10032, 0.0
        %v10037 = vcombine.low %v9172, %v9366
        %v10038 = vcombine.high %v9172, %v9366
        %v10040 = vunpack.c.l.s4 1983009808
        %v10041 = vunpack.c.0.s8 %v10040
        %v10042 = vlaneseq
        %v10043 = vshrl.u32 %v10042, 7
        %v10044 = vsub.s32 %v10041, %v10043
        %v10045 = vrot.slane %v10037, %v10044
        %v10047 = vunpack.c.l.s4 1983009808
        %v10048 = vunpack.c.0.s8 %v10047
        %v10049 = vlaneseq
        %v10050 = vshrl.u32 %v10049, 7
        %v10051 = vsub.s32 %v10048, %v10050
        %v10052 = vrot.slane %v10038, %v10051
        %v10053 = vcombine.low %v9269, %v9463
        %v10054 = vcombine.high %v9269, %v9463
        %v10056 = vunpack.c.l.s4 1983009808
        %v10057 = vunpack.c.0.s8 %v10056
        %v10058 = vlaneseq
        %v10059 = vshrl.u32 %v10058, 7
        %v10060 = vsub.s32 %v10057, %v10059
        %v10061 = vrot.slane %v10053, %v10060
        %v10063 = vunpack.c.l.s4 1983009808
        %v10064 = vunpack.c.0.s8 %v10063
        %v10065 = vlaneseq
        %v10066 = vshrl.u32 %v10065, 7
        %v10067 = vsub.s32 %v10064, %v10066
        %v10068 = vrot.slane %v10054, %v10067
        %v10069 = vcombine.low %v10045, %v10061
        %v10070 = vcombine.high %v10045, %v10061
        %v10072 = vunpack.c.l.s4 1934713408
        %v10073 = vunpack.c.0.s8 %v10072
        %v10074 = vlaneseq
        %v10075 = vshrl.u32 %v10074, 7
        %v10076 = vsub.s32 %v10073, %v10075
        %v10077 = vrot.slane %v10069, %v10076
        %v10079 = vunpack.c.l.s4 1934713408
        %v10080 = vunpack.c.0.s8 %v10079
        %v10081 = vlaneseq
        %v10082 = vshrl.u32 %v10081, 7
        %v10083 = vsub.s32 %v10080, %v10082
        %v10084 = vrot.slane %v10070, %v10083
        %v10085 = vcombine.low %v10052, %v10068
        %v10086 = vcombine.high %v10052, %v10068
        %v10088 = vunpack.c.l.s4 1934713408
        %v10089 = vunpack.c.0.s8 %v10088
        %v10090 = vlaneseq
        %v10091 = vshrl.u32 %v10090, 7
        %v10092 = vsub.s32 %v10089, %v10091
        %v10093 = vrot.slane %v10085, %v10092
        %v10095 = vunpack.c.l.s4 1934713408
        %v10096 = vunpack.c.0.s8 %v10095
        %v10097 = vlaneseq
        %v10098 = vshrl.u32 %v10097, 7
        %v10099 = vsub.s32 %v10096, %v10098
        %v10100 = vrot.slane %v10086, %v10099
        %v10101 = vcombine.high %v10077, 0.0
        %v10102 = vcombine.high %v10084, 0.0
        %v10103 = vcombine.high %v10093, 0.0
        %v10104 = vcombine.high %v10100, 0.0
        %v10105 = vcombine.low %v9175, %v9369
        %v10106 = vcombine.high %v9175, %v9369
        %v10108 = vunpack.c.l.s4 1983009808
        %v10109 = vunpack.c.0.s8 %v10108
        %v10110 = vlaneseq
        %v10111 = vshrl.u32 %v10110, 7
        %v10112 = vsub.s32 %v10109, %v10111
        %v10113 = vrot.slane %v10105, %v10112
        %v10115 = vunpack.c.l.s4 1983009808
        %v10116 = vunpack.c.0.s8 %v10115
        %v10117 = vlaneseq
        %v10118 = vshrl.u32 %v10117, 7
        %v10119 = vsub.s32 %v10116, %v10118
        %v10120 = vrot.slane %v10106, %v10119
        %v10121 = vcombine.low %v9272, %v9466
        %v10122 = vcombine.high %v9272, %v9466
        %v10124 = vunpack.c.l.s4 1983009808
        %v10125 = vunpack.c.0.s8 %v10124
        %v10126 = vlaneseq
        %v10127 = vshrl.u32 %v10126, 7
        %v10128 = vsub.s32 %v10125, %v10127
        %v10129 = vrot.slane %v10121, %v10128
        %v10131 = vunpack.c.l.s4 1983009808
        %v10132 = vunpack.c.0.s8 %v10131
        %v10133 = vlaneseq
        %v10134 = vshrl.u32 %v10133, 7
        %v10135 = vsub.s32 %v10132, %v10134
        %v10136 = vrot.slane %v10122, %v10135
        %v10137 = vcombine.low %v10113, %v10129
        %v10138 = vcombine.high %v10113, %v10129
        %v10140 = vunpack.c.l.s4 1934713408
        %v10141 = vunpack.c.0.s8 %v10140
        %v10142 = vlaneseq
        %v10143 = vshrl.u32 %v10142, 7
        %v10144 = vsub.s32 %v10141, %v10143
        %v10145 = vrot.slane %v10137, %v10144
        %v10147 = vunpack.c.l.s4 1934713408
        %v10148 = vunpack.c.0.s8 %v10147
        %v10149 = vlaneseq
        %v10150 = vshrl.u32 %v10149, 7
        %v10151 = vsub.s32 %v10148, %v10150
        %v10152 = vrot.slane %v10138, %v10151
        %v10153 = vcombine.low %v10120, %v10136
        %v10154 = vcombine.high %v10120, %v10136
        %v10156 = vunpack.c.l.s4 1934713408
        %v10157 = vunpack.c.0.s8 %v10156
        %v10158 = vlaneseq
        %v10159 = vshrl.u32 %v10158, 7
        %v10160 = vsub.s32 %v10157, %v10159
        %v10161 = vrot.slane %v10153, %v10160
        %v10163 = vunpack.c.l.s4 1934713408
        %v10164 = vunpack.c.0.s8 %v10163
        %v10165 = vlaneseq
        %v10166 = vshrl.u32 %v10165, 7
        %v10167 = vsub.s32 %v10164, %v10166
        %v10168 = vrot.slane %v10154, %v10167
        %v10169 = vcombine.high %v10145, 0.0
        %v10170 = vcombine.high %v10152, 0.0
        %v10171 = vcombine.high %v10161, 0.0
        %v10172 = vcombine.high %v10168, 0.0
        %v10173 = vcombine.low %v9180, %v9374
        %v10174 = vcombine.high %v9180, %v9374
        %v10176 = vunpack.c.l.s4 1983009808
        %v10177 = vunpack.c.0.s8 %v10176
        %v10178 = vlaneseq
        %v10179 = vshrl.u32 %v10178, 7
        %v10180 = vsub.s32 %v10177, %v10179
        %v10181 = vrot.slane %v10173, %v10180
        %v10183 = vunpack.c.l.s4 1983009808
        %v10184 = vunpack.c.0.s8 %v10183
        %v10185 = vlaneseq
        %v10186 = vshrl.u32 %v10185, 7
        %v10187 = vsub.s32 %v10184, %v10186
        %v10188 = vrot.slane %v10174, %v10187
        %v10189 = vcombine.low %v9277, %v9471
        %v10190 = vcombine.high %v9277, %v9471
        %v10192 = vunpack.c.l.s4 1983009808
        %v10193 = vunpack.c.0.s8 %v10192
        %v10194 = vlaneseq
        %v10195 = vshrl.u32 %v10194, 7
        %v10196 = vsub.s32 %v10193, %v10195
        %v10197 = vrot.slane %v10189, %v10196
        %v10199 = vunpack.c.l.s4 1983009808
        %v10200 = vunpack.c.0.s8 %v10199
        %v10201 = vlaneseq
        %v10202 = vshrl.u32 %v10201, 7
        %v10203 = vsub.s32 %v10200, %v10202
        %v10204 = vrot.slane %v10190, %v10203
        %v10205 = vcombine.low %v10181, %v10197
        %v10206 = vcombine.high %v10181, %v10197
        %v10208 = vunpack.c.l.s4 1934713408
        %v10209 = vunpack.c.0.s8 %v10208
        %v10210 = vlaneseq
        %v10211 = vshrl.u32 %v10210, 7
        %v10212 = vsub.s32 %v10209, %v10211
        %v10213 = vrot.slane %v10205, %v10212
        %v10215 = vunpack.c.l.s4 1934713408
        %v10216 = vunpack.c.0.s8 %v10215
        %v10217 = vlaneseq
        %v10218 = vshrl.u32 %v10217, 7
        %v10219 = vsub.s32 %v10216, %v10218
        %v10220 = vrot.slane %v10206, %v10219
        %v10221 = vcombine.low %v10188, %v10204
        %v10222 = vcombine.high %v10188, %v10204
        %v10224 = vunpack.c.l.s4 1934713408
        %v10225 = vunpack.c.0.s8 %v10224
        %v10226 = vlaneseq
        %v10227 = vshrl.u32 %v10226, 7
        %v10228 = vsub.s32 %v10225, %v10227
        %v10229 = vrot.slane %v10221, %v10228
        %v10231 = vunpack.c.l.s4 1934713408
        %v10232 = vunpack.c.0.s8 %v10231
        %v10233 = vlaneseq
        %v10234 = vshrl.u32 %v10233, 7
        %v10235 = vsub.s32 %v10232, %v10234
        %v10236 = vrot.slane %v10222, %v10235
        %v10237 = vcombine.high %v10213, 0.0
        %v10238 = vcombine.high %v10220, 0.0
        %v10239 = vcombine.high %v10229, 0.0
        %v10240 = vcombine.high %v10236, 0.0
        %v10241 = vcombine.low %v9183, %v9377
        %v10242 = vcombine.high %v9183, %v9377
        %v10244 = vunpack.c.l.s4 1983009808
        %v10245 = vunpack.c.0.s8 %v10244
        %v10246 = vlaneseq
        %v10247 = vshrl.u32 %v10246, 7
        %v10248 = vsub.s32 %v10245, %v10247
        %v10249 = vrot.slane %v10241, %v10248
        %v10251 = vunpack.c.l.s4 1983009808
        %v10252 = vunpack.c.0.s8 %v10251
        %v10253 = vlaneseq
        %v10254 = vshrl.u32 %v10253, 7
        %v10255 = vsub.s32 %v10252, %v10254
        %v10256 = vrot.slane %v10242, %v10255
        %v10257 = vcombine.low %v9280, %v9474
        %v10258 = vcombine.high %v9280, %v9474
        %v10260 = vunpack.c.l.s4 1983009808
        %v10261 = vunpack.c.0.s8 %v10260
        %v10262 = vlaneseq
        %v10263 = vshrl.u32 %v10262, 7
        %v10264 = vsub.s32 %v10261, %v10263
        %v10265 = vrot.slane %v10257, %v10264
        %v10267 = vunpack.c.l.s4 1983009808
        %v10268 = vunpack.c.0.s8 %v10267
        %v10269 = vlaneseq
        %v10270 = vshrl.u32 %v10269, 7
        %v10271 = vsub.s32 %v10268, %v10270
        %v10272 = vrot.slane %v10258, %v10271
        %v10273 = vcombine.low %v10249, %v10265
        %v10274 = vcombine.high %v10249, %v10265
        %v10276 = vunpack.c.l.s4 1934713408
        %v10277 = vunpack.c.0.s8 %v10276
        %v10278 = vlaneseq
        %v10279 = vshrl.u32 %v10278, 7
        %v10280 = vsub.s32 %v10277, %v10279
        %v10281 = vrot.slane %v10273, %v10280
        %v10283 = vunpack.c.l.s4 1934713408
        %v10284 = vunpack.c.0.s8 %v10283
        %v10285 = vlaneseq
        %v10286 = vshrl.u32 %v10285, 7
        %v10287 = vsub.s32 %v10284, %v10286
        %v10288 = vrot.slane %v10274, %v10287
        %v10289 = vcombine.low %v10256, %v10272
        %v10290 = vcombine.high %v10256, %v10272
        %v10292 = vunpack.c.l.s4 1934713408
        %v10293 = vunpack.c.0.s8 %v10292
        %v10294 = vlaneseq
        %v10295 = vshrl.u32 %v10294, 7
        %v10296 = vsub.s32 %v10293, %v10295
        %v10297 = vrot.slane %v10289, %v10296
        %v10299 = vunpack.c.l.s4 1934713408
        %v10300 = vunpack.c.0.s8 %v10299
        %v10301 = vlaneseq
        %v10302 = vshrl.u32 %v10301, 7
        %v10303 = vsub.s32 %v10300, %v10302
        %v10304 = vrot.slane %v10290, %v10303
        %v10305 = vcombine.high %v10281, 0.0
        %v10306 = vcombine.high %v10288, 0.0
        %v10307 = vcombine.high %v10297, 0.0
        %v10308 = vcombine.high %v10304, 0.0
        %v10309 = vcombine.low %v9188, %v9382
        %v10310 = vcombine.high %v9188, %v9382
        %v10312 = vunpack.c.l.s4 1983009808
        %v10313 = vunpack.c.0.s8 %v10312
        %v10314 = vlaneseq
        %v10315 = vshrl.u32 %v10314, 7
        %v10316 = vsub.s32 %v10313, %v10315
        %v10317 = vrot.slane %v10309, %v10316
        %v10319 = vunpack.c.l.s4 1983009808
        %v10320 = vunpack.c.0.s8 %v10319
        %v10321 = vlaneseq
        %v10322 = vshrl.u32 %v10321, 7
        %v10323 = vsub.s32 %v10320, %v10322
        %v10324 = vrot.slane %v10310, %v10323
        %v10325 = vcombine.low %v9285, %v9479
        %v10326 = vcombine.high %v9285, %v9479
        %v10328 = vunpack.c.l.s4 1983009808
        %v10329 = vunpack.c.0.s8 %v10328
        %v10330 = vlaneseq
        %v10331 = vshrl.u32 %v10330, 7
        %v10332 = vsub.s32 %v10329, %v10331
        %v10333 = vrot.slane %v10325, %v10332
        %v10335 = vunpack.c.l.s4 1983009808
        %v10336 = vunpack.c.0.s8 %v10335
        %v10337 = vlaneseq
        %v10338 = vshrl.u32 %v10337, 7
        %v10339 = vsub.s32 %v10336, %v10338
        %v10340 = vrot.slane %v10326, %v10339
        %v10341 = vcombine.low %v10317, %v10333
        %v10342 = vcombine.high %v10317, %v10333
        %v10344 = vunpack.c.l.s4 1934713408
        %v10345 = vunpack.c.0.s8 %v10344
        %v10346 = vlaneseq
        %v10347 = vshrl.u32 %v10346, 7
        %v10348 = vsub.s32 %v10345, %v10347
        %v10349 = vrot.slane %v10341, %v10348
        %v10351 = vunpack.c.l.s4 1934713408
        %v10352 = vunpack.c.0.s8 %v10351
        %v10353 = vlaneseq
        %v10354 = vshrl.u32 %v10353, 7
        %v10355 = vsub.s32 %v10352, %v10354
        %v10356 = vrot.slane %v10342, %v10355
        %v10357 = vcombine.low %v10324, %v10340
        %v10358 = vcombine.high %v10324, %v10340
        %v10360 = vunpack.c.l.s4 1934713408
        %v10361 = vunpack.c.0.s8 %v10360
        %v10362 = vlaneseq
        %v10363 = vshrl.u32 %v10362, 7
        %v10364 = vsub.s32 %v10361, %v10363
        %v10365 = vrot.slane %v10357, %v10364
        %v10367 = vunpack.c.l.s4 1934713408
        %v10368 = vunpack.c.0.s8 %v10367
        %v10369 = vlaneseq
        %v10370 = vshrl.u32 %v10369, 7
        %v10371 = vsub.s32 %v10368, %v10370
        %v10372 = vrot.slane %v10358, %v10371
        %v10373 = vcombine.high %v10349, 0.0
        %v10374 = vcombine.high %v10356, 0.0
        %v10375 = vcombine.high %v10365, 0.0
        %v10376 = vcombine.high %v10372, 0.0
        %v10377 = vcombine.low %v9191, %v9385
        %v10378 = vcombine.high %v9191, %v9385
        %v10380 = vunpack.c.l.s4 1983009808
        %v10381 = vunpack.c.0.s8 %v10380
        %v10382 = vlaneseq
        %v10383 = vshrl.u32 %v10382, 7
        %v10384 = vsub.s32 %v10381, %v10383
        %v10385 = vrot.slane %v10377, %v10384
        %v10387 = vunpack.c.l.s4 1983009808
        %v10388 = vunpack.c.0.s8 %v10387
        %v10389 = vlaneseq
        %v10390 = vshrl.u32 %v10389, 7
        %v10391 = vsub.s32 %v10388, %v10390
        %v10392 = vrot.slane %v10378, %v10391
        %v10393 = vcombine.low %v9288, %v9482
        %v10394 = vcombine.high %v9288, %v9482
        %v10396 = vunpack.c.l.s4 1983009808
        %v10397 = vunpack.c.0.s8 %v10396
        %v10398 = vlaneseq
        %v10399 = vshrl.u32 %v10398, 7
        %v10400 = vsub.s32 %v10397, %v10399
        %v10401 = vrot.slane %v10393, %v10400
        %v10403 = vunpack.c.l.s4 1983009808
        %v10404 = vunpack.c.0.s8 %v10403
        %v10405 = vlaneseq
        %v10406 = vshrl.u32 %v10405, 7
        %v10407 = vsub.s32 %v10404, %v10406
        %v10408 = vrot.slane %v10394, %v10407
        %v10409 = vcombine.low %v10385, %v10401
        %v10410 = vcombine.high %v10385, %v10401
        %v10412 = vunpack.c.l.s4 1934713408
        %v10413 = vunpack.c.0.s8 %v10412
        %v10414 = vlaneseq
        %v10415 = vshrl.u32 %v10414, 7
        %v10416 = vsub.s32 %v10413, %v10415
        %v10417 = vrot.slane %v10409, %v10416
        %v10419 = vunpack.c.l.s4 1934713408
        %v10420 = vunpack.c.0.s8 %v10419
        %v10421 = vlaneseq
        %v10422 = vshrl.u32 %v10421, 7
        %v10423 = vsub.s32 %v10420, %v10422
        %v10424 = vrot.slane %v10410, %v10423
        %v10425 = vcombine.low %v10392, %v10408
        %v10426 = vcombine.high %v10392, %v10408
        %v10428 = vunpack.c.l.s4 1934713408
        %v10429 = vunpack.c.0.s8 %v10428
        %v10430 = vlaneseq
        %v10431 = vshrl.u32 %v10430, 7
        %v10432 = vsub.s32 %v10429, %v10431
        %v10433 = vrot.slane %v10425, %v10432
        %v10435 = vunpack.c.l.s4 1934713408
        %v10436 = vunpack.c.0.s8 %v10435
        %v10437 = vlaneseq
        %v10438 = vshrl.u32 %v10437, 7
        %v10439 = vsub.s32 %v10436, %v10438
        %v10440 = vrot.slane %v10426, %v10439
        %v10441 = vcombine.high %v10417, 0.0
        %v10442 = vcombine.high %v10424, 0.0
        %v10443 = vcombine.high %v10433, 0.0
        %v10444 = vcombine.high %v10440, 0.0
        %v10445 = vcombine.low %v9196, %v9390
        %v10446 = vcombine.high %v9196, %v9390
        %v10448 = vunpack.c.l.s4 1983009808
        %v10449 = vunpack.c.0.s8 %v10448
        %v10450 = vlaneseq
        %v10451 = vshrl.u32 %v10450, 7
        %v10452 = vsub.s32 %v10449, %v10451
        %v10453 = vrot.slane %v10445, %v10452
        %v10455 = vunpack.c.l.s4 1983009808
        %v10456 = vunpack.c.0.s8 %v10455
        %v10457 = vlaneseq
        %v10458 = vshrl.u32 %v10457, 7
        %v10459 = vsub.s32 %v10456, %v10458
        %v10460 = vrot.slane %v10446, %v10459
        %v10461 = vcombine.low %v9293, %v9487
        %v10462 = vcombine.high %v9293, %v9487
        %v10464 = vunpack.c.l.s4 1983009808
        %v10465 = vunpack.c.0.s8 %v10464
        %v10466 = vlaneseq
        %v10467 = vshrl.u32 %v10466, 7
        %v10468 = vsub.s32 %v10465, %v10467
        %v10469 = vrot.slane %v10461, %v10468
        %v10471 = vunpack.c.l.s4 1983009808
        %v10472 = vunpack.c.0.s8 %v10471
        %v10473 = vlaneseq
        %v10474 = vshrl.u32 %v10473, 7
        %v10475 = vsub.s32 %v10472, %v10474
        %v10476 = vrot.slane %v10462, %v10475
        %v10477 = vcombine.low %v10453, %v10469
        %v10478 = vcombine.high %v10453, %v10469
        %v10480 = vunpack.c.l.s4 1934713408
        %v10481 = vunpack.c.0.s8 %v10480
        %v10482 = vlaneseq
        %v10483 = vshrl.u32 %v10482, 7
        %v10484 = vsub.s32 %v10481, %v10483
        %v10485 = vrot.slane %v10477, %v10484
        %v10487 = vunpack.c.l.s4 1934713408
        %v10488 = vunpack.c.0.s8 %v10487
        %v10489 = vlaneseq
        %v10490 = vshrl.u32 %v10489, 7
        %v10491 = vsub.s32 %v10488, %v10490
        %v10492 = vrot.slane %v10478, %v10491
        %v10493 = vcombine.low %v10460, %v10476
        %v10494 = vcombine.high %v10460, %v10476
        %v10496 = vunpack.c.l.s4 1934713408
        %v10497 = vunpack.c.0.s8 %v10496
        %v10498 = vlaneseq
        %v10499 = vshrl.u32 %v10498, 7
        %v10500 = vsub.s32 %v10497, %v10499
        %v10501 = vrot.slane %v10493, %v10500
        %v10503 = vunpack.c.l.s4 1934713408
        %v10504 = vunpack.c.0.s8 %v10503
        %v10505 = vlaneseq
        %v10506 = vshrl.u32 %v10505, 7
        %v10507 = vsub.s32 %v10504, %v10506
        %v10508 = vrot.slane %v10494, %v10507
        %v10509 = vcombine.high %v10485, 0.0
        %v10510 = vcombine.high %v10492, 0.0
        %v10511 = vcombine.high %v10501, 0.0
        %v10512 = vcombine.high %v10508, 0.0
        %v10513 = vcombine.low %v9199, %v9393
        %v10514 = vcombine.high %v9199, %v9393
        %v10516 = vunpack.c.l.s4 1983009808
        %v10517 = vunpack.c.0.s8 %v10516
        %v10518 = vlaneseq
        %v10519 = vshrl.u32 %v10518, 7
        %v10520 = vsub.s32 %v10517, %v10519
        %v10521 = vrot.slane %v10513, %v10520
        %v10523 = vunpack.c.l.s4 1983009808
        %v10524 = vunpack.c.0.s8 %v10523
        %v10525 = vlaneseq
        %v10526 = vshrl.u32 %v10525, 7
        %v10527 = vsub.s32 %v10524, %v10526
        %v10528 = vrot.slane %v10514, %v10527
        %v10529 = vcombine.low %v9296, %v9490
        %v10530 = vcombine.high %v9296, %v9490
        %v10532 = vunpack.c.l.s4 1983009808
        %v10533 = vunpack.c.0.s8 %v10532
        %v10534 = vlaneseq
        %v10535 = vshrl.u32 %v10534, 7
        %v10536 = vsub.s32 %v10533, %v10535
        %v10537 = vrot.slane %v10529, %v10536
        %v10539 = vunpack.c.l.s4 1983009808
        %v10540 = vunpack.c.0.s8 %v10539
        %v10541 = vlaneseq
        %v10542 = vshrl.u32 %v10541, 7
        %v10543 = vsub.s32 %v10540, %v10542
        %v10544 = vrot.slane %v10530, %v10543
        %v10545 = vcombine.low %v10521, %v10537
        %v10546 = vcombine.high %v10521, %v10537
        %v10548 = vunpack.c.l.s4 1934713408
        %v10549 = vunpack.c.0.s8 %v10548
        %v10550 = vlaneseq
        %v10551 = vshrl.u32 %v10550, 7
        %v10552 = vsub.s32 %v10549, %v10551
        %v10553 = vrot.slane %v10545, %v10552
        %v10555 = vunpack.c.l.s4 1934713408
        %v10556 = vunpack.c.0.s8 %v10555
        %v10557 = vlaneseq
        %v10558 = vshrl.u32 %v10557, 7
        %v10559 = vsub.s32 %v10556, %v10558
        %v10560 = vrot.slane %v10546, %v10559
        %v10561 = vcombine.low %v10528, %v10544
        %v10562 = vcombine.high %v10528, %v10544
        %v10564 = vunpack.c.l.s4 1934713408
        %v10565 = vunpack.c.0.s8 %v10564
        %v10566 = vlaneseq
        %v10567 = vshrl.u32 %v10566, 7
        %v10568 = vsub.s32 %v10565, %v10567
        %v10569 = vrot.slane %v10561, %v10568
        %v10571 = vunpack.c.l.s4 1934713408
        %v10572 = vunpack.c.0.s8 %v10571
        %v10573 = vlaneseq
        %v10574 = vshrl.u32 %v10573, 7
        %v10575 = vsub.s32 %v10572, %v10574
        %v10576 = vrot.slane %v10562, %v10575
        %v10577 = vcombine.high %v10553, 0.0
        %v10578 = vcombine.high %v10560, 0.0
        %v10579 = vcombine.high %v10569, 0.0
        %v10580 = vcombine.high %v10576, 0.0
        %v10581 = vcombine.low %v9533, %v9540
        %v10583 = vunpack.c.l.s4 1983009808
        %v10584 = vunpack.c.0.s8 %v10583
        %v10585 = vlaneseq
        %v10586 = vshrl.u32 %v10585, 7
        %v10587 = vsub.s32 %v10584, %v10586
        %v10588 = vrot.slane %v10581, %v10587
        %v10589 = vcombine.low %v9557, %v9558
        %v10591 = vunpack.c.l.s4 1983009808
        %v10592 = vunpack.c.0.s8 %v10591
        %v10593 = vlaneseq
        %v10594 = vshrl.u32 %v10593, 7
        %v10595 = vsub.s32 %v10592, %v10594
        %v10596 = vrot.slane %v10589, %v10595
        %v10597 = vcombine.low %v9549, %v9556
        %v10599 = vunpack.c.l.s4 1983009808
        %v10600 = vunpack.c.0.s8 %v10599
        %v10601 = vlaneseq
        %v10602 = vshrl.u32 %v10601, 7
        %v10603 = vsub.s32 %v10600, %v10602
        %v10604 = vrot.slane %v10597, %v10603
        %v10605 = vcombine.low %v9559, %v9560
        %v10607 = vunpack.c.l.s4 1983009808
        %v10608 = vunpack.c.0.s8 %v10607
        %v10609 = vlaneseq
        %v10610 = vshrl.u32 %v10609, 7
        %v10611 = vsub.s32 %v10608, %v10610
        %v10612 = vrot.slane %v10605, %v10611
        %v10613 = vcombine.low %v10588, %v10596
        %v10614 = vcombine.high %v10588, %v10596
        %v10616 = vunpack.c.l.s4 1934713408
        %v10617 = vunpack.c.0.s8 %v10616
        %v10618 = vlaneseq
        %v10619 = vshrl.u32 %v10618, 7
        %v10620 = vsub.s32 %v10617, %v10619
        %v10621 = vrot.slane %v10613, %v10620
        %v10623 = vunpack.c.l.s4 1934713408
        %v10624 = vunpack.c.0.s8 %v10623
        %v10625 = vlaneseq
        %v10626 = vshrl.u32 %v10625, 7
        %v10627 = vsub.s32 %v10624, %v10626
        %v10628 = vrot.slane %v10614, %v10627
        %v10629 = vcombine.low %v10604, %v10612
        %v10630 = vcombine.high %v10604, %v10612
        %v10632 = vunpack.c.l.s4 1934713408
        %v10633 = vunpack.c.0.s8 %v10632
        %v10634 = vlaneseq
        %v10635 = vshrl.u32 %v10634, 7
        %v10636 = vsub.s32 %v10633, %v10635
        %v10637 = vrot.slane %v10629, %v10636
        %v10639 = vunpack.c.l.s4 1934713408
        %v10640 = vunpack.c.0.s8 %v10639
        %v10641 = vlaneseq
        %v10642 = vshrl.u32 %v10641, 7
        %v10643 = vsub.s32 %v10640, %v10642
        %v10644 = vrot.slane %v10630, %v10643
        %v10645 = vcombine.low %v10621, %v10637
        %v10646 = vcombine.high %v10621, %v10637
        %v10647 = vcombine.low %v10628, %v10644
        %v10648 = vcombine.high %v10628, %v10644
        %v10649 = vcombine.low %v9601, %v9608
        %v10651 = vunpack.c.l.s4 1983009808
        %v10652 = vunpack.c.0.s8 %v10651
        %v10653 = vlaneseq
        %v10654 = vshrl.u32 %v10653, 7
        %v10655 = vsub.s32 %v10652, %v10654
        %v10656 = vrot.slane %v10649, %v10655
        %v10657 = vcombine.low %v9625, %v9626
        %v10659 = vunpack.c.l.s4 1983009808
        %v10660 = vunpack.c.0.s8 %v10659
        %v10661 = vlaneseq
        %v10662 = vshrl.u32 %v10661, 7
        %v10663 = vsub.s32 %v10660, %v10662
        %v10664 = vrot.slane %v10657, %v10663
        %v10665 = vcombine.low %v9617, %v9624
        %v10667 = vunpack.c.l.s4 1983009808
        %v10668 = vunpack.c.0.s8 %v10667
        %v10669 = vlaneseq
        %v10670 = vshrl.u32 %v10669, 7
        %v10671 = vsub.s32 %v10668, %v10670
        %v10672 = vrot.slane %v10665, %v10671
        %v10673 = vcombine.low %v9627, %v9628
        %v10675 = vunpack.c.l.s4 1983009808
        %v10676 = vunpack.c.0.s8 %v10675
        %v10677 = vlaneseq
        %v10678 = vshrl.u32 %v10677, 7
        %v10679 = vsub.s32 %v10676, %v10678
        %v10680 = vrot.slane %v10673, %v10679
        %v10681 = vcombine.low %v10656, %v10664
        %v10682 = vcombine.high %v10656, %v10664
        %v10684 = vunpack.c.l.s4 1934713408
        %v10685 = vunpack.c.0.s8 %v10684
        %v10686 = vlaneseq
        %v10687 = vshrl.u32 %v10686, 7
        %v10688 = vsub.s32 %v10685, %v10687
        %v10689 = vrot.slane %v10681, %v10688
        %v10691 = vunpack.c.l.s4 1934713408
        %v10692 = vunpack.c.0.s8 %v10691
        %v10693 = vlaneseq
        %v10694 = vshrl.u32 %v10693, 7
        %v10695 = vsub.s32 %v10692, %v10694
        %v10696 = vrot.slane %v10682, %v10695
        %v10697 = vcombine.low %v10672, %v10680
        %v10698 = vcombine.high %v10672, %v10680
        %v10700 = vunpack.c.l.s4 1934713408
        %v10701 = vunpack.c.0.s8 %v10700
        %v10702 = vlaneseq
        %v10703 = vshrl.u32 %v10702, 7
        %v10704 = vsub.s32 %v10701, %v10703
        %v10705 = vrot.slane %v10697, %v10704
        %v10707 = vunpack.c.l.s4 1934713408
        %v10708 = vunpack.c.0.s8 %v10707
        %v10709 = vlaneseq
        %v10710 = vshrl.u32 %v10709, 7
        %v10711 = vsub.s32 %v10708, %v10710
        %v10712 = vrot.slane %v10698, %v10711
        %v10713 = vcombine.low %v10689, %v10705
        %v10714 = vcombine.high %v10689, %v10705
        %v10715 = vcombine.low %v10696, %v10712
        %v10716 = vcombine.high %v10696, %v10712
        %v10717 = vcombine.low %v9669, %v9676
        %v10719 = vunpack.c.l.s4 1983009808
        %v10720 = vunpack.c.0.s8 %v10719
        %v10721 = vlaneseq
        %v10722 = vshrl.u32 %v10721, 7
        %v10723 = vsub.s32 %v10720, %v10722
        %v10724 = vrot.slane %v10717, %v10723
        %v10725 = vcombine.low %v9693, %v9694
        %v10727 = vunpack.c.l.s4 1983009808
        %v10728 = vunpack.c.0.s8 %v10727
        %v10729 = vlaneseq
        %v10730 = vshrl.u32 %v10729, 7
        %v10731 = vsub.s32 %v10728, %v10730
        %v10732 = vrot.slane %v10725, %v10731
        %v10733 = vcombine.low %v9685, %v9692
        %v10735 = vunpack.c.l.s4 1983009808
        %v10736 = vunpack.c.0.s8 %v10735
        %v10737 = vlaneseq
        %v10738 = vshrl.u32 %v10737, 7
        %v10739 = vsub.s32 %v10736, %v10738
        %v10740 = vrot.slane %v10733, %v10739
        %v10741 = vcombine.low %v9695, %v9696
        %v10743 = vunpack.c.l.s4 1983009808
        %v10744 = vunpack.c.0.s8 %v10743
        %v10745 = vlaneseq
        %v10746 = vshrl.u32 %v10745, 7
        %v10747 = vsub.s32 %v10744, %v10746
        %v10748 = vrot.slane %v10741, %v10747
        %v10749 = vcombine.low %v10724, %v10732
        %v10750 = vcombine.high %v10724, %v10732
        %v10752 = vunpack.c.l.s4 1934713408
        %v10753 = vunpack.c.0.s8 %v10752
        %v10754 = vlaneseq
        %v10755 = vshrl.u32 %v10754, 7
        %v10756 = vsub.s32 %v10753, %v10755
        %v10757 = vrot.slane %v10749, %v10756
        %v10759 = vunpack.c.l.s4 1934713408
        %v10760 = vunpack.c.0.s8 %v10759
        %v10761 = vlaneseq
        %v10762 = vshrl.u32 %v10761, 7
        %v10763 = vsub.s32 %v10760, %v10762
        %v10764 = vrot.slane %v10750, %v10763
        %v10765 = vcombine.low %v10740, %v10748
        %v10766 = vcombine.high %v10740, %v10748
        %v10768 = vunpack.c.l.s4 1934713408
        %v10769 = vunpack.c.0.s8 %v10768
        %v10770 = vlaneseq
        %v10771 = vshrl.u32 %v10770, 7
        %v10772 = vsub.s32 %v10769, %v10771
        %v10773 = vrot.slane %v10765, %v10772
        %v10775 = vunpack.c.l.s4 1934713408
        %v10776 = vunpack.c.0.s8 %v10775
        %v10777 = vlaneseq
        %v10778 = vshrl.u32 %v10777, 7
        %v10779 = vsub.s32 %v10776, %v10778
        %v10780 = vrot.slane %v10766, %v10779
        %v10781 = vcombine.low %v10757, %v10773
        %v10782 = vcombine.high %v10757, %v10773
        %v10783 = vcombine.low %v10764, %v10780
        %v10784 = vcombine.high %v10764, %v10780
        %v10785 = vcombine.low %v9737, %v9744
        %v10787 = vunpack.c.l.s4 1983009808
        %v10788 = vunpack.c.0.s8 %v10787
        %v10789 = vlaneseq
        %v10790 = vshrl.u32 %v10789, 7
        %v10791 = vsub.s32 %v10788, %v10790
        %v10792 = vrot.slane %v10785, %v10791
        %v10793 = vcombine.low %v9761, %v9762
        %v10795 = vunpack.c.l.s4 1983009808
        %v10796 = vunpack.c.0.s8 %v10795
        %v10797 = vlaneseq
        %v10798 = vshrl.u32 %v10797, 7
        %v10799 = vsub.s32 %v10796, %v10798
        %v10800 = vrot.slane %v10793, %v10799
        %v10801 = vcombine.low %v9753, %v9760
        %v10803 = vunpack.c.l.s4 1983009808
        %v10804 = vunpack.c.0.s8 %v10803
        %v10805 = vlaneseq
        %v10806 = vshrl.u32 %v10805, 7
        %v10807 = vsub.s32 %v10804, %v10806
        %v10808 = vrot.slane %v10801, %v10807
        %v10809 = vcombine.low %v9763, %v9764
        %v10811 = vunpack.c.l.s4 1983009808
        %v10812 = vunpack.c.0.s8 %v10811
        %v10813 = vlaneseq
        %v10814 = vshrl.u32 %v10813, 7
        %v10815 = vsub.s32 %v10812, %v10814
        %v10816 = vrot.slane %v10809, %v10815
        %v10817 = vcombine.low %v10792, %v10800
        %v10818 = vcombine.high %v10792, %v10800
        %v10820 = vunpack.c.l.s4 1934713408
        %v10821 = vunpack.c.0.s8 %v10820
        %v10822 = vlaneseq
        %v10823 = vshrl.u32 %v10822, 7
        %v10824 = vsub.s32 %v10821, %v10823
        %v10825 = vrot.slane %v10817, %v10824
        %v10827 = vunpack.c.l.s4 1934713408
        %v10828 = vunpack.c.0.s8 %v10827
        %v10829 = vlaneseq
        %v10830 = vshrl.u32 %v10829, 7
        %v10831 = vsub.s32 %v10828, %v10830
        %v10832 = vrot.slane %v10818, %v10831
        %v10833 = vcombine.low %v10808, %v10816
        %v10834 = vcombine.high %v10808, %v10816
        %v10836 = vunpack.c.l.s4 1934713408
        %v10837 = vunpack.c.0.s8 %v10836
        %v10838 = vlaneseq
        %v10839 = vshrl.u32 %v10838, 7
        %v10840 = vsub.s32 %v10837, %v10839
        %v10841 = vrot.slane %v10833, %v10840
        %v10843 = vunpack.c.l.s4 1934713408
        %v10844 = vunpack.c.0.s8 %v10843
        %v10845 = vlaneseq
        %v10846 = vshrl.u32 %v10845, 7
        %v10847 = vsub.s32 %v10844, %v10846
        %v10848 = vrot.slane %v10834, %v10847
        %v10849 = vcombine.low %v10825, %v10841
        %v10850 = vcombine.high %v10825, %v10841
        %v10851 = vcombine.low %v10832, %v10848
        %v10852 = vcombine.high %v10832, %v10848
        %v10853 = vcombine.low %v9805, %v9812
        %v10855 = vunpack.c.l.s4 1983009808
        %v10856 = vunpack.c.0.s8 %v10855
        %v10857 = vlaneseq
        %v10858 = vshrl.u32 %v10857, 7
        %v10859 = vsub.s32 %v10856, %v10858
        %v10860 = vrot.slane %v10853, %v10859
        %v10861 = vcombine.low %v9829, %v9830
        %v10863 = vunpack.c.l.s4 1983009808
        %v10864 = vunpack.c.0.s8 %v10863
        %v10865 = vlaneseq
        %v10866 = vshrl.u32 %v10865, 7
        %v10867 = vsub.s32 %v10864, %v10866
        %v10868 = vrot.slane %v10861, %v10867
        %v10869 = vcombine.low %v9821, %v9828
        %v10871 = vunpack.c.l.s4 1983009808
        %v10872 = vunpack.c.0.s8 %v10871
        %v10873 = vlaneseq
        %v10874 = vshrl.u32 %v10873, 7
        %v10875 = vsub.s32 %v10872, %v10874
        %v10876 = vrot.slane %v10869, %v10875
        %v10877 = vcombine.low %v9831, %v9832
        %v10879 = vunpack.c.l.s4 1983009808
        %v10880 = vunpack.c.0.s8 %v10879
        %v10881 = vlaneseq
        %v10882 = vshrl.u32 %v10881, 7
        %v10883 = vsub.s32 %v10880, %v10882
        %v10884 = vrot.slane %v10877, %v10883
        %v10885 = vcombine.low %v10860, %v10868
        %v10886 = vcombine.high %v10860, %v10868
        %v10888 = vunpack.c.l.s4 1934713408
        %v10889 = vunpack.c.0.s8 %v10888
        %v10890 = vlaneseq
        %v10891 = vshrl.u32 %v10890, 7
        %v10892 = vsub.s32 %v10889, %v10891
        %v10893 = vrot.slane %v10885, %v10892
        %v10895 = vunpack.c.l.s4 1934713408
        %v10896 = vunpack.c.0.s8 %v10895
        %v10897 = vlaneseq
        %v10898 = vshrl.u32 %v10897, 7
        %v10899 = vsub.s32 %v10896, %v10898
        %v10900 = vrot.slane %v10886, %v10899
        %v10901 = vcombine.low %v10876, %v10884
        %v10902 = vcombine.high %v10876, %v10884
        %v10904 = vunpack.c.l.s4 1934713408
        %v10905 = vunpack.c.0.s8 %v10904
        %v10906 = vlaneseq
        %v10907 = vshrl.u32 %v10906, 7
        %v10908 = vsub.s32 %v10905, %v10907
        %v10909 = vrot.slane %v10901, %v10908
        %v10911 = vunpack.c.l.s4 1934713408
        %v10912 = vunpack.c.0.s8 %v10911
        %v10913 = vlaneseq
        %v10914 = vshrl.u32 %v10913, 7
        %v10915 = vsub.s32 %v10912, %v10914
        %v10916 = vrot.slane %v10902, %v10915
        %v10917 = vcombine.low %v10893, %v10909
        %v10918 = vcombine.high %v10893, %v10909
        %v10919 = vcombine.low %v10900, %v10916
        %v10920 = vcombine.high %v10900, %v10916
        %v10921 = vcombine.low %v9873, %v9880
        %v10923 = vunpack.c.l.s4 1983009808
        %v10924 = vunpack.c.0.s8 %v10923
        %v10925 = vlaneseq
        %v10926 = vshrl.u32 %v10925, 7
        %v10927 = vsub.s32 %v10924, %v10926
        %v10928 = vrot.slane %v10921, %v10927
        %v10929 = vcombine.low %v9897, %v9898
        %v10931 = vunpack.c.l.s4 1983009808
        %v10932 = vunpack.c.0.s8 %v10931
        %v10933 = vlaneseq
        %v10934 = vshrl.u32 %v10933, 7
        %v10935 = vsub.s32 %v10932, %v10934
        %v10936 = vrot.slane %v10929, %v10935
        %v10937 = vcombine.low %v9889, %v9896
        %v10939 = vunpack.c.l.s4 1983009808
        %v10940 = vunpack.c.0.s8 %v10939
        %v10941 = vlaneseq
        %v10942 = vshrl.u32 %v10941, 7
        %v10943 = vsub.s32 %v10940, %v10942
        %v10944 = vrot.slane %v10937, %v10943
        %v10945 = vcombine.low %v9899, %v9900
        %v10947 = vunpack.c.l.s4 1983009808
        %v10948 = vunpack.c.0.s8 %v10947
        %v10949 = vlaneseq
        %v10950 = vshrl.u32 %v10949, 7
        %v10951 = vsub.s32 %v10948, %v10950
        %v10952 = vrot.slane %v10945, %v10951
        %v10953 = vcombine.low %v10928, %v10936
        %v10954 = vcombine.high %v10928, %v10936
        %v10956 = vunpack.c.l.s4 1934713408
        %v10957 = vunpack.c.0.s8 %v10956
        %v10958 = vlaneseq
        %v10959 = vshrl.u32 %v10958, 7
        %v10960 = vsub.s32 %v10957, %v10959
        %v10961 = vrot.slane %v10953, %v10960
        %v10963 = vunpack.c.l.s4 1934713408
        %v10964 = vunpack.c.0.s8 %v10963
        %v10965 = vlaneseq
        %v10966 = vshrl.u32 %v10965, 7
        %v10967 = vsub.s32 %v10964, %v10966
        %v10968 = vrot.slane %v10954, %v10967
        %v10969 = vcombine.low %v10944, %v10952
        %v10970 = vcombine.high %v10944, %v10952
        %v10972 = vunpack.c.l.s4 1934713408
        %v10973 = vunpack.c.0.s8 %v10972
        %v10974 = vlaneseq
        %v10975 = vshrl.u32 %v10974, 7
        %v10976 = vsub.s32 %v10973, %v10975
        %v10977 = vrot.slane %v10969, %v10976
        %v10979 = vunpack.c.l.s4 1934713408
        %v10980 = vunpack.c.0.s8 %v10979
        %v10981 = vlaneseq
        %v10982 = vshrl.u32 %v10981, 7
        %v10983 = vsub.s32 %v10980, %v10982
        %v10984 = vrot.slane %v10970, %v10983
        %v10985 = vcombine.low %v10961, %v10977
        %v10986 = vcombine.high %v10961, %v10977
        %v10987 = vcombine.low %v10968, %v10984
        %v10988 = vcombine.high %v10968, %v10984
        %v10989 = vcombine.low %v9941, %v9948
        %v10991 = vunpack.c.l.s4 1983009808
        %v10992 = vunpack.c.0.s8 %v10991
        %v10993 = vlaneseq
        %v10994 = vshrl.u32 %v10993, 7
        %v10995 = vsub.s32 %v10992, %v10994
        %v10996 = vrot.slane %v10989, %v10995
        %v10997 = vcombine.low %v9965, %v9966
        %v10999 = vunpack.c.l.s4 1983009808
        %v11000 = vunpack.c.0.s8 %v10999
        %v11001 = vlaneseq
        %v11002 = vshrl.u32 %v11001, 7
        %v11003 = vsub.s32 %v11000, %v11002
        %v11004 = vrot.slane %v10997, %v11003
        %v11005 = vcombine.low %v9957, %v9964
        %v11007 = vunpack.c.l.s4 1983009808
        %v11008 = vunpack.c.0.s8 %v11007
        %v11009 = vlaneseq
        %v11010 = vshrl.u32 %v11009, 7
        %v11011 = vsub.s32 %v11008, %v11010
        %v11012 = vrot.slane %v11005, %v11011
        %v11013 = vcombine.low %v9967, %v9968
        %v11015 = vunpack.c.l.s4 1983009808
        %v11016 = vunpack.c.0.s8 %v11015
        %v11017 = vlaneseq
        %v11018 = vshrl.u32 %v11017, 7
        %v11019 = vsub.s32 %v11016, %v11018
        %v11020 = vrot.slane %v11013, %v11019
        %v11021 = vcombine.low %v10996, %v11004
        %v11022 = vcombine.high %v10996, %v11004
        %v11024 = vunpack.c.l.s4 1934713408
        %v11025 = vunpack.c.0.s8 %v11024
        %v11026 = vlaneseq
        %v11027 = vshrl.u32 %v11026, 7
        %v11028 = vsub.s32 %v11025, %v11027
        %v11029 = vrot.slane %v11021, %v11028
        %v11031 = vunpack.c.l.s4 1934713408
        %v11032 = vunpack.c.0.s8 %v11031
        %v11033 = vlaneseq
        %v11034 = vshrl.u32 %v11033, 7
        %v11035 = vsub.s32 %v11032, %v11034
        %v11036 = vrot.slane %v11022, %v11035
        %v11037 = vcombine.low %v11012, %v11020
        %v11038 = vcombine.high %v11012, %v11020
        %v11040 = vunpack.c.l.s4 1934713408
        %v11041 = vunpack.c.0.s8 %v11040
        %v11042 = vlaneseq
        %v11043 = vshrl.u32 %v11042, 7
        %v11044 = vsub.s32 %v11041, %v11043
        %v11045 = vrot.slane %v11037, %v11044
        %v11047 = vunpack.c.l.s4 1934713408
        %v11048 = vunpack.c.0.s8 %v11047
        %v11049 = vlaneseq
        %v11050 = vshrl.u32 %v11049, 7
        %v11051 = vsub.s32 %v11048, %v11050
        %v11052 = vrot.slane %v11038, %v11051
        %v11053 = vcombine.low %v11029, %v11045
        %v11054 = vcombine.high %v11029, %v11045
        %v11055 = vcombine.low %v11036, %v11052
        %v11056 = vcombine.high %v11036, %v11052
        %v11057 = vcombine.low %v10009, %v10016
        %v11059 = vunpack.c.l.s4 1983009808
        %v11060 = vunpack.c.0.s8 %v11059
        %v11061 = vlaneseq
        %v11062 = vshrl.u32 %v11061, 7
        %v11063 = vsub.s32 %v11060, %v11062
        %v11064 = vrot.slane %v11057, %v11063
        %v11065 = vcombine.low %v10033, %v10034
        %v11067 = vunpack.c.l.s4 1983009808
        %v11068 = vunpack.c.0.s8 %v11067
        %v11069 = vlaneseq
        %v11070 = vshrl.u32 %v11069, 7
        %v11071 = vsub.s32 %v11068, %v11070
        %v11072 = vrot.slane %v11065, %v11071
        %v11073 = vcombine.low %v10025, %v10032
        %v11075 = vunpack.c.l.s4 1983009808
        %v11076 = vunpack.c.0.s8 %v11075
        %v11077 = vlaneseq
        %v11078 = vshrl.u32 %v11077, 7
        %v11079 = vsub.s32 %v11076, %v11078
        %v11080 = vrot.slane %v11073, %v11079
        %v11081 = vcombine.low %v10035, %v10036
        %v11083 = vunpack.c.l.s4 1983009808
        %v11084 = vunpack.c.0.s8 %v11083
        %v11085 = vlaneseq
        %v11086 = vshrl.u32 %v11085, 7
        %v11087 = vsub.s32 %v11084, %v11086
        %v11088 = vrot.slane %v11081, %v11087
        %v11089 = vcombine.low %v11064, %v11072
        %v11090 = vcombine.high %v11064, %v11072
        %v11092 = vunpack.c.l.s4 1934713408
        %v11093 = vunpack.c.0.s8 %v11092
        %v11094 = vlaneseq
        %v11095 = vshrl.u32 %v11094, 7
        %v11096 = vsub.s32 %v11093, %v11095
        %v11097 = vrot.slane %v11089, %v11096
        %v11099 = vunpack.c.l.s4 1934713408
        %v11100 = vunpack.c.0.s8 %v11099
        %v11101 = vlaneseq
        %v11102 = vshrl.u32 %v11101, 7
        %v11103 = vsub.s32 %v11100, %v11102
        %v11104 = vrot.slane %v11090, %v11103
        %v11105 = vcombine.low %v11080, %v11088
        %v11106 = vcombine.high %v11080, %v11088
        %v11108 = vunpack.c.l.s4 1934713408
        %v11109 = vunpack.c.0.s8 %v11108
        %v11110 = vlaneseq
        %v11111 = vshrl.u32 %v11110, 7
        %v11112 = vsub.s32 %v11109, %v11111
        %v11113 = vrot.slane %v11105, %v11112
        %v11115 = vunpack.c.l.s4 1934713408
        %v11116 = vunpack.c.0.s8 %v11115
        %v11117 = vlaneseq
        %v11118 = vshrl.u32 %v11117, 7
        %v11119 = vsub.s32 %v11116, %v11118
        %v11120 = vrot.slane %v11106, %v11119
        %v11121 = vcombine.low %v11097, %v11113
        %v11122 = vcombine.high %v11097, %v11113
        %v11123 = vcombine.low %v11104, %v11120
        %v11124 = vcombine.high %v11104, %v11120
        %v11125 = vcombine.low %v10077, %v10084
        %v11127 = vunpack.c.l.s4 1983009808
        %v11128 = vunpack.c.0.s8 %v11127
        %v11129 = vlaneseq
        %v11130 = vshrl.u32 %v11129, 7
        %v11131 = vsub.s32 %v11128, %v11130
        %v11132 = vrot.slane %v11125, %v11131
        %v11133 = vcombine.low %v10101, %v10102
        %v11135 = vunpack.c.l.s4 1983009808
        %v11136 = vunpack.c.0.s8 %v11135
        %v11137 = vlaneseq
        %v11138 = vshrl.u32 %v11137, 7
        %v11139 = vsub.s32 %v11136, %v11138
        %v11140 = vrot.slane %v11133, %v11139
        %v11141 = vcombine.low %v10093, %v10100
        %v11143 = vunpack.c.l.s4 1983009808
        %v11144 = vunpack.c.0.s8 %v11143
        %v11145 = vlaneseq
        %v11146 = vshrl.u32 %v11145, 7
        %v11147 = vsub.s32 %v11144, %v11146
        %v11148 = vrot.slane %v11141, %v11147
        %v11149 = vcombine.low %v10103, %v10104
        %v11151 = vunpack.c.l.s4 1983009808
        %v11152 = vunpack.c.0.s8 %v11151
        %v11153 = vlaneseq
        %v11154 = vshrl.u32 %v11153, 7
        %v11155 = vsub.s32 %v11152, %v11154
        %v11156 = vrot.slane %v11149, %v11155
        %v11157 = vcombine.low %v11132, %v11140
        %v11158 = vcombine.high %v11132, %v11140
        %v11160 = vunpack.c.l.s4 1934713408
        %v11161 = vunpack.c.0.s8 %v11160
        %v11162 = vlaneseq
        %v11163 = vshrl.u32 %v11162, 7
        %v11164 = vsub.s32 %v11161, %v11163
        %v11165 = vrot.slane %v11157, %v11164
        %v11167 = vunpack.c.l.s4 1934713408
        %v11168 = vunpack.c.0.s8 %v11167
        %v11169 = vlaneseq
        %v11170 = vshrl.u32 %v11169, 7
        %v11171 = vsub.s32 %v11168, %v11170
        %v11172 = vrot.slane %v11158, %v11171
        %v11173 = vcombine.low %v11148, %v11156
        %v11174 = vcombine.high %v11148, %v11156
        %v11176 = vunpack.c.l.s4 1934713408
        %v11177 = vunpack.c.0.s8 %v11176
        %v11178 = vlaneseq
        %v11179 = vshrl.u32 %v11178, 7
        %v11180 = vsub.s32 %v11177, %v11179
        %v11181 = vrot.slane %v11173, %v11180
        %v11183 = vunpack.c.l.s4 1934713408
        %v11184 = vunpack.c.0.s8 %v11183
        %v11185 = vlaneseq
        %v11186 = vshrl.u32 %v11185, 7
        %v11187 = vsub.s32 %v11184, %v11186
        %v11188 = vrot.slane %v11174, %v11187
        %v11189 = vcombine.low %v11165, %v11181
        %v11190 = vcombine.high %v11165, %v11181
        %v11191 = vcombine.low %v11172, %v11188
        %v11192 = vcombine.high %v11172, %v11188
        %v11193 = vcombine.low %v10145, %v10152
        %v11195 = vunpack.c.l.s4 1983009808
        %v11196 = vunpack.c.0.s8 %v11195
        %v11197 = vlaneseq
        %v11198 = vshrl.u32 %v11197, 7
        %v11199 = vsub.s32 %v11196, %v11198
        %v11200 = vrot.slane %v11193, %v11199
        %v11201 = vcombine.low %v10169, %v10170
        %v11203 = vunpack.c.l.s4 1983009808
        %v11204 = vunpack.c.0.s8 %v11203
        %v11205 = vlaneseq
        %v11206 = vshrl.u32 %v11205, 7
        %v11207 = vsub.s32 %v11204, %v11206
        %v11208 = vrot.slane %v11201, %v11207
        %v11209 = vcombine.low %v10161, %v10168
        %v11211 = vunpack.c.l.s4 1983009808
        %v11212 = vunpack.c.0.s8 %v11211
        %v11213 = vlaneseq
        %v11214 = vshrl.u32 %v11213, 7
        %v11215 = vsub.s32 %v11212, %v11214
        %v11216 = vrot.slane %v11209, %v11215
        %v11217 = vcombine.low %v10171, %v10172
        %v11219 = vunpack.c.l.s4 1983009808
        %v11220 = vunpack.c.0.s8 %v11219
        %v11221 = vlaneseq
        %v11222 = vshrl.u32 %v11221, 7
        %v11223 = vsub.s32 %v11220, %v11222
        %v11224 = vrot.slane %v11217, %v11223
        %v11225 = vcombine.low %v11200, %v11208
        %v11226 = vcombine.high %v11200, %v11208
        %v11228 = vunpack.c.l.s4 1934713408
        %v11229 = vunpack.c.0.s8 %v11228
        %v11230 = vlaneseq
        %v11231 = vshrl.u32 %v11230, 7
        %v11232 = vsub.s32 %v11229, %v11231
        %v11233 = vrot.slane %v11225, %v11232
        %v11235 = vunpack.c.l.s4 1934713408
        %v11236 = vunpack.c.0.s8 %v11235
        %v11237 = vlaneseq
        %v11238 = vshrl.u32 %v11237, 7
        %v11239 = vsub.s32 %v11236, %v11238
        %v11240 = vrot.slane %v11226, %v11239
        %v11241 = vcombine.low %v11216, %v11224
        %v11242 = vcombine.high %v11216, %v11224
        %v11244 = vunpack.c.l.s4 1934713408
        %v11245 = vunpack.c.0.s8 %v11244
        %v11246 = vlaneseq
        %v11247 = vshrl.u32 %v11246, 7
        %v11248 = vsub.s32 %v11245, %v11247
        %v11249 = vrot.slane %v11241, %v11248
        %v11251 = vunpack.c.l.s4 1934713408
        %v11252 = vunpack.c.0.s8 %v11251
        %v11253 = vlaneseq
        %v11254 = vshrl.u32 %v11253, 7
        %v11255 = vsub.s32 %v11252, %v11254
        %v11256 = vrot.slane %v11242, %v11255
        %v11257 = vcombine.low %v11233, %v11249
        %v11258 = vcombine.high %v11233, %v11249
        %v11259 = vcombine.low %v11240, %v11256
        %v11260 = vcombine.high %v11240, %v11256
        %v11261 = vcombine.low %v10213, %v10220
        %v11263 = vunpack.c.l.s4 1983009808
        %v11264 = vunpack.c.0.s8 %v11263
        %v11265 = vlaneseq
        %v11266 = vshrl.u32 %v11265, 7
        %v11267 = vsub.s32 %v11264, %v11266
        %v11268 = vrot.slane %v11261, %v11267
        %v11269 = vcombine.low %v10237, %v10238
        %v11271 = vunpack.c.l.s4 1983009808
        %v11272 = vunpack.c.0.s8 %v11271
        %v11273 = vlaneseq
        %v11274 = vshrl.u32 %v11273, 7
        %v11275 = vsub.s32 %v11272, %v11274
        %v11276 = vrot.slane %v11269, %v11275
        %v11277 = vcombine.low %v10229, %v10236
        %v11279 = vunpack.c.l.s4 1983009808
        %v11280 = vunpack.c.0.s8 %v11279
        %v11281 = vlaneseq
        %v11282 = vshrl.u32 %v11281, 7
        %v11283 = vsub.s32 %v11280, %v11282
        %v11284 = vrot.slane %v11277, %v11283
        %v11285 = vcombine.low %v10239, %v10240
        %v11287 = vunpack.c.l.s4 1983009808
        %v11288 = vunpack.c.0.s8 %v11287
        %v11289 = vlaneseq
        %v11290 = vshrl.u32 %v11289, 7
        %v11291 = vsub.s32 %v11288, %v11290
        %v11292 = vrot.slane %v11285, %v11291
        %v11293 = vcombine.low %v11268, %v11276
        %v11294 = vcombine.high %v11268, %v11276
        %v11296 = vunpack.c.l.s4 1934713408
        %v11297 = vunpack.c.0.s8 %v11296
        %v11298 = vlaneseq
        %v11299 = vshrl.u32 %v11298, 7
        %v11300 = vsub.s32 %v11297, %v11299
        %v11301 = vrot.slane %v11293, %v11300
        %v11303 = vunpack.c.l.s4 1934713408
        %v11304 = vunpack.c.0.s8 %v11303
        %v11305 = vlaneseq
        %v11306 = vshrl.u32 %v11305, 7
        %v11307 = vsub.s32 %v11304, %v11306
        %v11308 = vrot.slane %v11294, %v11307
        %v11309 = vcombine.low %v11284, %v11292
        %v11310 = vcombine.high %v11284, %v11292
        %v11312 = vunpack.c.l.s4 1934713408
        %v11313 = vunpack.c.0.s8 %v11312
        %v11314 = vlaneseq
        %v11315 = vshrl.u32 %v11314, 7
        %v11316 = vsub.s32 %v11313, %v11315
        %v11317 = vrot.slane %v11309, %v11316
        %v11319 = vunpack.c.l.s4 1934713408
        %v11320 = vunpack.c.0.s8 %v11319
        %v11321 = vlaneseq
        %v11322 = vshrl.u32 %v11321, 7
        %v11323 = vsub.s32 %v11320, %v11322
        %v11324 = vrot.slane %v11310, %v11323
        %v11325 = vcombine.low %v11301, %v11317
        %v11326 = vcombine.high %v11301, %v11317
        %v11327 = vcombine.low %v11308, %v11324
        %v11328 = vcombine.high %v11308, %v11324
        %v11329 = vcombine.low %v10281, %v10288
        %v11331 = vunpack.c.l.s4 1983009808
        %v11332 = vunpack.c.0.s8 %v11331
        %v11333 = vlaneseq
        %v11334 = vshrl.u32 %v11333, 7
        %v11335 = vsub.s32 %v11332, %v11334
        %v11336 = vrot.slane %v11329, %v11335
        %v11337 = vcombine.low %v10305, %v10306
        %v11339 = vunpack.c.l.s4 1983009808
        %v11340 = vunpack.c.0.s8 %v11339
        %v11341 = vlaneseq
        %v11342 = vshrl.u32 %v11341, 7
        %v11343 = vsub.s32 %v11340, %v11342
        %v11344 = vrot.slane %v11337, %v11343
        %v11345 = vcombine.low %v10297, %v10304
        %v11347 = vunpack.c.l.s4 1983009808
        %v11348 = vunpack.c.0.s8 %v11347
        %v11349 = vlaneseq
        %v11350 = vshrl.u32 %v11349, 7
        %v11351 = vsub.s32 %v11348, %v11350
        %v11352 = vrot.slane %v11345, %v11351
        %v11353 = vcombine.low %v10307, %v10308
        %v11355 = vunpack.c.l.s4 1983009808
        %v11356 = vunpack.c.0.s8 %v11355
        %v11357 = vlaneseq
        %v11358 = vshrl.u32 %v11357, 7
        %v11359 = vsub.s32 %v11356, %v11358
        %v11360 = vrot.slane %v11353, %v11359
        %v11361 = vcombine.low %v11336, %v11344
        %v11362 = vcombine.high %v11336, %v11344
        %v11364 = vunpack.c.l.s4 1934713408
        %v11365 = vunpack.c.0.s8 %v11364
        %v11366 = vlaneseq
        %v11367 = vshrl.u32 %v11366, 7
        %v11368 = vsub.s32 %v11365, %v11367
        %v11369 = vrot.slane %v11361, %v11368
        %v11371 = vunpack.c.l.s4 1934713408
        %v11372 = vunpack.c.0.s8 %v11371
        %v11373 = vlaneseq
        %v11374 = vshrl.u32 %v11373, 7
        %v11375 = vsub.s32 %v11372, %v11374
        %v11376 = vrot.slane %v11362, %v11375
        %v11377 = vcombine.low %v11352, %v11360
        %v11378 = vcombine.high %v11352, %v11360
        %v11380 = vunpack.c.l.s4 1934713408
        %v11381 = vunpack.c.0.s8 %v11380
        %v11382 = vlaneseq
        %v11383 = vshrl.u32 %v11382, 7
        %v11384 = vsub.s32 %v11381, %v11383
        %v11385 = vrot.slane %v11377, %v11384
        %v11387 = vunpack.c.l.s4 1934713408
        %v11388 = vunpack.c.0.s8 %v11387
        %v11389 = vlaneseq
        %v11390 = vshrl.u32 %v11389, 7
        %v11391 = vsub.s32 %v11388, %v11390
        %v11392 = vrot.slane %v11378, %v11391
        %v11393 = vcombine.low %v11369, %v11385
        %v11394 = vcombine.high %v11369, %v11385
        %v11395 = vcombine.low %v11376, %v11392
        %v11396 = vcombine.high %v11376, %v11392
        %v11397 = vcombine.low %v10349, %v10356
        %v11399 = vunpack.c.l.s4 1983009808
        %v11400 = vunpack.c.0.s8 %v11399
        %v11401 = vlaneseq
        %v11402 = vshrl.u32 %v11401, 7
        %v11403 = vsub.s32 %v11400, %v11402
        %v11404 = vrot.slane %v11397, %v11403
        %v11405 = vcombine.low %v10373, %v10374
        %v11407 = vunpack.c.l.s4 1983009808
        %v11408 = vunpack.c.0.s8 %v11407
        %v11409 = vlaneseq
        %v11410 = vshrl.u32 %v11409, 7
        %v11411 = vsub.s32 %v11408, %v11410
        %v11412 = vrot.slane %v11405, %v11411
        %v11413 = vcombine.low %v10365, %v10372
        %v11415 = vunpack.c.l.s4 1983009808
        %v11416 = vunpack.c.0.s8 %v11415
        %v11417 = vlaneseq
        %v11418 = vshrl.u32 %v11417, 7
        %v11419 = vsub.s32 %v11416, %v11418
        %v11420 = vrot.slane %v11413, %v11419
        %v11421 = vcombine.low %v10375, %v10376
        %v11423 = vunpack.c.l.s4 1983009808
        %v11424 = vunpack.c.0.s8 %v11423
        %v11425 = vlaneseq
        %v11426 = vshrl.u32 %v11425, 7
        %v11427 = vsub.s32 %v11424, %v11426
        %v11428 = vrot.slane %v11421, %v11427
        %v11429 = vcombine.low %v11404, %v11412
        %v11430 = vcombine.high %v11404, %v11412
        %v11432 = vunpack.c.l.s4 1934713408
        %v11433 = vunpack.c.0.s8 %v11432
        %v11434 = vlaneseq
        %v11435 = vshrl.u32 %v11434, 7
        %v11436 = vsub.s32 %v11433, %v11435
        %v11437 = vrot.slane %v11429, %v11436
        %v11439 = vunpack.c.l.s4 1934713408
        %v11440 = vunpack.c.0.s8 %v11439
        %v11441 = vlaneseq
        %v11442 = vshrl.u32 %v11441, 7
        %v11443 = vsub.s32 %v11440, %v11442
        %v11444 = vrot.slane %v11430, %v11443
        %v11445 = vcombine.low %v11420, %v11428
        %v11446 = vcombine.high %v11420, %v11428
        %v11448 = vunpack.c.l.s4 1934713408
        %v11449 = vunpack.c.0.s8 %v11448
        %v11450 = vlaneseq
        %v11451 = vshrl.u32 %v11450, 7
        %v11452 = vsub.s32 %v11449, %v11451
        %v11453 = vrot.slane %v11445, %v11452
        %v11455 = vunpack.c.l.s4 1934713408
        %v11456 = vunpack.c.0.s8 %v11455
        %v11457 = vlaneseq
        %v11458 = vshrl.u32 %v11457, 7
        %v11459 = vsub.s32 %v11456, %v11458
        %v11460 = vrot.slane %v11446, %v11459
        %v11461 = vcombine.low %v11437, %v11453
        %v11462 = vcombine.high %v11437, %v11453
        %v11463 = vcombine.low %v11444, %v11460
        %v11464 = vcombine.high %v11444, %v11460
        %v11465 = vcombine.low %v10417, %v10424
        %v11467 = vunpack.c.l.s4 1983009808
        %v11468 = vunpack.c.0.s8 %v11467
        %v11469 = vlaneseq
        %v11470 = vshrl.u32 %v11469, 7
        %v11471 = vsub.s32 %v11468, %v11470
        %v11472 = vrot.slane %v11465, %v11471
        %v11473 = vcombine.low %v10441, %v10442
        %v11475 = vunpack.c.l.s4 1983009808
        %v11476 = vunpack.c.0.s8 %v11475
        %v11477 = vlaneseq
        %v11478 = vshrl.u32 %v11477, 7
        %v11479 = vsub.s32 %v11476, %v11478
        %v11480 = vrot.slane %v11473, %v11479
        %v11481 = vcombine.low %v10433, %v10440
        %v11483 = vunpack.c.l.s4 1983009808
        %v11484 = vunpack.c.0.s8 %v11483
        %v11485 = vlaneseq
        %v11486 = vshrl.u32 %v11485, 7
        %v11487 = vsub.s32 %v11484, %v11486
        %v11488 = vrot.slane %v11481, %v11487
        %v11489 = vcombine.low %v10443, %v10444
        %v11491 = vunpack.c.l.s4 1983009808
        %v11492 = vunpack.c.0.s8 %v11491
        %v11493 = vlaneseq
        %v11494 = vshrl.u32 %v11493, 7
        %v11495 = vsub.s32 %v11492, %v11494
        %v11496 = vrot.slane %v11489, %v11495
        %v11497 = vcombine.low %v11472, %v11480
        %v11498 = vcombine.high %v11472, %v11480
        %v11500 = vunpack.c.l.s4 1934713408
        %v11501 = vunpack.c.0.s8 %v11500
        %v11502 = vlaneseq
        %v11503 = vshrl.u32 %v11502, 7
        %v11504 = vsub.s32 %v11501, %v11503
        %v11505 = vrot.slane %v11497, %v11504
        %v11507 = vunpack.c.l.s4 1934713408
        %v11508 = vunpack.c.0.s8 %v11507
        %v11509 = vlaneseq
        %v11510 = vshrl.u32 %v11509, 7
        %v11511 = vsub.s32 %v11508, %v11510
        %v11512 = vrot.slane %v11498, %v11511
        %v11513 = vcombine.low %v11488, %v11496
        %v11514 = vcombine.high %v11488, %v11496
        %v11516 = vunpack.c.l.s4 1934713408
        %v11517 = vunpack.c.0.s8 %v11516
        %v11518 = vlaneseq
        %v11519 = vshrl.u32 %v11518, 7
        %v11520 = vsub.s32 %v11517, %v11519
        %v11521 = vrot.slane %v11513, %v11520
        %v11523 = vunpack.c.l.s4 1934713408
        %v11524 = vunpack.c.0.s8 %v11523
        %v11525 = vlaneseq
        %v11526 = vshrl.u32 %v11525, 7
        %v11527 = vsub.s32 %v11524, %v11526
        %v11528 = vrot.slane %v11514, %v11527
        %v11529 = vcombine.low %v11505, %v11521
        %v11530 = vcombine.high %v11505, %v11521
        %v11531 = vcombine.low %v11512, %v11528
        %v11532 = vcombine.high %v11512, %v11528
        %v11533 = vcombine.low %v10485, %v10492
        %v11535 = vunpack.c.l.s4 1983009808
        %v11536 = vunpack.c.0.s8 %v11535
        %v11537 = vlaneseq
        %v11538 = vshrl.u32 %v11537, 7
        %v11539 = vsub.s32 %v11536, %v11538
        %v11540 = vrot.slane %v11533, %v11539
        %v11541 = vcombine.low %v10509, %v10510
        %v11543 = vunpack.c.l.s4 1983009808
        %v11544 = vunpack.c.0.s8 %v11543
        %v11545 = vlaneseq
        %v11546 = vshrl.u32 %v11545, 7
        %v11547 = vsub.s32 %v11544, %v11546
        %v11548 = vrot.slane %v11541, %v11547
        %v11549 = vcombine.low %v10501, %v10508
        %v11551 = vunpack.c.l.s4 1983009808
        %v11552 = vunpack.c.0.s8 %v11551
        %v11553 = vlaneseq
        %v11554 = vshrl.u32 %v11553, 7
        %v11555 = vsub.s32 %v11552, %v11554
        %v11556 = vrot.slane %v11549, %v11555
        %v11557 = vcombine.low %v10511, %v10512
        %v11559 = vunpack.c.l.s4 1983009808
        %v11560 = vunpack.c.0.s8 %v11559
        %v11561 = vlaneseq
        %v11562 = vshrl.u32 %v11561, 7
        %v11563 = vsub.s32 %v11560, %v11562
        %v11564 = vrot.slane %v11557, %v11563
        %v11565 = vcombine.low %v11540, %v11548
        %v11566 = vcombine.high %v11540, %v11548
        %v11568 = vunpack.c.l.s4 1934713408
        %v11569 = vunpack.c.0.s8 %v11568
        %v11570 = vlaneseq
        %v11571 = vshrl.u32 %v11570, 7
        %v11572 = vsub.s32 %v11569, %v11571
        %v11573 = vrot.slane %v11565, %v11572
        %v11575 = vunpack.c.l.s4 1934713408
        %v11576 = vunpack.c.0.s8 %v11575
        %v11577 = vlaneseq
        %v11578 = vshrl.u32 %v11577, 7
        %v11579 = vsub.s32 %v11576, %v11578
        %v11580 = vrot.slane %v11566, %v11579
        %v11581 = vcombine.low %v11556, %v11564
        %v11582 = vcombine.high %v11556, %v11564
        %v11584 = vunpack.c.l.s4 1934713408
        %v11585 = vunpack.c.0.s8 %v11584
        %v11586 = vlaneseq
        %v11587 = vshrl.u32 %v11586, 7
        %v11588 = vsub.s32 %v11585, %v11587
        %v11589 = vrot.slane %v11581, %v11588
        %v11591 = vunpack.c.l.s4 1934713408
        %v11592 = vunpack.c.0.s8 %v11591
        %v11593 = vlaneseq
        %v11594 = vshrl.u32 %v11593, 7
        %v11595 = vsub.s32 %v11592, %v11594
        %v11596 = vrot.slane %v11582, %v11595
        %v11597 = vcombine.low %v11573, %v11589
        %v11598 = vcombine.high %v11573, %v11589
        %v11599 = vcombine.low %v11580, %v11596
        %v11600 = vcombine.high %v11580, %v11596
        %v11601 = vcombine.low %v10553, %v10560
        %v11603 = vunpack.c.l.s4 1983009808
        %v11604 = vunpack.c.0.s8 %v11603
        %v11605 = vlaneseq
        %v11606 = vshrl.u32 %v11605, 7
        %v11607 = vsub.s32 %v11604, %v11606
        %v11608 = vrot.slane %v11601, %v11607
        %v11609 = vcombine.low %v10577, %v10578
        %v11611 = vunpack.c.l.s4 1983009808
        %v11612 = vunpack.c.0.s8 %v11611
        %v11613 = vlaneseq
        %v11614 = vshrl.u32 %v11613, 7
        %v11615 = vsub.s32 %v11612, %v11614
        %v11616 = vrot.slane %v11609, %v11615
        %v11617 = vcombine.low %v10569, %v10576
        %v11619 = vunpack.c.l.s4 1983009808
        %v11620 = vunpack.c.0.s8 %v11619
        %v11621 = vlaneseq
        %v11622 = vshrl.u32 %v11621, 7
        %v11623 = vsub.s32 %v11620, %v11622
        %v11624 = vrot.slane %v11617, %v11623
        %v11625 = vcombine.low %v10579, %v10580
        %v11627 = vunpack.c.l.s4 1983009808
        %v11628 = vunpack.c.0.s8 %v11627
        %v11629 = vlaneseq
        %v11630 = vshrl.u32 %v11629, 7
        %v11631 = vsub.s32 %v11628, %v11630
        %v11632 = vrot.slane %v11625, %v11631
        %v11633 = vcombine.low %v11608, %v11616
        %v11634 = vcombine.high %v11608, %v11616
        %v11636 = vunpack.c.l.s4 1934713408
        %v11637 = vunpack.c.0.s8 %v11636
        %v11638 = vlaneseq
        %v11639 = vshrl.u32 %v11638, 7
        %v11640 = vsub.s32 %v11637, %v11639
        %v11641 = vrot.slane %v11633, %v11640
        %v11643 = vunpack.c.l.s4 1934713408
        %v11644 = vunpack.c.0.s8 %v11643
        %v11645 = vlaneseq
        %v11646 = vshrl.u32 %v11645, 7
        %v11647 = vsub.s32 %v11644, %v11646
        %v11648 = vrot.slane %v11634, %v11647
        %v11649 = vcombine.low %v11624, %v11632
        %v11650 = vcombine.high %v11624, %v11632
        %v11652 = vunpack.c.l.s4 1934713408
        %v11653 = vunpack.c.0.s8 %v11652
        %v11654 = vlaneseq
        %v11655 = vshrl.u32 %v11654, 7
        %v11656 = vsub.s32 %v11653, %v11655
        %v11657 = vrot.slane %v11649, %v11656
        %v11659 = vunpack.c.l.s4 1934713408
        %v11660 = vunpack.c.0.s8 %v11659
        %v11661 = vlaneseq
        %v11662 = vshrl.u32 %v11661, 7
        %v11663 = vsub.s32 %v11660, %v11662
        %v11664 = vrot.slane %v11650, %v11663
        %v11665 = vcombine.low %v11641, %v11657
        %v11666 = vcombine.high %v11641, %v11657
        %v11667 = vcombine.low %v11648, %v11664
        %v11668 = vcombine.high %v11648, %v11664
        %11685 = vrot.lane.b32.xlu0 %v10646, 32
        %v11686 = vpop.permute.xlu0 %11685
        %11687 = vrot.lane.b32.xlu0 %v10714, 32
        %v11688 = vpop.permute.xlu0 %11687
        %11689 = vrot.lane.b32.xlu0 %v10782, 32
        %v11690 = vpop.permute.xlu0 %11689
        %11691 = vrot.lane.b32.xlu0 %v10850, 32
        %v11692 = vpop.permute.xlu0 %11691
        %11693 = vrot.lane.b32.xlu0 %v10918, 32
        %v11694 = vpop.permute.xlu0 %11693
        %11695 = vrot.lane.b32.xlu0 %v10986, 32
        %v11696 = vpop.permute.xlu0 %11695
        %11697 = vrot.lane.b32.xlu0 %v11054, 32
        %v11698 = vpop.permute.xlu0 %11697
        %11699 = vrot.lane.b32.xlu0 %v11122, 32
        %v11700 = vpop.permute.xlu0 %11699
        %11701 = vrot.lane.b32.xlu0 %v11190, 32
        %v11702 = vpop.permute.xlu0 %11701
        %11703 = vrot.lane.b32.xlu0 %v11258, 32
        %v11704 = vpop.permute.xlu0 %11703
        %11705 = vrot.lane.b32.xlu0 %v11326, 32
        %v11706 = vpop.permute.xlu0 %11705
        %11707 = vrot.lane.b32.xlu0 %v11394, 32
        %v11708 = vpop.permute.xlu0 %11707
        %11709 = vrot.lane.b32.xlu0 %v11462, 32
        %v11710 = vpop.permute.xlu0 %11709
        %11711 = vrot.lane.b32.xlu0 %v11530, 32
        %v11712 = vpop.permute.xlu0 %11711
        %11713 = vrot.lane.b32.xlu0 %v11598, 32
        %v11714 = vpop.permute.xlu0 %11713
        %11715 = vrot.lane.b32.xlu0 %v11666, 32
        %v11716 = vpop.permute.xlu0 %11715
        %11749 = vrot.lane.b32.xlu0 %v10647, 64
        %v11750 = vpop.permute.xlu0 %11749
        %11751 = vrot.lane.b32.xlu0 %v10715, 64
        %v11752 = vpop.permute.xlu0 %11751
        %11753 = vrot.lane.b32.xlu0 %v10783, 64
        %v11754 = vpop.permute.xlu0 %11753
        %11755 = vrot.lane.b32.xlu0 %v10851, 64
        %v11756 = vpop.permute.xlu0 %11755
        %11757 = vrot.lane.b32.xlu0 %v10919, 64
        %v11758 = vpop.permute.xlu0 %11757
        %11759 = vrot.lane.b32.xlu0 %v10987, 64
        %v11760 = vpop.permute.xlu0 %11759
        %11761 = vrot.lane.b32.xlu0 %v11055, 64
        %v11762 = vpop.permute.xlu0 %11761
        %11763 = vrot.lane.b32.xlu0 %v11123, 64
        %v11764 = vpop.permute.xlu0 %11763
        %11765 = vrot.lane.b32.xlu0 %v11191, 64
        %v11766 = vpop.permute.xlu0 %11765
        %11767 = vrot.lane.b32.xlu0 %v11259, 64
        %v11768 = vpop.permute.xlu0 %11767
        %11769 = vrot.lane.b32.xlu0 %v11327, 64
        %v11770 = vpop.permute.xlu0 %11769
        %11771 = vrot.lane.b32.xlu0 %v11395, 64
        %v11772 = vpop.permute.xlu0 %11771
        %11773 = vrot.lane.b32.xlu0 %v11463, 64
        %v11774 = vpop.permute.xlu0 %11773
        %11775 = vrot.lane.b32.xlu0 %v11531, 64
        %v11776 = vpop.permute.xlu0 %11775
        %11777 = vrot.lane.b32.xlu0 %v11599, 64
        %v11778 = vpop.permute.xlu0 %11777
        %11779 = vrot.lane.b32.xlu0 %v11667, 64
        %v11780 = vpop.permute.xlu0 %11779
        %11813 = vrot.lane.b32.xlu0 %v10648, 96
        %v11814 = vpop.permute.xlu0 %11813
        %11815 = vrot.lane.b32.xlu0 %v10716, 96
        %v11816 = vpop.permute.xlu0 %11815
        %11817 = vrot.lane.b32.xlu0 %v10784, 96
        %v11818 = vpop.permute.xlu0 %11817
        %11819 = vrot.lane.b32.xlu0 %v10852, 96
        %v11820 = vpop.permute.xlu0 %11819
        %11821 = vrot.lane.b32.xlu0 %v10920, 96
        %v11822 = vpop.permute.xlu0 %11821
        %11823 = vrot.lane.b32.xlu0 %v10988, 96
        %v11824 = vpop.permute.xlu0 %11823
        %11825 = vrot.lane.b32.xlu0 %v11056, 96
        %v11826 = vpop.permute.xlu0 %11825
        %11827 = vrot.lane.b32.xlu0 %v11124, 96
        %v11828 = vpop.permute.xlu0 %11827
        %11829 = vrot.lane.b32.xlu0 %v11192, 96
        %v11830 = vpop.permute.xlu0 %11829
        %11831 = vrot.lane.b32.xlu0 %v11260, 96
        %v11832 = vpop.permute.xlu0 %11831
        %11833 = vrot.lane.b32.xlu0 %v11328, 96
        %v11834 = vpop.permute.xlu0 %11833
        %11835 = vrot.lane.b32.xlu0 %v11396, 96
        %v11836 = vpop.permute.xlu0 %11835
        %11837 = vrot.lane.b32.xlu0 %v11464, 96
        %v11838 = vpop.permute.xlu0 %11837
        %11839 = vrot.lane.b32.xlu0 %v11532, 96
        %v11840 = vpop.permute.xlu0 %11839
        %11841 = vrot.lane.b32.xlu0 %v11600, 96
        %v11842 = vpop.permute.xlu0 %11841
        %11843 = vrot.lane.b32.xlu0 %v11668, 96
        %v11844 = vpop.permute.xlu0 %11843
        %v11861 = vsel %vm7948, %v10645, %v11686
        %v11862 = vsel %vm7948, %v10713, %v11688
        %v11863 = vsel %vm7948, %v10781, %v11690
        %v11864 = vsel %vm7948, %v10849, %v11692
        %v11865 = vsel %vm7948, %v10917, %v11694
        %v11866 = vsel %vm7948, %v10985, %v11696
        %v11867 = vsel %vm7948, %v11053, %v11698
        %v11868 = vsel %vm7948, %v11121, %v11700
        %v11869 = vsel %vm7948, %v11189, %v11702
        %v11870 = vsel %vm7948, %v11257, %v11704
        %v11871 = vsel %vm7948, %v11325, %v11706
        %v11872 = vsel %vm7948, %v11393, %v11708
        %v11873 = vsel %vm7948, %v11461, %v11710
        %v11874 = vsel %vm7948, %v11529, %v11712
        %v11875 = vsel %vm7948, %v11597, %v11714
        %v11876 = vsel %vm7948, %v11665, %v11716
        %vm11877 = vcmask 523264
        %v11878 = vsel %vm11877, %v11861, %v11750
        %v11879 = vsel %vm11877, %v11862, %v11752
        %v11880 = vsel %vm11877, %v11863, %v11754
        %v11881 = vsel %vm11877, %v11864, %v11756
        %v11882 = vsel %vm11877, %v11865, %v11758
        %v11883 = vsel %vm11877, %v11866, %v11760
        %v11884 = vsel %vm11877, %v11867, %v11762
        %v11885 = vsel %vm11877, %v11868, %v11764
        %v11886 = vsel %vm11877, %v11869, %v11766
        %v11887 = vsel %vm11877, %v11870, %v11768
        %v11888 = vsel %vm11877, %v11871, %v11770
        %v11889 = vsel %vm11877, %v11872, %v11772
        %v11890 = vsel %vm11877, %v11873, %v11774
        %v11891 = vsel %vm11877, %v11874, %v11776
        %v11892 = vsel %vm11877, %v11875, %v11778
        %v11893 = vsel %vm11877, %v11876, %v11780
        %vm11894 = vcmask 785408
        %v11895 = vsel %vm11894, %v11878, %v11814
        %v11896 = vsel %vm11894, %v11879, %v11816
        %v11897 = vsel %vm11894, %v11880, %v11818
        %v11898 = vsel %vm11894, %v11881, %v11820
        %v11899 = vsel %vm11894, %v11882, %v11822
        %v11900 = vsel %vm11894, %v11883, %v11824
        %v11901 = vsel %vm11894, %v11884, %v11826
        %v11902 = vsel %vm11894, %v11885, %v11828
        %v11903 = vsel %vm11894, %v11886, %v11830
        %v11904 = vsel %vm11894, %v11887, %v11832
        %v11905 = vsel %vm11894, %v11888, %v11834
        %v11906 = vsel %vm11894, %v11889, %v11836
        %v11907 = vsel %vm11894, %v11890, %v11838
        %v11908 = vsel %vm11894, %v11891, %v11840
        %v11909 = vsel %vm11894, %v11892, %v11842
        %v11910 = vsel %vm11894, %v11893, %v11844
        %v11911 = vpack.c.bf16 %v11896, %v11895
        %v11912 = vpack.c.bf16 %v11898, %v11897
        %v11913 = vpack.c.bf16 %v11900, %v11899
        %v11914 = vpack.c.bf16 %v11902, %v11901
        %v11915 = vpack.c.bf16 %v11904, %v11903
        %v11916 = vpack.c.bf16 %v11906, %v11905
        %v11917 = vpack.c.bf16 %v11908, %v11907
        %v11918 = vpack.c.bf16 %v11910, %v11909
        %v11919 = vld [vmem:[#allocation7] sm:$0xf]
        %v11920 = vld [vmem:[#allocation7 + $0x4] sm:$0xf]
        %v11921 = vld [vmem:[#allocation7 + $0x8] sm:$0xf]
        %v11922 = vld [vmem:[#allocation7 + $0xc] sm:$0xf]
        %v11923 = vld [vmem:[#allocation7 + $0x10] sm:$0xf]
        %v11924 = vld [vmem:[#allocation7 + $0x14] sm:$0xf]
        %v11925 = vld [vmem:[#allocation7 + $0x18] sm:$0xf]
        %v11926 = vld [vmem:[#allocation7 + $0x1c] sm:$0xf]
        %v11927 = vld [vmem:[#allocation7 + $0x20] sm:$0xf]
        %v11928 = vld [vmem:[#allocation7 + $0x24] sm:$0xf]
        %v11929 = vld [vmem:[#allocation7 + $0x28] sm:$0xf]
        %v11930 = vld [vmem:[#allocation7 + $0x2c] sm:$0xf]
        %v11931 = vld [vmem:[#allocation7 + $0x30] sm:$0xf]
        %v11932 = vld [vmem:[#allocation7 + $0x34] sm:$0xf]
        %v11933 = vld [vmem:[#allocation7 + $0x38] sm:$0xf]
        %v11934 = vld [vmem:[#allocation7 + $0x3c] sm:$0xf]
        %v11935 = vld [vmem:[%s4] sm:$0x1]
        %v11937 = vlaneseq
        %v11938 = vshrl.u32 %v11937, 7
        %v11939 = vsub.s32 0, %v11938
        %v11940 = vrot.slane %v11935, %v11939
        %v11958 = vunpack.c.l.b16 %v11919
        %v11959 = vunpack.c.l.b16 %v11920
        %v11960 = vunpack.c.l.b16 %v11921
        %v11961 = vunpack.c.l.b16 %v11922
        %v11962 = vunpack.c.l.b16 %v11923
        %v11963 = vunpack.c.l.b16 %v11924
        %v11964 = vunpack.c.l.b16 %v11925
        %v11965 = vunpack.c.l.b16 %v11926
        %v11966 = vunpack.c.l.b16 %v11927
        %v11967 = vunpack.c.l.b16 %v11928
        %v11968 = vunpack.c.l.b16 %v11929
        %v11969 = vunpack.c.l.b16 %v11930
        %v11970 = vunpack.c.l.b16 %v11931
        %v11971 = vunpack.c.l.b16 %v11932
        %v11972 = vunpack.c.l.b16 %v11933
        %v11973 = vunpack.c.l.b16 %v11934
        %v11974 = vpack.c.b16 %v11959, %v11958
        %v11975 = vpack.c.b16 %v11961, %v11960
        %v11976 = vpack.c.b16 %v11963, %v11962
        %v11977 = vpack.c.b16 %v11965, %v11964
        %v11978 = vpack.c.b16 %v11967, %v11966
        %v11979 = vpack.c.b16 %v11969, %v11968
        %v11980 = vpack.c.b16 %v11971, %v11970
        %v11981 = vpack.c.b16 %v11973, %v11972
        %11990 = vmatprep.subr.bf16.mxu0 0
        %11991 = vmatpush1.bf16.msra.mxu0 %v11981
        %11992 = vmatprep.subr.bf16.mxu0 0
        %11993 = vmatpush1.bf16.msra.mxu0 %v11980
        %11994 = vmatprep.subr.bf16.mxu0 0
        %11995 = vmatpush1.bf16.msra.mxu0 %v11979
        %11996 = vmatprep.subr.bf16.mxu0 0
        %11997 = vmatpush1.bf16.msra.mxu0 %v11978
        %11998 = vmatprep.subr.bf16.mxu0 0
        %11999 = vmatpush1.bf16.msra.mxu0 %v11977
        %12000 = vmatprep.subr.bf16.mxu0 0
        %12001 = vmatpush1.bf16.msra.mxu0 %v11976
        %12002 = vmatprep.subr.bf16.mxu0 0
        %12003 = vmatpush1.bf16.msra.mxu0 %v11975
        %12004 = vmatprep.subr.bf16.mxu0 0
        %12005 = vmatpush1.bf16.msra.mxu0 %v11974
        %12006 = vmatprep.subr.bf16.mxu0 0
        %12007 = vmatpush2.bf16.msra.mxu0 0
        %12008 = vmatprep.subr.bf16.mxu0 0
        %12009 = vmatpush2.bf16.msra.mxu0 0
        %12010 = vmatprep.subr.bf16.mxu0 0
        %12011 = vmatpush2.bf16.msra.mxu0 0
        %12012 = vmatprep.subr.bf16.mxu0 0
        %12013 = vmatpush2.bf16.msra.mxu0 0
        %12014 = vmatprep.subr.bf16.mxu0 0
        %12015 = vmatpush2.bf16.msra.mxu0 0
        %12016 = vmatprep.subr.bf16.mxu0 0
        %12017 = vmatpush2.bf16.msra.mxu0 0
        %12018 = vmatprep.subr.bf16.mxu0 0
        %12019 = vmatpush2.bf16.msra.mxu0 0
        %12020 = vmatprep.subr.bf16.mxu0 0
        %12021 = vmatpush2.bf16.msra.mxu0 0
        %12022 = vmatprep.mubr.bf16.mxu0 0
        %12023 = vmatmul.mubr.bf16.gmra.mxu0 %v11911
        %v12024 = vpop.f32.mrf.mxu0
        %v12025 = vadd.f32 %v11940, %v12024
        %v12026 = vpop.f32.mrf.mxu0
        %v12027 = vpop.f32.mrf.mxu0
        %v12028 = vadd.f32 %v11940, %v12027
        %v12029 = vpop.f32.mrf.mxu0
        %12030 = vmatprep.mubr.bf16.mxu0 0
        %12031 = vmatmul.mubr.bf16.gmra.mxu0 %v11912
        %v12032 = vpop.f32.mrf.mxu0
        %v12033 = vadd.f32 %v11940, %v12032
        %v12034 = vpop.f32.mrf.mxu0
        %v12035 = vpop.f32.mrf.mxu0
        %v12036 = vadd.f32 %v11940, %v12035
        %v12037 = vpop.f32.mrf.mxu0
        %12038 = vmatprep.mubr.bf16.mxu0 0
        %12039 = vmatmul.mubr.bf16.gmra.mxu0 %v11913
        %v12040 = vpop.f32.mrf.mxu0
        %v12041 = vadd.f32 %v11940, %v12040
        %v12042 = vpop.f32.mrf.mxu0
        %v12043 = vpop.f32.mrf.mxu0
        %v12044 = vadd.f32 %v11940, %v12043
        %v12045 = vpop.f32.mrf.mxu0
        %12046 = vmatprep.mubr.bf16.mxu0 0
        %12047 = vmatmul.mubr.bf16.gmra.mxu0 %v11914
        %v12048 = vpop.f32.mrf.mxu0
        %v12049 = vadd.f32 %v11940, %v12048
        %v12050 = vpop.f32.mrf.mxu0
        %v12051 = vpop.f32.mrf.mxu0
        %v12052 = vadd.f32 %v11940, %v12051
        %v12053 = vpop.f32.mrf.mxu0
        %12054 = vmatprep.mubr.bf16.mxu0 0
        %12055 = vmatmul.mubr.bf16.gmra.mxu0 %v11915
        %v12056 = vpop.f32.mrf.mxu0
        %v12057 = vadd.f32 %v11940, %v12056
        %v12058 = vpop.f32.mrf.mxu0
        %v12059 = vpop.f32.mrf.mxu0
        %v12060 = vadd.f32 %v11940, %v12059
        %v12061 = vpop.f32.mrf.mxu0
        %12062 = vmatprep.mubr.bf16.mxu0 0
        %12063 = vmatmul.mubr.bf16.gmra.mxu0 %v11916
        %v12064 = vpop.f32.mrf.mxu0
        %v12065 = vadd.f32 %v11940, %v12064
        %v12066 = vpop.f32.mrf.mxu0
        %v12067 = vpop.f32.mrf.mxu0
        %v12068 = vadd.f32 %v11940, %v12067
        %v12069 = vpop.f32.mrf.mxu0
        %12070 = vmatprep.mubr.bf16.mxu0 0
        %12071 = vmatmul.mubr.bf16.gmra.mxu0 %v11917
        %v12072 = vpop.f32.mrf.mxu0
        %v12073 = vadd.f32 %v11940, %v12072
        %v12074 = vpop.f32.mrf.mxu0
        %v12075 = vpop.f32.mrf.mxu0
        %v12076 = vadd.f32 %v11940, %v12075
        %v12077 = vpop.f32.mrf.mxu0
        %12078 = vmatprep.mubr.bf16.mxu0 0
        %12079 = vmatmul.mubr.bf16.gmra.mxu0 %v11918
        %v12080 = vpop.f32.mrf.mxu0
        %v12081 = vadd.f32 %v11940, %v12080
        %v12082 = vpop.f32.mrf.mxu0
        %v12083 = vpop.f32.mrf.mxu0
        %v12084 = vadd.f32 %v11940, %v12083
        %v12085 = vpop.f32.mrf.mxu0
        %12086 = vdwg.mxu0
        %12087 = vst [vmem:[%s318] sm:$0xff] %v12025
        %12088 = vst [vmem:[%s318 + $0x8] sm:$0xff] %v12028
        %12089 = vst [vmem:[%s318 + $0x10] sm:$0xff] %v12033
        %12090 = vst [vmem:[%s318 + $0x18] sm:$0xff] %v12036
        %12091 = vst [vmem:[%s318 + $0x20] sm:$0xff] %v12041
        %12092 = vst [vmem:[%s318 + $0x28] sm:$0xff] %v12044
        %12093 = vst [vmem:[%s318 + $0x30] sm:$0xff] %v12049
        %12094 = vst [vmem:[%s318 + $0x38] sm:$0xff] %v12052
        %12095 = vst [vmem:[%s318 + $0x40] sm:$0xff] %v12057
        %12096 = vst [vmem:[%s318 + $0x48] sm:$0xff] %v12060
        %12097 = vst [vmem:[%s318 + $0x50] sm:$0xff] %v12065
        %12098 = vst [vmem:[%s318 + $0x58] sm:$0xff] %v12068
        %12099 = vst [vmem:[%s318 + $0x60] sm:$0xff] %v12073
        %12100 = vst [vmem:[%s318 + $0x68] sm:$0xff] %v12076
        %12101 = vst [vmem:[%s318 + $0x70] sm:$0xff] %v12081
        %12102 = vst [vmem:[%s318 + $0x78] sm:$0xff] %v12084
        %s12103 = sand.u32 %s160, 1
        %s12104 = scalar_lea.sflag [#allocation4], %s12103
        %s12105 = sand.u32 %s160, 1
        %s12106 = smul.addr %s12105, 128
        %s12107 = scalar_lea.vmem [#allocation8], %s12106
        %s12108 = sand.u32 %s188, 1
        %s12109 = scalar_lea.sflag [#allocation10], %s12108
        %s12110 = sand.u32 %s188, 1
        %s12111 = smul.addr %s12110, 512
        %s12112 = scalar_lea.vmem [#allocation9], %s12111
        // Predicated region
        $region53: #{tpu_custom_call.1} parent=39 // pred_check
          %p12113 = pneg %p170
        $region54: #{tpu_custom_call.1} parent=39 // pred_check_branch
          %12115 = sbr.rel (%p12113) target = $region56
        $region55: #{tpu_custom_call.1} parent=39 // pred_region
          %s12116 = smul.u32 16, %s33
          %s12118 = ssub.s32 2048, 2048
          %12119 = vsyncadd %s12104, %s12118
          %s12120 = smul.addr %s32, 16
          %s12121 = sadd.s32 %s12116, %s12120
          %s12122 = smul.addr %s12121, 128
          %s12123 = scalar_lea.hbm %s5, %s12122
          %s12124 = sshll.u32 %s12107, 4
          %s12125 = int_to_ptr.vmem [resolvable:$true] %s12124
          %12130 = dma.vmem_to_hbm [thread:$0]  %s12125, 2048, %s12123, %s12104, 128, 128, 8
        $region56: #{tpu_custom_call.1} parent=39 // pred_fallthru
          _
        // Predicated region
        $region57: #{tpu_custom_call.1} parent=39 // pred_check
          %p12131 = pneg %p198
        $region58: #{tpu_custom_call.1} parent=39 // pred_check_branch
          %12133 = sbr.rel (%p12131) target = $region60
        $region59: #{tpu_custom_call.1} parent=39 // pred_region
          %s12134 = smul.u32 16, %s33
          %s12136 = ssub.s32 8192, 8192
          %12137 = vsyncadd %s12109, %s12136
          %s12138 = smul.addr %s12134, 4
          %s12139 = smul.addr %s32, 64
          %s12140 = sadd.s32 %s12138, %s12139
          %s12141 = smul.addr %s12140, 128
          %s12142 = scalar_lea.hbm %s6, %s12141
          %s12143 = sshll.u32 %s12112, 4
          %s12144 = int_to_ptr.vmem [resolvable:$true] %s12143
          %12149 = dma.vmem_to_hbm [thread:$0]  %s12144, 8192, %s12142, %s12109, 512, 512, 32
        $region60: #{tpu_custom_call.1} parent=39 // pred_fallthru
          _
      $region40: #{tpu_custom_call.1} parent=5 // pred_fallthru
        _
      %p12150 = scmp.le.s32.totalorder 2, %s23
      // Predicated region
      $region61: #{tpu_custom_call.1} parent=5 // pred_check
        %p12151 = pneg %p12150
      $region62: #{tpu_custom_call.1} parent=5 // pred_check_branch
        %12153 = sbr.rel (%p12151) target = $region64
      $region63: #{tpu_custom_call.1} parent=5 // pred_region
        %s12154 = ssub.s32 %s23, 2
        // Predicated region
        $region65: #{tpu_custom_call.1} parent=63 // pred_check
          %p12155 = pneg %p176
        $region66: #{tpu_custom_call.1} parent=63 // pred_check_branch
          %12157 = sbr.rel (%p12155) target = $region68
        $region67: #{tpu_custom_call.1} parent=63 // pred_region
          %s12158 = sand.u32 %s161, 1
          %s12159 = scalar_lea.sflag [#allocation4], %s12158
          %s12160 = sand.u32 %s161, 1
          %s12161 = smul.addr %s12160, 128
          %s12162 = scalar_lea.vmem [#allocation8], %s12161
          %12163 = dma.done %s12159, 2048
        $region68: #{tpu_custom_call.1} parent=63 // pred_fallthru
          _
        // Predicated region
        $region69: #{tpu_custom_call.1} parent=63 // pred_check
          %p12164 = pneg %p204
        $region70: #{tpu_custom_call.1} parent=63 // pred_check_branch
          %12166 = sbr.rel (%p12164) target = $region72
        $region71: #{tpu_custom_call.1} parent=63 // pred_region
          %s12167 = sand.u32 %s189, 1
          %s12168 = scalar_lea.sflag [#allocation10], %s12167
          %s12169 = sand.u32 %s189, 1
          %s12170 = smul.addr %s12169, 512
          %s12171 = scalar_lea.vmem [#allocation9], %s12170
          %12172 = dma.done %s12168, 8192
        $region72: #{tpu_custom_call.1} parent=63 // pred_fallthru
          _
      $region64: #{tpu_custom_call.1} parent=5 // pred_fallthru
        _
    $region6: #{tpu_custom_call.1} parent=1 // loop_footer
      %s27 = sadd.s32 1, %s23
    $region7: #{tpu_custom_call.1} parent=1 // loop_footer_branch
      %22 = sbr.rel target = $region3
    $region8: #{tpu_custom_call.1} parent=1 // loop_exit
      _
    %12173 = vsyncpa [#allocation3], 1
    %s12174 = scalar_lea.sflag [#allocation3], 1
    %12175 = vsyncpa %s12174, 1
    %12176 = vsyncpa [#allocation6], 1
    %12177 = vsyncpa [#allocation4], 1
    %s12178 = scalar_lea.sflag [#allocation4], 1
    %12179 = vsyncpa %s12178, 1
    %12180 = vsyncpa [#allocation10], 1
    %s12181 = scalar_lea.sflag [#allocation10], 1
    %12182 = vsyncpa %s12181, 1

</llo_original>
